<compile_context>
chip_gen: v7x
topology: tpu7x:2x2x1
jax: 0.10.0
libtpu: 0.0.40
codegen_flags: <defaults>
</compile_context>

<pallas_src>
import functools

import jax
import jax.numpy as jnp
from jax import lax
from jax.experimental import pallas as pl
from jax.experimental.pallas import tpu as pltpu


# ---------------------------------------------------------------------------
# Pallas kernel: in-VMEM im2col + (BN-folded W @ patches) + shift + LeakyReLU
# ---------------------------------------------------------------------------
def _make_kernel(k, stride, cin, cout, ho, wo):
    def kernel(w_ref, shift_ref, x_ref, o_ref):
        # w_ref:     (Cout, Kd)              Kd ordered (kh, kw, c), BN scale folded
        # shift_ref: (Cout, 1)               folded BN/bias shift
        # x_ref:     (1, s*s, Hs, Cin, Ws)   stride-parity layout of padded image
        # o_ref:     (1, Cout, Ho, Wo)       NCHW output block
        acc = jnp.zeros((ho, cout, wo), jnp.float32)
        for kh in range(k):
            for kw in range(k):
                q = (kh % stride) * stride + (kw % stride)
                i0 = kh // stride
                j0 = kw // stride
                # im2col tap, built from VMEM with unit-stride slices only
                tap = x_ref[0, q, i0:i0 + ho, :, j0:j0 + wo]      # (Ho, Cin, Wo)
                col = (kh * k + kw) * cin
                wk = w_ref[:, col:col + cin]                       # (Cout, Cin)
                wk3 = jnp.broadcast_to(wk[None, :, :], (ho, cout, cin))
                # batched over Ho on the MXU: (Cout,Cin) @ (Cin,Wo) -> (Cout,Wo)
                acc = acc + lax.dot_general(
                    wk3, tap,
                    dimension_numbers=(((2,), (1,)), ((0,), (0,))),
                    preferred_element_type=jnp.float32)
        y = acc + shift_ref[...][None, :, :]           # (Ho,Cout,Wo) + (1,Cout,1)
        y = jnp.where(y > 0.0, y, 0.2 * y)             # LeakyReLU(0.2)
        for oh in range(ho):                           # write rows -> NCHW block
            o_ref[0, :, oh, :] = y[oh].astype(o_ref.dtype)
    return kernel


def _conv_bn_lrelu(x_par, w_perm, shift, *, k, stride, ho, wo):
    # x_par: (N, s*s, Hs, Cin, Ws)   w_perm: (Cout, Kd)   shift: (Cout, 1)
    N, Q, Hs, Cin, Ws = x_par.shape
    Cout, Kd = w_perm.shape

    kernel = _make_kernel(k, stride, Cin, Cout, ho, wo)

    cost = pl.CostEstimate(
        flops=2 * N * Cout * ho * wo * Kd,
        transcendentals=0,
        bytes_accessed=4 * (x_par.size + N * Cout * ho * wo + Cout * Kd + Cout),
    )

    return pl.pallas_call(
        kernel,
        out_shape=jax.ShapeDtypeStruct((N, Cout, ho, wo), jnp.float32),
        grid=(N,),
        in_specs=[
            pl.BlockSpec((Cout, Kd), lambda n: (0, 0)),
            pl.BlockSpec((Cout, 1), lambda n: (0, 0)),
            pl.BlockSpec((1, Q, Hs, Cin, Ws), lambda n: (n, 0, 0, 0, 0)),
        ],
        out_specs=pl.BlockSpec((1, Cout, ho, wo), lambda n: (n, 0, 0, 0)),
        compiler_params=pltpu.CompilerParams(
            dimension_semantics=("parallel",),
            vmem_limit_bytes=32 * 1024 * 1024),
        cost_estimate=cost,
    )(w_perm, shift, x_par)


# ---------------------------------------------------------------------------
# Wrapper-side re-layout: zero-pad and split rows/cols by stride-parity so that
# every im2col tap becomes a unit-stride window inside the kernel.
# x_par[n, rp*s+cp, i, c, j] == x_padded[n, c, s*i+rp, s*j+cp]
# ---------------------------------------------------------------------------
def _parity_decompose(x, k, stride, pad):
    N, C, H, W = x.shape
    Hp, Wp = H + 2 * pad, W + 2 * pad
    ho = (Hp - k) // stride + 1
    wo = (Wp - k) // stride + 1
    Hs = -(-Hp // stride)          # ceil(Hp / stride)
    Ws = -(-Wp // stride)
    xp = jnp.pad(x, ((0, 0), (0, 0),
                     (pad, stride * Hs - H - pad),
                     (pad, stride * Ws - W - pad)))
    x_par = xp.reshape(N, C, Hs, stride, Ws, stride)
    x_par = x_par.transpose(0, 3, 5, 2, 1, 4)               # (N, rp, cp, i, c, j)
    x_par = x_par.reshape(N, stride * stride, Hs, C, Ws)
    return x_par, ho, wo


@functools.partial(jax.jit, static_argnames=("k", "stride", "pad"))
def _forward(x, weight, bias, gamma, beta, mean, var, eps, *, k, stride, pad):
    cout = weight.shape[0]
    # Fold BN (eval mode) into the GEMM: scale into weight columns, shift as add.
    scale = gamma / jnp.sqrt(var + eps)
    shift = (beta + scale * (bias - mean)).reshape(cout, 1).astype(jnp.float32)
    # Kd column order (kh, kw, c) to match the kernel's tap ordering.
    w_perm = (weight * scale[:, None, None, None]).transpose(0, 2, 3, 1)
    w_perm = w_perm.reshape(cout, -1).astype(jnp.float32)

    x_par, ho, wo = _parity_decompose(x.astype(jnp.float32), k, stride, pad)
    return _conv_bn_lrelu(x_par, w_perm, shift, k=k, stride=stride, ho=ho, wo=wo)


# ---------------------------------------------------------------------------
# MakeFrom wrapper (forward(x) = s(x)) with s = Conv+BN(eval)+LeakyReLU block
# ---------------------------------------------------------------------------
class MakeFromPallas:
    def __init__(self, cin=4, cout=8, k=4, stride=2, pad=1, key=None):
        key = jax.random.PRNGKey(0) if key is None else key
        kw_, kg_ = jax.random.split(key, 2)
        # DCGAN-style init, deterministic
        self.weight = 0.02 * jax.random.normal(kw_, (cout, cin, k, k), jnp.float32)
        self.bias = jnp.zeros((cout,), jnp.float32)
        self.gamma = 1.0 + 0.02 * jax.random.normal(kg_, (cout,), jnp.float32)
        self.beta = jnp.zeros((cout,), jnp.float32)
        self.running_mean = jnp.zeros((cout,), jnp.float32)
        self.running_var = jnp.ones((cout,), jnp.float32)
        self.eps = 1e-5
        self.k, self.stride, self.pad = k, stride, pad
        self.cin, self.cout = cin, cout

    def __call__(self, x):
        # x: (N, Cin, H, W) float32 (NCHW, like PyTorch); returns NCHW directly.
        return _forward(x, self.weight, self.bias, self.gamma, self.beta,
                        self.running_mean, self.running_var, self.eps,
                        k=self.k, stride=self.stride, pad=self.pad)


def _reference(x, m: MakeFromPallas):
    y = lax.conv_general_dilated(
        x, m.weight, window_strides=(m.stride, m.stride),
        padding=((m.pad, m.pad), (m.pad, m.pad)),
        dimension_numbers=("NCHW", "OIHW", "NCHW"))
    y = y + m.bias[None, :, None, None]
    scale = m.gamma / jnp.sqrt(m.running_var + m.eps)
    y = (y - m.running_mean[None, :, None, None]) * scale[None, :, None, None] \
        + m.beta[None, :, None, None]
    return jnp.where(y > 0, y, 0.2 * y)


if __name__ == "__main__":
    key = jax.random.PRNGKey(0)
    kx, kp = jax.random.split(key)
    x = jax.random.normal(kx, (2, 4, 16, 16), jnp.float32)   # NCHW
    model = MakeFromPallas(cin=4, cout=8, k=4, stride=2, pad=1, key=kp)

    out = jax.block_until_ready(model(x))

    ref = _reference(x, model)
    assert out.shape == (2, 8, 8, 8), out.shape
    assert jnp.allclose(out, ref, atol=1e-4, rtol=1e-4), \
        float(jnp.max(jnp.abs(out - ref)))
    print("KERNEL_OK")
</pallas_src>

<mosaic_0001>
module attributes {stable_mosaic.version = 11 : i64} {
  func.func @kernel(%arg0: i32, %arg1: memref<8x64xf32, #tpu.memory_space<vmem>>, %arg2: memref<8x1xf32, #tpu.memory_space<vmem>>, %arg3: memref<1x4x9x4x9xf32, #tpu.memory_space<vmem>>, %arg4: memref<1x8x8x8xf32, #tpu.memory_space<vmem>>) attributes {dimension_semantics = [#tpu.dimension_semantics<parallel>], iteration_bounds = array<i64: 2>, scalar_prefetch = 0 : i64, scratch_operands = 0 : i64, tpu.core_type = #tpu.core_type<tc>, window_params = [{pipeline_mode = #tpu.pipeline_mode<synchronous>, transform_indices = @transform_0, window_bounds = array<i64: 8, 64>}, {pipeline_mode = #tpu.pipeline_mode<synchronous>, transform_indices = @transform_1, window_bounds = array<i64: 8, 1>}, {transform_indices = @transform_2, window_bounds = array<i64: 1, 4, 9, 4, 9>}, {transform_indices = @transform_3, window_bounds = array<i64: 1, 8, 8, 8>}]} {
    %cst = arith.constant 0.000000e+00 : f32
    %0 = vector.broadcast %cst : f32 to vector<8x8x8xf32>
    %c0 = arith.constant 0 : index
    %c0_0 = arith.constant 0 : index
    %c0_1 = arith.constant 0 : index
    %c0_2 = arith.constant 0 : index
    %c0_3 = arith.constant 0 : index
    %1 = vector.load %arg3[%c0, %c0_0, %c0_1, %c0_2, %c0_3] : memref<1x4x9x4x9xf32, #tpu.memory_space<vmem>>, vector<1x1x8x4x8xf32>
    %2 = vector.shape_cast %1 : vector<1x1x8x4x8xf32> to vector<8x4x8xf32>
    %c0_4 = arith.constant 0 : index
    %c0_5 = arith.constant 0 : index
    %3 = vector.load %arg1[%c0_4, %c0_5] : memref<8x64xf32, #tpu.memory_space<vmem>>, vector<8x4xf32>
    %4 = vector.shape_cast %3 : vector<8x4xf32> to vector<1x8x4xf32>
    %5 = vector.shape_cast %4 : vector<1x8x4xf32> to vector<1x8x4xf32>
    %6 = vector.broadcast %5 : vector<1x8x4xf32> to vector<8x8x4xf32>
    %cst_6 = arith.constant dense<0.000000e+00> : vector<8x8x8xf32>
    %7 = tpu.matmul %6, %2, %cst_6 {dimension_numbers = #tpu.dot_dimension_numbers<[2], [1], [1], [2], [0, 0, 0, 1, 1, 2], [0], [0]>} : vector<8x8x4xf32>, vector<8x4x8xf32>, vector<8x8x8xf32> -> vector<8x8x8xf32>
    %8 = arith.addf %0, %7 : vector<8x8x8xf32>
    %c0_7 = arith.constant 0 : index
    %c1 = arith.constant 1 : index
    %c0_8 = arith.constant 0 : index
    %c0_9 = arith.constant 0 : index
    %c0_10 = arith.constant 0 : index
    %9 = vector.load %arg3[%c0_7, %c1, %c0_8, %c0_9, %c0_10] : memref<1x4x9x4x9xf32, #tpu.memory_space<vmem>>, vector<1x1x8x4x8xf32>
    %10 = vector.shape_cast %9 : vector<1x1x8x4x8xf32> to vector<8x4x8xf32>
    %c0_11 = arith.constant 0 : index
    %c4 = arith.constant 4 : index
    %11 = vector.load %arg1[%c0_11, %c4] : memref<8x64xf32, #tpu.memory_space<vmem>>, vector<8x4xf32>
    %12 = vector.shape_cast %11 : vector<8x4xf32> to vector<1x8x4xf32>
    %13 = vector.shape_cast %12 : vector<1x8x4xf32> to vector<1x8x4xf32>
    %14 = vector.broadcast %13 : vector<1x8x4xf32> to vector<8x8x4xf32>
    %cst_12 = arith.constant dense<0.000000e+00> : vector<8x8x8xf32>
    %15 = tpu.matmul %14, %10, %cst_12 {dimension_numbers = #tpu.dot_dimension_numbers<[2], [1], [1], [2], [0, 0, 0, 1, 1, 2], [0], [0]>} : vector<8x8x4xf32>, vector<8x4x8xf32>, vector<8x8x8xf32> -> vector<8x8x8xf32>
    %16 = arith.addf %8, %15 : vector<8x8x8xf32>
    %c0_13 = arith.constant 0 : index
    %c0_14 = arith.constant 0 : index
    %c0_15 = arith.constant 0 : index
    %c0_16 = arith.constant 0 : index
    %c1_17 = arith.constant 1 : index
    %17 = vector.load %arg3[%c0_13, %c0_14, %c0_15, %c0_16, %c1_17] : memref<1x4x9x4x9xf32, #tpu.memory_space<vmem>>, vector<1x1x8x4x8xf32>
    %18 = vector.shape_cast %17 : vector<1x1x8x4x8xf32> to vector<8x4x8xf32>
    %c0_18 = arith.constant 0 : index
    %c8 = arith.constant 8 : index
    %19 = vector.load %arg1[%c0_18, %c8] : memref<8x64xf32, #tpu.memory_space<vmem>>, vector<8x4xf32>
    %20 = vector.shape_cast %19 : vector<8x4xf32> to vector<1x8x4xf32>
    %21 = vector.shape_cast %20 : vector<1x8x4xf32> to vector<1x8x4xf32>
    %22 = vector.broadcast %21 : vector<1x8x4xf32> to vector<8x8x4xf32>
    %cst_19 = arith.constant dense<0.000000e+00> : vector<8x8x8xf32>
    %23 = tpu.matmul %22, %18, %cst_19 {dimension_numbers = #tpu.dot_dimension_numbers<[2], [1], [1], [2], [0, 0, 0, 1, 1, 2], [0], [0]>} : vector<8x8x4xf32>, vector<8x4x8xf32>, vector<8x8x8xf32> -> vector<8x8x8xf32>
    %24 = arith.addf %16, %23 : vector<8x8x8xf32>
    %c0_20 = arith.constant 0 : index
    %c1_21 = arith.constant 1 : index
    %c0_22 = arith.constant 0 : index
    %c0_23 = arith.constant 0 : index
    %c1_24 = arith.constant 1 : index
    %25 = vector.load %arg3[%c0_20, %c1_21, %c0_22, %c0_23, %c1_24] : memref<1x4x9x4x9xf32, #tpu.memory_space<vmem>>, vector<1x1x8x4x8xf32>
    %26 = vector.shape_cast %25 : vector<1x1x8x4x8xf32> to vector<8x4x8xf32>
    %c0_25 = arith.constant 0 : index
    %c12 = arith.constant 12 : index
    %27 = vector.load %arg1[%c0_25, %c12] : memref<8x64xf32, #tpu.memory_space<vmem>>, vector<8x4xf32>
    %28 = vector.shape_cast %27 : vector<8x4xf32> to vector<1x8x4xf32>
    %29 = vector.shape_cast %28 : vector<1x8x4xf32> to vector<1x8x4xf32>
    %30 = vector.broadcast %29 : vector<1x8x4xf32> to vector<8x8x4xf32>
    %cst_26 = arith.constant dense<0.000000e+00> : vector<8x8x8xf32>
    %31 = tpu.matmul %30, %26, %cst_26 {dimension_numbers = #tpu.dot_dimension_numbers<[2], [1], [1], [2], [0, 0, 0, 1, 1, 2], [0], [0]>} : vector<8x8x4xf32>, vector<8x4x8xf32>, vector<8x8x8xf32> -> vector<8x8x8xf32>
    %32 = arith.addf %24, %31 : vector<8x8x8xf32>
    %c0_27 = arith.constant 0 : index
    %c2 = arith.constant 2 : index
    %c0_28 = arith.constant 0 : index
    %c0_29 = arith.constant 0 : index
    %c0_30 = arith.constant 0 : index
    %33 = vector.load %arg3[%c0_27, %c2, %c0_28, %c0_29, %c0_30] : memref<1x4x9x4x9xf32, #tpu.memory_space<vmem>>, vector<1x1x8x4x8xf32>
    %34 = vector.shape_cast %33 : vector<1x1x8x4x8xf32> to vector<8x4x8xf32>
    %c0_31 = arith.constant 0 : index
    %c16 = arith.constant 16 : index
    %35 = vector.load %arg1[%c0_31, %c16] : memref<8x64xf32, #tpu.memory_space<vmem>>, vector<8x4xf32>
    %36 = vector.shape_cast %35 : vector<8x4xf32> to vector<1x8x4xf32>
    %37 = vector.shape_cast %36 : vector<1x8x4xf32> to vector<1x8x4xf32>
    %38 = vector.broadcast %37 : vector<1x8x4xf32> to vector<8x8x4xf32>
    %cst_32 = arith.constant dense<0.000000e+00> : vector<8x8x8xf32>
    %39 = tpu.matmul %38, %34, %cst_32 {dimension_numbers = #tpu.dot_dimension_numbers<[2], [1], [1], [2], [0, 0, 0, 1, 1, 2], [0], [0]>} : vector<8x8x4xf32>, vector<8x4x8xf32>, vector<8x8x8xf32> -> vector<8x8x8xf32>
    %40 = arith.addf %32, %39 : vector<8x8x8xf32>
    %c0_33 = arith.constant 0 : index
    %c3 = arith.constant 3 : index
    %c0_34 = arith.constant 0 : index
    %c0_35 = arith.constant 0 : index
    %c0_36 = arith.constant 0 : index
    %41 = vector.load %arg3[%c0_33, %c3, %c0_34, %c0_35, %c0_36] : memref<1x4x9x4x9xf32, #tpu.memory_space<vmem>>, vector<1x1x8x4x8xf32>
    %42 = vector.shape_cast %41 : vector<1x1x8x4x8xf32> to vector<8x4x8xf32>
    %c0_37 = arith.constant 0 : index
    %c20 = arith.constant 20 : index
    %43 = vector.load %arg1[%c0_37, %c20] : memref<8x64xf32, #tpu.memory_space<vmem>>, vector<8x4xf32>
    %44 = vector.shape_cast %43 : vector<8x4xf32> to vector<1x8x4xf32>
    %45 = vector.shape_cast %44 : vector<1x8x4xf32> to vector<1x8x4xf32>
    %46 = vector.broadcast %45 : vector<1x8x4xf32> to vector<8x8x4xf32>
    %cst_38 = arith.constant dense<0.000000e+00> : vector<8x8x8xf32>
    %47 = tpu.matmul %46, %42, %cst_38 {dimension_numbers = #tpu.dot_dimension_numbers<[2], [1], [1], [2], [0, 0, 0, 1, 1, 2], [0], [0]>} : vector<8x8x4xf32>, vector<8x4x8xf32>, vector<8x8x8xf32> -> vector<8x8x8xf32>
    %48 = arith.addf %40, %47 : vector<8x8x8xf32>
    %c0_39 = arith.constant 0 : index
    %c2_40 = arith.constant 2 : index
    %c0_41 = arith.constant 0 : index
    %c0_42 = arith.constant 0 : index
    %c1_43 = arith.constant 1 : index
    %49 = vector.load %arg3[%c0_39, %c2_40, %c0_41, %c0_42, %c1_43] : memref<1x4x9x4x9xf32, #tpu.memory_space<vmem>>, vector<1x1x8x4x8xf32>
    %50 = vector.shape_cast %49 : vector<1x1x8x4x8xf32> to vector<8x4x8xf32>
    %c0_44 = arith.constant 0 : index
    %c24 = arith.constant 24 : index
    %51 = vector.load %arg1[%c0_44, %c24] : memref<8x64xf32, #tpu.memory_space<vmem>>, vector<8x4xf32>
    %52 = vector.shape_cast %51 : vector<8x4xf32> to vector<1x8x4xf32>
    %53 = vector.shape_cast %52 : vector<1x8x4xf32> to vector<1x8x4xf32>
    %54 = vector.broadcast %53 : vector<1x8x4xf32> to vector<8x8x4xf32>
    %cst_45 = arith.constant dense<0.000000e+00> : vector<8x8x8xf32>
    %55 = tpu.matmul %54, %50, %cst_45 {dimension_numbers = #tpu.dot_dimension_numbers<[2], [1], [1], [2], [0, 0, 0, 1, 1, 2], [0], [0]>} : vector<8x8x4xf32>, vector<8x4x8xf32>, vector<8x8x8xf32> -> vector<8x8x8xf32>
    %56 = arith.addf %48, %55 : vector<8x8x8xf32>
    %c0_46 = arith.constant 0 : index
    %c3_47 = arith.constant 3 : index
    %c0_48 = arith.constant 0 : index
    %c0_49 = arith.constant 0 : index
    %c1_50 = arith.constant 1 : index
    %57 = vector.load %arg3[%c0_46, %c3_47, %c0_48, %c0_49, %c1_50] : memref<1x4x9x4x9xf32, #tpu.memory_space<vmem>>, vector<1x1x8x4x8xf32>
    %58 = vector.shape_cast %57 : vector<1x1x8x4x8xf32> to vector<8x4x8xf32>
    %c0_51 = arith.constant 0 : index
    %c28 = arith.constant 28 : index
    %59 = vector.load %arg1[%c0_51, %c28] : memref<8x64xf32, #tpu.memory_space<vmem>>, vector<8x4xf32>
    %60 = vector.shape_cast %59 : vector<8x4xf32> to vector<1x8x4xf32>
    %61 = vector.shape_cast %60 : vector<1x8x4xf32> to vector<1x8x4xf32>
    %62 = vector.broadcast %61 : vector<1x8x4xf32> to vector<8x8x4xf32>
    %cst_52 = arith.constant dense<0.000000e+00> : vector<8x8x8xf32>
    %63 = tpu.matmul %62, %58, %cst_52 {dimension_numbers = #tpu.dot_dimension_numbers<[2], [1], [1], [2], [0, 0, 0, 1, 1, 2], [0], [0]>} : vector<8x8x4xf32>, vector<8x4x8xf32>, vector<8x8x8xf32> -> vector<8x8x8xf32>
    %64 = arith.addf %56, %63 : vector<8x8x8xf32>
    %c0_53 = arith.constant 0 : index
    %c0_54 = arith.constant 0 : index
    %c1_55 = arith.constant 1 : index
    %c0_56 = arith.constant 0 : index
    %c0_57 = arith.constant 0 : index
    %65 = vector.load %arg3[%c0_53, %c0_54, %c1_55, %c0_56, %c0_57] : memref<1x4x9x4x9xf32, #tpu.memory_space<vmem>>, vector<1x1x8x4x8xf32>
    %66 = vector.shape_cast %65 : vector<1x1x8x4x8xf32> to vector<8x4x8xf32>
    %c0_58 = arith.constant 0 : index
    %c32 = arith.constant 32 : index
    %67 = vector.load %arg1[%c0_58, %c32] : memref<8x64xf32, #tpu.memory_space<vmem>>, vector<8x4xf32>
    %68 = vector.shape_cast %67 : vector<8x4xf32> to vector<1x8x4xf32>
    %69 = vector.shape_cast %68 : vector<1x8x4xf32> to vector<1x8x4xf32>
    %70 = vector.broadcast %69 : vector<1x8x4xf32> to vector<8x8x4xf32>
    %cst_59 = arith.constant dense<0.000000e+00> : vector<8x8x8xf32>
    %71 = tpu.matmul %70, %66, %cst_59 {dimension_numbers = #tpu.dot_dimension_numbers<[2], [1], [1], [2], [0, 0, 0, 1, 1, 2], [0], [0]>} : vector<8x8x4xf32>, vector<8x4x8xf32>, vector<8x8x8xf32> -> vector<8x8x8xf32>
    %72 = arith.addf %64, %71 : vector<8x8x8xf32>
    %c0_60 = arith.constant 0 : index
    %c1_61 = arith.constant 1 : index
    %c1_62 = arith.constant 1 : index
    %c0_63 = arith.constant 0 : index
    %c0_64 = arith.constant 0 : index
    %73 = vector.load %arg3[%c0_60, %c1_61, %c1_62, %c0_63, %c0_64] : memref<1x4x9x4x9xf32, #tpu.memory_space<vmem>>, vector<1x1x8x4x8xf32>
    %74 = vector.shape_cast %73 : vector<1x1x8x4x8xf32> to vector<8x4x8xf32>
    %c0_65 = arith.constant 0 : index
    %c36 = arith.constant 36 : index
    %75 = vector.load %arg1[%c0_65, %c36] : memref<8x64xf32, #tpu.memory_space<vmem>>, vector<8x4xf32>
    %76 = vector.shape_cast %75 : vector<8x4xf32> to vector<1x8x4xf32>
    %77 = vector.shape_cast %76 : vector<1x8x4xf32> to vector<1x8x4xf32>
    %78 = vector.broadcast %77 : vector<1x8x4xf32> to vector<8x8x4xf32>
    %cst_66 = arith.constant dense<0.000000e+00> : vector<8x8x8xf32>
    %79 = tpu.matmul %78, %74, %cst_66 {dimension_numbers = #tpu.dot_dimension_numbers<[2], [1], [1], [2], [0, 0, 0, 1, 1, 2], [0], [0]>} : vector<8x8x4xf32>, vector<8x4x8xf32>, vector<8x8x8xf32> -> vector<8x8x8xf32>
    %80 = arith.addf %72, %79 : vector<8x8x8xf32>
    %c0_67 = arith.constant 0 : index
    %c0_68 = arith.constant 0 : index
    %c1_69 = arith.constant 1 : index
    %c0_70 = arith.constant 0 : index
    %c1_71 = arith.constant 1 : index
    %81 = vector.load %arg3[%c0_67, %c0_68, %c1_69, %c0_70, %c1_71] : memref<1x4x9x4x9xf32, #tpu.memory_space<vmem>>, vector<1x1x8x4x8xf32>
    %82 = vector.shape_cast %81 : vector<1x1x8x4x8xf32> to vector<8x4x8xf32>
    %c0_72 = arith.constant 0 : index
    %c40 = arith.constant 40 : index
    %83 = vector.load %arg1[%c0_72, %c40] : memref<8x64xf32, #tpu.memory_space<vmem>>, vector<8x4xf32>
    %84 = vector.shape_cast %83 : vector<8x4xf32> to vector<1x8x4xf32>
    %85 = vector.shape_cast %84 : vector<1x8x4xf32> to vector<1x8x4xf32>
    %86 = vector.broadcast %85 : vector<1x8x4xf32> to vector<8x8x4xf32>
    %cst_73 = arith.constant dense<0.000000e+00> : vector<8x8x8xf32>
    %87 = tpu.matmul %86, %82, %cst_73 {dimension_numbers = #tpu.dot_dimension_numbers<[2], [1], [1], [2], [0, 0, 0, 1, 1, 2], [0], [0]>} : vector<8x8x4xf32>, vector<8x4x8xf32>, vector<8x8x8xf32> -> vector<8x8x8xf32>
    %88 = arith.addf %80, %87 : vector<8x8x8xf32>
    %c0_74 = arith.constant 0 : index
    %c1_75 = arith.constant 1 : index
    %c1_76 = arith.constant 1 : index
    %c0_77 = arith.constant 0 : index
    %c1_78 = arith.constant 1 : index
    %89 = vector.load %arg3[%c0_74, %c1_75, %c1_76, %c0_77, %c1_78] : memref<1x4x9x4x9xf32, #tpu.memory_space<vmem>>, vector<1x1x8x4x8xf32>
    %90 = vector.shape_cast %89 : vector<1x1x8x4x8xf32> to vector<8x4x8xf32>
    %c0_79 = arith.constant 0 : index
    %c44 = arith.constant 44 : index
    %91 = vector.load %arg1[%c0_79, %c44] : memref<8x64xf32, #tpu.memory_space<vmem>>, vector<8x4xf32>
    %92 = vector.shape_cast %91 : vector<8x4xf32> to vector<1x8x4xf32>
    %93 = vector.shape_cast %92 : vector<1x8x4xf32> to vector<1x8x4xf32>
    %94 = vector.broadcast %93 : vector<1x8x4xf32> to vector<8x8x4xf32>
    %cst_80 = arith.constant dense<0.000000e+00> : vector<8x8x8xf32>
    %95 = tpu.matmul %94, %90, %cst_80 {dimension_numbers = #tpu.dot_dimension_numbers<[2], [1], [1], [2], [0, 0, 0, 1, 1, 2], [0], [0]>} : vector<8x8x4xf32>, vector<8x4x8xf32>, vector<8x8x8xf32> -> vector<8x8x8xf32>
    %96 = arith.addf %88, %95 : vector<8x8x8xf32>
    %c0_81 = arith.constant 0 : index
    %c2_82 = arith.constant 2 : index
    %c1_83 = arith.constant 1 : index
    %c0_84 = arith.constant 0 : index
    %c0_85 = arith.constant 0 : index
    %97 = vector.load %arg3[%c0_81, %c2_82, %c1_83, %c0_84, %c0_85] : memref<1x4x9x4x9xf32, #tpu.memory_space<vmem>>, vector<1x1x8x4x8xf32>
    %98 = vector.shape_cast %97 : vector<1x1x8x4x8xf32> to vector<8x4x8xf32>
    %c0_86 = arith.constant 0 : index
    %c48 = arith.constant 48 : index
    %99 = vector.load %arg1[%c0_86, %c48] : memref<8x64xf32, #tpu.memory_space<vmem>>, vector<8x4xf32>
    %100 = vector.shape_cast %99 : vector<8x4xf32> to vector<1x8x4xf32>
    %101 = vector.shape_cast %100 : vector<1x8x4xf32> to vector<1x8x4xf32>
    %102 = vector.broadcast %101 : vector<1x8x4xf32> to vector<8x8x4xf32>
    %cst_87 = arith.constant dense<0.000000e+00> : vector<8x8x8xf32>
    %103 = tpu.matmul %102, %98, %cst_87 {dimension_numbers = #tpu.dot_dimension_numbers<[2], [1], [1], [2], [0, 0, 0, 1, 1, 2], [0], [0]>} : vector<8x8x4xf32>, vector<8x4x8xf32>, vector<8x8x8xf32> -> vector<8x8x8xf32>
    %104 = arith.addf %96, %103 : vector<8x8x8xf32>
    %c0_88 = arith.constant 0 : index
    %c3_89 = arith.constant 3 : index
    %c1_90 = arith.constant 1 : index
    %c0_91 = arith.constant 0 : index
    %c0_92 = arith.constant 0 : index
    %105 = vector.load %arg3[%c0_88, %c3_89, %c1_90, %c0_91, %c0_92] : memref<1x4x9x4x9xf32, #tpu.memory_space<vmem>>, vector<1x1x8x4x8xf32>
    %106 = vector.shape_cast %105 : vector<1x1x8x4x8xf32> to vector<8x4x8xf32>
    %c0_93 = arith.constant 0 : index
    %c52 = arith.constant 52 : index
    %107 = vector.load %arg1[%c0_93, %c52] : memref<8x64xf32, #tpu.memory_space<vmem>>, vector<8x4xf32>
    %108 = vector.shape_cast %107 : vector<8x4xf32> to vector<1x8x4xf32>
    %109 = vector.shape_cast %108 : vector<1x8x4xf32> to vector<1x8x4xf32>
    %110 = vector.broadcast %109 : vector<1x8x4xf32> to vector<8x8x4xf32>
    %cst_94 = arith.constant dense<0.000000e+00> : vector<8x8x8xf32>
    %111 = tpu.matmul %110, %106, %cst_94 {dimension_numbers = #tpu.dot_dimension_numbers<[2], [1], [1], [2], [0, 0, 0, 1, 1, 2], [0], [0]>} : vector<8x8x4xf32>, vector<8x4x8xf32>, vector<8x8x8xf32> -> vector<8x8x8xf32>
    %112 = arith.addf %104, %111 : vector<8x8x8xf32>
    %c0_95 = arith.constant 0 : index
    %c2_96 = arith.constant 2 : index
    %c1_97 = arith.constant 1 : index
    %c0_98 = arith.constant 0 : index
    %c1_99 = arith.constant 1 : index
    %113 = vector.load %arg3[%c0_95, %c2_96, %c1_97, %c0_98, %c1_99] : memref<1x4x9x4x9xf32, #tpu.memory_space<vmem>>, vector<1x1x8x4x8xf32>
    %114 = vector.shape_cast %113 : vector<1x1x8x4x8xf32> to vector<8x4x8xf32>
    %c0_100 = arith.constant 0 : index
    %c56 = arith.constant 56 : index
    %115 = vector.load %arg1[%c0_100, %c56] : memref<8x64xf32, #tpu.memory_space<vmem>>, vector<8x4xf32>
    %116 = vector.shape_cast %115 : vector<8x4xf32> to vector<1x8x4xf32>
    %117 = vector.shape_cast %116 : vector<1x8x4xf32> to vector<1x8x4xf32>
    %118 = vector.broadcast %117 : vector<1x8x4xf32> to vector<8x8x4xf32>
    %cst_101 = arith.constant dense<0.000000e+00> : vector<8x8x8xf32>
    %119 = tpu.matmul %118, %114, %cst_101 {dimension_numbers = #tpu.dot_dimension_numbers<[2], [1], [1], [2], [0, 0, 0, 1, 1, 2], [0], [0]>} : vector<8x8x4xf32>, vector<8x4x8xf32>, vector<8x8x8xf32> -> vector<8x8x8xf32>
    %120 = arith.addf %112, %119 : vector<8x8x8xf32>
    %c0_102 = arith.constant 0 : index
    %c3_103 = arith.constant 3 : index
    %c1_104 = arith.constant 1 : index
    %c0_105 = arith.constant 0 : index
    %c1_106 = arith.constant 1 : index
    %121 = vector.load %arg3[%c0_102, %c3_103, %c1_104, %c0_105, %c1_106] : memref<1x4x9x4x9xf32, #tpu.memory_space<vmem>>, vector<1x1x8x4x8xf32>
    %122 = vector.shape_cast %121 : vector<1x1x8x4x8xf32> to vector<8x4x8xf32>
    %c0_107 = arith.constant 0 : index
    %c60 = arith.constant 60 : index
    %123 = vector.load %arg1[%c0_107, %c60] : memref<8x64xf32, #tpu.memory_space<vmem>>, vector<8x4xf32>
    %124 = vector.shape_cast %123 : vector<8x4xf32> to vector<1x8x4xf32>
    %125 = vector.shape_cast %124 : vector<1x8x4xf32> to vector<1x8x4xf32>
    %126 = vector.broadcast %125 : vector<1x8x4xf32> to vector<8x8x4xf32>
    %cst_108 = arith.constant dense<0.000000e+00> : vector<8x8x8xf32>
    %127 = tpu.matmul %126, %122, %cst_108 {dimension_numbers = #tpu.dot_dimension_numbers<[2], [1], [1], [2], [0, 0, 0, 1, 1, 2], [0], [0]>} : vector<8x8x4xf32>, vector<8x4x8xf32>, vector<8x8x8xf32> -> vector<8x8x8xf32>
    %128 = arith.addf %120, %127 : vector<8x8x8xf32>
    %c0_109 = arith.constant 0 : index
    %c0_110 = arith.constant 0 : index
    %129 = vector.load %arg2[%c0_109, %c0_110] : memref<8x1xf32, #tpu.memory_space<vmem>>, vector<8x1xf32>
    %130 = vector.shape_cast %129 : vector<8x1xf32> to vector<1x8x1xf32>
    %131 = vector.broadcast %130 : vector<1x8x1xf32> to vector<8x8x8xf32>
    %132 = arith.addf %128, %131 : vector<8x8x8xf32>
    %cst_111 = arith.constant 0.000000e+00 : f32
    %133 = vector.broadcast %cst_111 : f32 to vector<8x8x8xf32>
    %134 = arith.cmpf ogt, %132, %133 : vector<8x8x8xf32>
    %cst_112 = arith.constant 2.000000e-01 : f32
    %135 = vector.broadcast %cst_112 : f32 to vector<8x8x8xf32>
    %136 = arith.mulf %135, %132 : vector<8x8x8xf32>
    %137 = arith.select %134, %132, %136 : vector<8x8x8xi1>, vector<8x8x8xf32>
    %138 = vector.extract_strided_slice %137 {offsets = [0, 0, 0], sizes = [1, 8, 8], strides = [1, 1, 1]} : vector<8x8x8xf32> to vector<1x8x8xf32>
    %139 = vector.shape_cast %138 : vector<1x8x8xf32> to vector<8x8xf32>
    %c0_113 = arith.constant 0 : index
    %c0_114 = arith.constant 0 : index
    %c0_115 = arith.constant 0 : index
    %c0_116 = arith.constant 0 : index
    %140 = vector.load %arg4[%c0_113, %c0_114, %c0_115, %c0_116] : memref<1x8x8x8xf32, #tpu.memory_space<vmem>>, vector<1x8x1x8xf32>
    %141 = vector.shape_cast %140 : vector<1x8x1x8xf32> to vector<8x8xf32>
    %142 = vector.shape_cast %139 : vector<8x8xf32> to vector<1x8x1x8xf32>
    tpu.vector_store %arg4[%c0_113, %c0_114, %c0_115, %c0_116], %142 {strides = array<i32>} : memref<1x8x8x8xf32, #tpu.memory_space<vmem>>, vector<1x8x1x8xf32>,
    %143 = vector.extract_strided_slice %137 {offsets = [1, 0, 0], sizes = [1, 8, 8], strides = [1, 1, 1]} : vector<8x8x8xf32> to vector<1x8x8xf32>
    %144 = vector.shape_cast %143 : vector<1x8x8xf32> to vector<8x8xf32>
    %c0_117 = arith.constant 0 : index
    %c0_118 = arith.constant 0 : index
    %c1_119 = arith.constant 1 : index
    %c0_120 = arith.constant 0 : index
    %145 = vector.load %arg4[%c0_117, %c0_118, %c1_119, %c0_120] : memref<1x8x8x8xf32, #tpu.memory_space<vmem>>, vector<1x8x1x8xf32>
    %146 = vector.shape_cast %145 : vector<1x8x1x8xf32> to vector<8x8xf32>
    %147 = vector.shape_cast %144 : vector<8x8xf32> to vector<1x8x1x8xf32>
    tpu.vector_store %arg4[%c0_117, %c0_118, %c1_119, %c0_120], %147 {strides = array<i32>} : memref<1x8x8x8xf32, #tpu.memory_space<vmem>>, vector<1x8x1x8xf32>,
    %148 = vector.extract_strided_slice %137 {offsets = [2, 0, 0], sizes = [1, 8, 8], strides = [1, 1, 1]} : vector<8x8x8xf32> to vector<1x8x8xf32>
    %149 = vector.shape_cast %148 : vector<1x8x8xf32> to vector<8x8xf32>
    %c0_121 = arith.constant 0 : index
    %c0_122 = arith.constant 0 : index
    %c2_123 = arith.constant 2 : index
    %c0_124 = arith.constant 0 : index
    %150 = vector.load %arg4[%c0_121, %c0_122, %c2_123, %c0_124] : memref<1x8x8x8xf32, #tpu.memory_space<vmem>>, vector<1x8x1x8xf32>
    %151 = vector.shape_cast %150 : vector<1x8x1x8xf32> to vector<8x8xf32>
    %152 = vector.shape_cast %149 : vector<8x8xf32> to vector<1x8x1x8xf32>
    tpu.vector_store %arg4[%c0_121, %c0_122, %c2_123, %c0_124], %152 {strides = array<i32>} : memref<1x8x8x8xf32, #tpu.memory_space<vmem>>, vector<1x8x1x8xf32>,
    %153 = vector.extract_strided_slice %137 {offsets = [3, 0, 0], sizes = [1, 8, 8], strides = [1, 1, 1]} : vector<8x8x8xf32> to vector<1x8x8xf32>
    %154 = vector.shape_cast %153 : vector<1x8x8xf32> to vector<8x8xf32>
    %c0_125 = arith.constant 0 : index
    %c0_126 = arith.constant 0 : index
    %c3_127 = arith.constant 3 : index
    %c0_128 = arith.constant 0 : index
    %155 = vector.load %arg4[%c0_125, %c0_126, %c3_127, %c0_128] : memref<1x8x8x8xf32, #tpu.memory_space<vmem>>, vector<1x8x1x8xf32>
    %156 = vector.shape_cast %155 : vector<1x8x1x8xf32> to vector<8x8xf32>
    %157 = vector.shape_cast %154 : vector<8x8xf32> to vector<1x8x1x8xf32>
    tpu.vector_store %arg4[%c0_125, %c0_126, %c3_127, %c0_128], %157 {strides = array<i32>} : memref<1x8x8x8xf32, #tpu.memory_space<vmem>>, vector<1x8x1x8xf32>,
    %158 = vector.extract_strided_slice %137 {offsets = [4, 0, 0], sizes = [1, 8, 8], strides = [1, 1, 1]} : vector<8x8x8xf32> to vector<1x8x8xf32>
    %159 = vector.shape_cast %158 : vector<1x8x8xf32> to vector<8x8xf32>
    %c0_129 = arith.constant 0 : index
    %c0_130 = arith.constant 0 : index
    %c4_131 = arith.constant 4 : index
    %c0_132 = arith.constant 0 : index
    %160 = vector.load %arg4[%c0_129, %c0_130, %c4_131, %c0_132] : memref<1x8x8x8xf32, #tpu.memory_space<vmem>>, vector<1x8x1x8xf32>
    %161 = vector.shape_cast %160 : vector<1x8x1x8xf32> to vector<8x8xf32>
    %162 = vector.shape_cast %159 : vector<8x8xf32> to vector<1x8x1x8xf32>
    tpu.vector_store %arg4[%c0_129, %c0_130, %c4_131, %c0_132], %162 {strides = array<i32>} : memref<1x8x8x8xf32, #tpu.memory_space<vmem>>, vector<1x8x1x8xf32>,
    %163 = vector.extract_strided_slice %137 {offsets = [5, 0, 0], sizes = [1, 8, 8], strides = [1, 1, 1]} : vector<8x8x8xf32> to vector<1x8x8xf32>
    %164 = vector.shape_cast %163 : vector<1x8x8xf32> to vector<8x8xf32>
    %c0_133 = arith.constant 0 : index
    %c0_134 = arith.constant 0 : index
    %c5 = arith.constant 5 : index
    %c0_135 = arith.constant 0 : index
    %165 = vector.load %arg4[%c0_133, %c0_134, %c5, %c0_135] : memref<1x8x8x8xf32, #tpu.memory_space<vmem>>, vector<1x8x1x8xf32>
    %166 = vector.shape_cast %165 : vector<1x8x1x8xf32> to vector<8x8xf32>
    %167 = vector.shape_cast %164 : vector<8x8xf32> to vector<1x8x1x8xf32>
    tpu.vector_store %arg4[%c0_133, %c0_134, %c5, %c0_135], %167 {strides = array<i32>} : memref<1x8x8x8xf32, #tpu.memory_space<vmem>>, vector<1x8x1x8xf32>,
    %168 = vector.extract_strided_slice %137 {offsets = [6, 0, 0], sizes = [1, 8, 8], strides = [1, 1, 1]} : vector<8x8x8xf32> to vector<1x8x8xf32>
    %169 = vector.shape_cast %168 : vector<1x8x8xf32> to vector<8x8xf32>
    %c0_136 = arith.constant 0 : index
    %c0_137 = arith.constant 0 : index
    %c6 = arith.constant 6 : index
    %c0_138 = arith.constant 0 : index
    %170 = vector.load %arg4[%c0_136, %c0_137, %c6, %c0_138] : memref<1x8x8x8xf32, #tpu.memory_space<vmem>>, vector<1x8x1x8xf32>
    %171 = vector.shape_cast %170 : vector<1x8x1x8xf32> to vector<8x8xf32>
    %172 = vector.shape_cast %169 : vector<8x8xf32> to vector<1x8x1x8xf32>
    tpu.vector_store %arg4[%c0_136, %c0_137, %c6, %c0_138], %172 {strides = array<i32>} : memref<1x8x8x8xf32, #tpu.memory_space<vmem>>, vector<1x8x1x8xf32>,
    %173 = vector.extract_strided_slice %137 {offsets = [7, 0, 0], sizes = [1, 8, 8], strides = [1, 1, 1]} : vector<8x8x8xf32> to vector<1x8x8xf32>
    %174 = vector.shape_cast %173 : vector<1x8x8xf32> to vector<8x8xf32>
    %c0_139 = arith.constant 0 : index
    %c0_140 = arith.constant 0 : index
    %c7 = arith.constant 7 : index
    %c0_141 = arith.constant 0 : index
    %175 = vector.load %arg4[%c0_139, %c0_140, %c7, %c0_141] : memref<1x8x8x8xf32, #tpu.memory_space<vmem>>, vector<1x8x1x8xf32>
    %176 = vector.shape_cast %175 : vector<1x8x1x8xf32> to vector<8x8xf32>
    %177 = vector.shape_cast %174 : vector<8x8xf32> to vector<1x8x1x8xf32>
    tpu.vector_store %arg4[%c0_139, %c0_140, %c7, %c0_141], %177 {strides = array<i32>} : memref<1x8x8x8xf32, #tpu.memory_space<vmem>>, vector<1x8x1x8xf32>,
    return
  }
  func.func @transform_0(%arg0: i32) -> (i32, i32) {
    %c0_i32 = arith.constant 0 : i32
    %c0_i32_0 = arith.constant 0 : i32
    %c0_i32_1 = arith.constant 0 : i32
    return %c0_i32, %c0_i32_0 : i32, i32
  }
  func.func @transform_1(%arg0: i32) -> (i32, i32) {
    %c0_i32 = arith.constant 0 : i32
    %c0_i32_0 = arith.constant 0 : i32
    %c0_i32_1 = arith.constant 0 : i32
    return %c0_i32, %c0_i32_0 : i32, i32
  }
  func.func @transform_2(%arg0: i32) -> (i32, i32, i32, i32, i32) {
    %c0_i32 = arith.constant 0 : i32
    %c0_i32_0 = arith.constant 0 : i32
    %c0_i32_1 = arith.constant 0 : i32
    %c0_i32_2 = arith.constant 0 : i32
    %c0_i32_3 = arith.constant 0 : i32
    return %arg0, %c0_i32, %c0_i32_0, %c0_i32_1, %c0_i32_2 : i32, i32, i32, i32, i32
  }
  func.func @transform_3(%arg0: i32) -> (i32, i32, i32, i32) {
    %c0_i32 = arith.constant 0 : i32
    %c0_i32_0 = arith.constant 0 : i32
    %c0_i32_1 = arith.constant 0 : i32
    %c0_i32_2 = arith.constant 0 : i32
    return %arg0, %c0_i32, %c0_i32_0, %c0_i32_1 : i32, i32, i32, i32
  }
}

</mosaic_0001>

<llo_original>
// kernel: _forward.1
$region0: #{_forward.1}
  #allocation0 [shape = 'u32[]', space=smem, size = 0x4, offset = 0x4, fixed_abs, tag = 'smem constant byte address 0x4 - core index']
  #allocation1 [shape = 'u32[144,128]{1,0:T(1,128)}', space=vmem, size = 0x12000, scoped, tag = 'internal scratch']
  %s0 = inlined_call_operand.vmem [shape: f32[8,64], index: 0, kind: input, shape index: {}]
  %s1 = inlined_call_operand.vmem [shape: f32[8,1], index: 1, kind: input, shape index: {}]
  %s2 = inlined_call_operand.vmem [shape: f32[2,4,9,4,9], index: 2, kind: input, shape index: {}]
  %s3 = inlined_call_operand.hbm [shape: f32[2,8,8,8], index: 3, kind: output, shape index: {}]
  %s4 = sld [smem:[#allocation0]]
  $region45: #{_forward.1} parent=0
    _
  %s6 = ssub.s32 1, %s4
  %s7 = scalar_select 0, %s6, %s4
  $region1: #{_forward.1} parent=0
    #allocation2 [shape = 'u8[65536]{0}', space=vmem, size = 0x10000, scoped, tag = 'output window, operand 0']
    #allocation3 [shape = 's32[2]{0}', space=sflag, size = 0x8, scoped, tag = 'scoped memory for _forward.1']
    %8 = vsyncpa [#allocation3], 0
    %s9 = scalar_lea.sflag [#allocation3], 1
    %10 = vsyncpa %s9, 0
    loop: start=0, step=1, limit=4
    $region2: #{_forward.1} parent=1 // loop_pre_header
      _
    $region3: #{_forward.1} parent=1 // loop_header
      %s12 = sphi 0, %s16
      %p13 = scmp.ge.s32.totalorder %s12, 4
      %s20 = sphi 0, %s20
      %s22 = sphi 0, %s20
      %s23 = sphi 0, %s22
      %s37 = sphi 0, %s23
      %s41 = sphi 0, %s41
      %s43 = sphi 0, %s41
      %s44 = sphi 0, %s43
      %s58 = sphi 0, %s44
      %s64 = sphi 0, %s66
      %s67 = sphi 0, %s64
      %s68 = sphi 0, %s67
      %s84 = sphi 0, %s68
      %s90 = sphi 0, %s92
      %s93 = sphi 0, %s90
      %s94 = sphi 0, %s93
      %s110 = sphi 0, %s94
    $region4: #{_forward.1} parent=1 // loop_header_branch
      %15 = sbr.rel (%p13) target = $region8
    $region5: #{_forward.1} parent=1 // loop_body
      %s17 = ssub.s32 %s12, 1
      %s18 = ssub.s32 %s12, 2
      %s19 = sadd.s32 %s12, 1
      %s21 = sadd.s32 %s20, 1
      %p24 = scmp.eq.s32.totalorder %s12, 1
      %p25 = scmp.ne.s32.totalorder %s20, %s22
      %p26 = scmp.eq.s32.totalorder %s12, 0
      %p27 = por %p25, %p26
      %p28 = scmp.ne.s32.totalorder %s20, %s22
      %p29 = scmp.eq.s32.totalorder %s17, 1
      %p30 = por %p28, %p29
      %p31 = scmp.ne.s32.totalorder %s22, %s23
      %p32 = scmp.eq.s32.totalorder %s17, 0
      %p33 = por %p31, %p32
      %p34 = scmp.ne.s32.totalorder %s22, %s23
      %p35 = scmp.eq.s32.totalorder %s18, 1
      %p36 = por %p34, %p35
      %p38 = scmp.ne.s32.totalorder %s23, %s37
      %p39 = scmp.eq.s32.totalorder %s18, 0
      %p40 = por %p38, %p39
      %s42 = sadd.s32 %s41, 1
      %p45 = scmp.eq.s32.totalorder %s12, 1
      %p46 = scmp.ne.s32.totalorder %s41, %s43
      %p47 = scmp.eq.s32.totalorder %s12, 0
      %p48 = por %p46, %p47
      %p49 = scmp.ne.s32.totalorder %s41, %s43
      %p50 = scmp.eq.s32.totalorder %s17, 1
      %p51 = por %p49, %p50
      %p52 = scmp.ne.s32.totalorder %s43, %s44
      %p53 = scmp.eq.s32.totalorder %s17, 0
      %p54 = por %p52, %p53
      %p55 = scmp.ne.s32.totalorder %s43, %s44
      %p56 = scmp.eq.s32.totalorder %s18, 1
      %p57 = por %p55, %p56
      %p59 = scmp.ne.s32.totalorder %s44, %s58
      %p60 = scmp.eq.s32.totalorder %s18, 0
      %p61 = por %p59, %p60
      %s62 = ssub.s32 %s12, %s19
      %p63 = scmp.eq.s32.totalorder %s62, 0
      %s65 = sadd.s32 %s64, 1
      %s66 = scalar_select %p63, %s64, %s65
      %p69 = pneg %p63
      %p70 = scmp.eq.s32.totalorder %s12, 1
      %p71 = por %p69, %p70
      %p72 = scmp.ne.s32.totalorder %s64, %s67
      %p73 = scmp.eq.s32.totalorder %s12, 0
      %p74 = por %p72, %p73
      %p75 = scmp.ne.s32.totalorder %s64, %s67
      %p76 = scmp.eq.s32.totalorder %s17, 1
      %p77 = por %p75, %p76
      %p78 = scmp.ne.s32.totalorder %s67, %s68
      %p79 = scmp.eq.s32.totalorder %s17, 0
      %p80 = por %p78, %p79
      %p81 = scmp.ne.s32.totalorder %s67, %s68
      %p82 = scmp.eq.s32.totalorder %s18, 1
      %p83 = por %p81, %p82
      %p85 = scmp.ne.s32.totalorder %s68, %s84
      %p86 = scmp.eq.s32.totalorder %s18, 0
      %p87 = por %p85, %p86
      %s88 = ssub.s32 %s12, %s19
      %p89 = scmp.eq.s32.totalorder %s88, 0
      %s91 = sadd.s32 %s90, 1
      %s92 = scalar_select %p89, %s90, %s91
      %p95 = pneg %p89
      %p96 = scmp.eq.s32.totalorder %s12, 1
      %p97 = por %p95, %p96
      %p98 = scmp.ne.s32.totalorder %s90, %s93
      %p99 = scmp.eq.s32.totalorder %s12, 0
      %p100 = por %p98, %p99
      %p101 = scmp.ne.s32.totalorder %s90, %s93
      %p102 = scmp.eq.s32.totalorder %s17, 1
      %p103 = por %p101, %p102
      %p104 = scmp.ne.s32.totalorder %s93, %s94
      %p105 = scmp.eq.s32.totalorder %s17, 0
      %p106 = por %p104, %p105
      %p107 = scmp.ne.s32.totalorder %s93, %s94
      %p108 = scmp.eq.s32.totalorder %s18, 1
      %p109 = por %p107, %p108
      %p111 = scmp.ne.s32.totalorder %s94, %s110
      %p112 = scmp.eq.s32.totalorder %s18, 0
      %p113 = por %p111, %p112
      %p114 = scmp.le.s32.totalorder 1, %s12
      %p115 = scmp.lt.s32.totalorder %s12, 3
      %p116 = pnand %p114, %p115
      %p117 = pneg %p116
      // Predicated region
      $region9: #{_forward.1} parent=5 // pred_check
        _
      $region10: #{_forward.1} parent=5 // pred_check_branch
        %119 = sbr.rel (%p116) target = $region12
      $region11: #{_forward.1} parent=5 // pred_region
        %s120 = ssub.s32 %s12, 1
        // Predicated region
        $region13: #{_forward.1} parent=11 // pred_check
          %p121 = pneg %p33
        $region14: #{_forward.1} parent=11 // pred_check_branch
          %123 = sbr.rel (%p121) target = $region16
        $region15: #{_forward.1} parent=11 // pred_region
          _
        $region16: #{_forward.1} parent=11 // pred_fallthru
          _
        // Predicated region
        $region17: #{_forward.1} parent=11 // pred_check
          %p124 = pneg %p54
        $region18: #{_forward.1} parent=11 // pred_check_branch
          %126 = sbr.rel (%p124) target = $region20
        $region19: #{_forward.1} parent=11 // pred_region
          _
        $region20: #{_forward.1} parent=11 // pred_fallthru
          _
      $region12: #{_forward.1} parent=5 // pred_fallthru
        _
      %p127 = scmp.lt.s32.totalorder %s12, 2
      // Predicated region
      $region21: #{_forward.1} parent=5 // pred_check
        %p128 = pneg %p127
      $region22: #{_forward.1} parent=5 // pred_check_branch
        %130 = sbr.rel (%p128) target = $region24
      $region23: #{_forward.1} parent=5 // pred_region
        // Predicated region
        $region25: #{_forward.1} parent=23 // pred_check
          %p131 = pneg %p74
        $region26: #{_forward.1} parent=23 // pred_check_branch
          %133 = sbr.rel (%p131) target = $region28
        $region27: #{_forward.1} parent=23 // pred_region
          %p134 = scmp.lt.s32.totalorder %s12, 1
          %s135 = scalar_select %p134, %s12, 1
          %s136 = smul.addr %s135, 36
          %s137 = smul.addr %s136, 4
          %s138 = scalar_lea.vmem %s2, %s137
        $region28: #{_forward.1} parent=23 // pred_fallthru
          _
      $region24: #{_forward.1} parent=5 // pred_fallthru
        _
      %p139 = scmp.le.s32.totalorder 1, %s12
      %p140 = scmp.lt.s32.totalorder %s12, 3
      %p141 = pnand %p139, %p140
      %p142 = pneg %p141
      // Predicated region
      $region29: #{_forward.1} parent=5 // pred_check
        _
      $region30: #{_forward.1} parent=5 // pred_check_branch
        %144 = sbr.rel (%p141) target = $region32
      $region31: #{_forward.1} parent=5 // pred_region
        %s145 = ssub.s32 %s12, 1
        %p146 = pneg %p33
        %p147 = pneg %p30
        %p148 = pneg %p54
        %p149 = pneg %p51
        %p150 = scmp.lt.s32.totalorder %s17, 1
        %s151 = scalar_select %p150, %s17, 1
        %s152 = smul.addr %s151, 36
        %s153 = smul.addr %s152, 4
        %s154 = scalar_lea.vmem %s2, %s153
        %p155 = pneg %p80
        %p156 = pneg %p77
        %p157 = pneg %p106
        %p158 = pneg %p103
        %s159 = sand.u32 %s93, 1
        %s160 = scalar_lea.sflag [#allocation3], %s159
        %s161 = sand.u32 %s93, 1
        %s162 = smul.addr %s161, 64
        %s163 = scalar_lea.vmem [#allocation2], %s162
        %p164 = scmp.lt.s32.totalorder %s17, 1
        %s165 = scalar_select %p164, %s17, 1
        %s166 = smul.addr %s165, 36
        %s167 = smul.addr %s166, 4
        %s168 = scalar_lea.vmem %s2, %s167
        %v169 = vld [vmem:[%s168] sm:$0xf]
        %v170 = vld [vmem:[%s168 + $0x4] sm:$0xf]
        %v171 = vld [vmem:[%s168 + $0x8] sm:$0xf]
        %v172 = vld [vmem:[%s168 + $0xc] sm:$0xf]
        %v173 = vld [vmem:[%s168 + $0x10] sm:$0xf]
        %v174 = vld [vmem:[%s168 + $0x14] sm:$0xf]
        %v175 = vld [vmem:[%s168 + $0x18] sm:$0xf]
        %v176 = vld [vmem:[%s168 + $0x1c] sm:$0xf]
        %v177 = vld [vmem:[%s0] sm:$0xff]
        %s178 = scalar_lea.vmem %s168, 36
        %v179 = vld [vmem:[%s178] sm:$0xf]
        %v180 = vld [vmem:[%s178 + $0x4] sm:$0xf]
        %v181 = vld [vmem:[%s178 + $0x8] sm:$0xf]
        %v182 = vld [vmem:[%s178 + $0xc] sm:$0xf]
        %v183 = vld [vmem:[%s178 + $0x10] sm:$0xf]
        %v184 = vld [vmem:[%s178 + $0x14] sm:$0xf]
        %v185 = vld [vmem:[%s178 + $0x18] sm:$0xf]
        %v186 = vld [vmem:[%s178 + $0x1c] sm:$0xf]
        %188 = vrot.lane.b32.xlu0 %v177, 124
        %v189 = vpop.permute.xlu0 %188
        %vm190 = vcmask 31744
        %v191 = vsel %vm190, %v189, 0
        %vm193 = vcmask 1043456
        %v195 = vsel %vm193, %v179, 0
        %197 = vmatprep.subr.mxu0 0.0
        %198 = vmatpush1.msra.mxu0 %v195
        %199 = vmatprep.subr.mxu0 0.0
        %200 = vmatpush1.msra.mxu0 0.0
        %201 = vmatprep.subr.mxu0 0.0
        %202 = vmatpush1.msra.mxu0 0.0
        %203 = vmatprep.subr.mxu0 0.0
        %204 = vmatpush1.msra.mxu0 0.0
        %205 = vmatprep.subr.mxu0 0.0
        %206 = vmatpush1.msra.mxu0 0.0
        %207 = vmatprep.subr.mxu0 0.0
        %208 = vmatpush1.msra.mxu0 0.0
        %209 = vmatprep.subr.mxu0 0.0
        %210 = vmatpush1.msra.mxu0 0.0
        %211 = vmatprep.subr.mxu0 0.0
        %212 = vmatpush1.msra.mxu0 0.0
        %213 = vmatprep.subr.mxu0 0.0
        %214 = vmatpush1.msra.mxu0 0.0
        %215 = vmatprep.subr.mxu0 0.0
        %216 = vmatpush1.msra.mxu0 0.0
        %217 = vmatprep.subr.mxu0 0.0
        %218 = vmatpush1.msra.mxu0 0.0
        %219 = vmatprep.subr.mxu0 0.0
        %220 = vmatpush1.msra.mxu0 0.0
        %221 = vmatprep.subr.mxu0 0.0
        %222 = vmatpush1.msra.mxu0 0.0
        %223 = vmatprep.subr.mxu0 0.0
        %224 = vmatpush1.msra.mxu0 0.0
        %225 = vmatprep.subr.mxu0 0.0
        %226 = vmatpush1.msra.mxu0 0.0
        %227 = vmatprep.subr.mxu0 0.0
        %228 = vmatpush1.msra.mxu0 0.0
        %229 = vmatprep.subr.mxu0 0.0
        %230 = vmatpush1.msra.mxu0 0.0
        %231 = vmatprep.subr.mxu0 0.0
        %232 = vmatpush1.msra.mxu0 0.0
        %233 = vmatprep.subr.mxu0 0.0
        %234 = vmatpush1.msra.mxu0 0.0
        %235 = vmatprep.subr.mxu0 0.0
        %236 = vmatpush1.msra.mxu0 0.0
        %237 = vmatprep.subr.mxu0 0.0
        %238 = vmatpush1.msra.mxu0 0.0
        %239 = vmatprep.subr.mxu0 0.0
        %240 = vmatpush1.msra.mxu0 0.0
        %241 = vmatprep.subr.mxu0 0.0
        %242 = vmatpush1.msra.mxu0 0.0
        %243 = vmatprep.subr.mxu0 0.0
        %244 = vmatpush1.msra.mxu0 0.0
        %245 = vmatprep.subr.mxu0 0.0
        %246 = vmatpush1.msra.mxu0 0.0
        %247 = vmatprep.subr.mxu0 0.0
        %248 = vmatpush1.msra.mxu0 0.0
        %249 = vmatprep.subr.mxu0 0.0
        %250 = vmatpush1.msra.mxu0 0.0
        %251 = vmatprep.subr.mxu0 0.0
        %252 = vmatpush1.msra.mxu0 0.0
        %253 = vmatprep.subr.mxu0 0.0
        %254 = vmatpush1.msra.mxu0 0.0
        %255 = vmatprep.subr.mxu0 0.0
        %256 = vmatpush1.msra.mxu0 0.0
        %257 = vmatprep.subr.mxu0 0.0
        %258 = vmatpush1.msra.mxu0 0.0
        %259 = vmatprep.subr.mxu0 0.0
        %260 = vmatpush1.msra.mxu0 0.0
        %261 = vmatprep.mubr.f32.mxu0 0.0
        %262 = vmatmul.mubr.f32.gmra.mrb[0].mxu0 %v191
        %v263 = vpop.f32.mrb[0].mxu0
        %v264 = vadd.f32 0.0, %v263
        %v265 = vpop.f32.mrb[0].mxu0
        %266 = vdwg.mxu0
        %v268 = vsel %vm193, %v180, 0
        %270 = vmatprep.subr.mxu0 0.0
        %271 = vmatpush1.msra.mxu0 %v268
        %272 = vmatprep.subr.mxu0 0.0
        %273 = vmatpush1.msra.mxu0 0.0
        %274 = vmatprep.subr.mxu0 0.0
        %275 = vmatpush1.msra.mxu0 0.0
        %276 = vmatprep.subr.mxu0 0.0
        %277 = vmatpush1.msra.mxu0 0.0
        %278 = vmatprep.subr.mxu0 0.0
        %279 = vmatpush1.msra.mxu0 0.0
        %280 = vmatprep.subr.mxu0 0.0
        %281 = vmatpush1.msra.mxu0 0.0
        %282 = vmatprep.subr.mxu0 0.0
        %283 = vmatpush1.msra.mxu0 0.0
        %284 = vmatprep.subr.mxu0 0.0
        %285 = vmatpush1.msra.mxu0 0.0
        %286 = vmatprep.subr.mxu0 0.0
        %287 = vmatpush1.msra.mxu0 0.0
        %288 = vmatprep.subr.mxu0 0.0
        %289 = vmatpush1.msra.mxu0 0.0
        %290 = vmatprep.subr.mxu0 0.0
        %291 = vmatpush1.msra.mxu0 0.0
        %292 = vmatprep.subr.mxu0 0.0
        %293 = vmatpush1.msra.mxu0 0.0
        %294 = vmatprep.subr.mxu0 0.0
        %295 = vmatpush1.msra.mxu0 0.0
        %296 = vmatprep.subr.mxu0 0.0
        %297 = vmatpush1.msra.mxu0 0.0
        %298 = vmatprep.subr.mxu0 0.0
        %299 = vmatpush1.msra.mxu0 0.0
        %300 = vmatprep.subr.mxu0 0.0
        %301 = vmatpush1.msra.mxu0 0.0
        %302 = vmatprep.subr.mxu0 0.0
        %303 = vmatpush1.msra.mxu0 0.0
        %304 = vmatprep.subr.mxu0 0.0
        %305 = vmatpush1.msra.mxu0 0.0
        %306 = vmatprep.subr.mxu0 0.0
        %307 = vmatpush1.msra.mxu0 0.0
        %308 = vmatprep.subr.mxu0 0.0
        %309 = vmatpush1.msra.mxu0 0.0
        %310 = vmatprep.subr.mxu0 0.0
        %311 = vmatpush1.msra.mxu0 0.0
        %312 = vmatprep.subr.mxu0 0.0
        %313 = vmatpush1.msra.mxu0 0.0
        %314 = vmatprep.subr.mxu0 0.0
        %315 = vmatpush1.msra.mxu0 0.0
        %316 = vmatprep.subr.mxu0 0.0
        %317 = vmatpush1.msra.mxu0 0.0
        %318 = vmatprep.subr.mxu0 0.0
        %319 = vmatpush1.msra.mxu0 0.0
        %320 = vmatprep.subr.mxu0 0.0
        %321 = vmatpush1.msra.mxu0 0.0
        %322 = vmatprep.subr.mxu0 0.0
        %323 = vmatpush1.msra.mxu0 0.0
        %324 = vmatprep.subr.mxu0 0.0
        %325 = vmatpush1.msra.mxu0 0.0
        %326 = vmatprep.subr.mxu0 0.0
        %327 = vmatpush1.msra.mxu0 0.0
        %328 = vmatprep.subr.mxu0 0.0
        %329 = vmatpush1.msra.mxu0 0.0
        %330 = vmatprep.subr.mxu0 0.0
        %331 = vmatpush1.msra.mxu0 0.0
        %332 = vmatprep.subr.mxu0 0.0
        %333 = vmatpush1.msra.mxu0 0.0
        %334 = vmatprep.mubr.f32.mxu0 0.0
        %335 = vmatmul.mubr.f32.gmra.mrb[0].mxu0 %v191
        %v336 = vpop.f32.mrb[0].mxu0
        %v337 = vadd.f32 0.0, %v336
        %v338 = vpop.f32.mrb[0].mxu0
        %339 = vdwg.mxu0
        %v341 = vsel %vm193, %v181, 0
        %343 = vmatprep.subr.mxu0 0.0
        %344 = vmatpush1.msra.mxu0 %v341
        %345 = vmatprep.subr.mxu0 0.0
        %346 = vmatpush1.msra.mxu0 0.0
        %347 = vmatprep.subr.mxu0 0.0
        %348 = vmatpush1.msra.mxu0 0.0
        %349 = vmatprep.subr.mxu0 0.0
        %350 = vmatpush1.msra.mxu0 0.0
        %351 = vmatprep.subr.mxu0 0.0
        %352 = vmatpush1.msra.mxu0 0.0
        %353 = vmatprep.subr.mxu0 0.0
        %354 = vmatpush1.msra.mxu0 0.0
        %355 = vmatprep.subr.mxu0 0.0
        %356 = vmatpush1.msra.mxu0 0.0
        %357 = vmatprep.subr.mxu0 0.0
        %358 = vmatpush1.msra.mxu0 0.0
        %359 = vmatprep.subr.mxu0 0.0
        %360 = vmatpush1.msra.mxu0 0.0
        %361 = vmatprep.subr.mxu0 0.0
        %362 = vmatpush1.msra.mxu0 0.0
        %363 = vmatprep.subr.mxu0 0.0
        %364 = vmatpush1.msra.mxu0 0.0
        %365 = vmatprep.subr.mxu0 0.0
        %366 = vmatpush1.msra.mxu0 0.0
        %367 = vmatprep.subr.mxu0 0.0
        %368 = vmatpush1.msra.mxu0 0.0
        %369 = vmatprep.subr.mxu0 0.0
        %370 = vmatpush1.msra.mxu0 0.0
        %371 = vmatprep.subr.mxu0 0.0
        %372 = vmatpush1.msra.mxu0 0.0
        %373 = vmatprep.subr.mxu0 0.0
        %374 = vmatpush1.msra.mxu0 0.0
        %375 = vmatprep.subr.mxu0 0.0
        %376 = vmatpush1.msra.mxu0 0.0
        %377 = vmatprep.subr.mxu0 0.0
        %378 = vmatpush1.msra.mxu0 0.0
        %379 = vmatprep.subr.mxu0 0.0
        %380 = vmatpush1.msra.mxu0 0.0
        %381 = vmatprep.subr.mxu0 0.0
        %382 = vmatpush1.msra.mxu0 0.0
        %383 = vmatprep.subr.mxu0 0.0
        %384 = vmatpush1.msra.mxu0 0.0
        %385 = vmatprep.subr.mxu0 0.0
        %386 = vmatpush1.msra.mxu0 0.0
        %387 = vmatprep.subr.mxu0 0.0
        %388 = vmatpush1.msra.mxu0 0.0
        %389 = vmatprep.subr.mxu0 0.0
        %390 = vmatpush1.msra.mxu0 0.0
        %391 = vmatprep.subr.mxu0 0.0
        %392 = vmatpush1.msra.mxu0 0.0
        %393 = vmatprep.subr.mxu0 0.0
        %394 = vmatpush1.msra.mxu0 0.0
        %395 = vmatprep.subr.mxu0 0.0
        %396 = vmatpush1.msra.mxu0 0.0
        %397 = vmatprep.subr.mxu0 0.0
        %398 = vmatpush1.msra.mxu0 0.0
        %399 = vmatprep.subr.mxu0 0.0
        %400 = vmatpush1.msra.mxu0 0.0
        %401 = vmatprep.subr.mxu0 0.0
        %402 = vmatpush1.msra.mxu0 0.0
        %403 = vmatprep.subr.mxu0 0.0
        %404 = vmatpush1.msra.mxu0 0.0
        %405 = vmatprep.subr.mxu0 0.0
        %406 = vmatpush1.msra.mxu0 0.0
        %407 = vmatprep.mubr.f32.mxu0 0.0
        %408 = vmatmul.mubr.f32.gmra.mrb[0].mxu0 %v191
        %v409 = vpop.f32.mrb[0].mxu0
        %v410 = vadd.f32 0.0, %v409
        %v411 = vpop.f32.mrb[0].mxu0
        %412 = vdwg.mxu0
        %v414 = vsel %vm193, %v182, 0
        %416 = vmatprep.subr.mxu0 0.0
        %417 = vmatpush1.msra.mxu0 %v414
        %418 = vmatprep.subr.mxu0 0.0
        %419 = vmatpush1.msra.mxu0 0.0
        %420 = vmatprep.subr.mxu0 0.0
        %421 = vmatpush1.msra.mxu0 0.0
        %422 = vmatprep.subr.mxu0 0.0
        %423 = vmatpush1.msra.mxu0 0.0
        %424 = vmatprep.subr.mxu0 0.0
        %425 = vmatpush1.msra.mxu0 0.0
        %426 = vmatprep.subr.mxu0 0.0
        %427 = vmatpush1.msra.mxu0 0.0
        %428 = vmatprep.subr.mxu0 0.0
        %429 = vmatpush1.msra.mxu0 0.0
        %430 = vmatprep.subr.mxu0 0.0
        %431 = vmatpush1.msra.mxu0 0.0
        %432 = vmatprep.subr.mxu0 0.0
        %433 = vmatpush1.msra.mxu0 0.0
        %434 = vmatprep.subr.mxu0 0.0
        %435 = vmatpush1.msra.mxu0 0.0
        %436 = vmatprep.subr.mxu0 0.0
        %437 = vmatpush1.msra.mxu0 0.0
        %438 = vmatprep.subr.mxu0 0.0
        %439 = vmatpush1.msra.mxu0 0.0
        %440 = vmatprep.subr.mxu0 0.0
        %441 = vmatpush1.msra.mxu0 0.0
        %442 = vmatprep.subr.mxu0 0.0
        %443 = vmatpush1.msra.mxu0 0.0
        %444 = vmatprep.subr.mxu0 0.0
        %445 = vmatpush1.msra.mxu0 0.0
        %446 = vmatprep.subr.mxu0 0.0
        %447 = vmatpush1.msra.mxu0 0.0
        %448 = vmatprep.subr.mxu0 0.0
        %449 = vmatpush1.msra.mxu0 0.0
        %450 = vmatprep.subr.mxu0 0.0
        %451 = vmatpush1.msra.mxu0 0.0
        %452 = vmatprep.subr.mxu0 0.0
        %453 = vmatpush1.msra.mxu0 0.0
        %454 = vmatprep.subr.mxu0 0.0
        %455 = vmatpush1.msra.mxu0 0.0
        %456 = vmatprep.subr.mxu0 0.0
        %457 = vmatpush1.msra.mxu0 0.0
        %458 = vmatprep.subr.mxu0 0.0
        %459 = vmatpush1.msra.mxu0 0.0
        %460 = vmatprep.subr.mxu0 0.0
        %461 = vmatpush1.msra.mxu0 0.0
        %462 = vmatprep.subr.mxu0 0.0
        %463 = vmatpush1.msra.mxu0 0.0
        %464 = vmatprep.subr.mxu0 0.0
        %465 = vmatpush1.msra.mxu0 0.0
        %466 = vmatprep.subr.mxu0 0.0
        %467 = vmatpush1.msra.mxu0 0.0
        %468 = vmatprep.subr.mxu0 0.0
        %469 = vmatpush1.msra.mxu0 0.0
        %470 = vmatprep.subr.mxu0 0.0
        %471 = vmatpush1.msra.mxu0 0.0
        %472 = vmatprep.subr.mxu0 0.0
        %473 = vmatpush1.msra.mxu0 0.0
        %474 = vmatprep.subr.mxu0 0.0
        %475 = vmatpush1.msra.mxu0 0.0
        %476 = vmatprep.subr.mxu0 0.0
        %477 = vmatpush1.msra.mxu0 0.0
        %478 = vmatprep.subr.mxu0 0.0
        %479 = vmatpush1.msra.mxu0 0.0
        %480 = vmatprep.mubr.f32.mxu0 0.0
        %481 = vmatmul.mubr.f32.gmra.mrb[0].mxu0 %v191
        %v482 = vpop.f32.mrb[0].mxu0
        %v483 = vadd.f32 0.0, %v482
        %v484 = vpop.f32.mrb[0].mxu0
        %485 = vdwg.mxu0
        %v487 = vsel %vm193, %v183, 0
        %489 = vmatprep.subr.mxu0 0.0
        %490 = vmatpush1.msra.mxu0 %v487
        %491 = vmatprep.subr.mxu0 0.0
        %492 = vmatpush1.msra.mxu0 0.0
        %493 = vmatprep.subr.mxu0 0.0
        %494 = vmatpush1.msra.mxu0 0.0
        %495 = vmatprep.subr.mxu0 0.0
        %496 = vmatpush1.msra.mxu0 0.0
        %497 = vmatprep.subr.mxu0 0.0
        %498 = vmatpush1.msra.mxu0 0.0
        %499 = vmatprep.subr.mxu0 0.0
        %500 = vmatpush1.msra.mxu0 0.0
        %501 = vmatprep.subr.mxu0 0.0
        %502 = vmatpush1.msra.mxu0 0.0
        %503 = vmatprep.subr.mxu0 0.0
        %504 = vmatpush1.msra.mxu0 0.0
        %505 = vmatprep.subr.mxu0 0.0
        %506 = vmatpush1.msra.mxu0 0.0
        %507 = vmatprep.subr.mxu0 0.0
        %508 = vmatpush1.msra.mxu0 0.0
        %509 = vmatprep.subr.mxu0 0.0
        %510 = vmatpush1.msra.mxu0 0.0
        %511 = vmatprep.subr.mxu0 0.0
        %512 = vmatpush1.msra.mxu0 0.0
        %513 = vmatprep.subr.mxu0 0.0
        %514 = vmatpush1.msra.mxu0 0.0
        %515 = vmatprep.subr.mxu0 0.0
        %516 = vmatpush1.msra.mxu0 0.0
        %517 = vmatprep.subr.mxu0 0.0
        %518 = vmatpush1.msra.mxu0 0.0
        %519 = vmatprep.subr.mxu0 0.0
        %520 = vmatpush1.msra.mxu0 0.0
        %521 = vmatprep.subr.mxu0 0.0
        %522 = vmatpush1.msra.mxu0 0.0
        %523 = vmatprep.subr.mxu0 0.0
        %524 = vmatpush1.msra.mxu0 0.0
        %525 = vmatprep.subr.mxu0 0.0
        %526 = vmatpush1.msra.mxu0 0.0
        %527 = vmatprep.subr.mxu0 0.0
        %528 = vmatpush1.msra.mxu0 0.0
        %529 = vmatprep.subr.mxu0 0.0
        %530 = vmatpush1.msra.mxu0 0.0
        %531 = vmatprep.subr.mxu0 0.0
        %532 = vmatpush1.msra.mxu0 0.0
        %533 = vmatprep.subr.mxu0 0.0
        %534 = vmatpush1.msra.mxu0 0.0
        %535 = vmatprep.subr.mxu0 0.0
        %536 = vmatpush1.msra.mxu0 0.0
        %537 = vmatprep.subr.mxu0 0.0
        %538 = vmatpush1.msra.mxu0 0.0
        %539 = vmatprep.subr.mxu0 0.0
        %540 = vmatpush1.msra.mxu0 0.0
        %541 = vmatprep.subr.mxu0 0.0
        %542 = vmatpush1.msra.mxu0 0.0
        %543 = vmatprep.subr.mxu0 0.0
        %544 = vmatpush1.msra.mxu0 0.0
        %545 = vmatprep.subr.mxu0 0.0
        %546 = vmatpush1.msra.mxu0 0.0
        %547 = vmatprep.subr.mxu0 0.0
        %548 = vmatpush1.msra.mxu0 0.0
        %549 = vmatprep.subr.mxu0 0.0
        %550 = vmatpush1.msra.mxu0 0.0
        %551 = vmatprep.subr.mxu0 0.0
        %552 = vmatpush1.msra.mxu0 0.0
        %553 = vmatprep.mubr.f32.mxu0 0.0
        %554 = vmatmul.mubr.f32.gmra.mrb[0].mxu0 %v191
        %v555 = vpop.f32.mrb[0].mxu0
        %v556 = vadd.f32 0.0, %v555
        %v557 = vpop.f32.mrb[0].mxu0
        %558 = vdwg.mxu0
        %v560 = vsel %vm193, %v184, 0
        %562 = vmatprep.subr.mxu0 0.0
        %563 = vmatpush1.msra.mxu0 %v560
        %564 = vmatprep.subr.mxu0 0.0
        %565 = vmatpush1.msra.mxu0 0.0
        %566 = vmatprep.subr.mxu0 0.0
        %567 = vmatpush1.msra.mxu0 0.0
        %568 = vmatprep.subr.mxu0 0.0
        %569 = vmatpush1.msra.mxu0 0.0
        %570 = vmatprep.subr.mxu0 0.0
        %571 = vmatpush1.msra.mxu0 0.0
        %572 = vmatprep.subr.mxu0 0.0
        %573 = vmatpush1.msra.mxu0 0.0
        %574 = vmatprep.subr.mxu0 0.0
        %575 = vmatpush1.msra.mxu0 0.0
        %576 = vmatprep.subr.mxu0 0.0
        %577 = vmatpush1.msra.mxu0 0.0
        %578 = vmatprep.subr.mxu0 0.0
        %579 = vmatpush1.msra.mxu0 0.0
        %580 = vmatprep.subr.mxu0 0.0
        %581 = vmatpush1.msra.mxu0 0.0
        %582 = vmatprep.subr.mxu0 0.0
        %583 = vmatpush1.msra.mxu0 0.0
        %584 = vmatprep.subr.mxu0 0.0
        %585 = vmatpush1.msra.mxu0 0.0
        %586 = vmatprep.subr.mxu0 0.0
        %587 = vmatpush1.msra.mxu0 0.0
        %588 = vmatprep.subr.mxu0 0.0
        %589 = vmatpush1.msra.mxu0 0.0
        %590 = vmatprep.subr.mxu0 0.0
        %591 = vmatpush1.msra.mxu0 0.0
        %592 = vmatprep.subr.mxu0 0.0
        %593 = vmatpush1.msra.mxu0 0.0
        %594 = vmatprep.subr.mxu0 0.0
        %595 = vmatpush1.msra.mxu0 0.0
        %596 = vmatprep.subr.mxu0 0.0
        %597 = vmatpush1.msra.mxu0 0.0
        %598 = vmatprep.subr.mxu0 0.0
        %599 = vmatpush1.msra.mxu0 0.0
        %600 = vmatprep.subr.mxu0 0.0
        %601 = vmatpush1.msra.mxu0 0.0
        %602 = vmatprep.subr.mxu0 0.0
        %603 = vmatpush1.msra.mxu0 0.0
        %604 = vmatprep.subr.mxu0 0.0
        %605 = vmatpush1.msra.mxu0 0.0
        %606 = vmatprep.subr.mxu0 0.0
        %607 = vmatpush1.msra.mxu0 0.0
        %608 = vmatprep.subr.mxu0 0.0
        %609 = vmatpush1.msra.mxu0 0.0
        %610 = vmatprep.subr.mxu0 0.0
        %611 = vmatpush1.msra.mxu0 0.0
        %612 = vmatprep.subr.mxu0 0.0
        %613 = vmatpush1.msra.mxu0 0.0
        %614 = vmatprep.subr.mxu0 0.0
        %615 = vmatpush1.msra.mxu0 0.0
        %616 = vmatprep.subr.mxu0 0.0
        %617 = vmatpush1.msra.mxu0 0.0
        %618 = vmatprep.subr.mxu0 0.0
        %619 = vmatpush1.msra.mxu0 0.0
        %620 = vmatprep.subr.mxu0 0.0
        %621 = vmatpush1.msra.mxu0 0.0
        %622 = vmatprep.subr.mxu0 0.0
        %623 = vmatpush1.msra.mxu0 0.0
        %624 = vmatprep.subr.mxu0 0.0
        %625 = vmatpush1.msra.mxu0 0.0
        %626 = vmatprep.mubr.f32.mxu0 0.0
        %627 = vmatmul.mubr.f32.gmra.mrb[0].mxu0 %v191
        %v628 = vpop.f32.mrb[0].mxu0
        %v629 = vadd.f32 0.0, %v628
        %v630 = vpop.f32.mrb[0].mxu0
        %631 = vdwg.mxu0
        %v633 = vsel %vm193, %v185, 0
        %635 = vmatprep.subr.mxu0 0.0
        %636 = vmatpush1.msra.mxu0 %v633
        %637 = vmatprep.subr.mxu0 0.0
        %638 = vmatpush1.msra.mxu0 0.0
        %639 = vmatprep.subr.mxu0 0.0
        %640 = vmatpush1.msra.mxu0 0.0
        %641 = vmatprep.subr.mxu0 0.0
        %642 = vmatpush1.msra.mxu0 0.0
        %643 = vmatprep.subr.mxu0 0.0
        %644 = vmatpush1.msra.mxu0 0.0
        %645 = vmatprep.subr.mxu0 0.0
        %646 = vmatpush1.msra.mxu0 0.0
        %647 = vmatprep.subr.mxu0 0.0
        %648 = vmatpush1.msra.mxu0 0.0
        %649 = vmatprep.subr.mxu0 0.0
        %650 = vmatpush1.msra.mxu0 0.0
        %651 = vmatprep.subr.mxu0 0.0
        %652 = vmatpush1.msra.mxu0 0.0
        %653 = vmatprep.subr.mxu0 0.0
        %654 = vmatpush1.msra.mxu0 0.0
        %655 = vmatprep.subr.mxu0 0.0
        %656 = vmatpush1.msra.mxu0 0.0
        %657 = vmatprep.subr.mxu0 0.0
        %658 = vmatpush1.msra.mxu0 0.0
        %659 = vmatprep.subr.mxu0 0.0
        %660 = vmatpush1.msra.mxu0 0.0
        %661 = vmatprep.subr.mxu0 0.0
        %662 = vmatpush1.msra.mxu0 0.0
        %663 = vmatprep.subr.mxu0 0.0
        %664 = vmatpush1.msra.mxu0 0.0
        %665 = vmatprep.subr.mxu0 0.0
        %666 = vmatpush1.msra.mxu0 0.0
        %667 = vmatprep.subr.mxu0 0.0
        %668 = vmatpush1.msra.mxu0 0.0
        %669 = vmatprep.subr.mxu0 0.0
        %670 = vmatpush1.msra.mxu0 0.0
        %671 = vmatprep.subr.mxu0 0.0
        %672 = vmatpush1.msra.mxu0 0.0
        %673 = vmatprep.subr.mxu0 0.0
        %674 = vmatpush1.msra.mxu0 0.0
        %675 = vmatprep.subr.mxu0 0.0
        %676 = vmatpush1.msra.mxu0 0.0
        %677 = vmatprep.subr.mxu0 0.0
        %678 = vmatpush1.msra.mxu0 0.0
        %679 = vmatprep.subr.mxu0 0.0
        %680 = vmatpush1.msra.mxu0 0.0
        %681 = vmatprep.subr.mxu0 0.0
        %682 = vmatpush1.msra.mxu0 0.0
        %683 = vmatprep.subr.mxu0 0.0
        %684 = vmatpush1.msra.mxu0 0.0
        %685 = vmatprep.subr.mxu0 0.0
        %686 = vmatpush1.msra.mxu0 0.0
        %687 = vmatprep.subr.mxu0 0.0
        %688 = vmatpush1.msra.mxu0 0.0
        %689 = vmatprep.subr.mxu0 0.0
        %690 = vmatpush1.msra.mxu0 0.0
        %691 = vmatprep.subr.mxu0 0.0
        %692 = vmatpush1.msra.mxu0 0.0
        %693 = vmatprep.subr.mxu0 0.0
        %694 = vmatpush1.msra.mxu0 0.0
        %695 = vmatprep.subr.mxu0 0.0
        %696 = vmatpush1.msra.mxu0 0.0
        %697 = vmatprep.subr.mxu0 0.0
        %698 = vmatpush1.msra.mxu0 0.0
        %699 = vmatprep.mubr.f32.mxu0 0.0
        %700 = vmatmul.mubr.f32.gmra.mrb[0].mxu0 %v191
        %v701 = vpop.f32.mrb[0].mxu0
        %v702 = vadd.f32 0.0, %v701
        %v703 = vpop.f32.mrb[0].mxu0
        %704 = vdwg.mxu0
        %v706 = vsel %vm193, %v186, 0
        %708 = vmatprep.subr.mxu0 0.0
        %709 = vmatpush1.msra.mxu0 %v706
        %710 = vmatprep.subr.mxu0 0.0
        %711 = vmatpush1.msra.mxu0 0.0
        %712 = vmatprep.subr.mxu0 0.0
        %713 = vmatpush1.msra.mxu0 0.0
        %714 = vmatprep.subr.mxu0 0.0
        %715 = vmatpush1.msra.mxu0 0.0
        %716 = vmatprep.subr.mxu0 0.0
        %717 = vmatpush1.msra.mxu0 0.0
        %718 = vmatprep.subr.mxu0 0.0
        %719 = vmatpush1.msra.mxu0 0.0
        %720 = vmatprep.subr.mxu0 0.0
        %721 = vmatpush1.msra.mxu0 0.0
        %722 = vmatprep.subr.mxu0 0.0
        %723 = vmatpush1.msra.mxu0 0.0
        %724 = vmatprep.subr.mxu0 0.0
        %725 = vmatpush1.msra.mxu0 0.0
        %726 = vmatprep.subr.mxu0 0.0
        %727 = vmatpush1.msra.mxu0 0.0
        %728 = vmatprep.subr.mxu0 0.0
        %729 = vmatpush1.msra.mxu0 0.0
        %730 = vmatprep.subr.mxu0 0.0
        %731 = vmatpush1.msra.mxu0 0.0
        %732 = vmatprep.subr.mxu0 0.0
        %733 = vmatpush1.msra.mxu0 0.0
        %734 = vmatprep.subr.mxu0 0.0
        %735 = vmatpush1.msra.mxu0 0.0
        %736 = vmatprep.subr.mxu0 0.0
        %737 = vmatpush1.msra.mxu0 0.0
        %738 = vmatprep.subr.mxu0 0.0
        %739 = vmatpush1.msra.mxu0 0.0
        %740 = vmatprep.subr.mxu0 0.0
        %741 = vmatpush1.msra.mxu0 0.0
        %742 = vmatprep.subr.mxu0 0.0
        %743 = vmatpush1.msra.mxu0 0.0
        %744 = vmatprep.subr.mxu0 0.0
        %745 = vmatpush1.msra.mxu0 0.0
        %746 = vmatprep.subr.mxu0 0.0
        %747 = vmatpush1.msra.mxu0 0.0
        %748 = vmatprep.subr.mxu0 0.0
        %749 = vmatpush1.msra.mxu0 0.0
        %750 = vmatprep.subr.mxu0 0.0
        %751 = vmatpush1.msra.mxu0 0.0
        %752 = vmatprep.subr.mxu0 0.0
        %753 = vmatpush1.msra.mxu0 0.0
        %754 = vmatprep.subr.mxu0 0.0
        %755 = vmatpush1.msra.mxu0 0.0
        %756 = vmatprep.subr.mxu0 0.0
        %757 = vmatpush1.msra.mxu0 0.0
        %758 = vmatprep.subr.mxu0 0.0
        %759 = vmatpush1.msra.mxu0 0.0
        %760 = vmatprep.subr.mxu0 0.0
        %761 = vmatpush1.msra.mxu0 0.0
        %762 = vmatprep.subr.mxu0 0.0
        %763 = vmatpush1.msra.mxu0 0.0
        %764 = vmatprep.subr.mxu0 0.0
        %765 = vmatpush1.msra.mxu0 0.0
        %766 = vmatprep.subr.mxu0 0.0
        %767 = vmatpush1.msra.mxu0 0.0
        %768 = vmatprep.subr.mxu0 0.0
        %769 = vmatpush1.msra.mxu0 0.0
        %770 = vmatprep.subr.mxu0 0.0
        %771 = vmatpush1.msra.mxu0 0.0
        %772 = vmatprep.mubr.f32.mxu0 0.0
        %773 = vmatmul.mubr.f32.gmra.mrb[0].mxu0 %v191
        %v774 = vpop.f32.mrb[0].mxu0
        %v775 = vadd.f32 0.0, %v774
        %v776 = vpop.f32.mrb[0].mxu0
        %777 = vdwg.mxu0
        %v778 = vsel %vm190, %v177, 0
        %v781 = vsel %vm193, %v169, 0
        %783 = vmatprep.subr.mxu0 0.0
        %784 = vmatpush1.msra.mxu0 %v781
        %785 = vmatprep.subr.mxu0 0.0
        %786 = vmatpush1.msra.mxu0 0.0
        %787 = vmatprep.subr.mxu0 0.0
        %788 = vmatpush1.msra.mxu0 0.0
        %789 = vmatprep.subr.mxu0 0.0
        %790 = vmatpush1.msra.mxu0 0.0
        %791 = vmatprep.subr.mxu0 0.0
        %792 = vmatpush1.msra.mxu0 0.0
        %793 = vmatprep.subr.mxu0 0.0
        %794 = vmatpush1.msra.mxu0 0.0
        %795 = vmatprep.subr.mxu0 0.0
        %796 = vmatpush1.msra.mxu0 0.0
        %797 = vmatprep.subr.mxu0 0.0
        %798 = vmatpush1.msra.mxu0 0.0
        %799 = vmatprep.subr.mxu0 0.0
        %800 = vmatpush1.msra.mxu0 0.0
        %801 = vmatprep.subr.mxu0 0.0
        %802 = vmatpush1.msra.mxu0 0.0
        %803 = vmatprep.subr.mxu0 0.0
        %804 = vmatpush1.msra.mxu0 0.0
        %805 = vmatprep.subr.mxu0 0.0
        %806 = vmatpush1.msra.mxu0 0.0
        %807 = vmatprep.subr.mxu0 0.0
        %808 = vmatpush1.msra.mxu0 0.0
        %809 = vmatprep.subr.mxu0 0.0
        %810 = vmatpush1.msra.mxu0 0.0
        %811 = vmatprep.subr.mxu0 0.0
        %812 = vmatpush1.msra.mxu0 0.0
        %813 = vmatprep.subr.mxu0 0.0
        %814 = vmatpush1.msra.mxu0 0.0
        %815 = vmatprep.subr.mxu0 0.0
        %816 = vmatpush1.msra.mxu0 0.0
        %817 = vmatprep.subr.mxu0 0.0
        %818 = vmatpush1.msra.mxu0 0.0
        %819 = vmatprep.subr.mxu0 0.0
        %820 = vmatpush1.msra.mxu0 0.0
        %821 = vmatprep.subr.mxu0 0.0
        %822 = vmatpush1.msra.mxu0 0.0
        %823 = vmatprep.subr.mxu0 0.0
        %824 = vmatpush1.msra.mxu0 0.0
        %825 = vmatprep.subr.mxu0 0.0
        %826 = vmatpush1.msra.mxu0 0.0
        %827 = vmatprep.subr.mxu0 0.0
        %828 = vmatpush1.msra.mxu0 0.0
        %829 = vmatprep.subr.mxu0 0.0
        %830 = vmatpush1.msra.mxu0 0.0
        %831 = vmatprep.subr.mxu0 0.0
        %832 = vmatpush1.msra.mxu0 0.0
        %833 = vmatprep.subr.mxu0 0.0
        %834 = vmatpush1.msra.mxu0 0.0
        %835 = vmatprep.subr.mxu0 0.0
        %836 = vmatpush1.msra.mxu0 0.0
        %837 = vmatprep.subr.mxu0 0.0
        %838 = vmatpush1.msra.mxu0 0.0
        %839 = vmatprep.subr.mxu0 0.0
        %840 = vmatpush1.msra.mxu0 0.0
        %841 = vmatprep.subr.mxu0 0.0
        %842 = vmatpush1.msra.mxu0 0.0
        %843 = vmatprep.subr.mxu0 0.0
        %844 = vmatpush1.msra.mxu0 0.0
        %845 = vmatprep.subr.mxu0 0.0
        %846 = vmatpush1.msra.mxu0 0.0
        %847 = vmatprep.mubr.f32.mxu0 0.0
        %848 = vmatmul.mubr.f32.gmra.mrb[0].mxu0 %v778
        %v849 = vpop.f32.mrb[0].mxu0
        %v850 = vadd.f32 %v264, %v849
        %v851 = vpop.f32.mrb[0].mxu0
        %852 = vdwg.mxu0
        %v854 = vsel %vm193, %v170, 0
        %856 = vmatprep.subr.mxu0 0.0
        %857 = vmatpush1.msra.mxu0 %v854
        %858 = vmatprep.subr.mxu0 0.0
        %859 = vmatpush1.msra.mxu0 0.0
        %860 = vmatprep.subr.mxu0 0.0
        %861 = vmatpush1.msra.mxu0 0.0
        %862 = vmatprep.subr.mxu0 0.0
        %863 = vmatpush1.msra.mxu0 0.0
        %864 = vmatprep.subr.mxu0 0.0
        %865 = vmatpush1.msra.mxu0 0.0
        %866 = vmatprep.subr.mxu0 0.0
        %867 = vmatpush1.msra.mxu0 0.0
        %868 = vmatprep.subr.mxu0 0.0
        %869 = vmatpush1.msra.mxu0 0.0
        %870 = vmatprep.subr.mxu0 0.0
        %871 = vmatpush1.msra.mxu0 0.0
        %872 = vmatprep.subr.mxu0 0.0
        %873 = vmatpush1.msra.mxu0 0.0
        %874 = vmatprep.subr.mxu0 0.0
        %875 = vmatpush1.msra.mxu0 0.0
        %876 = vmatprep.subr.mxu0 0.0
        %877 = vmatpush1.msra.mxu0 0.0
        %878 = vmatprep.subr.mxu0 0.0
        %879 = vmatpush1.msra.mxu0 0.0
        %880 = vmatprep.subr.mxu0 0.0
        %881 = vmatpush1.msra.mxu0 0.0
        %882 = vmatprep.subr.mxu0 0.0
        %883 = vmatpush1.msra.mxu0 0.0
        %884 = vmatprep.subr.mxu0 0.0
        %885 = vmatpush1.msra.mxu0 0.0
        %886 = vmatprep.subr.mxu0 0.0
        %887 = vmatpush1.msra.mxu0 0.0
        %888 = vmatprep.subr.mxu0 0.0
        %889 = vmatpush1.msra.mxu0 0.0
        %890 = vmatprep.subr.mxu0 0.0
        %891 = vmatpush1.msra.mxu0 0.0
        %892 = vmatprep.subr.mxu0 0.0
        %893 = vmatpush1.msra.mxu0 0.0
        %894 = vmatprep.subr.mxu0 0.0
        %895 = vmatpush1.msra.mxu0 0.0
        %896 = vmatprep.subr.mxu0 0.0
        %897 = vmatpush1.msra.mxu0 0.0
        %898 = vmatprep.subr.mxu0 0.0
        %899 = vmatpush1.msra.mxu0 0.0
        %900 = vmatprep.subr.mxu0 0.0
        %901 = vmatpush1.msra.mxu0 0.0
        %902 = vmatprep.subr.mxu0 0.0
        %903 = vmatpush1.msra.mxu0 0.0
        %904 = vmatprep.subr.mxu0 0.0
        %905 = vmatpush1.msra.mxu0 0.0
        %906 = vmatprep.subr.mxu0 0.0
        %907 = vmatpush1.msra.mxu0 0.0
        %908 = vmatprep.subr.mxu0 0.0
        %909 = vmatpush1.msra.mxu0 0.0
        %910 = vmatprep.subr.mxu0 0.0
        %911 = vmatpush1.msra.mxu0 0.0
        %912 = vmatprep.subr.mxu0 0.0
        %913 = vmatpush1.msra.mxu0 0.0
        %914 = vmatprep.subr.mxu0 0.0
        %915 = vmatpush1.msra.mxu0 0.0
        %916 = vmatprep.subr.mxu0 0.0
        %917 = vmatpush1.msra.mxu0 0.0
        %918 = vmatprep.subr.mxu0 0.0
        %919 = vmatpush1.msra.mxu0 0.0
        %920 = vmatprep.mubr.f32.mxu0 0.0
        %921 = vmatmul.mubr.f32.gmra.mrb[0].mxu0 %v778
        %v922 = vpop.f32.mrb[0].mxu0
        %v923 = vadd.f32 %v337, %v922
        %v924 = vpop.f32.mrb[0].mxu0
        %925 = vdwg.mxu0
        %v927 = vsel %vm193, %v171, 0
        %929 = vmatprep.subr.mxu0 0.0
        %930 = vmatpush1.msra.mxu0 %v927
        %931 = vmatprep.subr.mxu0 0.0
        %932 = vmatpush1.msra.mxu0 0.0
        %933 = vmatprep.subr.mxu0 0.0
        %934 = vmatpush1.msra.mxu0 0.0
        %935 = vmatprep.subr.mxu0 0.0
        %936 = vmatpush1.msra.mxu0 0.0
        %937 = vmatprep.subr.mxu0 0.0
        %938 = vmatpush1.msra.mxu0 0.0
        %939 = vmatprep.subr.mxu0 0.0
        %940 = vmatpush1.msra.mxu0 0.0
        %941 = vmatprep.subr.mxu0 0.0
        %942 = vmatpush1.msra.mxu0 0.0
        %943 = vmatprep.subr.mxu0 0.0
        %944 = vmatpush1.msra.mxu0 0.0
        %945 = vmatprep.subr.mxu0 0.0
        %946 = vmatpush1.msra.mxu0 0.0
        %947 = vmatprep.subr.mxu0 0.0
        %948 = vmatpush1.msra.mxu0 0.0
        %949 = vmatprep.subr.mxu0 0.0
        %950 = vmatpush1.msra.mxu0 0.0
        %951 = vmatprep.subr.mxu0 0.0
        %952 = vmatpush1.msra.mxu0 0.0
        %953 = vmatprep.subr.mxu0 0.0
        %954 = vmatpush1.msra.mxu0 0.0
        %955 = vmatprep.subr.mxu0 0.0
        %956 = vmatpush1.msra.mxu0 0.0
        %957 = vmatprep.subr.mxu0 0.0
        %958 = vmatpush1.msra.mxu0 0.0
        %959 = vmatprep.subr.mxu0 0.0
        %960 = vmatpush1.msra.mxu0 0.0
        %961 = vmatprep.subr.mxu0 0.0
        %962 = vmatpush1.msra.mxu0 0.0
        %963 = vmatprep.subr.mxu0 0.0
        %964 = vmatpush1.msra.mxu0 0.0
        %965 = vmatprep.subr.mxu0 0.0
        %966 = vmatpush1.msra.mxu0 0.0
        %967 = vmatprep.subr.mxu0 0.0
        %968 = vmatpush1.msra.mxu0 0.0
        %969 = vmatprep.subr.mxu0 0.0
        %970 = vmatpush1.msra.mxu0 0.0
        %971 = vmatprep.subr.mxu0 0.0
        %972 = vmatpush1.msra.mxu0 0.0
        %973 = vmatprep.subr.mxu0 0.0
        %974 = vmatpush1.msra.mxu0 0.0
        %975 = vmatprep.subr.mxu0 0.0
        %976 = vmatpush1.msra.mxu0 0.0
        %977 = vmatprep.subr.mxu0 0.0
        %978 = vmatpush1.msra.mxu0 0.0
        %979 = vmatprep.subr.mxu0 0.0
        %980 = vmatpush1.msra.mxu0 0.0
        %981 = vmatprep.subr.mxu0 0.0
        %982 = vmatpush1.msra.mxu0 0.0
        %983 = vmatprep.subr.mxu0 0.0
        %984 = vmatpush1.msra.mxu0 0.0
        %985 = vmatprep.subr.mxu0 0.0
        %986 = vmatpush1.msra.mxu0 0.0
        %987 = vmatprep.subr.mxu0 0.0
        %988 = vmatpush1.msra.mxu0 0.0
        %989 = vmatprep.subr.mxu0 0.0
        %990 = vmatpush1.msra.mxu0 0.0
        %991 = vmatprep.subr.mxu0 0.0
        %992 = vmatpush1.msra.mxu0 0.0
        %993 = vmatprep.mubr.f32.mxu0 0.0
        %994 = vmatmul.mubr.f32.gmra.mrb[0].mxu0 %v778
        %v995 = vpop.f32.mrb[0].mxu0
        %v996 = vadd.f32 %v410, %v995
        %v997 = vpop.f32.mrb[0].mxu0
        %998 = vdwg.mxu0
        %v1000 = vsel %vm193, %v172, 0
        %1002 = vmatprep.subr.mxu0 0.0
        %1003 = vmatpush1.msra.mxu0 %v1000
        %1004 = vmatprep.subr.mxu0 0.0
        %1005 = vmatpush1.msra.mxu0 0.0
        %1006 = vmatprep.subr.mxu0 0.0
        %1007 = vmatpush1.msra.mxu0 0.0
        %1008 = vmatprep.subr.mxu0 0.0
        %1009 = vmatpush1.msra.mxu0 0.0
        %1010 = vmatprep.subr.mxu0 0.0
        %1011 = vmatpush1.msra.mxu0 0.0
        %1012 = vmatprep.subr.mxu0 0.0
        %1013 = vmatpush1.msra.mxu0 0.0
        %1014 = vmatprep.subr.mxu0 0.0
        %1015 = vmatpush1.msra.mxu0 0.0
        %1016 = vmatprep.subr.mxu0 0.0
        %1017 = vmatpush1.msra.mxu0 0.0
        %1018 = vmatprep.subr.mxu0 0.0
        %1019 = vmatpush1.msra.mxu0 0.0
        %1020 = vmatprep.subr.mxu0 0.0
        %1021 = vmatpush1.msra.mxu0 0.0
        %1022 = vmatprep.subr.mxu0 0.0
        %1023 = vmatpush1.msra.mxu0 0.0
        %1024 = vmatprep.subr.mxu0 0.0
        %1025 = vmatpush1.msra.mxu0 0.0
        %1026 = vmatprep.subr.mxu0 0.0
        %1027 = vmatpush1.msra.mxu0 0.0
        %1028 = vmatprep.subr.mxu0 0.0
        %1029 = vmatpush1.msra.mxu0 0.0
        %1030 = vmatprep.subr.mxu0 0.0
        %1031 = vmatpush1.msra.mxu0 0.0
        %1032 = vmatprep.subr.mxu0 0.0
        %1033 = vmatpush1.msra.mxu0 0.0
        %1034 = vmatprep.subr.mxu0 0.0
        %1035 = vmatpush1.msra.mxu0 0.0
        %1036 = vmatprep.subr.mxu0 0.0
        %1037 = vmatpush1.msra.mxu0 0.0
        %1038 = vmatprep.subr.mxu0 0.0
        %1039 = vmatpush1.msra.mxu0 0.0
        %1040 = vmatprep.subr.mxu0 0.0
        %1041 = vmatpush1.msra.mxu0 0.0
        %1042 = vmatprep.subr.mxu0 0.0
        %1043 = vmatpush1.msra.mxu0 0.0
        %1044 = vmatprep.subr.mxu0 0.0
        %1045 = vmatpush1.msra.mxu0 0.0
        %1046 = vmatprep.subr.mxu0 0.0
        %1047 = vmatpush1.msra.mxu0 0.0
        %1048 = vmatprep.subr.mxu0 0.0
        %1049 = vmatpush1.msra.mxu0 0.0
        %1050 = vmatprep.subr.mxu0 0.0
        %1051 = vmatpush1.msra.mxu0 0.0
        %1052 = vmatprep.subr.mxu0 0.0
        %1053 = vmatpush1.msra.mxu0 0.0
        %1054 = vmatprep.subr.mxu0 0.0
        %1055 = vmatpush1.msra.mxu0 0.0
        %1056 = vmatprep.subr.mxu0 0.0
        %1057 = vmatpush1.msra.mxu0 0.0
        %1058 = vmatprep.subr.mxu0 0.0
        %1059 = vmatpush1.msra.mxu0 0.0
        %1060 = vmatprep.subr.mxu0 0.0
        %1061 = vmatpush1.msra.mxu0 0.0
        %1062 = vmatprep.subr.mxu0 0.0
        %1063 = vmatpush1.msra.mxu0 0.0
        %1064 = vmatprep.subr.mxu0 0.0
        %1065 = vmatpush1.msra.mxu0 0.0
        %1066 = vmatprep.mubr.f32.mxu0 0.0
        %1067 = vmatmul.mubr.f32.gmra.mrb[0].mxu0 %v778
        %v1068 = vpop.f32.mrb[0].mxu0
        %v1069 = vadd.f32 %v483, %v1068
        %v1070 = vpop.f32.mrb[0].mxu0
        %1071 = vdwg.mxu0
        %v1073 = vsel %vm193, %v173, 0
        %1075 = vmatprep.subr.mxu0 0.0
        %1076 = vmatpush1.msra.mxu0 %v1073
        %1077 = vmatprep.subr.mxu0 0.0
        %1078 = vmatpush1.msra.mxu0 0.0
        %1079 = vmatprep.subr.mxu0 0.0
        %1080 = vmatpush1.msra.mxu0 0.0
        %1081 = vmatprep.subr.mxu0 0.0
        %1082 = vmatpush1.msra.mxu0 0.0
        %1083 = vmatprep.subr.mxu0 0.0
        %1084 = vmatpush1.msra.mxu0 0.0
        %1085 = vmatprep.subr.mxu0 0.0
        %1086 = vmatpush1.msra.mxu0 0.0
        %1087 = vmatprep.subr.mxu0 0.0
        %1088 = vmatpush1.msra.mxu0 0.0
        %1089 = vmatprep.subr.mxu0 0.0
        %1090 = vmatpush1.msra.mxu0 0.0
        %1091 = vmatprep.subr.mxu0 0.0
        %1092 = vmatpush1.msra.mxu0 0.0
        %1093 = vmatprep.subr.mxu0 0.0
        %1094 = vmatpush1.msra.mxu0 0.0
        %1095 = vmatprep.subr.mxu0 0.0
        %1096 = vmatpush1.msra.mxu0 0.0
        %1097 = vmatprep.subr.mxu0 0.0
        %1098 = vmatpush1.msra.mxu0 0.0
        %1099 = vmatprep.subr.mxu0 0.0
        %1100 = vmatpush1.msra.mxu0 0.0
        %1101 = vmatprep.subr.mxu0 0.0
        %1102 = vmatpush1.msra.mxu0 0.0
        %1103 = vmatprep.subr.mxu0 0.0
        %1104 = vmatpush1.msra.mxu0 0.0
        %1105 = vmatprep.subr.mxu0 0.0
        %1106 = vmatpush1.msra.mxu0 0.0
        %1107 = vmatprep.subr.mxu0 0.0
        %1108 = vmatpush1.msra.mxu0 0.0
        %1109 = vmatprep.subr.mxu0 0.0
        %1110 = vmatpush1.msra.mxu0 0.0
        %1111 = vmatprep.subr.mxu0 0.0
        %1112 = vmatpush1.msra.mxu0 0.0
        %1113 = vmatprep.subr.mxu0 0.0
        %1114 = vmatpush1.msra.mxu0 0.0
        %1115 = vmatprep.subr.mxu0 0.0
        %1116 = vmatpush1.msra.mxu0 0.0
        %1117 = vmatprep.subr.mxu0 0.0
        %1118 = vmatpush1.msra.mxu0 0.0
        %1119 = vmatprep.subr.mxu0 0.0
        %1120 = vmatpush1.msra.mxu0 0.0
        %1121 = vmatprep.subr.mxu0 0.0
        %1122 = vmatpush1.msra.mxu0 0.0
        %1123 = vmatprep.subr.mxu0 0.0
        %1124 = vmatpush1.msra.mxu0 0.0
        %1125 = vmatprep.subr.mxu0 0.0
        %1126 = vmatpush1.msra.mxu0 0.0
        %1127 = vmatprep.subr.mxu0 0.0
        %1128 = vmatpush1.msra.mxu0 0.0
        %1129 = vmatprep.subr.mxu0 0.0
        %1130 = vmatpush1.msra.mxu0 0.0
        %1131 = vmatprep.subr.mxu0 0.0
        %1132 = vmatpush1.msra.mxu0 0.0
        %1133 = vmatprep.subr.mxu0 0.0
        %1134 = vmatpush1.msra.mxu0 0.0
        %1135 = vmatprep.subr.mxu0 0.0
        %1136 = vmatpush1.msra.mxu0 0.0
        %1137 = vmatprep.subr.mxu0 0.0
        %1138 = vmatpush1.msra.mxu0 0.0
        %1139 = vmatprep.mubr.f32.mxu0 0.0
        %1140 = vmatmul.mubr.f32.gmra.mrb[0].mxu0 %v778
        %v1141 = vpop.f32.mrb[0].mxu0
        %v1142 = vadd.f32 %v556, %v1141
        %v1143 = vpop.f32.mrb[0].mxu0
        %1144 = vdwg.mxu0
        %v1146 = vsel %vm193, %v174, 0
        %1148 = vmatprep.subr.mxu0 0.0
        %1149 = vmatpush1.msra.mxu0 %v1146
        %1150 = vmatprep.subr.mxu0 0.0
        %1151 = vmatpush1.msra.mxu0 0.0
        %1152 = vmatprep.subr.mxu0 0.0
        %1153 = vmatpush1.msra.mxu0 0.0
        %1154 = vmatprep.subr.mxu0 0.0
        %1155 = vmatpush1.msra.mxu0 0.0
        %1156 = vmatprep.subr.mxu0 0.0
        %1157 = vmatpush1.msra.mxu0 0.0
        %1158 = vmatprep.subr.mxu0 0.0
        %1159 = vmatpush1.msra.mxu0 0.0
        %1160 = vmatprep.subr.mxu0 0.0
        %1161 = vmatpush1.msra.mxu0 0.0
        %1162 = vmatprep.subr.mxu0 0.0
        %1163 = vmatpush1.msra.mxu0 0.0
        %1164 = vmatprep.subr.mxu0 0.0
        %1165 = vmatpush1.msra.mxu0 0.0
        %1166 = vmatprep.subr.mxu0 0.0
        %1167 = vmatpush1.msra.mxu0 0.0
        %1168 = vmatprep.subr.mxu0 0.0
        %1169 = vmatpush1.msra.mxu0 0.0
        %1170 = vmatprep.subr.mxu0 0.0
        %1171 = vmatpush1.msra.mxu0 0.0
        %1172 = vmatprep.subr.mxu0 0.0
        %1173 = vmatpush1.msra.mxu0 0.0
        %1174 = vmatprep.subr.mxu0 0.0
        %1175 = vmatpush1.msra.mxu0 0.0
        %1176 = vmatprep.subr.mxu0 0.0
        %1177 = vmatpush1.msra.mxu0 0.0
        %1178 = vmatprep.subr.mxu0 0.0
        %1179 = vmatpush1.msra.mxu0 0.0
        %1180 = vmatprep.subr.mxu0 0.0
        %1181 = vmatpush1.msra.mxu0 0.0
        %1182 = vmatprep.subr.mxu0 0.0
        %1183 = vmatpush1.msra.mxu0 0.0
        %1184 = vmatprep.subr.mxu0 0.0
        %1185 = vmatpush1.msra.mxu0 0.0
        %1186 = vmatprep.subr.mxu0 0.0
        %1187 = vmatpush1.msra.mxu0 0.0
        %1188 = vmatprep.subr.mxu0 0.0
        %1189 = vmatpush1.msra.mxu0 0.0
        %1190 = vmatprep.subr.mxu0 0.0
        %1191 = vmatpush1.msra.mxu0 0.0
        %1192 = vmatprep.subr.mxu0 0.0
        %1193 = vmatpush1.msra.mxu0 0.0
        %1194 = vmatprep.subr.mxu0 0.0
        %1195 = vmatpush1.msra.mxu0 0.0
        %1196 = vmatprep.subr.mxu0 0.0
        %1197 = vmatpush1.msra.mxu0 0.0
        %1198 = vmatprep.subr.mxu0 0.0
        %1199 = vmatpush1.msra.mxu0 0.0
        %1200 = vmatprep.subr.mxu0 0.0
        %1201 = vmatpush1.msra.mxu0 0.0
        %1202 = vmatprep.subr.mxu0 0.0
        %1203 = vmatpush1.msra.mxu0 0.0
        %1204 = vmatprep.subr.mxu0 0.0
        %1205 = vmatpush1.msra.mxu0 0.0
        %1206 = vmatprep.subr.mxu0 0.0
        %1207 = vmatpush1.msra.mxu0 0.0
        %1208 = vmatprep.subr.mxu0 0.0
        %1209 = vmatpush1.msra.mxu0 0.0
        %1210 = vmatprep.subr.mxu0 0.0
        %1211 = vmatpush1.msra.mxu0 0.0
        %1212 = vmatprep.mubr.f32.mxu0 0.0
        %1213 = vmatmul.mubr.f32.gmra.mrb[0].mxu0 %v778
        %v1214 = vpop.f32.mrb[0].mxu0
        %v1215 = vadd.f32 %v629, %v1214
        %v1216 = vpop.f32.mrb[0].mxu0
        %1217 = vdwg.mxu0
        %v1219 = vsel %vm193, %v175, 0
        %1221 = vmatprep.subr.mxu0 0.0
        %1222 = vmatpush1.msra.mxu0 %v1219
        %1223 = vmatprep.subr.mxu0 0.0
        %1224 = vmatpush1.msra.mxu0 0.0
        %1225 = vmatprep.subr.mxu0 0.0
        %1226 = vmatpush1.msra.mxu0 0.0
        %1227 = vmatprep.subr.mxu0 0.0
        %1228 = vmatpush1.msra.mxu0 0.0
        %1229 = vmatprep.subr.mxu0 0.0
        %1230 = vmatpush1.msra.mxu0 0.0
        %1231 = vmatprep.subr.mxu0 0.0
        %1232 = vmatpush1.msra.mxu0 0.0
        %1233 = vmatprep.subr.mxu0 0.0
        %1234 = vmatpush1.msra.mxu0 0.0
        %1235 = vmatprep.subr.mxu0 0.0
        %1236 = vmatpush1.msra.mxu0 0.0
        %1237 = vmatprep.subr.mxu0 0.0
        %1238 = vmatpush1.msra.mxu0 0.0
        %1239 = vmatprep.subr.mxu0 0.0
        %1240 = vmatpush1.msra.mxu0 0.0
        %1241 = vmatprep.subr.mxu0 0.0
        %1242 = vmatpush1.msra.mxu0 0.0
        %1243 = vmatprep.subr.mxu0 0.0
        %1244 = vmatpush1.msra.mxu0 0.0
        %1245 = vmatprep.subr.mxu0 0.0
        %1246 = vmatpush1.msra.mxu0 0.0
        %1247 = vmatprep.subr.mxu0 0.0
        %1248 = vmatpush1.msra.mxu0 0.0
        %1249 = vmatprep.subr.mxu0 0.0
        %1250 = vmatpush1.msra.mxu0 0.0
        %1251 = vmatprep.subr.mxu0 0.0
        %1252 = vmatpush1.msra.mxu0 0.0
        %1253 = vmatprep.subr.mxu0 0.0
        %1254 = vmatpush1.msra.mxu0 0.0
        %1255 = vmatprep.subr.mxu0 0.0
        %1256 = vmatpush1.msra.mxu0 0.0
        %1257 = vmatprep.subr.mxu0 0.0
        %1258 = vmatpush1.msra.mxu0 0.0
        %1259 = vmatprep.subr.mxu0 0.0
        %1260 = vmatpush1.msra.mxu0 0.0
        %1261 = vmatprep.subr.mxu0 0.0
        %1262 = vmatpush1.msra.mxu0 0.0
        %1263 = vmatprep.subr.mxu0 0.0
        %1264 = vmatpush1.msra.mxu0 0.0
        %1265 = vmatprep.subr.mxu0 0.0
        %1266 = vmatpush1.msra.mxu0 0.0
        %1267 = vmatprep.subr.mxu0 0.0
        %1268 = vmatpush1.msra.mxu0 0.0
        %1269 = vmatprep.subr.mxu0 0.0
        %1270 = vmatpush1.msra.mxu0 0.0
        %1271 = vmatprep.subr.mxu0 0.0
        %1272 = vmatpush1.msra.mxu0 0.0
        %1273 = vmatprep.subr.mxu0 0.0
        %1274 = vmatpush1.msra.mxu0 0.0
        %1275 = vmatprep.subr.mxu0 0.0
        %1276 = vmatpush1.msra.mxu0 0.0
        %1277 = vmatprep.subr.mxu0 0.0
        %1278 = vmatpush1.msra.mxu0 0.0
        %1279 = vmatprep.subr.mxu0 0.0
        %1280 = vmatpush1.msra.mxu0 0.0
        %1281 = vmatprep.subr.mxu0 0.0
        %1282 = vmatpush1.msra.mxu0 0.0
        %1283 = vmatprep.subr.mxu0 0.0
        %1284 = vmatpush1.msra.mxu0 0.0
        %1285 = vmatprep.mubr.f32.mxu0 0.0
        %1286 = vmatmul.mubr.f32.gmra.mrb[0].mxu0 %v778
        %v1287 = vpop.f32.mrb[0].mxu0
        %v1288 = vadd.f32 %v702, %v1287
        %v1289 = vpop.f32.mrb[0].mxu0
        %1290 = vdwg.mxu0
        %v1292 = vsel %vm193, %v176, 0
        %1294 = vmatprep.subr.mxu0 0.0
        %1295 = vmatpush1.msra.mxu0 %v1292
        %1296 = vmatprep.subr.mxu0 0.0
        %1297 = vmatpush1.msra.mxu0 0.0
        %1298 = vmatprep.subr.mxu0 0.0
        %1299 = vmatpush1.msra.mxu0 0.0
        %1300 = vmatprep.subr.mxu0 0.0
        %1301 = vmatpush1.msra.mxu0 0.0
        %1302 = vmatprep.subr.mxu0 0.0
        %1303 = vmatpush1.msra.mxu0 0.0
        %1304 = vmatprep.subr.mxu0 0.0
        %1305 = vmatpush1.msra.mxu0 0.0
        %1306 = vmatprep.subr.mxu0 0.0
        %1307 = vmatpush1.msra.mxu0 0.0
        %1308 = vmatprep.subr.mxu0 0.0
        %1309 = vmatpush1.msra.mxu0 0.0
        %1310 = vmatprep.subr.mxu0 0.0
        %1311 = vmatpush1.msra.mxu0 0.0
        %1312 = vmatprep.subr.mxu0 0.0
        %1313 = vmatpush1.msra.mxu0 0.0
        %1314 = vmatprep.subr.mxu0 0.0
        %1315 = vmatpush1.msra.mxu0 0.0
        %1316 = vmatprep.subr.mxu0 0.0
        %1317 = vmatpush1.msra.mxu0 0.0
        %1318 = vmatprep.subr.mxu0 0.0
        %1319 = vmatpush1.msra.mxu0 0.0
        %1320 = vmatprep.subr.mxu0 0.0
        %1321 = vmatpush1.msra.mxu0 0.0
        %1322 = vmatprep.subr.mxu0 0.0
        %1323 = vmatpush1.msra.mxu0 0.0
        %1324 = vmatprep.subr.mxu0 0.0
        %1325 = vmatpush1.msra.mxu0 0.0
        %1326 = vmatprep.subr.mxu0 0.0
        %1327 = vmatpush1.msra.mxu0 0.0
        %1328 = vmatprep.subr.mxu0 0.0
        %1329 = vmatpush1.msra.mxu0 0.0
        %1330 = vmatprep.subr.mxu0 0.0
        %1331 = vmatpush1.msra.mxu0 0.0
        %1332 = vmatprep.subr.mxu0 0.0
        %1333 = vmatpush1.msra.mxu0 0.0
        %1334 = vmatprep.subr.mxu0 0.0
        %1335 = vmatpush1.msra.mxu0 0.0
        %1336 = vmatprep.subr.mxu0 0.0
        %1337 = vmatpush1.msra.mxu0 0.0
        %1338 = vmatprep.subr.mxu0 0.0
        %1339 = vmatpush1.msra.mxu0 0.0
        %1340 = vmatprep.subr.mxu0 0.0
        %1341 = vmatpush1.msra.mxu0 0.0
        %1342 = vmatprep.subr.mxu0 0.0
        %1343 = vmatpush1.msra.mxu0 0.0
        %1344 = vmatprep.subr.mxu0 0.0
        %1345 = vmatpush1.msra.mxu0 0.0
        %1346 = vmatprep.subr.mxu0 0.0
        %1347 = vmatpush1.msra.mxu0 0.0
        %1348 = vmatprep.subr.mxu0 0.0
        %1349 = vmatpush1.msra.mxu0 0.0
        %1350 = vmatprep.subr.mxu0 0.0
        %1351 = vmatpush1.msra.mxu0 0.0
        %1352 = vmatprep.subr.mxu0 0.0
        %1353 = vmatpush1.msra.mxu0 0.0
        %1354 = vmatprep.subr.mxu0 0.0
        %1355 = vmatpush1.msra.mxu0 0.0
        %1356 = vmatprep.subr.mxu0 0.0
        %1357 = vmatpush1.msra.mxu0 0.0
        %1358 = vmatprep.mubr.f32.mxu0 0.0
        %1359 = vmatmul.mubr.f32.gmra.mrb[0].mxu0 %v778
        %v1360 = vpop.f32.mrb[0].mxu0
        %v1361 = vadd.f32 %v775, %v1360
        %v1362 = vpop.f32.mrb[0].mxu0
        %1363 = vdwg.mxu0
        %1364 = vrot.lane.b32.xlu0 %v177, 120
        %v1365 = vpop.permute.xlu0 %1364
        %1366 = vrot.lane.b32.xlu0 %v169, 127
        %v1367 = vpop.permute.xlu0 %1366
        %v1368 = vsel %vm190, %v1365, 0
        %v1370 = vsel %vm193, %v1367, 0
        %1372 = vmatprep.subr.mxu0 0.0
        %1373 = vmatpush1.msra.mxu0 %v1370
        %1374 = vmatprep.subr.mxu0 0.0
        %1375 = vmatpush1.msra.mxu0 0.0
        %1376 = vmatprep.subr.mxu0 0.0
        %1377 = vmatpush1.msra.mxu0 0.0
        %1378 = vmatprep.subr.mxu0 0.0
        %1379 = vmatpush1.msra.mxu0 0.0
        %1380 = vmatprep.subr.mxu0 0.0
        %1381 = vmatpush1.msra.mxu0 0.0
        %1382 = vmatprep.subr.mxu0 0.0
        %1383 = vmatpush1.msra.mxu0 0.0
        %1384 = vmatprep.subr.mxu0 0.0
        %1385 = vmatpush1.msra.mxu0 0.0
        %1386 = vmatprep.subr.mxu0 0.0
        %1387 = vmatpush1.msra.mxu0 0.0
        %1388 = vmatprep.subr.mxu0 0.0
        %1389 = vmatpush1.msra.mxu0 0.0
        %1390 = vmatprep.subr.mxu0 0.0
        %1391 = vmatpush1.msra.mxu0 0.0
        %1392 = vmatprep.subr.mxu0 0.0
        %1393 = vmatpush1.msra.mxu0 0.0
        %1394 = vmatprep.subr.mxu0 0.0
        %1395 = vmatpush1.msra.mxu0 0.0
        %1396 = vmatprep.subr.mxu0 0.0
        %1397 = vmatpush1.msra.mxu0 0.0
        %1398 = vmatprep.subr.mxu0 0.0
        %1399 = vmatpush1.msra.mxu0 0.0
        %1400 = vmatprep.subr.mxu0 0.0
        %1401 = vmatpush1.msra.mxu0 0.0
        %1402 = vmatprep.subr.mxu0 0.0
        %1403 = vmatpush1.msra.mxu0 0.0
        %1404 = vmatprep.subr.mxu0 0.0
        %1405 = vmatpush1.msra.mxu0 0.0
        %1406 = vmatprep.subr.mxu0 0.0
        %1407 = vmatpush1.msra.mxu0 0.0
        %1408 = vmatprep.subr.mxu0 0.0
        %1409 = vmatpush1.msra.mxu0 0.0
        %1410 = vmatprep.subr.mxu0 0.0
        %1411 = vmatpush1.msra.mxu0 0.0
        %1412 = vmatprep.subr.mxu0 0.0
        %1413 = vmatpush1.msra.mxu0 0.0
        %1414 = vmatprep.subr.mxu0 0.0
        %1415 = vmatpush1.msra.mxu0 0.0
        %1416 = vmatprep.subr.mxu0 0.0
        %1417 = vmatpush1.msra.mxu0 0.0
        %1418 = vmatprep.subr.mxu0 0.0
        %1419 = vmatpush1.msra.mxu0 0.0
        %1420 = vmatprep.subr.mxu0 0.0
        %1421 = vmatpush1.msra.mxu0 0.0
        %1422 = vmatprep.subr.mxu0 0.0
        %1423 = vmatpush1.msra.mxu0 0.0
        %1424 = vmatprep.subr.mxu0 0.0
        %1425 = vmatpush1.msra.mxu0 0.0
        %1426 = vmatprep.subr.mxu0 0.0
        %1427 = vmatpush1.msra.mxu0 0.0
        %1428 = vmatprep.subr.mxu0 0.0
        %1429 = vmatpush1.msra.mxu0 0.0
        %1430 = vmatprep.subr.mxu0 0.0
        %1431 = vmatpush1.msra.mxu0 0.0
        %1432 = vmatprep.subr.mxu0 0.0
        %1433 = vmatpush1.msra.mxu0 0.0
        %1434 = vmatprep.subr.mxu0 0.0
        %1435 = vmatpush1.msra.mxu0 0.0
        %1436 = vmatprep.mubr.f32.mxu0 0.0
        %1437 = vmatmul.mubr.f32.gmra.mrb[0].mxu0 %v1368
        %v1438 = vpop.f32.mrb[0].mxu0
        %v1439 = vadd.f32 0.0, %v1438
        %v1440 = vpop.f32.mrb[0].mxu0
        %1441 = vdwg.mxu0
        %1442 = vrot.lane.b32.xlu0 %v170, 127
        %v1443 = vpop.permute.xlu0 %1442
        %v1444 = vsel %vm193, %v1443, 0
        %1446 = vmatprep.subr.mxu0 0.0
        %1447 = vmatpush1.msra.mxu0 %v1444
        %1448 = vmatprep.subr.mxu0 0.0
        %1449 = vmatpush1.msra.mxu0 0.0
        %1450 = vmatprep.subr.mxu0 0.0
        %1451 = vmatpush1.msra.mxu0 0.0
        %1452 = vmatprep.subr.mxu0 0.0
        %1453 = vmatpush1.msra.mxu0 0.0
        %1454 = vmatprep.subr.mxu0 0.0
        %1455 = vmatpush1.msra.mxu0 0.0
        %1456 = vmatprep.subr.mxu0 0.0
        %1457 = vmatpush1.msra.mxu0 0.0
        %1458 = vmatprep.subr.mxu0 0.0
        %1459 = vmatpush1.msra.mxu0 0.0
        %1460 = vmatprep.subr.mxu0 0.0
        %1461 = vmatpush1.msra.mxu0 0.0
        %1462 = vmatprep.subr.mxu0 0.0
        %1463 = vmatpush1.msra.mxu0 0.0
        %1464 = vmatprep.subr.mxu0 0.0
        %1465 = vmatpush1.msra.mxu0 0.0
        %1466 = vmatprep.subr.mxu0 0.0
        %1467 = vmatpush1.msra.mxu0 0.0
        %1468 = vmatprep.subr.mxu0 0.0
        %1469 = vmatpush1.msra.mxu0 0.0
        %1470 = vmatprep.subr.mxu0 0.0
        %1471 = vmatpush1.msra.mxu0 0.0
        %1472 = vmatprep.subr.mxu0 0.0
        %1473 = vmatpush1.msra.mxu0 0.0
        %1474 = vmatprep.subr.mxu0 0.0
        %1475 = vmatpush1.msra.mxu0 0.0
        %1476 = vmatprep.subr.mxu0 0.0
        %1477 = vmatpush1.msra.mxu0 0.0
        %1478 = vmatprep.subr.mxu0 0.0
        %1479 = vmatpush1.msra.mxu0 0.0
        %1480 = vmatprep.subr.mxu0 0.0
        %1481 = vmatpush1.msra.mxu0 0.0
        %1482 = vmatprep.subr.mxu0 0.0
        %1483 = vmatpush1.msra.mxu0 0.0
        %1484 = vmatprep.subr.mxu0 0.0
        %1485 = vmatpush1.msra.mxu0 0.0
        %1486 = vmatprep.subr.mxu0 0.0
        %1487 = vmatpush1.msra.mxu0 0.0
        %1488 = vmatprep.subr.mxu0 0.0
        %1489 = vmatpush1.msra.mxu0 0.0
        %1490 = vmatprep.subr.mxu0 0.0
        %1491 = vmatpush1.msra.mxu0 0.0
        %1492 = vmatprep.subr.mxu0 0.0
        %1493 = vmatpush1.msra.mxu0 0.0
        %1494 = vmatprep.subr.mxu0 0.0
        %1495 = vmatpush1.msra.mxu0 0.0
        %1496 = vmatprep.subr.mxu0 0.0
        %1497 = vmatpush1.msra.mxu0 0.0
        %1498 = vmatprep.subr.mxu0 0.0
        %1499 = vmatpush1.msra.mxu0 0.0
        %1500 = vmatprep.subr.mxu0 0.0
        %1501 = vmatpush1.msra.mxu0 0.0
        %1502 = vmatprep.subr.mxu0 0.0
        %1503 = vmatpush1.msra.mxu0 0.0
        %1504 = vmatprep.subr.mxu0 0.0
        %1505 = vmatpush1.msra.mxu0 0.0
        %1506 = vmatprep.subr.mxu0 0.0
        %1507 = vmatpush1.msra.mxu0 0.0
        %1508 = vmatprep.subr.mxu0 0.0
        %1509 = vmatpush1.msra.mxu0 0.0
        %1510 = vmatprep.mubr.f32.mxu0 0.0
        %1511 = vmatmul.mubr.f32.gmra.mrb[0].mxu0 %v1368
        %v1512 = vpop.f32.mrb[0].mxu0
        %v1513 = vadd.f32 0.0, %v1512
        %v1514 = vpop.f32.mrb[0].mxu0
        %1515 = vdwg.mxu0
        %1516 = vrot.lane.b32.xlu0 %v171, 127
        %v1517 = vpop.permute.xlu0 %1516
        %v1518 = vsel %vm193, %v1517, 0
        %1520 = vmatprep.subr.mxu0 0.0
        %1521 = vmatpush1.msra.mxu0 %v1518
        %1522 = vmatprep.subr.mxu0 0.0
        %1523 = vmatpush1.msra.mxu0 0.0
        %1524 = vmatprep.subr.mxu0 0.0
        %1525 = vmatpush1.msra.mxu0 0.0
        %1526 = vmatprep.subr.mxu0 0.0
        %1527 = vmatpush1.msra.mxu0 0.0
        %1528 = vmatprep.subr.mxu0 0.0
        %1529 = vmatpush1.msra.mxu0 0.0
        %1530 = vmatprep.subr.mxu0 0.0
        %1531 = vmatpush1.msra.mxu0 0.0
        %1532 = vmatprep.subr.mxu0 0.0
        %1533 = vmatpush1.msra.mxu0 0.0
        %1534 = vmatprep.subr.mxu0 0.0
        %1535 = vmatpush1.msra.mxu0 0.0
        %1536 = vmatprep.subr.mxu0 0.0
        %1537 = vmatpush1.msra.mxu0 0.0
        %1538 = vmatprep.subr.mxu0 0.0
        %1539 = vmatpush1.msra.mxu0 0.0
        %1540 = vmatprep.subr.mxu0 0.0
        %1541 = vmatpush1.msra.mxu0 0.0
        %1542 = vmatprep.subr.mxu0 0.0
        %1543 = vmatpush1.msra.mxu0 0.0
        %1544 = vmatprep.subr.mxu0 0.0
        %1545 = vmatpush1.msra.mxu0 0.0
        %1546 = vmatprep.subr.mxu0 0.0
        %1547 = vmatpush1.msra.mxu0 0.0
        %1548 = vmatprep.subr.mxu0 0.0
        %1549 = vmatpush1.msra.mxu0 0.0
        %1550 = vmatprep.subr.mxu0 0.0
        %1551 = vmatpush1.msra.mxu0 0.0
        %1552 = vmatprep.subr.mxu0 0.0
        %1553 = vmatpush1.msra.mxu0 0.0
        %1554 = vmatprep.subr.mxu0 0.0
        %1555 = vmatpush1.msra.mxu0 0.0
        %1556 = vmatprep.subr.mxu0 0.0
        %1557 = vmatpush1.msra.mxu0 0.0
        %1558 = vmatprep.subr.mxu0 0.0
        %1559 = vmatpush1.msra.mxu0 0.0
        %1560 = vmatprep.subr.mxu0 0.0
        %1561 = vmatpush1.msra.mxu0 0.0
        %1562 = vmatprep.subr.mxu0 0.0
        %1563 = vmatpush1.msra.mxu0 0.0
        %1564 = vmatprep.subr.mxu0 0.0
        %1565 = vmatpush1.msra.mxu0 0.0
        %1566 = vmatprep.subr.mxu0 0.0
        %1567 = vmatpush1.msra.mxu0 0.0
        %1568 = vmatprep.subr.mxu0 0.0
        %1569 = vmatpush1.msra.mxu0 0.0
        %1570 = vmatprep.subr.mxu0 0.0
        %1571 = vmatpush1.msra.mxu0 0.0
        %1572 = vmatprep.subr.mxu0 0.0
        %1573 = vmatpush1.msra.mxu0 0.0
        %1574 = vmatprep.subr.mxu0 0.0
        %1575 = vmatpush1.msra.mxu0 0.0
        %1576 = vmatprep.subr.mxu0 0.0
        %1577 = vmatpush1.msra.mxu0 0.0
        %1578 = vmatprep.subr.mxu0 0.0
        %1579 = vmatpush1.msra.mxu0 0.0
        %1580 = vmatprep.subr.mxu0 0.0
        %1581 = vmatpush1.msra.mxu0 0.0
        %1582 = vmatprep.subr.mxu0 0.0
        %1583 = vmatpush1.msra.mxu0 0.0
        %1584 = vmatprep.mubr.f32.mxu0 0.0
        %1585 = vmatmul.mubr.f32.gmra.mrb[0].mxu0 %v1368
        %v1586 = vpop.f32.mrb[0].mxu0
        %v1587 = vadd.f32 0.0, %v1586
        %v1588 = vpop.f32.mrb[0].mxu0
        %1589 = vdwg.mxu0
        %1590 = vrot.lane.b32.xlu0 %v172, 127
        %v1591 = vpop.permute.xlu0 %1590
        %v1592 = vsel %vm193, %v1591, 0
        %1594 = vmatprep.subr.mxu0 0.0
        %1595 = vmatpush1.msra.mxu0 %v1592
        %1596 = vmatprep.subr.mxu0 0.0
        %1597 = vmatpush1.msra.mxu0 0.0
        %1598 = vmatprep.subr.mxu0 0.0
        %1599 = vmatpush1.msra.mxu0 0.0
        %1600 = vmatprep.subr.mxu0 0.0
        %1601 = vmatpush1.msra.mxu0 0.0
        %1602 = vmatprep.subr.mxu0 0.0
        %1603 = vmatpush1.msra.mxu0 0.0
        %1604 = vmatprep.subr.mxu0 0.0
        %1605 = vmatpush1.msra.mxu0 0.0
        %1606 = vmatprep.subr.mxu0 0.0
        %1607 = vmatpush1.msra.mxu0 0.0
        %1608 = vmatprep.subr.mxu0 0.0
        %1609 = vmatpush1.msra.mxu0 0.0
        %1610 = vmatprep.subr.mxu0 0.0
        %1611 = vmatpush1.msra.mxu0 0.0
        %1612 = vmatprep.subr.mxu0 0.0
        %1613 = vmatpush1.msra.mxu0 0.0
        %1614 = vmatprep.subr.mxu0 0.0
        %1615 = vmatpush1.msra.mxu0 0.0
        %1616 = vmatprep.subr.mxu0 0.0
        %1617 = vmatpush1.msra.mxu0 0.0
        %1618 = vmatprep.subr.mxu0 0.0
        %1619 = vmatpush1.msra.mxu0 0.0
        %1620 = vmatprep.subr.mxu0 0.0
        %1621 = vmatpush1.msra.mxu0 0.0
        %1622 = vmatprep.subr.mxu0 0.0
        %1623 = vmatpush1.msra.mxu0 0.0
        %1624 = vmatprep.subr.mxu0 0.0
        %1625 = vmatpush1.msra.mxu0 0.0
        %1626 = vmatprep.subr.mxu0 0.0
        %1627 = vmatpush1.msra.mxu0 0.0
        %1628 = vmatprep.subr.mxu0 0.0
        %1629 = vmatpush1.msra.mxu0 0.0
        %1630 = vmatprep.subr.mxu0 0.0
        %1631 = vmatpush1.msra.mxu0 0.0
        %1632 = vmatprep.subr.mxu0 0.0
        %1633 = vmatpush1.msra.mxu0 0.0
        %1634 = vmatprep.subr.mxu0 0.0
        %1635 = vmatpush1.msra.mxu0 0.0
        %1636 = vmatprep.subr.mxu0 0.0
        %1637 = vmatpush1.msra.mxu0 0.0
        %1638 = vmatprep.subr.mxu0 0.0
        %1639 = vmatpush1.msra.mxu0 0.0
        %1640 = vmatprep.subr.mxu0 0.0
        %1641 = vmatpush1.msra.mxu0 0.0
        %1642 = vmatprep.subr.mxu0 0.0
        %1643 = vmatpush1.msra.mxu0 0.0
        %1644 = vmatprep.subr.mxu0 0.0
        %1645 = vmatpush1.msra.mxu0 0.0
        %1646 = vmatprep.subr.mxu0 0.0
        %1647 = vmatpush1.msra.mxu0 0.0
        %1648 = vmatprep.subr.mxu0 0.0
        %1649 = vmatpush1.msra.mxu0 0.0
        %1650 = vmatprep.subr.mxu0 0.0
        %1651 = vmatpush1.msra.mxu0 0.0
        %1652 = vmatprep.subr.mxu0 0.0
        %1653 = vmatpush1.msra.mxu0 0.0
        %1654 = vmatprep.subr.mxu0 0.0
        %1655 = vmatpush1.msra.mxu0 0.0
        %1656 = vmatprep.subr.mxu0 0.0
        %1657 = vmatpush1.msra.mxu0 0.0
        %1658 = vmatprep.mubr.f32.mxu0 0.0
        %1659 = vmatmul.mubr.f32.gmra.mrb[0].mxu0 %v1368
        %v1660 = vpop.f32.mrb[0].mxu0
        %v1661 = vadd.f32 0.0, %v1660
        %v1662 = vpop.f32.mrb[0].mxu0
        %1663 = vdwg.mxu0
        %1664 = vrot.lane.b32.xlu0 %v173, 127
        %v1665 = vpop.permute.xlu0 %1664
        %v1666 = vsel %vm193, %v1665, 0
        %1668 = vmatprep.subr.mxu0 0.0
        %1669 = vmatpush1.msra.mxu0 %v1666
        %1670 = vmatprep.subr.mxu0 0.0
        %1671 = vmatpush1.msra.mxu0 0.0
        %1672 = vmatprep.subr.mxu0 0.0
        %1673 = vmatpush1.msra.mxu0 0.0
        %1674 = vmatprep.subr.mxu0 0.0
        %1675 = vmatpush1.msra.mxu0 0.0
        %1676 = vmatprep.subr.mxu0 0.0
        %1677 = vmatpush1.msra.mxu0 0.0
        %1678 = vmatprep.subr.mxu0 0.0
        %1679 = vmatpush1.msra.mxu0 0.0
        %1680 = vmatprep.subr.mxu0 0.0
        %1681 = vmatpush1.msra.mxu0 0.0
        %1682 = vmatprep.subr.mxu0 0.0
        %1683 = vmatpush1.msra.mxu0 0.0
        %1684 = vmatprep.subr.mxu0 0.0
        %1685 = vmatpush1.msra.mxu0 0.0
        %1686 = vmatprep.subr.mxu0 0.0
        %1687 = vmatpush1.msra.mxu0 0.0
        %1688 = vmatprep.subr.mxu0 0.0
        %1689 = vmatpush1.msra.mxu0 0.0
        %1690 = vmatprep.subr.mxu0 0.0
        %1691 = vmatpush1.msra.mxu0 0.0
        %1692 = vmatprep.subr.mxu0 0.0
        %1693 = vmatpush1.msra.mxu0 0.0
        %1694 = vmatprep.subr.mxu0 0.0
        %1695 = vmatpush1.msra.mxu0 0.0
        %1696 = vmatprep.subr.mxu0 0.0
        %1697 = vmatpush1.msra.mxu0 0.0
        %1698 = vmatprep.subr.mxu0 0.0
        %1699 = vmatpush1.msra.mxu0 0.0
        %1700 = vmatprep.subr.mxu0 0.0
        %1701 = vmatpush1.msra.mxu0 0.0
        %1702 = vmatprep.subr.mxu0 0.0
        %1703 = vmatpush1.msra.mxu0 0.0
        %1704 = vmatprep.subr.mxu0 0.0
        %1705 = vmatpush1.msra.mxu0 0.0
        %1706 = vmatprep.subr.mxu0 0.0
        %1707 = vmatpush1.msra.mxu0 0.0
        %1708 = vmatprep.subr.mxu0 0.0
        %1709 = vmatpush1.msra.mxu0 0.0
        %1710 = vmatprep.subr.mxu0 0.0
        %1711 = vmatpush1.msra.mxu0 0.0
        %1712 = vmatprep.subr.mxu0 0.0
        %1713 = vmatpush1.msra.mxu0 0.0
        %1714 = vmatprep.subr.mxu0 0.0
        %1715 = vmatpush1.msra.mxu0 0.0
        %1716 = vmatprep.subr.mxu0 0.0
        %1717 = vmatpush1.msra.mxu0 0.0
        %1718 = vmatprep.subr.mxu0 0.0
        %1719 = vmatpush1.msra.mxu0 0.0
        %1720 = vmatprep.subr.mxu0 0.0
        %1721 = vmatpush1.msra.mxu0 0.0
        %1722 = vmatprep.subr.mxu0 0.0
        %1723 = vmatpush1.msra.mxu0 0.0
        %1724 = vmatprep.subr.mxu0 0.0
        %1725 = vmatpush1.msra.mxu0 0.0
        %1726 = vmatprep.subr.mxu0 0.0
        %1727 = vmatpush1.msra.mxu0 0.0
        %1728 = vmatprep.subr.mxu0 0.0
        %1729 = vmatpush1.msra.mxu0 0.0
        %1730 = vmatprep.subr.mxu0 0.0
        %1731 = vmatpush1.msra.mxu0 0.0
        %1732 = vmatprep.mubr.f32.mxu0 0.0
        %1733 = vmatmul.mubr.f32.gmra.mrb[0].mxu0 %v1368
        %v1734 = vpop.f32.mrb[0].mxu0
        %v1735 = vadd.f32 0.0, %v1734
        %v1736 = vpop.f32.mrb[0].mxu0
        %1737 = vdwg.mxu0
        %1738 = vrot.lane.b32.xlu0 %v174, 127
        %v1739 = vpop.permute.xlu0 %1738
        %v1740 = vsel %vm193, %v1739, 0
        %1742 = vmatprep.subr.mxu0 0.0
        %1743 = vmatpush1.msra.mxu0 %v1740
        %1744 = vmatprep.subr.mxu0 0.0
        %1745 = vmatpush1.msra.mxu0 0.0
        %1746 = vmatprep.subr.mxu0 0.0
        %1747 = vmatpush1.msra.mxu0 0.0
        %1748 = vmatprep.subr.mxu0 0.0
        %1749 = vmatpush1.msra.mxu0 0.0
        %1750 = vmatprep.subr.mxu0 0.0
        %1751 = vmatpush1.msra.mxu0 0.0
        %1752 = vmatprep.subr.mxu0 0.0
        %1753 = vmatpush1.msra.mxu0 0.0
        %1754 = vmatprep.subr.mxu0 0.0
        %1755 = vmatpush1.msra.mxu0 0.0
        %1756 = vmatprep.subr.mxu0 0.0
        %1757 = vmatpush1.msra.mxu0 0.0
        %1758 = vmatprep.subr.mxu0 0.0
        %1759 = vmatpush1.msra.mxu0 0.0
        %1760 = vmatprep.subr.mxu0 0.0
        %1761 = vmatpush1.msra.mxu0 0.0
        %1762 = vmatprep.subr.mxu0 0.0
        %1763 = vmatpush1.msra.mxu0 0.0
        %1764 = vmatprep.subr.mxu0 0.0
        %1765 = vmatpush1.msra.mxu0 0.0
        %1766 = vmatprep.subr.mxu0 0.0
        %1767 = vmatpush1.msra.mxu0 0.0
        %1768 = vmatprep.subr.mxu0 0.0
        %1769 = vmatpush1.msra.mxu0 0.0
        %1770 = vmatprep.subr.mxu0 0.0
        %1771 = vmatpush1.msra.mxu0 0.0
        %1772 = vmatprep.subr.mxu0 0.0
        %1773 = vmatpush1.msra.mxu0 0.0
        %1774 = vmatprep.subr.mxu0 0.0
        %1775 = vmatpush1.msra.mxu0 0.0
        %1776 = vmatprep.subr.mxu0 0.0
        %1777 = vmatpush1.msra.mxu0 0.0
        %1778 = vmatprep.subr.mxu0 0.0
        %1779 = vmatpush1.msra.mxu0 0.0
        %1780 = vmatprep.subr.mxu0 0.0
        %1781 = vmatpush1.msra.mxu0 0.0
        %1782 = vmatprep.subr.mxu0 0.0
        %1783 = vmatpush1.msra.mxu0 0.0
        %1784 = vmatprep.subr.mxu0 0.0
        %1785 = vmatpush1.msra.mxu0 0.0
        %1786 = vmatprep.subr.mxu0 0.0
        %1787 = vmatpush1.msra.mxu0 0.0
        %1788 = vmatprep.subr.mxu0 0.0
        %1789 = vmatpush1.msra.mxu0 0.0
        %1790 = vmatprep.subr.mxu0 0.0
        %1791 = vmatpush1.msra.mxu0 0.0
        %1792 = vmatprep.subr.mxu0 0.0
        %1793 = vmatpush1.msra.mxu0 0.0
        %1794 = vmatprep.subr.mxu0 0.0
        %1795 = vmatpush1.msra.mxu0 0.0
        %1796 = vmatprep.subr.mxu0 0.0
        %1797 = vmatpush1.msra.mxu0 0.0
        %1798 = vmatprep.subr.mxu0 0.0
        %1799 = vmatpush1.msra.mxu0 0.0
        %1800 = vmatprep.subr.mxu0 0.0
        %1801 = vmatpush1.msra.mxu0 0.0
        %1802 = vmatprep.subr.mxu0 0.0
        %1803 = vmatpush1.msra.mxu0 0.0
        %1804 = vmatprep.subr.mxu0 0.0
        %1805 = vmatpush1.msra.mxu0 0.0
        %1806 = vmatprep.mubr.f32.mxu0 0.0
        %1807 = vmatmul.mubr.f32.gmra.mrb[0].mxu0 %v1368
        %v1808 = vpop.f32.mrb[0].mxu0
        %v1809 = vadd.f32 0.0, %v1808
        %v1810 = vpop.f32.mrb[0].mxu0
        %1811 = vdwg.mxu0
        %1812 = vrot.lane.b32.xlu0 %v175, 127
        %v1813 = vpop.permute.xlu0 %1812
        %v1814 = vsel %vm193, %v1813, 0
        %1816 = vmatprep.subr.mxu0 0.0
        %1817 = vmatpush1.msra.mxu0 %v1814
        %1818 = vmatprep.subr.mxu0 0.0
        %1819 = vmatpush1.msra.mxu0 0.0
        %1820 = vmatprep.subr.mxu0 0.0
        %1821 = vmatpush1.msra.mxu0 0.0
        %1822 = vmatprep.subr.mxu0 0.0
        %1823 = vmatpush1.msra.mxu0 0.0
        %1824 = vmatprep.subr.mxu0 0.0
        %1825 = vmatpush1.msra.mxu0 0.0
        %1826 = vmatprep.subr.mxu0 0.0
        %1827 = vmatpush1.msra.mxu0 0.0
        %1828 = vmatprep.subr.mxu0 0.0
        %1829 = vmatpush1.msra.mxu0 0.0
        %1830 = vmatprep.subr.mxu0 0.0
        %1831 = vmatpush1.msra.mxu0 0.0
        %1832 = vmatprep.subr.mxu0 0.0
        %1833 = vmatpush1.msra.mxu0 0.0
        %1834 = vmatprep.subr.mxu0 0.0
        %1835 = vmatpush1.msra.mxu0 0.0
        %1836 = vmatprep.subr.mxu0 0.0
        %1837 = vmatpush1.msra.mxu0 0.0
        %1838 = vmatprep.subr.mxu0 0.0
        %1839 = vmatpush1.msra.mxu0 0.0
        %1840 = vmatprep.subr.mxu0 0.0
        %1841 = vmatpush1.msra.mxu0 0.0
        %1842 = vmatprep.subr.mxu0 0.0
        %1843 = vmatpush1.msra.mxu0 0.0
        %1844 = vmatprep.subr.mxu0 0.0
        %1845 = vmatpush1.msra.mxu0 0.0
        %1846 = vmatprep.subr.mxu0 0.0
        %1847 = vmatpush1.msra.mxu0 0.0
        %1848 = vmatprep.subr.mxu0 0.0
        %1849 = vmatpush1.msra.mxu0 0.0
        %1850 = vmatprep.subr.mxu0 0.0
        %1851 = vmatpush1.msra.mxu0 0.0
        %1852 = vmatprep.subr.mxu0 0.0
        %1853 = vmatpush1.msra.mxu0 0.0
        %1854 = vmatprep.subr.mxu0 0.0
        %1855 = vmatpush1.msra.mxu0 0.0
        %1856 = vmatprep.subr.mxu0 0.0
        %1857 = vmatpush1.msra.mxu0 0.0
        %1858 = vmatprep.subr.mxu0 0.0
        %1859 = vmatpush1.msra.mxu0 0.0
        %1860 = vmatprep.subr.mxu0 0.0
        %1861 = vmatpush1.msra.mxu0 0.0
        %1862 = vmatprep.subr.mxu0 0.0
        %1863 = vmatpush1.msra.mxu0 0.0
        %1864 = vmatprep.subr.mxu0 0.0
        %1865 = vmatpush1.msra.mxu0 0.0
        %1866 = vmatprep.subr.mxu0 0.0
        %1867 = vmatpush1.msra.mxu0 0.0
        %1868 = vmatprep.subr.mxu0 0.0
        %1869 = vmatpush1.msra.mxu0 0.0
        %1870 = vmatprep.subr.mxu0 0.0
        %1871 = vmatpush1.msra.mxu0 0.0
        %1872 = vmatprep.subr.mxu0 0.0
        %1873 = vmatpush1.msra.mxu0 0.0
        %1874 = vmatprep.subr.mxu0 0.0
        %1875 = vmatpush1.msra.mxu0 0.0
        %1876 = vmatprep.subr.mxu0 0.0
        %1877 = vmatpush1.msra.mxu0 0.0
        %1878 = vmatprep.subr.mxu0 0.0
        %1879 = vmatpush1.msra.mxu0 0.0
        %1880 = vmatprep.mubr.f32.mxu0 0.0
        %1881 = vmatmul.mubr.f32.gmra.mrb[0].mxu0 %v1368
        %v1882 = vpop.f32.mrb[0].mxu0
        %v1883 = vadd.f32 0.0, %v1882
        %v1884 = vpop.f32.mrb[0].mxu0
        %1885 = vdwg.mxu0
        %1886 = vrot.lane.b32.xlu0 %v176, 127
        %v1887 = vpop.permute.xlu0 %1886
        %v1888 = vsel %vm193, %v1887, 0
        %1890 = vmatprep.subr.mxu0 0.0
        %1891 = vmatpush1.msra.mxu0 %v1888
        %1892 = vmatprep.subr.mxu0 0.0
        %1893 = vmatpush1.msra.mxu0 0.0
        %1894 = vmatprep.subr.mxu0 0.0
        %1895 = vmatpush1.msra.mxu0 0.0
        %1896 = vmatprep.subr.mxu0 0.0
        %1897 = vmatpush1.msra.mxu0 0.0
        %1898 = vmatprep.subr.mxu0 0.0
        %1899 = vmatpush1.msra.mxu0 0.0
        %1900 = vmatprep.subr.mxu0 0.0
        %1901 = vmatpush1.msra.mxu0 0.0
        %1902 = vmatprep.subr.mxu0 0.0
        %1903 = vmatpush1.msra.mxu0 0.0
        %1904 = vmatprep.subr.mxu0 0.0
        %1905 = vmatpush1.msra.mxu0 0.0
        %1906 = vmatprep.subr.mxu0 0.0
        %1907 = vmatpush1.msra.mxu0 0.0
        %1908 = vmatprep.subr.mxu0 0.0
        %1909 = vmatpush1.msra.mxu0 0.0
        %1910 = vmatprep.subr.mxu0 0.0
        %1911 = vmatpush1.msra.mxu0 0.0
        %1912 = vmatprep.subr.mxu0 0.0
        %1913 = vmatpush1.msra.mxu0 0.0
        %1914 = vmatprep.subr.mxu0 0.0
        %1915 = vmatpush1.msra.mxu0 0.0
        %1916 = vmatprep.subr.mxu0 0.0
        %1917 = vmatpush1.msra.mxu0 0.0
        %1918 = vmatprep.subr.mxu0 0.0
        %1919 = vmatpush1.msra.mxu0 0.0
        %1920 = vmatprep.subr.mxu0 0.0
        %1921 = vmatpush1.msra.mxu0 0.0
        %1922 = vmatprep.subr.mxu0 0.0
        %1923 = vmatpush1.msra.mxu0 0.0
        %1924 = vmatprep.subr.mxu0 0.0
        %1925 = vmatpush1.msra.mxu0 0.0
        %1926 = vmatprep.subr.mxu0 0.0
        %1927 = vmatpush1.msra.mxu0 0.0
        %1928 = vmatprep.subr.mxu0 0.0
        %1929 = vmatpush1.msra.mxu0 0.0
        %1930 = vmatprep.subr.mxu0 0.0
        %1931 = vmatpush1.msra.mxu0 0.0
        %1932 = vmatprep.subr.mxu0 0.0
        %1933 = vmatpush1.msra.mxu0 0.0
        %1934 = vmatprep.subr.mxu0 0.0
        %1935 = vmatpush1.msra.mxu0 0.0
        %1936 = vmatprep.subr.mxu0 0.0
        %1937 = vmatpush1.msra.mxu0 0.0
        %1938 = vmatprep.subr.mxu0 0.0
        %1939 = vmatpush1.msra.mxu0 0.0
        %1940 = vmatprep.subr.mxu0 0.0
        %1941 = vmatpush1.msra.mxu0 0.0
        %1942 = vmatprep.subr.mxu0 0.0
        %1943 = vmatpush1.msra.mxu0 0.0
        %1944 = vmatprep.subr.mxu0 0.0
        %1945 = vmatpush1.msra.mxu0 0.0
        %1946 = vmatprep.subr.mxu0 0.0
        %1947 = vmatpush1.msra.mxu0 0.0
        %1948 = vmatprep.subr.mxu0 0.0
        %1949 = vmatpush1.msra.mxu0 0.0
        %1950 = vmatprep.subr.mxu0 0.0
        %1951 = vmatpush1.msra.mxu0 0.0
        %1952 = vmatprep.subr.mxu0 0.0
        %1953 = vmatpush1.msra.mxu0 0.0
        %1954 = vmatprep.mubr.f32.mxu0 0.0
        %1955 = vmatmul.mubr.f32.gmra.mrb[0].mxu0 %v1368
        %v1956 = vpop.f32.mrb[0].mxu0
        %v1957 = vadd.f32 0.0, %v1956
        %v1958 = vpop.f32.mrb[0].mxu0
        %1959 = vdwg.mxu0
        %v1960 = vadd.f32 %v850, %v1439
        %v1961 = vadd.f32 %v923, %v1513
        %v1962 = vadd.f32 %v996, %v1587
        %v1963 = vadd.f32 %v1069, %v1661
        %v1964 = vadd.f32 %v1142, %v1735
        %v1965 = vadd.f32 %v1215, %v1809
        %v1966 = vadd.f32 %v1288, %v1883
        %v1967 = vadd.f32 %v1361, %v1957
        %1968 = vrot.lane.b32.xlu0 %v177, 116
        %v1969 = vpop.permute.xlu0 %1968
        %1970 = vrot.lane.b32.xlu0 %v179, 127
        %v1971 = vpop.permute.xlu0 %1970
        %v1972 = vsel %vm190, %v1969, 0
        %v1974 = vsel %vm193, %v1971, 0
        %1976 = vmatprep.subr.mxu0 0.0
        %1977 = vmatpush1.msra.mxu0 %v1974
        %1978 = vmatprep.subr.mxu0 0.0
        %1979 = vmatpush1.msra.mxu0 0.0
        %1980 = vmatprep.subr.mxu0 0.0
        %1981 = vmatpush1.msra.mxu0 0.0
        %1982 = vmatprep.subr.mxu0 0.0
        %1983 = vmatpush1.msra.mxu0 0.0
        %1984 = vmatprep.subr.mxu0 0.0
        %1985 = vmatpush1.msra.mxu0 0.0
        %1986 = vmatprep.subr.mxu0 0.0
        %1987 = vmatpush1.msra.mxu0 0.0
        %1988 = vmatprep.subr.mxu0 0.0
        %1989 = vmatpush1.msra.mxu0 0.0
        %1990 = vmatprep.subr.mxu0 0.0
        %1991 = vmatpush1.msra.mxu0 0.0
        %1992 = vmatprep.subr.mxu0 0.0
        %1993 = vmatpush1.msra.mxu0 0.0
        %1994 = vmatprep.subr.mxu0 0.0
        %1995 = vmatpush1.msra.mxu0 0.0
        %1996 = vmatprep.subr.mxu0 0.0
        %1997 = vmatpush1.msra.mxu0 0.0
        %1998 = vmatprep.subr.mxu0 0.0
        %1999 = vmatpush1.msra.mxu0 0.0
        %2000 = vmatprep.subr.mxu0 0.0
        %2001 = vmatpush1.msra.mxu0 0.0
        %2002 = vmatprep.subr.mxu0 0.0
        %2003 = vmatpush1.msra.mxu0 0.0
        %2004 = vmatprep.subr.mxu0 0.0
        %2005 = vmatpush1.msra.mxu0 0.0
        %2006 = vmatprep.subr.mxu0 0.0
        %2007 = vmatpush1.msra.mxu0 0.0
        %2008 = vmatprep.subr.mxu0 0.0
        %2009 = vmatpush1.msra.mxu0 0.0
        %2010 = vmatprep.subr.mxu0 0.0
        %2011 = vmatpush1.msra.mxu0 0.0
        %2012 = vmatprep.subr.mxu0 0.0
        %2013 = vmatpush1.msra.mxu0 0.0
        %2014 = vmatprep.subr.mxu0 0.0
        %2015 = vmatpush1.msra.mxu0 0.0
        %2016 = vmatprep.subr.mxu0 0.0
        %2017 = vmatpush1.msra.mxu0 0.0
        %2018 = vmatprep.subr.mxu0 0.0
        %2019 = vmatpush1.msra.mxu0 0.0
        %2020 = vmatprep.subr.mxu0 0.0
        %2021 = vmatpush1.msra.mxu0 0.0
        %2022 = vmatprep.subr.mxu0 0.0
        %2023 = vmatpush1.msra.mxu0 0.0
        %2024 = vmatprep.subr.mxu0 0.0
        %2025 = vmatpush1.msra.mxu0 0.0
        %2026 = vmatprep.subr.mxu0 0.0
        %2027 = vmatpush1.msra.mxu0 0.0
        %2028 = vmatprep.subr.mxu0 0.0
        %2029 = vmatpush1.msra.mxu0 0.0
        %2030 = vmatprep.subr.mxu0 0.0
        %2031 = vmatpush1.msra.mxu0 0.0
        %2032 = vmatprep.subr.mxu0 0.0
        %2033 = vmatpush1.msra.mxu0 0.0
        %2034 = vmatprep.subr.mxu0 0.0
        %2035 = vmatpush1.msra.mxu0 0.0
        %2036 = vmatprep.subr.mxu0 0.0
        %2037 = vmatpush1.msra.mxu0 0.0
        %2038 = vmatprep.subr.mxu0 0.0
        %2039 = vmatpush1.msra.mxu0 0.0
        %2040 = vmatprep.mubr.f32.mxu0 0.0
        %2041 = vmatmul.mubr.f32.gmra.mrb[0].mxu0 %v1972
        %v2042 = vpop.f32.mrb[0].mxu0
        %v2043 = vadd.f32 0.0, %v2042
        %v2044 = vpop.f32.mrb[0].mxu0
        %2045 = vdwg.mxu0
        %2046 = vrot.lane.b32.xlu0 %v180, 127
        %v2047 = vpop.permute.xlu0 %2046
        %v2048 = vsel %vm193, %v2047, 0
        %2050 = vmatprep.subr.mxu0 0.0
        %2051 = vmatpush1.msra.mxu0 %v2048
        %2052 = vmatprep.subr.mxu0 0.0
        %2053 = vmatpush1.msra.mxu0 0.0
        %2054 = vmatprep.subr.mxu0 0.0
        %2055 = vmatpush1.msra.mxu0 0.0
        %2056 = vmatprep.subr.mxu0 0.0
        %2057 = vmatpush1.msra.mxu0 0.0
        %2058 = vmatprep.subr.mxu0 0.0
        %2059 = vmatpush1.msra.mxu0 0.0
        %2060 = vmatprep.subr.mxu0 0.0
        %2061 = vmatpush1.msra.mxu0 0.0
        %2062 = vmatprep.subr.mxu0 0.0
        %2063 = vmatpush1.msra.mxu0 0.0
        %2064 = vmatprep.subr.mxu0 0.0
        %2065 = vmatpush1.msra.mxu0 0.0
        %2066 = vmatprep.subr.mxu0 0.0
        %2067 = vmatpush1.msra.mxu0 0.0
        %2068 = vmatprep.subr.mxu0 0.0
        %2069 = vmatpush1.msra.mxu0 0.0
        %2070 = vmatprep.subr.mxu0 0.0
        %2071 = vmatpush1.msra.mxu0 0.0
        %2072 = vmatprep.subr.mxu0 0.0
        %2073 = vmatpush1.msra.mxu0 0.0
        %2074 = vmatprep.subr.mxu0 0.0
        %2075 = vmatpush1.msra.mxu0 0.0
        %2076 = vmatprep.subr.mxu0 0.0
        %2077 = vmatpush1.msra.mxu0 0.0
        %2078 = vmatprep.subr.mxu0 0.0
        %2079 = vmatpush1.msra.mxu0 0.0
        %2080 = vmatprep.subr.mxu0 0.0
        %2081 = vmatpush1.msra.mxu0 0.0
        %2082 = vmatprep.subr.mxu0 0.0
        %2083 = vmatpush1.msra.mxu0 0.0
        %2084 = vmatprep.subr.mxu0 0.0
        %2085 = vmatpush1.msra.mxu0 0.0
        %2086 = vmatprep.subr.mxu0 0.0
        %2087 = vmatpush1.msra.mxu0 0.0
        %2088 = vmatprep.subr.mxu0 0.0
        %2089 = vmatpush1.msra.mxu0 0.0
        %2090 = vmatprep.subr.mxu0 0.0
        %2091 = vmatpush1.msra.mxu0 0.0
        %2092 = vmatprep.subr.mxu0 0.0
        %2093 = vmatpush1.msra.mxu0 0.0
        %2094 = vmatprep.subr.mxu0 0.0
        %2095 = vmatpush1.msra.mxu0 0.0
        %2096 = vmatprep.subr.mxu0 0.0
        %2097 = vmatpush1.msra.mxu0 0.0
        %2098 = vmatprep.subr.mxu0 0.0
        %2099 = vmatpush1.msra.mxu0 0.0
        %2100 = vmatprep.subr.mxu0 0.0
        %2101 = vmatpush1.msra.mxu0 0.0
        %2102 = vmatprep.subr.mxu0 0.0
        %2103 = vmatpush1.msra.mxu0 0.0
        %2104 = vmatprep.subr.mxu0 0.0
        %2105 = vmatpush1.msra.mxu0 0.0
        %2106 = vmatprep.subr.mxu0 0.0
        %2107 = vmatpush1.msra.mxu0 0.0
        %2108 = vmatprep.subr.mxu0 0.0
        %2109 = vmatpush1.msra.mxu0 0.0
        %2110 = vmatprep.subr.mxu0 0.0
        %2111 = vmatpush1.msra.mxu0 0.0
        %2112 = vmatprep.subr.mxu0 0.0
        %2113 = vmatpush1.msra.mxu0 0.0
        %2114 = vmatprep.mubr.f32.mxu0 0.0
        %2115 = vmatmul.mubr.f32.gmra.mrb[0].mxu0 %v1972
        %v2116 = vpop.f32.mrb[0].mxu0
        %v2117 = vadd.f32 0.0, %v2116
        %v2118 = vpop.f32.mrb[0].mxu0
        %2119 = vdwg.mxu0
        %2120 = vrot.lane.b32.xlu0 %v181, 127
        %v2121 = vpop.permute.xlu0 %2120
        %v2122 = vsel %vm193, %v2121, 0
        %2124 = vmatprep.subr.mxu0 0.0
        %2125 = vmatpush1.msra.mxu0 %v2122
        %2126 = vmatprep.subr.mxu0 0.0
        %2127 = vmatpush1.msra.mxu0 0.0
        %2128 = vmatprep.subr.mxu0 0.0
        %2129 = vmatpush1.msra.mxu0 0.0
        %2130 = vmatprep.subr.mxu0 0.0
        %2131 = vmatpush1.msra.mxu0 0.0
        %2132 = vmatprep.subr.mxu0 0.0
        %2133 = vmatpush1.msra.mxu0 0.0
        %2134 = vmatprep.subr.mxu0 0.0
        %2135 = vmatpush1.msra.mxu0 0.0
        %2136 = vmatprep.subr.mxu0 0.0
        %2137 = vmatpush1.msra.mxu0 0.0
        %2138 = vmatprep.subr.mxu0 0.0
        %2139 = vmatpush1.msra.mxu0 0.0
        %2140 = vmatprep.subr.mxu0 0.0
        %2141 = vmatpush1.msra.mxu0 0.0
        %2142 = vmatprep.subr.mxu0 0.0
        %2143 = vmatpush1.msra.mxu0 0.0
        %2144 = vmatprep.subr.mxu0 0.0
        %2145 = vmatpush1.msra.mxu0 0.0
        %2146 = vmatprep.subr.mxu0 0.0
        %2147 = vmatpush1.msra.mxu0 0.0
        %2148 = vmatprep.subr.mxu0 0.0
        %2149 = vmatpush1.msra.mxu0 0.0
        %2150 = vmatprep.subr.mxu0 0.0
        %2151 = vmatpush1.msra.mxu0 0.0
        %2152 = vmatprep.subr.mxu0 0.0
        %2153 = vmatpush1.msra.mxu0 0.0
        %2154 = vmatprep.subr.mxu0 0.0
        %2155 = vmatpush1.msra.mxu0 0.0
        %2156 = vmatprep.subr.mxu0 0.0
        %2157 = vmatpush1.msra.mxu0 0.0
        %2158 = vmatprep.subr.mxu0 0.0
        %2159 = vmatpush1.msra.mxu0 0.0
        %2160 = vmatprep.subr.mxu0 0.0
        %2161 = vmatpush1.msra.mxu0 0.0
        %2162 = vmatprep.subr.mxu0 0.0
        %2163 = vmatpush1.msra.mxu0 0.0
        %2164 = vmatprep.subr.mxu0 0.0
        %2165 = vmatpush1.msra.mxu0 0.0
        %2166 = vmatprep.subr.mxu0 0.0
        %2167 = vmatpush1.msra.mxu0 0.0
        %2168 = vmatprep.subr.mxu0 0.0
        %2169 = vmatpush1.msra.mxu0 0.0
        %2170 = vmatprep.subr.mxu0 0.0
        %2171 = vmatpush1.msra.mxu0 0.0
        %2172 = vmatprep.subr.mxu0 0.0
        %2173 = vmatpush1.msra.mxu0 0.0
        %2174 = vmatprep.subr.mxu0 0.0
        %2175 = vmatpush1.msra.mxu0 0.0
        %2176 = vmatprep.subr.mxu0 0.0
        %2177 = vmatpush1.msra.mxu0 0.0
        %2178 = vmatprep.subr.mxu0 0.0
        %2179 = vmatpush1.msra.mxu0 0.0
        %2180 = vmatprep.subr.mxu0 0.0
        %2181 = vmatpush1.msra.mxu0 0.0
        %2182 = vmatprep.subr.mxu0 0.0
        %2183 = vmatpush1.msra.mxu0 0.0
        %2184 = vmatprep.subr.mxu0 0.0
        %2185 = vmatpush1.msra.mxu0 0.0
        %2186 = vmatprep.subr.mxu0 0.0
        %2187 = vmatpush1.msra.mxu0 0.0
        %2188 = vmatprep.mubr.f32.mxu0 0.0
        %2189 = vmatmul.mubr.f32.gmra.mrb[0].mxu0 %v1972
        %v2190 = vpop.f32.mrb[0].mxu0
        %v2191 = vadd.f32 0.0, %v2190
        %v2192 = vpop.f32.mrb[0].mxu0
        %2193 = vdwg.mxu0
        %2194 = vrot.lane.b32.xlu0 %v182, 127
        %v2195 = vpop.permute.xlu0 %2194
        %v2196 = vsel %vm193, %v2195, 0
        %2198 = vmatprep.subr.mxu0 0.0
        %2199 = vmatpush1.msra.mxu0 %v2196
        %2200 = vmatprep.subr.mxu0 0.0
        %2201 = vmatpush1.msra.mxu0 0.0
        %2202 = vmatprep.subr.mxu0 0.0
        %2203 = vmatpush1.msra.mxu0 0.0
        %2204 = vmatprep.subr.mxu0 0.0
        %2205 = vmatpush1.msra.mxu0 0.0
        %2206 = vmatprep.subr.mxu0 0.0
        %2207 = vmatpush1.msra.mxu0 0.0
        %2208 = vmatprep.subr.mxu0 0.0
        %2209 = vmatpush1.msra.mxu0 0.0
        %2210 = vmatprep.subr.mxu0 0.0
        %2211 = vmatpush1.msra.mxu0 0.0
        %2212 = vmatprep.subr.mxu0 0.0
        %2213 = vmatpush1.msra.mxu0 0.0
        %2214 = vmatprep.subr.mxu0 0.0
        %2215 = vmatpush1.msra.mxu0 0.0
        %2216 = vmatprep.subr.mxu0 0.0
        %2217 = vmatpush1.msra.mxu0 0.0
        %2218 = vmatprep.subr.mxu0 0.0
        %2219 = vmatpush1.msra.mxu0 0.0
        %2220 = vmatprep.subr.mxu0 0.0
        %2221 = vmatpush1.msra.mxu0 0.0
        %2222 = vmatprep.subr.mxu0 0.0
        %2223 = vmatpush1.msra.mxu0 0.0
        %2224 = vmatprep.subr.mxu0 0.0
        %2225 = vmatpush1.msra.mxu0 0.0
        %2226 = vmatprep.subr.mxu0 0.0
        %2227 = vmatpush1.msra.mxu0 0.0
        %2228 = vmatprep.subr.mxu0 0.0
        %2229 = vmatpush1.msra.mxu0 0.0
        %2230 = vmatprep.subr.mxu0 0.0
        %2231 = vmatpush1.msra.mxu0 0.0
        %2232 = vmatprep.subr.mxu0 0.0
        %2233 = vmatpush1.msra.mxu0 0.0
        %2234 = vmatprep.subr.mxu0 0.0
        %2235 = vmatpush1.msra.mxu0 0.0
        %2236 = vmatprep.subr.mxu0 0.0
        %2237 = vmatpush1.msra.mxu0 0.0
        %2238 = vmatprep.subr.mxu0 0.0
        %2239 = vmatpush1.msra.mxu0 0.0
        %2240 = vmatprep.subr.mxu0 0.0
        %2241 = vmatpush1.msra.mxu0 0.0
        %2242 = vmatprep.subr.mxu0 0.0
        %2243 = vmatpush1.msra.mxu0 0.0
        %2244 = vmatprep.subr.mxu0 0.0
        %2245 = vmatpush1.msra.mxu0 0.0
        %2246 = vmatprep.subr.mxu0 0.0
        %2247 = vmatpush1.msra.mxu0 0.0
        %2248 = vmatprep.subr.mxu0 0.0
        %2249 = vmatpush1.msra.mxu0 0.0
        %2250 = vmatprep.subr.mxu0 0.0
        %2251 = vmatpush1.msra.mxu0 0.0
        %2252 = vmatprep.subr.mxu0 0.0
        %2253 = vmatpush1.msra.mxu0 0.0
        %2254 = vmatprep.subr.mxu0 0.0
        %2255 = vmatpush1.msra.mxu0 0.0
        %2256 = vmatprep.subr.mxu0 0.0
        %2257 = vmatpush1.msra.mxu0 0.0
        %2258 = vmatprep.subr.mxu0 0.0
        %2259 = vmatpush1.msra.mxu0 0.0
        %2260 = vmatprep.subr.mxu0 0.0
        %2261 = vmatpush1.msra.mxu0 0.0
        %2262 = vmatprep.mubr.f32.mxu0 0.0
        %2263 = vmatmul.mubr.f32.gmra.mrb[0].mxu0 %v1972
        %v2264 = vpop.f32.mrb[0].mxu0
        %v2265 = vadd.f32 0.0, %v2264
        %v2266 = vpop.f32.mrb[0].mxu0
        %2267 = vdwg.mxu0
        %2268 = vrot.lane.b32.xlu0 %v183, 127
        %v2269 = vpop.permute.xlu0 %2268
        %v2270 = vsel %vm193, %v2269, 0
        %2272 = vmatprep.subr.mxu0 0.0
        %2273 = vmatpush1.msra.mxu0 %v2270
        %2274 = vmatprep.subr.mxu0 0.0
        %2275 = vmatpush1.msra.mxu0 0.0
        %2276 = vmatprep.subr.mxu0 0.0
        %2277 = vmatpush1.msra.mxu0 0.0
        %2278 = vmatprep.subr.mxu0 0.0
        %2279 = vmatpush1.msra.mxu0 0.0
        %2280 = vmatprep.subr.mxu0 0.0
        %2281 = vmatpush1.msra.mxu0 0.0
        %2282 = vmatprep.subr.mxu0 0.0
        %2283 = vmatpush1.msra.mxu0 0.0
        %2284 = vmatprep.subr.mxu0 0.0
        %2285 = vmatpush1.msra.mxu0 0.0
        %2286 = vmatprep.subr.mxu0 0.0
        %2287 = vmatpush1.msra.mxu0 0.0
        %2288 = vmatprep.subr.mxu0 0.0
        %2289 = vmatpush1.msra.mxu0 0.0
        %2290 = vmatprep.subr.mxu0 0.0
        %2291 = vmatpush1.msra.mxu0 0.0
        %2292 = vmatprep.subr.mxu0 0.0
        %2293 = vmatpush1.msra.mxu0 0.0
        %2294 = vmatprep.subr.mxu0 0.0
        %2295 = vmatpush1.msra.mxu0 0.0
        %2296 = vmatprep.subr.mxu0 0.0
        %2297 = vmatpush1.msra.mxu0 0.0
        %2298 = vmatprep.subr.mxu0 0.0
        %2299 = vmatpush1.msra.mxu0 0.0
        %2300 = vmatprep.subr.mxu0 0.0
        %2301 = vmatpush1.msra.mxu0 0.0
        %2302 = vmatprep.subr.mxu0 0.0
        %2303 = vmatpush1.msra.mxu0 0.0
        %2304 = vmatprep.subr.mxu0 0.0
        %2305 = vmatpush1.msra.mxu0 0.0
        %2306 = vmatprep.subr.mxu0 0.0
        %2307 = vmatpush1.msra.mxu0 0.0
        %2308 = vmatprep.subr.mxu0 0.0
        %2309 = vmatpush1.msra.mxu0 0.0
        %2310 = vmatprep.subr.mxu0 0.0
        %2311 = vmatpush1.msra.mxu0 0.0
        %2312 = vmatprep.subr.mxu0 0.0
        %2313 = vmatpush1.msra.mxu0 0.0
        %2314 = vmatprep.subr.mxu0 0.0
        %2315 = vmatpush1.msra.mxu0 0.0
        %2316 = vmatprep.subr.mxu0 0.0
        %2317 = vmatpush1.msra.mxu0 0.0
        %2318 = vmatprep.subr.mxu0 0.0
        %2319 = vmatpush1.msra.mxu0 0.0
        %2320 = vmatprep.subr.mxu0 0.0
        %2321 = vmatpush1.msra.mxu0 0.0
        %2322 = vmatprep.subr.mxu0 0.0
        %2323 = vmatpush1.msra.mxu0 0.0
        %2324 = vmatprep.subr.mxu0 0.0
        %2325 = vmatpush1.msra.mxu0 0.0
        %2326 = vmatprep.subr.mxu0 0.0
        %2327 = vmatpush1.msra.mxu0 0.0
        %2328 = vmatprep.subr.mxu0 0.0
        %2329 = vmatpush1.msra.mxu0 0.0
        %2330 = vmatprep.subr.mxu0 0.0
        %2331 = vmatpush1.msra.mxu0 0.0
        %2332 = vmatprep.subr.mxu0 0.0
        %2333 = vmatpush1.msra.mxu0 0.0
        %2334 = vmatprep.subr.mxu0 0.0
        %2335 = vmatpush1.msra.mxu0 0.0
        %2336 = vmatprep.mubr.f32.mxu0 0.0
        %2337 = vmatmul.mubr.f32.gmra.mrb[0].mxu0 %v1972
        %v2338 = vpop.f32.mrb[0].mxu0
        %v2339 = vadd.f32 0.0, %v2338
        %v2340 = vpop.f32.mrb[0].mxu0
        %2341 = vdwg.mxu0
        %2342 = vrot.lane.b32.xlu0 %v184, 127
        %v2343 = vpop.permute.xlu0 %2342
        %v2344 = vsel %vm193, %v2343, 0
        %2346 = vmatprep.subr.mxu0 0.0
        %2347 = vmatpush1.msra.mxu0 %v2344
        %2348 = vmatprep.subr.mxu0 0.0
        %2349 = vmatpush1.msra.mxu0 0.0
        %2350 = vmatprep.subr.mxu0 0.0
        %2351 = vmatpush1.msra.mxu0 0.0
        %2352 = vmatprep.subr.mxu0 0.0
        %2353 = vmatpush1.msra.mxu0 0.0
        %2354 = vmatprep.subr.mxu0 0.0
        %2355 = vmatpush1.msra.mxu0 0.0
        %2356 = vmatprep.subr.mxu0 0.0
        %2357 = vmatpush1.msra.mxu0 0.0
        %2358 = vmatprep.subr.mxu0 0.0
        %2359 = vmatpush1.msra.mxu0 0.0
        %2360 = vmatprep.subr.mxu0 0.0
        %2361 = vmatpush1.msra.mxu0 0.0
        %2362 = vmatprep.subr.mxu0 0.0
        %2363 = vmatpush1.msra.mxu0 0.0
        %2364 = vmatprep.subr.mxu0 0.0
        %2365 = vmatpush1.msra.mxu0 0.0
        %2366 = vmatprep.subr.mxu0 0.0
        %2367 = vmatpush1.msra.mxu0 0.0
        %2368 = vmatprep.subr.mxu0 0.0
        %2369 = vmatpush1.msra.mxu0 0.0
        %2370 = vmatprep.subr.mxu0 0.0
        %2371 = vmatpush1.msra.mxu0 0.0
        %2372 = vmatprep.subr.mxu0 0.0
        %2373 = vmatpush1.msra.mxu0 0.0
        %2374 = vmatprep.subr.mxu0 0.0
        %2375 = vmatpush1.msra.mxu0 0.0
        %2376 = vmatprep.subr.mxu0 0.0
        %2377 = vmatpush1.msra.mxu0 0.0
        %2378 = vmatprep.subr.mxu0 0.0
        %2379 = vmatpush1.msra.mxu0 0.0
        %2380 = vmatprep.subr.mxu0 0.0
        %2381 = vmatpush1.msra.mxu0 0.0
        %2382 = vmatprep.subr.mxu0 0.0
        %2383 = vmatpush1.msra.mxu0 0.0
        %2384 = vmatprep.subr.mxu0 0.0
        %2385 = vmatpush1.msra.mxu0 0.0
        %2386 = vmatprep.subr.mxu0 0.0
        %2387 = vmatpush1.msra.mxu0 0.0
        %2388 = vmatprep.subr.mxu0 0.0
        %2389 = vmatpush1.msra.mxu0 0.0
        %2390 = vmatprep.subr.mxu0 0.0
        %2391 = vmatpush1.msra.mxu0 0.0
        %2392 = vmatprep.subr.mxu0 0.0
        %2393 = vmatpush1.msra.mxu0 0.0
        %2394 = vmatprep.subr.mxu0 0.0
        %2395 = vmatpush1.msra.mxu0 0.0
        %2396 = vmatprep.subr.mxu0 0.0
        %2397 = vmatpush1.msra.mxu0 0.0
        %2398 = vmatprep.subr.mxu0 0.0
        %2399 = vmatpush1.msra.mxu0 0.0
        %2400 = vmatprep.subr.mxu0 0.0
        %2401 = vmatpush1.msra.mxu0 0.0
        %2402 = vmatprep.subr.mxu0 0.0
        %2403 = vmatpush1.msra.mxu0 0.0
        %2404 = vmatprep.subr.mxu0 0.0
        %2405 = vmatpush1.msra.mxu0 0.0
        %2406 = vmatprep.subr.mxu0 0.0
        %2407 = vmatpush1.msra.mxu0 0.0
        %2408 = vmatprep.subr.mxu0 0.0
        %2409 = vmatpush1.msra.mxu0 0.0
        %2410 = vmatprep.mubr.f32.mxu0 0.0
        %2411 = vmatmul.mubr.f32.gmra.mrb[0].mxu0 %v1972
        %v2412 = vpop.f32.mrb[0].mxu0
        %v2413 = vadd.f32 0.0, %v2412
        %v2414 = vpop.f32.mrb[0].mxu0
        %2415 = vdwg.mxu0
        %2416 = vrot.lane.b32.xlu0 %v185, 127
        %v2417 = vpop.permute.xlu0 %2416
        %v2418 = vsel %vm193, %v2417, 0
        %2420 = vmatprep.subr.mxu0 0.0
        %2421 = vmatpush1.msra.mxu0 %v2418
        %2422 = vmatprep.subr.mxu0 0.0
        %2423 = vmatpush1.msra.mxu0 0.0
        %2424 = vmatprep.subr.mxu0 0.0
        %2425 = vmatpush1.msra.mxu0 0.0
        %2426 = vmatprep.subr.mxu0 0.0
        %2427 = vmatpush1.msra.mxu0 0.0
        %2428 = vmatprep.subr.mxu0 0.0
        %2429 = vmatpush1.msra.mxu0 0.0
        %2430 = vmatprep.subr.mxu0 0.0
        %2431 = vmatpush1.msra.mxu0 0.0
        %2432 = vmatprep.subr.mxu0 0.0
        %2433 = vmatpush1.msra.mxu0 0.0
        %2434 = vmatprep.subr.mxu0 0.0
        %2435 = vmatpush1.msra.mxu0 0.0
        %2436 = vmatprep.subr.mxu0 0.0
        %2437 = vmatpush1.msra.mxu0 0.0
        %2438 = vmatprep.subr.mxu0 0.0
        %2439 = vmatpush1.msra.mxu0 0.0
        %2440 = vmatprep.subr.mxu0 0.0
        %2441 = vmatpush1.msra.mxu0 0.0
        %2442 = vmatprep.subr.mxu0 0.0
        %2443 = vmatpush1.msra.mxu0 0.0
        %2444 = vmatprep.subr.mxu0 0.0
        %2445 = vmatpush1.msra.mxu0 0.0
        %2446 = vmatprep.subr.mxu0 0.0
        %2447 = vmatpush1.msra.mxu0 0.0
        %2448 = vmatprep.subr.mxu0 0.0
        %2449 = vmatpush1.msra.mxu0 0.0
        %2450 = vmatprep.subr.mxu0 0.0
        %2451 = vmatpush1.msra.mxu0 0.0
        %2452 = vmatprep.subr.mxu0 0.0
        %2453 = vmatpush1.msra.mxu0 0.0
        %2454 = vmatprep.subr.mxu0 0.0
        %2455 = vmatpush1.msra.mxu0 0.0
        %2456 = vmatprep.subr.mxu0 0.0
        %2457 = vmatpush1.msra.mxu0 0.0
        %2458 = vmatprep.subr.mxu0 0.0
        %2459 = vmatpush1.msra.mxu0 0.0
        %2460 = vmatprep.subr.mxu0 0.0
        %2461 = vmatpush1.msra.mxu0 0.0
        %2462 = vmatprep.subr.mxu0 0.0
        %2463 = vmatpush1.msra.mxu0 0.0
        %2464 = vmatprep.subr.mxu0 0.0
        %2465 = vmatpush1.msra.mxu0 0.0
        %2466 = vmatprep.subr.mxu0 0.0
        %2467 = vmatpush1.msra.mxu0 0.0
        %2468 = vmatprep.subr.mxu0 0.0
        %2469 = vmatpush1.msra.mxu0 0.0
        %2470 = vmatprep.subr.mxu0 0.0
        %2471 = vmatpush1.msra.mxu0 0.0
        %2472 = vmatprep.subr.mxu0 0.0
        %2473 = vmatpush1.msra.mxu0 0.0
        %2474 = vmatprep.subr.mxu0 0.0
        %2475 = vmatpush1.msra.mxu0 0.0
        %2476 = vmatprep.subr.mxu0 0.0
        %2477 = vmatpush1.msra.mxu0 0.0
        %2478 = vmatprep.subr.mxu0 0.0
        %2479 = vmatpush1.msra.mxu0 0.0
        %2480 = vmatprep.subr.mxu0 0.0
        %2481 = vmatpush1.msra.mxu0 0.0
        %2482 = vmatprep.subr.mxu0 0.0
        %2483 = vmatpush1.msra.mxu0 0.0
        %2484 = vmatprep.mubr.f32.mxu0 0.0
        %2485 = vmatmul.mubr.f32.gmra.mrb[0].mxu0 %v1972
        %v2486 = vpop.f32.mrb[0].mxu0
        %v2487 = vadd.f32 0.0, %v2486
        %v2488 = vpop.f32.mrb[0].mxu0
        %2489 = vdwg.mxu0
        %2490 = vrot.lane.b32.xlu0 %v186, 127
        %v2491 = vpop.permute.xlu0 %2490
        %v2492 = vsel %vm193, %v2491, 0
        %2494 = vmatprep.subr.mxu0 0.0
        %2495 = vmatpush1.msra.mxu0 %v2492
        %2496 = vmatprep.subr.mxu0 0.0
        %2497 = vmatpush1.msra.mxu0 0.0
        %2498 = vmatprep.subr.mxu0 0.0
        %2499 = vmatpush1.msra.mxu0 0.0
        %2500 = vmatprep.subr.mxu0 0.0
        %2501 = vmatpush1.msra.mxu0 0.0
        %2502 = vmatprep.subr.mxu0 0.0
        %2503 = vmatpush1.msra.mxu0 0.0
        %2504 = vmatprep.subr.mxu0 0.0
        %2505 = vmatpush1.msra.mxu0 0.0
        %2506 = vmatprep.subr.mxu0 0.0
        %2507 = vmatpush1.msra.mxu0 0.0
        %2508 = vmatprep.subr.mxu0 0.0
        %2509 = vmatpush1.msra.mxu0 0.0
        %2510 = vmatprep.subr.mxu0 0.0
        %2511 = vmatpush1.msra.mxu0 0.0
        %2512 = vmatprep.subr.mxu0 0.0
        %2513 = vmatpush1.msra.mxu0 0.0
        %2514 = vmatprep.subr.mxu0 0.0
        %2515 = vmatpush1.msra.mxu0 0.0
        %2516 = vmatprep.subr.mxu0 0.0
        %2517 = vmatpush1.msra.mxu0 0.0
        %2518 = vmatprep.subr.mxu0 0.0
        %2519 = vmatpush1.msra.mxu0 0.0
        %2520 = vmatprep.subr.mxu0 0.0
        %2521 = vmatpush1.msra.mxu0 0.0
        %2522 = vmatprep.subr.mxu0 0.0
        %2523 = vmatpush1.msra.mxu0 0.0
        %2524 = vmatprep.subr.mxu0 0.0
        %2525 = vmatpush1.msra.mxu0 0.0
        %2526 = vmatprep.subr.mxu0 0.0
        %2527 = vmatpush1.msra.mxu0 0.0
        %2528 = vmatprep.subr.mxu0 0.0
        %2529 = vmatpush1.msra.mxu0 0.0
        %2530 = vmatprep.subr.mxu0 0.0
        %2531 = vmatpush1.msra.mxu0 0.0
        %2532 = vmatprep.subr.mxu0 0.0
        %2533 = vmatpush1.msra.mxu0 0.0
        %2534 = vmatprep.subr.mxu0 0.0
        %2535 = vmatpush1.msra.mxu0 0.0
        %2536 = vmatprep.subr.mxu0 0.0
        %2537 = vmatpush1.msra.mxu0 0.0
        %2538 = vmatprep.subr.mxu0 0.0
        %2539 = vmatpush1.msra.mxu0 0.0
        %2540 = vmatprep.subr.mxu0 0.0
        %2541 = vmatpush1.msra.mxu0 0.0
        %2542 = vmatprep.subr.mxu0 0.0
        %2543 = vmatpush1.msra.mxu0 0.0
        %2544 = vmatprep.subr.mxu0 0.0
        %2545 = vmatpush1.msra.mxu0 0.0
        %2546 = vmatprep.subr.mxu0 0.0
        %2547 = vmatpush1.msra.mxu0 0.0
        %2548 = vmatprep.subr.mxu0 0.0
        %2549 = vmatpush1.msra.mxu0 0.0
        %2550 = vmatprep.subr.mxu0 0.0
        %2551 = vmatpush1.msra.mxu0 0.0
        %2552 = vmatprep.subr.mxu0 0.0
        %2553 = vmatpush1.msra.mxu0 0.0
        %2554 = vmatprep.subr.mxu0 0.0
        %2555 = vmatpush1.msra.mxu0 0.0
        %2556 = vmatprep.subr.mxu0 0.0
        %2557 = vmatpush1.msra.mxu0 0.0
        %2558 = vmatprep.mubr.f32.mxu0 0.0
        %2559 = vmatmul.mubr.f32.gmra.mrb[0].mxu0 %v1972
        %v2560 = vpop.f32.mrb[0].mxu0
        %v2561 = vadd.f32 0.0, %v2560
        %v2562 = vpop.f32.mrb[0].mxu0
        %2563 = vdwg.mxu0
        %v2564 = vadd.f32 %v1960, %v2043
        %v2565 = vadd.f32 %v1961, %v2117
        %v2566 = vadd.f32 %v1962, %v2191
        %v2567 = vadd.f32 %v1963, %v2265
        %v2568 = vadd.f32 %v1964, %v2339
        %v2569 = vadd.f32 %v1965, %v2413
        %v2570 = vadd.f32 %v1966, %v2487
        %v2571 = vadd.f32 %v1967, %v2561
        %s2572 = scalar_lea.vmem %s168, 72
        %v2573 = vld [vmem:[%s2572] sm:$0xf]
        %v2574 = vld [vmem:[%s2572 + $0x4] sm:$0xf]
        %v2575 = vld [vmem:[%s2572 + $0x8] sm:$0xf]
        %v2576 = vld [vmem:[%s2572 + $0xc] sm:$0xf]
        %v2577 = vld [vmem:[%s2572 + $0x10] sm:$0xf]
        %v2578 = vld [vmem:[%s2572 + $0x14] sm:$0xf]
        %v2579 = vld [vmem:[%s2572 + $0x18] sm:$0xf]
        %v2580 = vld [vmem:[%s2572 + $0x1c] sm:$0xf]
        %2581 = vrot.lane.b32.xlu0 %v177, 112
        %v2582 = vpop.permute.xlu0 %2581
        %v2583 = vsel %vm190, %v2582, 0
        %v2586 = vsel %vm193, %v2573, 0
        %2588 = vmatprep.subr.mxu0 0.0
        %2589 = vmatpush1.msra.mxu0 %v2586
        %2590 = vmatprep.subr.mxu0 0.0
        %2591 = vmatpush1.msra.mxu0 0.0
        %2592 = vmatprep.subr.mxu0 0.0
        %2593 = vmatpush1.msra.mxu0 0.0
        %2594 = vmatprep.subr.mxu0 0.0
        %2595 = vmatpush1.msra.mxu0 0.0
        %2596 = vmatprep.subr.mxu0 0.0
        %2597 = vmatpush1.msra.mxu0 0.0
        %2598 = vmatprep.subr.mxu0 0.0
        %2599 = vmatpush1.msra.mxu0 0.0
        %2600 = vmatprep.subr.mxu0 0.0
        %2601 = vmatpush1.msra.mxu0 0.0
        %2602 = vmatprep.subr.mxu0 0.0
        %2603 = vmatpush1.msra.mxu0 0.0
        %2604 = vmatprep.subr.mxu0 0.0
        %2605 = vmatpush1.msra.mxu0 0.0
        %2606 = vmatprep.subr.mxu0 0.0
        %2607 = vmatpush1.msra.mxu0 0.0
        %2608 = vmatprep.subr.mxu0 0.0
        %2609 = vmatpush1.msra.mxu0 0.0
        %2610 = vmatprep.subr.mxu0 0.0
        %2611 = vmatpush1.msra.mxu0 0.0
        %2612 = vmatprep.subr.mxu0 0.0
        %2613 = vmatpush1.msra.mxu0 0.0
        %2614 = vmatprep.subr.mxu0 0.0
        %2615 = vmatpush1.msra.mxu0 0.0
        %2616 = vmatprep.subr.mxu0 0.0
        %2617 = vmatpush1.msra.mxu0 0.0
        %2618 = vmatprep.subr.mxu0 0.0
        %2619 = vmatpush1.msra.mxu0 0.0
        %2620 = vmatprep.subr.mxu0 0.0
        %2621 = vmatpush1.msra.mxu0 0.0
        %2622 = vmatprep.subr.mxu0 0.0
        %2623 = vmatpush1.msra.mxu0 0.0
        %2624 = vmatprep.subr.mxu0 0.0
        %2625 = vmatpush1.msra.mxu0 0.0
        %2626 = vmatprep.subr.mxu0 0.0
        %2627 = vmatpush1.msra.mxu0 0.0
        %2628 = vmatprep.subr.mxu0 0.0
        %2629 = vmatpush1.msra.mxu0 0.0
        %2630 = vmatprep.subr.mxu0 0.0
        %2631 = vmatpush1.msra.mxu0 0.0
        %2632 = vmatprep.subr.mxu0 0.0
        %2633 = vmatpush1.msra.mxu0 0.0
        %2634 = vmatprep.subr.mxu0 0.0
        %2635 = vmatpush1.msra.mxu0 0.0
        %2636 = vmatprep.subr.mxu0 0.0
        %2637 = vmatpush1.msra.mxu0 0.0
        %2638 = vmatprep.subr.mxu0 0.0
        %2639 = vmatpush1.msra.mxu0 0.0
        %2640 = vmatprep.subr.mxu0 0.0
        %2641 = vmatpush1.msra.mxu0 0.0
        %2642 = vmatprep.subr.mxu0 0.0
        %2643 = vmatpush1.msra.mxu0 0.0
        %2644 = vmatprep.subr.mxu0 0.0
        %2645 = vmatpush1.msra.mxu0 0.0
        %2646 = vmatprep.subr.mxu0 0.0
        %2647 = vmatpush1.msra.mxu0 0.0
        %2648 = vmatprep.subr.mxu0 0.0
        %2649 = vmatpush1.msra.mxu0 0.0
        %2650 = vmatprep.subr.mxu0 0.0
        %2651 = vmatpush1.msra.mxu0 0.0
        %2652 = vmatprep.mubr.f32.mxu0 0.0
        %2653 = vmatmul.mubr.f32.gmra.mrb[0].mxu0 %v2583
        %v2654 = vpop.f32.mrb[0].mxu0
        %v2655 = vadd.f32 0.0, %v2654
        %v2656 = vpop.f32.mrb[0].mxu0
        %2657 = vdwg.mxu0
        %v2659 = vsel %vm193, %v2574, 0
        %2661 = vmatprep.subr.mxu0 0.0
        %2662 = vmatpush1.msra.mxu0 %v2659
        %2663 = vmatprep.subr.mxu0 0.0
        %2664 = vmatpush1.msra.mxu0 0.0
        %2665 = vmatprep.subr.mxu0 0.0
        %2666 = vmatpush1.msra.mxu0 0.0
        %2667 = vmatprep.subr.mxu0 0.0
        %2668 = vmatpush1.msra.mxu0 0.0
        %2669 = vmatprep.subr.mxu0 0.0
        %2670 = vmatpush1.msra.mxu0 0.0
        %2671 = vmatprep.subr.mxu0 0.0
        %2672 = vmatpush1.msra.mxu0 0.0
        %2673 = vmatprep.subr.mxu0 0.0
        %2674 = vmatpush1.msra.mxu0 0.0
        %2675 = vmatprep.subr.mxu0 0.0
        %2676 = vmatpush1.msra.mxu0 0.0
        %2677 = vmatprep.subr.mxu0 0.0
        %2678 = vmatpush1.msra.mxu0 0.0
        %2679 = vmatprep.subr.mxu0 0.0
        %2680 = vmatpush1.msra.mxu0 0.0
        %2681 = vmatprep.subr.mxu0 0.0
        %2682 = vmatpush1.msra.mxu0 0.0
        %2683 = vmatprep.subr.mxu0 0.0
        %2684 = vmatpush1.msra.mxu0 0.0
        %2685 = vmatprep.subr.mxu0 0.0
        %2686 = vmatpush1.msra.mxu0 0.0
        %2687 = vmatprep.subr.mxu0 0.0
        %2688 = vmatpush1.msra.mxu0 0.0
        %2689 = vmatprep.subr.mxu0 0.0
        %2690 = vmatpush1.msra.mxu0 0.0
        %2691 = vmatprep.subr.mxu0 0.0
        %2692 = vmatpush1.msra.mxu0 0.0
        %2693 = vmatprep.subr.mxu0 0.0
        %2694 = vmatpush1.msra.mxu0 0.0
        %2695 = vmatprep.subr.mxu0 0.0
        %2696 = vmatpush1.msra.mxu0 0.0
        %2697 = vmatprep.subr.mxu0 0.0
        %2698 = vmatpush1.msra.mxu0 0.0
        %2699 = vmatprep.subr.mxu0 0.0
        %2700 = vmatpush1.msra.mxu0 0.0
        %2701 = vmatprep.subr.mxu0 0.0
        %2702 = vmatpush1.msra.mxu0 0.0
        %2703 = vmatprep.subr.mxu0 0.0
        %2704 = vmatpush1.msra.mxu0 0.0
        %2705 = vmatprep.subr.mxu0 0.0
        %2706 = vmatpush1.msra.mxu0 0.0
        %2707 = vmatprep.subr.mxu0 0.0
        %2708 = vmatpush1.msra.mxu0 0.0
        %2709 = vmatprep.subr.mxu0 0.0
        %2710 = vmatpush1.msra.mxu0 0.0
        %2711 = vmatprep.subr.mxu0 0.0
        %2712 = vmatpush1.msra.mxu0 0.0
        %2713 = vmatprep.subr.mxu0 0.0
        %2714 = vmatpush1.msra.mxu0 0.0
        %2715 = vmatprep.subr.mxu0 0.0
        %2716 = vmatpush1.msra.mxu0 0.0
        %2717 = vmatprep.subr.mxu0 0.0
        %2718 = vmatpush1.msra.mxu0 0.0
        %2719 = vmatprep.subr.mxu0 0.0
        %2720 = vmatpush1.msra.mxu0 0.0
        %2721 = vmatprep.subr.mxu0 0.0
        %2722 = vmatpush1.msra.mxu0 0.0
        %2723 = vmatprep.subr.mxu0 0.0
        %2724 = vmatpush1.msra.mxu0 0.0
        %2725 = vmatprep.mubr.f32.mxu0 0.0
        %2726 = vmatmul.mubr.f32.gmra.mrb[0].mxu0 %v2583
        %v2727 = vpop.f32.mrb[0].mxu0
        %v2728 = vadd.f32 0.0, %v2727
        %v2729 = vpop.f32.mrb[0].mxu0
        %2730 = vdwg.mxu0
        %v2732 = vsel %vm193, %v2575, 0
        %2734 = vmatprep.subr.mxu0 0.0
        %2735 = vmatpush1.msra.mxu0 %v2732
        %2736 = vmatprep.subr.mxu0 0.0
        %2737 = vmatpush1.msra.mxu0 0.0
        %2738 = vmatprep.subr.mxu0 0.0
        %2739 = vmatpush1.msra.mxu0 0.0
        %2740 = vmatprep.subr.mxu0 0.0
        %2741 = vmatpush1.msra.mxu0 0.0
        %2742 = vmatprep.subr.mxu0 0.0
        %2743 = vmatpush1.msra.mxu0 0.0
        %2744 = vmatprep.subr.mxu0 0.0
        %2745 = vmatpush1.msra.mxu0 0.0
        %2746 = vmatprep.subr.mxu0 0.0
        %2747 = vmatpush1.msra.mxu0 0.0
        %2748 = vmatprep.subr.mxu0 0.0
        %2749 = vmatpush1.msra.mxu0 0.0
        %2750 = vmatprep.subr.mxu0 0.0
        %2751 = vmatpush1.msra.mxu0 0.0
        %2752 = vmatprep.subr.mxu0 0.0
        %2753 = vmatpush1.msra.mxu0 0.0
        %2754 = vmatprep.subr.mxu0 0.0
        %2755 = vmatpush1.msra.mxu0 0.0
        %2756 = vmatprep.subr.mxu0 0.0
        %2757 = vmatpush1.msra.mxu0 0.0
        %2758 = vmatprep.subr.mxu0 0.0
        %2759 = vmatpush1.msra.mxu0 0.0
        %2760 = vmatprep.subr.mxu0 0.0
        %2761 = vmatpush1.msra.mxu0 0.0
        %2762 = vmatprep.subr.mxu0 0.0
        %2763 = vmatpush1.msra.mxu0 0.0
        %2764 = vmatprep.subr.mxu0 0.0
        %2765 = vmatpush1.msra.mxu0 0.0
        %2766 = vmatprep.subr.mxu0 0.0
        %2767 = vmatpush1.msra.mxu0 0.0
        %2768 = vmatprep.subr.mxu0 0.0
        %2769 = vmatpush1.msra.mxu0 0.0
        %2770 = vmatprep.subr.mxu0 0.0
        %2771 = vmatpush1.msra.mxu0 0.0
        %2772 = vmatprep.subr.mxu0 0.0
        %2773 = vmatpush1.msra.mxu0 0.0
        %2774 = vmatprep.subr.mxu0 0.0
        %2775 = vmatpush1.msra.mxu0 0.0
        %2776 = vmatprep.subr.mxu0 0.0
        %2777 = vmatpush1.msra.mxu0 0.0
        %2778 = vmatprep.subr.mxu0 0.0
        %2779 = vmatpush1.msra.mxu0 0.0
        %2780 = vmatprep.subr.mxu0 0.0
        %2781 = vmatpush1.msra.mxu0 0.0
        %2782 = vmatprep.subr.mxu0 0.0
        %2783 = vmatpush1.msra.mxu0 0.0
        %2784 = vmatprep.subr.mxu0 0.0
        %2785 = vmatpush1.msra.mxu0 0.0
        %2786 = vmatprep.subr.mxu0 0.0
        %2787 = vmatpush1.msra.mxu0 0.0
        %2788 = vmatprep.subr.mxu0 0.0
        %2789 = vmatpush1.msra.mxu0 0.0
        %2790 = vmatprep.subr.mxu0 0.0
        %2791 = vmatpush1.msra.mxu0 0.0
        %2792 = vmatprep.subr.mxu0 0.0
        %2793 = vmatpush1.msra.mxu0 0.0
        %2794 = vmatprep.subr.mxu0 0.0
        %2795 = vmatpush1.msra.mxu0 0.0
        %2796 = vmatprep.subr.mxu0 0.0
        %2797 = vmatpush1.msra.mxu0 0.0
        %2798 = vmatprep.mubr.f32.mxu0 0.0
        %2799 = vmatmul.mubr.f32.gmra.mrb[0].mxu0 %v2583
        %v2800 = vpop.f32.mrb[0].mxu0
        %v2801 = vadd.f32 0.0, %v2800
        %v2802 = vpop.f32.mrb[0].mxu0
        %2803 = vdwg.mxu0
        %v2805 = vsel %vm193, %v2576, 0
        %2807 = vmatprep.subr.mxu0 0.0
        %2808 = vmatpush1.msra.mxu0 %v2805
        %2809 = vmatprep.subr.mxu0 0.0
        %2810 = vmatpush1.msra.mxu0 0.0
        %2811 = vmatprep.subr.mxu0 0.0
        %2812 = vmatpush1.msra.mxu0 0.0
        %2813 = vmatprep.subr.mxu0 0.0
        %2814 = vmatpush1.msra.mxu0 0.0
        %2815 = vmatprep.subr.mxu0 0.0
        %2816 = vmatpush1.msra.mxu0 0.0
        %2817 = vmatprep.subr.mxu0 0.0
        %2818 = vmatpush1.msra.mxu0 0.0
        %2819 = vmatprep.subr.mxu0 0.0
        %2820 = vmatpush1.msra.mxu0 0.0
        %2821 = vmatprep.subr.mxu0 0.0
        %2822 = vmatpush1.msra.mxu0 0.0
        %2823 = vmatprep.subr.mxu0 0.0
        %2824 = vmatpush1.msra.mxu0 0.0
        %2825 = vmatprep.subr.mxu0 0.0
        %2826 = vmatpush1.msra.mxu0 0.0
        %2827 = vmatprep.subr.mxu0 0.0
        %2828 = vmatpush1.msra.mxu0 0.0
        %2829 = vmatprep.subr.mxu0 0.0
        %2830 = vmatpush1.msra.mxu0 0.0
        %2831 = vmatprep.subr.mxu0 0.0
        %2832 = vmatpush1.msra.mxu0 0.0
        %2833 = vmatprep.subr.mxu0 0.0
        %2834 = vmatpush1.msra.mxu0 0.0
        %2835 = vmatprep.subr.mxu0 0.0
        %2836 = vmatpush1.msra.mxu0 0.0
        %2837 = vmatprep.subr.mxu0 0.0
        %2838 = vmatpush1.msra.mxu0 0.0
        %2839 = vmatprep.subr.mxu0 0.0
        %2840 = vmatpush1.msra.mxu0 0.0
        %2841 = vmatprep.subr.mxu0 0.0
        %2842 = vmatpush1.msra.mxu0 0.0
        %2843 = vmatprep.subr.mxu0 0.0
        %2844 = vmatpush1.msra.mxu0 0.0
        %2845 = vmatprep.subr.mxu0 0.0
        %2846 = vmatpush1.msra.mxu0 0.0
        %2847 = vmatprep.subr.mxu0 0.0
        %2848 = vmatpush1.msra.mxu0 0.0
        %2849 = vmatprep.subr.mxu0 0.0
        %2850 = vmatpush1.msra.mxu0 0.0
        %2851 = vmatprep.subr.mxu0 0.0
        %2852 = vmatpush1.msra.mxu0 0.0
        %2853 = vmatprep.subr.mxu0 0.0
        %2854 = vmatpush1.msra.mxu0 0.0
        %2855 = vmatprep.subr.mxu0 0.0
        %2856 = vmatpush1.msra.mxu0 0.0
        %2857 = vmatprep.subr.mxu0 0.0
        %2858 = vmatpush1.msra.mxu0 0.0
        %2859 = vmatprep.subr.mxu0 0.0
        %2860 = vmatpush1.msra.mxu0 0.0
        %2861 = vmatprep.subr.mxu0 0.0
        %2862 = vmatpush1.msra.mxu0 0.0
        %2863 = vmatprep.subr.mxu0 0.0
        %2864 = vmatpush1.msra.mxu0 0.0
        %2865 = vmatprep.subr.mxu0 0.0
        %2866 = vmatpush1.msra.mxu0 0.0
        %2867 = vmatprep.subr.mxu0 0.0
        %2868 = vmatpush1.msra.mxu0 0.0
        %2869 = vmatprep.subr.mxu0 0.0
        %2870 = vmatpush1.msra.mxu0 0.0
        %2871 = vmatprep.mubr.f32.mxu0 0.0
        %2872 = vmatmul.mubr.f32.gmra.mrb[0].mxu0 %v2583
        %v2873 = vpop.f32.mrb[0].mxu0
        %v2874 = vadd.f32 0.0, %v2873
        %v2875 = vpop.f32.mrb[0].mxu0
        %2876 = vdwg.mxu0
        %v2878 = vsel %vm193, %v2577, 0
        %2880 = vmatprep.subr.mxu0 0.0
        %2881 = vmatpush1.msra.mxu0 %v2878
        %2882 = vmatprep.subr.mxu0 0.0
        %2883 = vmatpush1.msra.mxu0 0.0
        %2884 = vmatprep.subr.mxu0 0.0
        %2885 = vmatpush1.msra.mxu0 0.0
        %2886 = vmatprep.subr.mxu0 0.0
        %2887 = vmatpush1.msra.mxu0 0.0
        %2888 = vmatprep.subr.mxu0 0.0
        %2889 = vmatpush1.msra.mxu0 0.0
        %2890 = vmatprep.subr.mxu0 0.0
        %2891 = vmatpush1.msra.mxu0 0.0
        %2892 = vmatprep.subr.mxu0 0.0
        %2893 = vmatpush1.msra.mxu0 0.0
        %2894 = vmatprep.subr.mxu0 0.0
        %2895 = vmatpush1.msra.mxu0 0.0
        %2896 = vmatprep.subr.mxu0 0.0
        %2897 = vmatpush1.msra.mxu0 0.0
        %2898 = vmatprep.subr.mxu0 0.0
        %2899 = vmatpush1.msra.mxu0 0.0
        %2900 = vmatprep.subr.mxu0 0.0
        %2901 = vmatpush1.msra.mxu0 0.0
        %2902 = vmatprep.subr.mxu0 0.0
        %2903 = vmatpush1.msra.mxu0 0.0
        %2904 = vmatprep.subr.mxu0 0.0
        %2905 = vmatpush1.msra.mxu0 0.0
        %2906 = vmatprep.subr.mxu0 0.0
        %2907 = vmatpush1.msra.mxu0 0.0
        %2908 = vmatprep.subr.mxu0 0.0
        %2909 = vmatpush1.msra.mxu0 0.0
        %2910 = vmatprep.subr.mxu0 0.0
        %2911 = vmatpush1.msra.mxu0 0.0
        %2912 = vmatprep.subr.mxu0 0.0
        %2913 = vmatpush1.msra.mxu0 0.0
        %2914 = vmatprep.subr.mxu0 0.0
        %2915 = vmatpush1.msra.mxu0 0.0
        %2916 = vmatprep.subr.mxu0 0.0
        %2917 = vmatpush1.msra.mxu0 0.0
        %2918 = vmatprep.subr.mxu0 0.0
        %2919 = vmatpush1.msra.mxu0 0.0
        %2920 = vmatprep.subr.mxu0 0.0
        %2921 = vmatpush1.msra.mxu0 0.0
        %2922 = vmatprep.subr.mxu0 0.0
        %2923 = vmatpush1.msra.mxu0 0.0
        %2924 = vmatprep.subr.mxu0 0.0
        %2925 = vmatpush1.msra.mxu0 0.0
        %2926 = vmatprep.subr.mxu0 0.0
        %2927 = vmatpush1.msra.mxu0 0.0
        %2928 = vmatprep.subr.mxu0 0.0
        %2929 = vmatpush1.msra.mxu0 0.0
        %2930 = vmatprep.subr.mxu0 0.0
        %2931 = vmatpush1.msra.mxu0 0.0
        %2932 = vmatprep.subr.mxu0 0.0
        %2933 = vmatpush1.msra.mxu0 0.0
        %2934 = vmatprep.subr.mxu0 0.0
        %2935 = vmatpush1.msra.mxu0 0.0
        %2936 = vmatprep.subr.mxu0 0.0
        %2937 = vmatpush1.msra.mxu0 0.0
        %2938 = vmatprep.subr.mxu0 0.0
        %2939 = vmatpush1.msra.mxu0 0.0
        %2940 = vmatprep.subr.mxu0 0.0
        %2941 = vmatpush1.msra.mxu0 0.0
        %2942 = vmatprep.subr.mxu0 0.0
        %2943 = vmatpush1.msra.mxu0 0.0
        %2944 = vmatprep.mubr.f32.mxu0 0.0
        %2945 = vmatmul.mubr.f32.gmra.mrb[0].mxu0 %v2583
        %v2946 = vpop.f32.mrb[0].mxu0
        %v2947 = vadd.f32 0.0, %v2946
        %v2948 = vpop.f32.mrb[0].mxu0
        %2949 = vdwg.mxu0
        %v2951 = vsel %vm193, %v2578, 0
        %2953 = vmatprep.subr.mxu0 0.0
        %2954 = vmatpush1.msra.mxu0 %v2951
        %2955 = vmatprep.subr.mxu0 0.0
        %2956 = vmatpush1.msra.mxu0 0.0
        %2957 = vmatprep.subr.mxu0 0.0
        %2958 = vmatpush1.msra.mxu0 0.0
        %2959 = vmatprep.subr.mxu0 0.0
        %2960 = vmatpush1.msra.mxu0 0.0
        %2961 = vmatprep.subr.mxu0 0.0
        %2962 = vmatpush1.msra.mxu0 0.0
        %2963 = vmatprep.subr.mxu0 0.0
        %2964 = vmatpush1.msra.mxu0 0.0
        %2965 = vmatprep.subr.mxu0 0.0
        %2966 = vmatpush1.msra.mxu0 0.0
        %2967 = vmatprep.subr.mxu0 0.0
        %2968 = vmatpush1.msra.mxu0 0.0
        %2969 = vmatprep.subr.mxu0 0.0
        %2970 = vmatpush1.msra.mxu0 0.0
        %2971 = vmatprep.subr.mxu0 0.0
        %2972 = vmatpush1.msra.mxu0 0.0
        %2973 = vmatprep.subr.mxu0 0.0
        %2974 = vmatpush1.msra.mxu0 0.0
        %2975 = vmatprep.subr.mxu0 0.0
        %2976 = vmatpush1.msra.mxu0 0.0
        %2977 = vmatprep.subr.mxu0 0.0
        %2978 = vmatpush1.msra.mxu0 0.0
        %2979 = vmatprep.subr.mxu0 0.0
        %2980 = vmatpush1.msra.mxu0 0.0
        %2981 = vmatprep.subr.mxu0 0.0
        %2982 = vmatpush1.msra.mxu0 0.0
        %2983 = vmatprep.subr.mxu0 0.0
        %2984 = vmatpush1.msra.mxu0 0.0
        %2985 = vmatprep.subr.mxu0 0.0
        %2986 = vmatpush1.msra.mxu0 0.0
        %2987 = vmatprep.subr.mxu0 0.0
        %2988 = vmatpush1.msra.mxu0 0.0
        %2989 = vmatprep.subr.mxu0 0.0
        %2990 = vmatpush1.msra.mxu0 0.0
        %2991 = vmatprep.subr.mxu0 0.0
        %2992 = vmatpush1.msra.mxu0 0.0
        %2993 = vmatprep.subr.mxu0 0.0
        %2994 = vmatpush1.msra.mxu0 0.0
        %2995 = vmatprep.subr.mxu0 0.0
        %2996 = vmatpush1.msra.mxu0 0.0
        %2997 = vmatprep.subr.mxu0 0.0
        %2998 = vmatpush1.msra.mxu0 0.0
        %2999 = vmatprep.subr.mxu0 0.0
        %3000 = vmatpush1.msra.mxu0 0.0
        %3001 = vmatprep.subr.mxu0 0.0
        %3002 = vmatpush1.msra.mxu0 0.0
        %3003 = vmatprep.subr.mxu0 0.0
        %3004 = vmatpush1.msra.mxu0 0.0
        %3005 = vmatprep.subr.mxu0 0.0
        %3006 = vmatpush1.msra.mxu0 0.0
        %3007 = vmatprep.subr.mxu0 0.0
        %3008 = vmatpush1.msra.mxu0 0.0
        %3009 = vmatprep.subr.mxu0 0.0
        %3010 = vmatpush1.msra.mxu0 0.0
        %3011 = vmatprep.subr.mxu0 0.0
        %3012 = vmatpush1.msra.mxu0 0.0
        %3013 = vmatprep.subr.mxu0 0.0
        %3014 = vmatpush1.msra.mxu0 0.0
        %3015 = vmatprep.subr.mxu0 0.0
        %3016 = vmatpush1.msra.mxu0 0.0
        %3017 = vmatprep.mubr.f32.mxu0 0.0
        %3018 = vmatmul.mubr.f32.gmra.mrb[0].mxu0 %v2583
        %v3019 = vpop.f32.mrb[0].mxu0
        %v3020 = vadd.f32 0.0, %v3019
        %v3021 = vpop.f32.mrb[0].mxu0
        %3022 = vdwg.mxu0
        %v3024 = vsel %vm193, %v2579, 0
        %3026 = vmatprep.subr.mxu0 0.0
        %3027 = vmatpush1.msra.mxu0 %v3024
        %3028 = vmatprep.subr.mxu0 0.0
        %3029 = vmatpush1.msra.mxu0 0.0
        %3030 = vmatprep.subr.mxu0 0.0
        %3031 = vmatpush1.msra.mxu0 0.0
        %3032 = vmatprep.subr.mxu0 0.0
        %3033 = vmatpush1.msra.mxu0 0.0
        %3034 = vmatprep.subr.mxu0 0.0
        %3035 = vmatpush1.msra.mxu0 0.0
        %3036 = vmatprep.subr.mxu0 0.0
        %3037 = vmatpush1.msra.mxu0 0.0
        %3038 = vmatprep.subr.mxu0 0.0
        %3039 = vmatpush1.msra.mxu0 0.0
        %3040 = vmatprep.subr.mxu0 0.0
        %3041 = vmatpush1.msra.mxu0 0.0
        %3042 = vmatprep.subr.mxu0 0.0
        %3043 = vmatpush1.msra.mxu0 0.0
        %3044 = vmatprep.subr.mxu0 0.0
        %3045 = vmatpush1.msra.mxu0 0.0
        %3046 = vmatprep.subr.mxu0 0.0
        %3047 = vmatpush1.msra.mxu0 0.0
        %3048 = vmatprep.subr.mxu0 0.0
        %3049 = vmatpush1.msra.mxu0 0.0
        %3050 = vmatprep.subr.mxu0 0.0
        %3051 = vmatpush1.msra.mxu0 0.0
        %3052 = vmatprep.subr.mxu0 0.0
        %3053 = vmatpush1.msra.mxu0 0.0
        %3054 = vmatprep.subr.mxu0 0.0
        %3055 = vmatpush1.msra.mxu0 0.0
        %3056 = vmatprep.subr.mxu0 0.0
        %3057 = vmatpush1.msra.mxu0 0.0
        %3058 = vmatprep.subr.mxu0 0.0
        %3059 = vmatpush1.msra.mxu0 0.0
        %3060 = vmatprep.subr.mxu0 0.0
        %3061 = vmatpush1.msra.mxu0 0.0
        %3062 = vmatprep.subr.mxu0 0.0
        %3063 = vmatpush1.msra.mxu0 0.0
        %3064 = vmatprep.subr.mxu0 0.0
        %3065 = vmatpush1.msra.mxu0 0.0
        %3066 = vmatprep.subr.mxu0 0.0
        %3067 = vmatpush1.msra.mxu0 0.0
        %3068 = vmatprep.subr.mxu0 0.0
        %3069 = vmatpush1.msra.mxu0 0.0
        %3070 = vmatprep.subr.mxu0 0.0
        %3071 = vmatpush1.msra.mxu0 0.0
        %3072 = vmatprep.subr.mxu0 0.0
        %3073 = vmatpush1.msra.mxu0 0.0
        %3074 = vmatprep.subr.mxu0 0.0
        %3075 = vmatpush1.msra.mxu0 0.0
        %3076 = vmatprep.subr.mxu0 0.0
        %3077 = vmatpush1.msra.mxu0 0.0
        %3078 = vmatprep.subr.mxu0 0.0
        %3079 = vmatpush1.msra.mxu0 0.0
        %3080 = vmatprep.subr.mxu0 0.0
        %3081 = vmatpush1.msra.mxu0 0.0
        %3082 = vmatprep.subr.mxu0 0.0
        %3083 = vmatpush1.msra.mxu0 0.0
        %3084 = vmatprep.subr.mxu0 0.0
        %3085 = vmatpush1.msra.mxu0 0.0
        %3086 = vmatprep.subr.mxu0 0.0
        %3087 = vmatpush1.msra.mxu0 0.0
        %3088 = vmatprep.subr.mxu0 0.0
        %3089 = vmatpush1.msra.mxu0 0.0
        %3090 = vmatprep.mubr.f32.mxu0 0.0
        %3091 = vmatmul.mubr.f32.gmra.mrb[0].mxu0 %v2583
        %v3092 = vpop.f32.mrb[0].mxu0
        %v3093 = vadd.f32 0.0, %v3092
        %v3094 = vpop.f32.mrb[0].mxu0
        %3095 = vdwg.mxu0
        %v3097 = vsel %vm193, %v2580, 0
        %3099 = vmatprep.subr.mxu0 0.0
        %3100 = vmatpush1.msra.mxu0 %v3097
        %3101 = vmatprep.subr.mxu0 0.0
        %3102 = vmatpush1.msra.mxu0 0.0
        %3103 = vmatprep.subr.mxu0 0.0
        %3104 = vmatpush1.msra.mxu0 0.0
        %3105 = vmatprep.subr.mxu0 0.0
        %3106 = vmatpush1.msra.mxu0 0.0
        %3107 = vmatprep.subr.mxu0 0.0
        %3108 = vmatpush1.msra.mxu0 0.0
        %3109 = vmatprep.subr.mxu0 0.0
        %3110 = vmatpush1.msra.mxu0 0.0
        %3111 = vmatprep.subr.mxu0 0.0
        %3112 = vmatpush1.msra.mxu0 0.0
        %3113 = vmatprep.subr.mxu0 0.0
        %3114 = vmatpush1.msra.mxu0 0.0
        %3115 = vmatprep.subr.mxu0 0.0
        %3116 = vmatpush1.msra.mxu0 0.0
        %3117 = vmatprep.subr.mxu0 0.0
        %3118 = vmatpush1.msra.mxu0 0.0
        %3119 = vmatprep.subr.mxu0 0.0
        %3120 = vmatpush1.msra.mxu0 0.0
        %3121 = vmatprep.subr.mxu0 0.0
        %3122 = vmatpush1.msra.mxu0 0.0
        %3123 = vmatprep.subr.mxu0 0.0
        %3124 = vmatpush1.msra.mxu0 0.0
        %3125 = vmatprep.subr.mxu0 0.0
        %3126 = vmatpush1.msra.mxu0 0.0
        %3127 = vmatprep.subr.mxu0 0.0
        %3128 = vmatpush1.msra.mxu0 0.0
        %3129 = vmatprep.subr.mxu0 0.0
        %3130 = vmatpush1.msra.mxu0 0.0
        %3131 = vmatprep.subr.mxu0 0.0
        %3132 = vmatpush1.msra.mxu0 0.0
        %3133 = vmatprep.subr.mxu0 0.0
        %3134 = vmatpush1.msra.mxu0 0.0
        %3135 = vmatprep.subr.mxu0 0.0
        %3136 = vmatpush1.msra.mxu0 0.0
        %3137 = vmatprep.subr.mxu0 0.0
        %3138 = vmatpush1.msra.mxu0 0.0
        %3139 = vmatprep.subr.mxu0 0.0
        %3140 = vmatpush1.msra.mxu0 0.0
        %3141 = vmatprep.subr.mxu0 0.0
        %3142 = vmatpush1.msra.mxu0 0.0
        %3143 = vmatprep.subr.mxu0 0.0
        %3144 = vmatpush1.msra.mxu0 0.0
        %3145 = vmatprep.subr.mxu0 0.0
        %3146 = vmatpush1.msra.mxu0 0.0
        %3147 = vmatprep.subr.mxu0 0.0
        %3148 = vmatpush1.msra.mxu0 0.0
        %3149 = vmatprep.subr.mxu0 0.0
        %3150 = vmatpush1.msra.mxu0 0.0
        %3151 = vmatprep.subr.mxu0 0.0
        %3152 = vmatpush1.msra.mxu0 0.0
        %3153 = vmatprep.subr.mxu0 0.0
        %3154 = vmatpush1.msra.mxu0 0.0
        %3155 = vmatprep.subr.mxu0 0.0
        %3156 = vmatpush1.msra.mxu0 0.0
        %3157 = vmatprep.subr.mxu0 0.0
        %3158 = vmatpush1.msra.mxu0 0.0
        %3159 = vmatprep.subr.mxu0 0.0
        %3160 = vmatpush1.msra.mxu0 0.0
        %3161 = vmatprep.subr.mxu0 0.0
        %3162 = vmatpush1.msra.mxu0 0.0
        %3163 = vmatprep.mubr.f32.mxu0 0.0
        %3164 = vmatmul.mubr.f32.gmra.mrb[0].mxu0 %v2583
        %v3165 = vpop.f32.mrb[0].mxu0
        %v3166 = vadd.f32 0.0, %v3165
        %v3167 = vpop.f32.mrb[0].mxu0
        %3168 = vdwg.mxu0
        %v3169 = vadd.f32 %v2564, %v2655
        %v3170 = vadd.f32 %v2565, %v2728
        %v3171 = vadd.f32 %v2566, %v2801
        %v3172 = vadd.f32 %v2567, %v2874
        %v3173 = vadd.f32 %v2568, %v2947
        %v3174 = vadd.f32 %v2569, %v3020
        %v3175 = vadd.f32 %v2570, %v3093
        %v3176 = vadd.f32 %v2571, %v3166
        %s3177 = scalar_lea.vmem %s168, 108
        %v3178 = vld [vmem:[%s3177] sm:$0xf]
        %v3179 = vld [vmem:[%s3177 + $0x4] sm:$0xf]
        %v3180 = vld [vmem:[%s3177 + $0x8] sm:$0xf]
        %v3181 = vld [vmem:[%s3177 + $0xc] sm:$0xf]
        %v3182 = vld [vmem:[%s3177 + $0x10] sm:$0xf]
        %v3183 = vld [vmem:[%s3177 + $0x14] sm:$0xf]
        %v3184 = vld [vmem:[%s3177 + $0x18] sm:$0xf]
        %v3185 = vld [vmem:[%s3177 + $0x1c] sm:$0xf]
        %3186 = vrot.lane.b32.xlu0 %v177, 108
        %v3187 = vpop.permute.xlu0 %3186
        %v3188 = vsel %vm190, %v3187, 0
        %v3191 = vsel %vm193, %v3178, 0
        %3193 = vmatprep.subr.mxu0 0.0
        %3194 = vmatpush1.msra.mxu0 %v3191
        %3195 = vmatprep.subr.mxu0 0.0
        %3196 = vmatpush1.msra.mxu0 0.0
        %3197 = vmatprep.subr.mxu0 0.0
        %3198 = vmatpush1.msra.mxu0 0.0
        %3199 = vmatprep.subr.mxu0 0.0
        %3200 = vmatpush1.msra.mxu0 0.0
        %3201 = vmatprep.subr.mxu0 0.0
        %3202 = vmatpush1.msra.mxu0 0.0
        %3203 = vmatprep.subr.mxu0 0.0
        %3204 = vmatpush1.msra.mxu0 0.0
        %3205 = vmatprep.subr.mxu0 0.0
        %3206 = vmatpush1.msra.mxu0 0.0
        %3207 = vmatprep.subr.mxu0 0.0
        %3208 = vmatpush1.msra.mxu0 0.0
        %3209 = vmatprep.subr.mxu0 0.0
        %3210 = vmatpush1.msra.mxu0 0.0
        %3211 = vmatprep.subr.mxu0 0.0
        %3212 = vmatpush1.msra.mxu0 0.0
        %3213 = vmatprep.subr.mxu0 0.0
        %3214 = vmatpush1.msra.mxu0 0.0
        %3215 = vmatprep.subr.mxu0 0.0
        %3216 = vmatpush1.msra.mxu0 0.0
        %3217 = vmatprep.subr.mxu0 0.0
        %3218 = vmatpush1.msra.mxu0 0.0
        %3219 = vmatprep.subr.mxu0 0.0
        %3220 = vmatpush1.msra.mxu0 0.0
        %3221 = vmatprep.subr.mxu0 0.0
        %3222 = vmatpush1.msra.mxu0 0.0
        %3223 = vmatprep.subr.mxu0 0.0
        %3224 = vmatpush1.msra.mxu0 0.0
        %3225 = vmatprep.subr.mxu0 0.0
        %3226 = vmatpush1.msra.mxu0 0.0
        %3227 = vmatprep.subr.mxu0 0.0
        %3228 = vmatpush1.msra.mxu0 0.0
        %3229 = vmatprep.subr.mxu0 0.0
        %3230 = vmatpush1.msra.mxu0 0.0
        %3231 = vmatprep.subr.mxu0 0.0
        %3232 = vmatpush1.msra.mxu0 0.0
        %3233 = vmatprep.subr.mxu0 0.0
        %3234 = vmatpush1.msra.mxu0 0.0
        %3235 = vmatprep.subr.mxu0 0.0
        %3236 = vmatpush1.msra.mxu0 0.0
        %3237 = vmatprep.subr.mxu0 0.0
        %3238 = vmatpush1.msra.mxu0 0.0
        %3239 = vmatprep.subr.mxu0 0.0
        %3240 = vmatpush1.msra.mxu0 0.0
        %3241 = vmatprep.subr.mxu0 0.0
        %3242 = vmatpush1.msra.mxu0 0.0
        %3243 = vmatprep.subr.mxu0 0.0
        %3244 = vmatpush1.msra.mxu0 0.0
        %3245 = vmatprep.subr.mxu0 0.0
        %3246 = vmatpush1.msra.mxu0 0.0
        %3247 = vmatprep.subr.mxu0 0.0
        %3248 = vmatpush1.msra.mxu0 0.0
        %3249 = vmatprep.subr.mxu0 0.0
        %3250 = vmatpush1.msra.mxu0 0.0
        %3251 = vmatprep.subr.mxu0 0.0
        %3252 = vmatpush1.msra.mxu0 0.0
        %3253 = vmatprep.subr.mxu0 0.0
        %3254 = vmatpush1.msra.mxu0 0.0
        %3255 = vmatprep.subr.mxu0 0.0
        %3256 = vmatpush1.msra.mxu0 0.0
        %3257 = vmatprep.mubr.f32.mxu0 0.0
        %3258 = vmatmul.mubr.f32.gmra.mrb[0].mxu0 %v3188
        %v3259 = vpop.f32.mrb[0].mxu0
        %v3260 = vadd.f32 0.0, %v3259
        %v3261 = vpop.f32.mrb[0].mxu0
        %3262 = vdwg.mxu0
        %v3264 = vsel %vm193, %v3179, 0
        %3266 = vmatprep.subr.mxu0 0.0
        %3267 = vmatpush1.msra.mxu0 %v3264
        %3268 = vmatprep.subr.mxu0 0.0
        %3269 = vmatpush1.msra.mxu0 0.0
        %3270 = vmatprep.subr.mxu0 0.0
        %3271 = vmatpush1.msra.mxu0 0.0
        %3272 = vmatprep.subr.mxu0 0.0
        %3273 = vmatpush1.msra.mxu0 0.0
        %3274 = vmatprep.subr.mxu0 0.0
        %3275 = vmatpush1.msra.mxu0 0.0
        %3276 = vmatprep.subr.mxu0 0.0
        %3277 = vmatpush1.msra.mxu0 0.0
        %3278 = vmatprep.subr.mxu0 0.0
        %3279 = vmatpush1.msra.mxu0 0.0
        %3280 = vmatprep.subr.mxu0 0.0
        %3281 = vmatpush1.msra.mxu0 0.0
        %3282 = vmatprep.subr.mxu0 0.0
        %3283 = vmatpush1.msra.mxu0 0.0
        %3284 = vmatprep.subr.mxu0 0.0
        %3285 = vmatpush1.msra.mxu0 0.0
        %3286 = vmatprep.subr.mxu0 0.0
        %3287 = vmatpush1.msra.mxu0 0.0
        %3288 = vmatprep.subr.mxu0 0.0
        %3289 = vmatpush1.msra.mxu0 0.0
        %3290 = vmatprep.subr.mxu0 0.0
        %3291 = vmatpush1.msra.mxu0 0.0
        %3292 = vmatprep.subr.mxu0 0.0
        %3293 = vmatpush1.msra.mxu0 0.0
        %3294 = vmatprep.subr.mxu0 0.0
        %3295 = vmatpush1.msra.mxu0 0.0
        %3296 = vmatprep.subr.mxu0 0.0
        %3297 = vmatpush1.msra.mxu0 0.0
        %3298 = vmatprep.subr.mxu0 0.0
        %3299 = vmatpush1.msra.mxu0 0.0
        %3300 = vmatprep.subr.mxu0 0.0
        %3301 = vmatpush1.msra.mxu0 0.0
        %3302 = vmatprep.subr.mxu0 0.0
        %3303 = vmatpush1.msra.mxu0 0.0
        %3304 = vmatprep.subr.mxu0 0.0
        %3305 = vmatpush1.msra.mxu0 0.0
        %3306 = vmatprep.subr.mxu0 0.0
        %3307 = vmatpush1.msra.mxu0 0.0
        %3308 = vmatprep.subr.mxu0 0.0
        %3309 = vmatpush1.msra.mxu0 0.0
        %3310 = vmatprep.subr.mxu0 0.0
        %3311 = vmatpush1.msra.mxu0 0.0
        %3312 = vmatprep.subr.mxu0 0.0
        %3313 = vmatpush1.msra.mxu0 0.0
        %3314 = vmatprep.subr.mxu0 0.0
        %3315 = vmatpush1.msra.mxu0 0.0
        %3316 = vmatprep.subr.mxu0 0.0
        %3317 = vmatpush1.msra.mxu0 0.0
        %3318 = vmatprep.subr.mxu0 0.0
        %3319 = vmatpush1.msra.mxu0 0.0
        %3320 = vmatprep.subr.mxu0 0.0
        %3321 = vmatpush1.msra.mxu0 0.0
        %3322 = vmatprep.subr.mxu0 0.0
        %3323 = vmatpush1.msra.mxu0 0.0
        %3324 = vmatprep.subr.mxu0 0.0
        %3325 = vmatpush1.msra.mxu0 0.0
        %3326 = vmatprep.subr.mxu0 0.0
        %3327 = vmatpush1.msra.mxu0 0.0
        %3328 = vmatprep.subr.mxu0 0.0
        %3329 = vmatpush1.msra.mxu0 0.0
        %3330 = vmatprep.mubr.f32.mxu0 0.0
        %3331 = vmatmul.mubr.f32.gmra.mrb[0].mxu0 %v3188
        %v3332 = vpop.f32.mrb[0].mxu0
        %v3333 = vadd.f32 0.0, %v3332
        %v3334 = vpop.f32.mrb[0].mxu0
        %3335 = vdwg.mxu0
        %v3337 = vsel %vm193, %v3180, 0
        %3339 = vmatprep.subr.mxu0 0.0
        %3340 = vmatpush1.msra.mxu0 %v3337
        %3341 = vmatprep.subr.mxu0 0.0
        %3342 = vmatpush1.msra.mxu0 0.0
        %3343 = vmatprep.subr.mxu0 0.0
        %3344 = vmatpush1.msra.mxu0 0.0
        %3345 = vmatprep.subr.mxu0 0.0
        %3346 = vmatpush1.msra.mxu0 0.0
        %3347 = vmatprep.subr.mxu0 0.0
        %3348 = vmatpush1.msra.mxu0 0.0
        %3349 = vmatprep.subr.mxu0 0.0
        %3350 = vmatpush1.msra.mxu0 0.0
        %3351 = vmatprep.subr.mxu0 0.0
        %3352 = vmatpush1.msra.mxu0 0.0
        %3353 = vmatprep.subr.mxu0 0.0
        %3354 = vmatpush1.msra.mxu0 0.0
        %3355 = vmatprep.subr.mxu0 0.0
        %3356 = vmatpush1.msra.mxu0 0.0
        %3357 = vmatprep.subr.mxu0 0.0
        %3358 = vmatpush1.msra.mxu0 0.0
        %3359 = vmatprep.subr.mxu0 0.0
        %3360 = vmatpush1.msra.mxu0 0.0
        %3361 = vmatprep.subr.mxu0 0.0
        %3362 = vmatpush1.msra.mxu0 0.0
        %3363 = vmatprep.subr.mxu0 0.0
        %3364 = vmatpush1.msra.mxu0 0.0
        %3365 = vmatprep.subr.mxu0 0.0
        %3366 = vmatpush1.msra.mxu0 0.0
        %3367 = vmatprep.subr.mxu0 0.0
        %3368 = vmatpush1.msra.mxu0 0.0
        %3369 = vmatprep.subr.mxu0 0.0
        %3370 = vmatpush1.msra.mxu0 0.0
        %3371 = vmatprep.subr.mxu0 0.0
        %3372 = vmatpush1.msra.mxu0 0.0
        %3373 = vmatprep.subr.mxu0 0.0
        %3374 = vmatpush1.msra.mxu0 0.0
        %3375 = vmatprep.subr.mxu0 0.0
        %3376 = vmatpush1.msra.mxu0 0.0
        %3377 = vmatprep.subr.mxu0 0.0
        %3378 = vmatpush1.msra.mxu0 0.0
        %3379 = vmatprep.subr.mxu0 0.0
        %3380 = vmatpush1.msra.mxu0 0.0
        %3381 = vmatprep.subr.mxu0 0.0
        %3382 = vmatpush1.msra.mxu0 0.0
        %3383 = vmatprep.subr.mxu0 0.0
        %3384 = vmatpush1.msra.mxu0 0.0
        %3385 = vmatprep.subr.mxu0 0.0
        %3386 = vmatpush1.msra.mxu0 0.0
        %3387 = vmatprep.subr.mxu0 0.0
        %3388 = vmatpush1.msra.mxu0 0.0
        %3389 = vmatprep.subr.mxu0 0.0
        %3390 = vmatpush1.msra.mxu0 0.0
        %3391 = vmatprep.subr.mxu0 0.0
        %3392 = vmatpush1.msra.mxu0 0.0
        %3393 = vmatprep.subr.mxu0 0.0
        %3394 = vmatpush1.msra.mxu0 0.0
        %3395 = vmatprep.subr.mxu0 0.0
        %3396 = vmatpush1.msra.mxu0 0.0
        %3397 = vmatprep.subr.mxu0 0.0
        %3398 = vmatpush1.msra.mxu0 0.0
        %3399 = vmatprep.subr.mxu0 0.0
        %3400 = vmatpush1.msra.mxu0 0.0
        %3401 = vmatprep.subr.mxu0 0.0
        %3402 = vmatpush1.msra.mxu0 0.0
        %3403 = vmatprep.mubr.f32.mxu0 0.0
        %3404 = vmatmul.mubr.f32.gmra.mrb[0].mxu0 %v3188
        %v3405 = vpop.f32.mrb[0].mxu0
        %v3406 = vadd.f32 0.0, %v3405
        %v3407 = vpop.f32.mrb[0].mxu0
        %3408 = vdwg.mxu0
        %v3410 = vsel %vm193, %v3181, 0
        %3412 = vmatprep.subr.mxu0 0.0
        %3413 = vmatpush1.msra.mxu0 %v3410
        %3414 = vmatprep.subr.mxu0 0.0
        %3415 = vmatpush1.msra.mxu0 0.0
        %3416 = vmatprep.subr.mxu0 0.0
        %3417 = vmatpush1.msra.mxu0 0.0
        %3418 = vmatprep.subr.mxu0 0.0
        %3419 = vmatpush1.msra.mxu0 0.0
        %3420 = vmatprep.subr.mxu0 0.0
        %3421 = vmatpush1.msra.mxu0 0.0
        %3422 = vmatprep.subr.mxu0 0.0
        %3423 = vmatpush1.msra.mxu0 0.0
        %3424 = vmatprep.subr.mxu0 0.0
        %3425 = vmatpush1.msra.mxu0 0.0
        %3426 = vmatprep.subr.mxu0 0.0
        %3427 = vmatpush1.msra.mxu0 0.0
        %3428 = vmatprep.subr.mxu0 0.0
        %3429 = vmatpush1.msra.mxu0 0.0
        %3430 = vmatprep.subr.mxu0 0.0
        %3431 = vmatpush1.msra.mxu0 0.0
        %3432 = vmatprep.subr.mxu0 0.0
        %3433 = vmatpush1.msra.mxu0 0.0
        %3434 = vmatprep.subr.mxu0 0.0
        %3435 = vmatpush1.msra.mxu0 0.0
        %3436 = vmatprep.subr.mxu0 0.0
        %3437 = vmatpush1.msra.mxu0 0.0
        %3438 = vmatprep.subr.mxu0 0.0
        %3439 = vmatpush1.msra.mxu0 0.0
        %3440 = vmatprep.subr.mxu0 0.0
        %3441 = vmatpush1.msra.mxu0 0.0
        %3442 = vmatprep.subr.mxu0 0.0
        %3443 = vmatpush1.msra.mxu0 0.0
        %3444 = vmatprep.subr.mxu0 0.0
        %3445 = vmatpush1.msra.mxu0 0.0
        %3446 = vmatprep.subr.mxu0 0.0
        %3447 = vmatpush1.msra.mxu0 0.0
        %3448 = vmatprep.subr.mxu0 0.0
        %3449 = vmatpush1.msra.mxu0 0.0
        %3450 = vmatprep.subr.mxu0 0.0
        %3451 = vmatpush1.msra.mxu0 0.0
        %3452 = vmatprep.subr.mxu0 0.0
        %3453 = vmatpush1.msra.mxu0 0.0
        %3454 = vmatprep.subr.mxu0 0.0
        %3455 = vmatpush1.msra.mxu0 0.0
        %3456 = vmatprep.subr.mxu0 0.0
        %3457 = vmatpush1.msra.mxu0 0.0
        %3458 = vmatprep.subr.mxu0 0.0
        %3459 = vmatpush1.msra.mxu0 0.0
        %3460 = vmatprep.subr.mxu0 0.0
        %3461 = vmatpush1.msra.mxu0 0.0
        %3462 = vmatprep.subr.mxu0 0.0
        %3463 = vmatpush1.msra.mxu0 0.0
        %3464 = vmatprep.subr.mxu0 0.0
        %3465 = vmatpush1.msra.mxu0 0.0
        %3466 = vmatprep.subr.mxu0 0.0
        %3467 = vmatpush1.msra.mxu0 0.0
        %3468 = vmatprep.subr.mxu0 0.0
        %3469 = vmatpush1.msra.mxu0 0.0
        %3470 = vmatprep.subr.mxu0 0.0
        %3471 = vmatpush1.msra.mxu0 0.0
        %3472 = vmatprep.subr.mxu0 0.0
        %3473 = vmatpush1.msra.mxu0 0.0
        %3474 = vmatprep.subr.mxu0 0.0
        %3475 = vmatpush1.msra.mxu0 0.0
        %3476 = vmatprep.mubr.f32.mxu0 0.0
        %3477 = vmatmul.mubr.f32.gmra.mrb[0].mxu0 %v3188
        %v3478 = vpop.f32.mrb[0].mxu0
        %v3479 = vadd.f32 0.0, %v3478
        %v3480 = vpop.f32.mrb[0].mxu0
        %3481 = vdwg.mxu0
        %v3483 = vsel %vm193, %v3182, 0
        %3485 = vmatprep.subr.mxu0 0.0
        %3486 = vmatpush1.msra.mxu0 %v3483
        %3487 = vmatprep.subr.mxu0 0.0
        %3488 = vmatpush1.msra.mxu0 0.0
        %3489 = vmatprep.subr.mxu0 0.0
        %3490 = vmatpush1.msra.mxu0 0.0
        %3491 = vmatprep.subr.mxu0 0.0
        %3492 = vmatpush1.msra.mxu0 0.0
        %3493 = vmatprep.subr.mxu0 0.0
        %3494 = vmatpush1.msra.mxu0 0.0
        %3495 = vmatprep.subr.mxu0 0.0
        %3496 = vmatpush1.msra.mxu0 0.0
        %3497 = vmatprep.subr.mxu0 0.0
        %3498 = vmatpush1.msra.mxu0 0.0
        %3499 = vmatprep.subr.mxu0 0.0
        %3500 = vmatpush1.msra.mxu0 0.0
        %3501 = vmatprep.subr.mxu0 0.0
        %3502 = vmatpush1.msra.mxu0 0.0
        %3503 = vmatprep.subr.mxu0 0.0
        %3504 = vmatpush1.msra.mxu0 0.0
        %3505 = vmatprep.subr.mxu0 0.0
        %3506 = vmatpush1.msra.mxu0 0.0
        %3507 = vmatprep.subr.mxu0 0.0
        %3508 = vmatpush1.msra.mxu0 0.0
        %3509 = vmatprep.subr.mxu0 0.0
        %3510 = vmatpush1.msra.mxu0 0.0
        %3511 = vmatprep.subr.mxu0 0.0
        %3512 = vmatpush1.msra.mxu0 0.0
        %3513 = vmatprep.subr.mxu0 0.0
        %3514 = vmatpush1.msra.mxu0 0.0
        %3515 = vmatprep.subr.mxu0 0.0
        %3516 = vmatpush1.msra.mxu0 0.0
        %3517 = vmatprep.subr.mxu0 0.0
        %3518 = vmatpush1.msra.mxu0 0.0
        %3519 = vmatprep.subr.mxu0 0.0
        %3520 = vmatpush1.msra.mxu0 0.0
        %3521 = vmatprep.subr.mxu0 0.0
        %3522 = vmatpush1.msra.mxu0 0.0
        %3523 = vmatprep.subr.mxu0 0.0
        %3524 = vmatpush1.msra.mxu0 0.0
        %3525 = vmatprep.subr.mxu0 0.0
        %3526 = vmatpush1.msra.mxu0 0.0
        %3527 = vmatprep.subr.mxu0 0.0
        %3528 = vmatpush1.msra.mxu0 0.0
        %3529 = vmatprep.subr.mxu0 0.0
        %3530 = vmatpush1.msra.mxu0 0.0
        %3531 = vmatprep.subr.mxu0 0.0
        %3532 = vmatpush1.msra.mxu0 0.0
        %3533 = vmatprep.subr.mxu0 0.0
        %3534 = vmatpush1.msra.mxu0 0.0
        %3535 = vmatprep.subr.mxu0 0.0
        %3536 = vmatpush1.msra.mxu0 0.0
        %3537 = vmatprep.subr.mxu0 0.0
        %3538 = vmatpush1.msra.mxu0 0.0
        %3539 = vmatprep.subr.mxu0 0.0
        %3540 = vmatpush1.msra.mxu0 0.0
        %3541 = vmatprep.subr.mxu0 0.0
        %3542 = vmatpush1.msra.mxu0 0.0
        %3543 = vmatprep.subr.mxu0 0.0
        %3544 = vmatpush1.msra.mxu0 0.0
        %3545 = vmatprep.subr.mxu0 0.0
        %3546 = vmatpush1.msra.mxu0 0.0
        %3547 = vmatprep.subr.mxu0 0.0
        %3548 = vmatpush1.msra.mxu0 0.0
        %3549 = vmatprep.mubr.f32.mxu0 0.0
        %3550 = vmatmul.mubr.f32.gmra.mrb[0].mxu0 %v3188
        %v3551 = vpop.f32.mrb[0].mxu0
        %v3552 = vadd.f32 0.0, %v3551
        %v3553 = vpop.f32.mrb[0].mxu0
        %3554 = vdwg.mxu0
        %v3556 = vsel %vm193, %v3183, 0
        %3558 = vmatprep.subr.mxu0 0.0
        %3559 = vmatpush1.msra.mxu0 %v3556
        %3560 = vmatprep.subr.mxu0 0.0
        %3561 = vmatpush1.msra.mxu0 0.0
        %3562 = vmatprep.subr.mxu0 0.0
        %3563 = vmatpush1.msra.mxu0 0.0
        %3564 = vmatprep.subr.mxu0 0.0
        %3565 = vmatpush1.msra.mxu0 0.0
        %3566 = vmatprep.subr.mxu0 0.0
        %3567 = vmatpush1.msra.mxu0 0.0
        %3568 = vmatprep.subr.mxu0 0.0
        %3569 = vmatpush1.msra.mxu0 0.0
        %3570 = vmatprep.subr.mxu0 0.0
        %3571 = vmatpush1.msra.mxu0 0.0
        %3572 = vmatprep.subr.mxu0 0.0
        %3573 = vmatpush1.msra.mxu0 0.0
        %3574 = vmatprep.subr.mxu0 0.0
        %3575 = vmatpush1.msra.mxu0 0.0
        %3576 = vmatprep.subr.mxu0 0.0
        %3577 = vmatpush1.msra.mxu0 0.0
        %3578 = vmatprep.subr.mxu0 0.0
        %3579 = vmatpush1.msra.mxu0 0.0
        %3580 = vmatprep.subr.mxu0 0.0
        %3581 = vmatpush1.msra.mxu0 0.0
        %3582 = vmatprep.subr.mxu0 0.0
        %3583 = vmatpush1.msra.mxu0 0.0
        %3584 = vmatprep.subr.mxu0 0.0
        %3585 = vmatpush1.msra.mxu0 0.0
        %3586 = vmatprep.subr.mxu0 0.0
        %3587 = vmatpush1.msra.mxu0 0.0
        %3588 = vmatprep.subr.mxu0 0.0
        %3589 = vmatpush1.msra.mxu0 0.0
        %3590 = vmatprep.subr.mxu0 0.0
        %3591 = vmatpush1.msra.mxu0 0.0
        %3592 = vmatprep.subr.mxu0 0.0
        %3593 = vmatpush1.msra.mxu0 0.0
        %3594 = vmatprep.subr.mxu0 0.0
        %3595 = vmatpush1.msra.mxu0 0.0
        %3596 = vmatprep.subr.mxu0 0.0
        %3597 = vmatpush1.msra.mxu0 0.0
        %3598 = vmatprep.subr.mxu0 0.0
        %3599 = vmatpush1.msra.mxu0 0.0
        %3600 = vmatprep.subr.mxu0 0.0
        %3601 = vmatpush1.msra.mxu0 0.0
        %3602 = vmatprep.subr.mxu0 0.0
        %3603 = vmatpush1.msra.mxu0 0.0
        %3604 = vmatprep.subr.mxu0 0.0
        %3605 = vmatpush1.msra.mxu0 0.0
        %3606 = vmatprep.subr.mxu0 0.0
        %3607 = vmatpush1.msra.mxu0 0.0
        %3608 = vmatprep.subr.mxu0 0.0
        %3609 = vmatpush1.msra.mxu0 0.0
        %3610 = vmatprep.subr.mxu0 0.0
        %3611 = vmatpush1.msra.mxu0 0.0
        %3612 = vmatprep.subr.mxu0 0.0
        %3613 = vmatpush1.msra.mxu0 0.0
        %3614 = vmatprep.subr.mxu0 0.0
        %3615 = vmatpush1.msra.mxu0 0.0
        %3616 = vmatprep.subr.mxu0 0.0
        %3617 = vmatpush1.msra.mxu0 0.0
        %3618 = vmatprep.subr.mxu0 0.0
        %3619 = vmatpush1.msra.mxu0 0.0
        %3620 = vmatprep.subr.mxu0 0.0
        %3621 = vmatpush1.msra.mxu0 0.0
        %3622 = vmatprep.mubr.f32.mxu0 0.0
        %3623 = vmatmul.mubr.f32.gmra.mrb[0].mxu0 %v3188
        %v3624 = vpop.f32.mrb[0].mxu0
        %v3625 = vadd.f32 0.0, %v3624
        %v3626 = vpop.f32.mrb[0].mxu0
        %3627 = vdwg.mxu0
        %v3629 = vsel %vm193, %v3184, 0
        %3631 = vmatprep.subr.mxu0 0.0
        %3632 = vmatpush1.msra.mxu0 %v3629
        %3633 = vmatprep.subr.mxu0 0.0
        %3634 = vmatpush1.msra.mxu0 0.0
        %3635 = vmatprep.subr.mxu0 0.0
        %3636 = vmatpush1.msra.mxu0 0.0
        %3637 = vmatprep.subr.mxu0 0.0
        %3638 = vmatpush1.msra.mxu0 0.0
        %3639 = vmatprep.subr.mxu0 0.0
        %3640 = vmatpush1.msra.mxu0 0.0
        %3641 = vmatprep.subr.mxu0 0.0
        %3642 = vmatpush1.msra.mxu0 0.0
        %3643 = vmatprep.subr.mxu0 0.0
        %3644 = vmatpush1.msra.mxu0 0.0
        %3645 = vmatprep.subr.mxu0 0.0
        %3646 = vmatpush1.msra.mxu0 0.0
        %3647 = vmatprep.subr.mxu0 0.0
        %3648 = vmatpush1.msra.mxu0 0.0
        %3649 = vmatprep.subr.mxu0 0.0
        %3650 = vmatpush1.msra.mxu0 0.0
        %3651 = vmatprep.subr.mxu0 0.0
        %3652 = vmatpush1.msra.mxu0 0.0
        %3653 = vmatprep.subr.mxu0 0.0
        %3654 = vmatpush1.msra.mxu0 0.0
        %3655 = vmatprep.subr.mxu0 0.0
        %3656 = vmatpush1.msra.mxu0 0.0
        %3657 = vmatprep.subr.mxu0 0.0
        %3658 = vmatpush1.msra.mxu0 0.0
        %3659 = vmatprep.subr.mxu0 0.0
        %3660 = vmatpush1.msra.mxu0 0.0
        %3661 = vmatprep.subr.mxu0 0.0
        %3662 = vmatpush1.msra.mxu0 0.0
        %3663 = vmatprep.subr.mxu0 0.0
        %3664 = vmatpush1.msra.mxu0 0.0
        %3665 = vmatprep.subr.mxu0 0.0
        %3666 = vmatpush1.msra.mxu0 0.0
        %3667 = vmatprep.subr.mxu0 0.0
        %3668 = vmatpush1.msra.mxu0 0.0
        %3669 = vmatprep.subr.mxu0 0.0
        %3670 = vmatpush1.msra.mxu0 0.0
        %3671 = vmatprep.subr.mxu0 0.0
        %3672 = vmatpush1.msra.mxu0 0.0
        %3673 = vmatprep.subr.mxu0 0.0
        %3674 = vmatpush1.msra.mxu0 0.0
        %3675 = vmatprep.subr.mxu0 0.0
        %3676 = vmatpush1.msra.mxu0 0.0
        %3677 = vmatprep.subr.mxu0 0.0
        %3678 = vmatpush1.msra.mxu0 0.0
        %3679 = vmatprep.subr.mxu0 0.0
        %3680 = vmatpush1.msra.mxu0 0.0
        %3681 = vmatprep.subr.mxu0 0.0
        %3682 = vmatpush1.msra.mxu0 0.0
        %3683 = vmatprep.subr.mxu0 0.0
        %3684 = vmatpush1.msra.mxu0 0.0
        %3685 = vmatprep.subr.mxu0 0.0
        %3686 = vmatpush1.msra.mxu0 0.0
        %3687 = vmatprep.subr.mxu0 0.0
        %3688 = vmatpush1.msra.mxu0 0.0
        %3689 = vmatprep.subr.mxu0 0.0
        %3690 = vmatpush1.msra.mxu0 0.0
        %3691 = vmatprep.subr.mxu0 0.0
        %3692 = vmatpush1.msra.mxu0 0.0
        %3693 = vmatprep.subr.mxu0 0.0
        %3694 = vmatpush1.msra.mxu0 0.0
        %3695 = vmatprep.mubr.f32.mxu0 0.0
        %3696 = vmatmul.mubr.f32.gmra.mrb[0].mxu0 %v3188
        %v3697 = vpop.f32.mrb[0].mxu0
        %v3698 = vadd.f32 0.0, %v3697
        %v3699 = vpop.f32.mrb[0].mxu0
        %3700 = vdwg.mxu0
        %v3702 = vsel %vm193, %v3185, 0
        %3704 = vmatprep.subr.mxu0 0.0
        %3705 = vmatpush1.msra.mxu0 %v3702
        %3706 = vmatprep.subr.mxu0 0.0
        %3707 = vmatpush1.msra.mxu0 0.0
        %3708 = vmatprep.subr.mxu0 0.0
        %3709 = vmatpush1.msra.mxu0 0.0
        %3710 = vmatprep.subr.mxu0 0.0
        %3711 = vmatpush1.msra.mxu0 0.0
        %3712 = vmatprep.subr.mxu0 0.0
        %3713 = vmatpush1.msra.mxu0 0.0
        %3714 = vmatprep.subr.mxu0 0.0
        %3715 = vmatpush1.msra.mxu0 0.0
        %3716 = vmatprep.subr.mxu0 0.0
        %3717 = vmatpush1.msra.mxu0 0.0
        %3718 = vmatprep.subr.mxu0 0.0
        %3719 = vmatpush1.msra.mxu0 0.0
        %3720 = vmatprep.subr.mxu0 0.0
        %3721 = vmatpush1.msra.mxu0 0.0
        %3722 = vmatprep.subr.mxu0 0.0
        %3723 = vmatpush1.msra.mxu0 0.0
        %3724 = vmatprep.subr.mxu0 0.0
        %3725 = vmatpush1.msra.mxu0 0.0
        %3726 = vmatprep.subr.mxu0 0.0
        %3727 = vmatpush1.msra.mxu0 0.0
        %3728 = vmatprep.subr.mxu0 0.0
        %3729 = vmatpush1.msra.mxu0 0.0
        %3730 = vmatprep.subr.mxu0 0.0
        %3731 = vmatpush1.msra.mxu0 0.0
        %3732 = vmatprep.subr.mxu0 0.0
        %3733 = vmatpush1.msra.mxu0 0.0
        %3734 = vmatprep.subr.mxu0 0.0
        %3735 = vmatpush1.msra.mxu0 0.0
        %3736 = vmatprep.subr.mxu0 0.0
        %3737 = vmatpush1.msra.mxu0 0.0
        %3738 = vmatprep.subr.mxu0 0.0
        %3739 = vmatpush1.msra.mxu0 0.0
        %3740 = vmatprep.subr.mxu0 0.0
        %3741 = vmatpush1.msra.mxu0 0.0
        %3742 = vmatprep.subr.mxu0 0.0
        %3743 = vmatpush1.msra.mxu0 0.0
        %3744 = vmatprep.subr.mxu0 0.0
        %3745 = vmatpush1.msra.mxu0 0.0
        %3746 = vmatprep.subr.mxu0 0.0
        %3747 = vmatpush1.msra.mxu0 0.0
        %3748 = vmatprep.subr.mxu0 0.0
        %3749 = vmatpush1.msra.mxu0 0.0
        %3750 = vmatprep.subr.mxu0 0.0
        %3751 = vmatpush1.msra.mxu0 0.0
        %3752 = vmatprep.subr.mxu0 0.0
        %3753 = vmatpush1.msra.mxu0 0.0
        %3754 = vmatprep.subr.mxu0 0.0
        %3755 = vmatpush1.msra.mxu0 0.0
        %3756 = vmatprep.subr.mxu0 0.0
        %3757 = vmatpush1.msra.mxu0 0.0
        %3758 = vmatprep.subr.mxu0 0.0
        %3759 = vmatpush1.msra.mxu0 0.0
        %3760 = vmatprep.subr.mxu0 0.0
        %3761 = vmatpush1.msra.mxu0 0.0
        %3762 = vmatprep.subr.mxu0 0.0
        %3763 = vmatpush1.msra.mxu0 0.0
        %3764 = vmatprep.subr.mxu0 0.0
        %3765 = vmatpush1.msra.mxu0 0.0
        %3766 = vmatprep.subr.mxu0 0.0
        %3767 = vmatpush1.msra.mxu0 0.0
        %3768 = vmatprep.mubr.f32.mxu0 0.0
        %3769 = vmatmul.mubr.f32.gmra.mrb[0].mxu0 %v3188
        %v3770 = vpop.f32.mrb[0].mxu0
        %v3771 = vadd.f32 0.0, %v3770
        %v3772 = vpop.f32.mrb[0].mxu0
        %3773 = vdwg.mxu0
        %v3774 = vadd.f32 %v3169, %v3260
        %v3775 = vadd.f32 %v3170, %v3333
        %v3776 = vadd.f32 %v3171, %v3406
        %v3777 = vadd.f32 %v3172, %v3479
        %v3778 = vadd.f32 %v3173, %v3552
        %v3779 = vadd.f32 %v3174, %v3625
        %v3780 = vadd.f32 %v3175, %v3698
        %v3781 = vadd.f32 %v3176, %v3771
        %3782 = vrot.lane.b32.xlu0 %v177, 104
        %v3783 = vpop.permute.xlu0 %3782
        %3784 = vrot.lane.b32.xlu0 %v2573, 127
        %v3785 = vpop.permute.xlu0 %3784
        %v3786 = vsel %vm190, %v3783, 0
        %v3788 = vsel %vm193, %v3785, 0
        %3790 = vmatprep.subr.mxu0 0.0
        %3791 = vmatpush1.msra.mxu0 %v3788
        %3792 = vmatprep.subr.mxu0 0.0
        %3793 = vmatpush1.msra.mxu0 0.0
        %3794 = vmatprep.subr.mxu0 0.0
        %3795 = vmatpush1.msra.mxu0 0.0
        %3796 = vmatprep.subr.mxu0 0.0
        %3797 = vmatpush1.msra.mxu0 0.0
        %3798 = vmatprep.subr.mxu0 0.0
        %3799 = vmatpush1.msra.mxu0 0.0
        %3800 = vmatprep.subr.mxu0 0.0
        %3801 = vmatpush1.msra.mxu0 0.0
        %3802 = vmatprep.subr.mxu0 0.0
        %3803 = vmatpush1.msra.mxu0 0.0
        %3804 = vmatprep.subr.mxu0 0.0
        %3805 = vmatpush1.msra.mxu0 0.0
        %3806 = vmatprep.subr.mxu0 0.0
        %3807 = vmatpush1.msra.mxu0 0.0
        %3808 = vmatprep.subr.mxu0 0.0
        %3809 = vmatpush1.msra.mxu0 0.0
        %3810 = vmatprep.subr.mxu0 0.0
        %3811 = vmatpush1.msra.mxu0 0.0
        %3812 = vmatprep.subr.mxu0 0.0
        %3813 = vmatpush1.msra.mxu0 0.0
        %3814 = vmatprep.subr.mxu0 0.0
        %3815 = vmatpush1.msra.mxu0 0.0
        %3816 = vmatprep.subr.mxu0 0.0
        %3817 = vmatpush1.msra.mxu0 0.0
        %3818 = vmatprep.subr.mxu0 0.0
        %3819 = vmatpush1.msra.mxu0 0.0
        %3820 = vmatprep.subr.mxu0 0.0
        %3821 = vmatpush1.msra.mxu0 0.0
        %3822 = vmatprep.subr.mxu0 0.0
        %3823 = vmatpush1.msra.mxu0 0.0
        %3824 = vmatprep.subr.mxu0 0.0
        %3825 = vmatpush1.msra.mxu0 0.0
        %3826 = vmatprep.subr.mxu0 0.0
        %3827 = vmatpush1.msra.mxu0 0.0
        %3828 = vmatprep.subr.mxu0 0.0
        %3829 = vmatpush1.msra.mxu0 0.0
        %3830 = vmatprep.subr.mxu0 0.0
        %3831 = vmatpush1.msra.mxu0 0.0
        %3832 = vmatprep.subr.mxu0 0.0
        %3833 = vmatpush1.msra.mxu0 0.0
        %3834 = vmatprep.subr.mxu0 0.0
        %3835 = vmatpush1.msra.mxu0 0.0
        %3836 = vmatprep.subr.mxu0 0.0
        %3837 = vmatpush1.msra.mxu0 0.0
        %3838 = vmatprep.subr.mxu0 0.0
        %3839 = vmatpush1.msra.mxu0 0.0
        %3840 = vmatprep.subr.mxu0 0.0
        %3841 = vmatpush1.msra.mxu0 0.0
        %3842 = vmatprep.subr.mxu0 0.0
        %3843 = vmatpush1.msra.mxu0 0.0
        %3844 = vmatprep.subr.mxu0 0.0
        %3845 = vmatpush1.msra.mxu0 0.0
        %3846 = vmatprep.subr.mxu0 0.0
        %3847 = vmatpush1.msra.mxu0 0.0
        %3848 = vmatprep.subr.mxu0 0.0
        %3849 = vmatpush1.msra.mxu0 0.0
        %3850 = vmatprep.subr.mxu0 0.0
        %3851 = vmatpush1.msra.mxu0 0.0
        %3852 = vmatprep.subr.mxu0 0.0
        %3853 = vmatpush1.msra.mxu0 0.0
        %3854 = vmatprep.mubr.f32.mxu0 0.0
        %3855 = vmatmul.mubr.f32.gmra.mrb[0].mxu0 %v3786
        %v3856 = vpop.f32.mrb[0].mxu0
        %v3857 = vadd.f32 0.0, %v3856
        %v3858 = vpop.f32.mrb[0].mxu0
        %3859 = vdwg.mxu0
        %3860 = vrot.lane.b32.xlu0 %v2574, 127
        %v3861 = vpop.permute.xlu0 %3860
        %v3862 = vsel %vm193, %v3861, 0
        %3864 = vmatprep.subr.mxu0 0.0
        %3865 = vmatpush1.msra.mxu0 %v3862
        %3866 = vmatprep.subr.mxu0 0.0
        %3867 = vmatpush1.msra.mxu0 0.0
        %3868 = vmatprep.subr.mxu0 0.0
        %3869 = vmatpush1.msra.mxu0 0.0
        %3870 = vmatprep.subr.mxu0 0.0
        %3871 = vmatpush1.msra.mxu0 0.0
        %3872 = vmatprep.subr.mxu0 0.0
        %3873 = vmatpush1.msra.mxu0 0.0
        %3874 = vmatprep.subr.mxu0 0.0
        %3875 = vmatpush1.msra.mxu0 0.0
        %3876 = vmatprep.subr.mxu0 0.0
        %3877 = vmatpush1.msra.mxu0 0.0
        %3878 = vmatprep.subr.mxu0 0.0
        %3879 = vmatpush1.msra.mxu0 0.0
        %3880 = vmatprep.subr.mxu0 0.0
        %3881 = vmatpush1.msra.mxu0 0.0
        %3882 = vmatprep.subr.mxu0 0.0
        %3883 = vmatpush1.msra.mxu0 0.0
        %3884 = vmatprep.subr.mxu0 0.0
        %3885 = vmatpush1.msra.mxu0 0.0
        %3886 = vmatprep.subr.mxu0 0.0
        %3887 = vmatpush1.msra.mxu0 0.0
        %3888 = vmatprep.subr.mxu0 0.0
        %3889 = vmatpush1.msra.mxu0 0.0
        %3890 = vmatprep.subr.mxu0 0.0
        %3891 = vmatpush1.msra.mxu0 0.0
        %3892 = vmatprep.subr.mxu0 0.0
        %3893 = vmatpush1.msra.mxu0 0.0
        %3894 = vmatprep.subr.mxu0 0.0
        %3895 = vmatpush1.msra.mxu0 0.0
        %3896 = vmatprep.subr.mxu0 0.0
        %3897 = vmatpush1.msra.mxu0 0.0
        %3898 = vmatprep.subr.mxu0 0.0
        %3899 = vmatpush1.msra.mxu0 0.0
        %3900 = vmatprep.subr.mxu0 0.0
        %3901 = vmatpush1.msra.mxu0 0.0
        %3902 = vmatprep.subr.mxu0 0.0
        %3903 = vmatpush1.msra.mxu0 0.0
        %3904 = vmatprep.subr.mxu0 0.0
        %3905 = vmatpush1.msra.mxu0 0.0
        %3906 = vmatprep.subr.mxu0 0.0
        %3907 = vmatpush1.msra.mxu0 0.0
        %3908 = vmatprep.subr.mxu0 0.0
        %3909 = vmatpush1.msra.mxu0 0.0
        %3910 = vmatprep.subr.mxu0 0.0
        %3911 = vmatpush1.msra.mxu0 0.0
        %3912 = vmatprep.subr.mxu0 0.0
        %3913 = vmatpush1.msra.mxu0 0.0
        %3914 = vmatprep.subr.mxu0 0.0
        %3915 = vmatpush1.msra.mxu0 0.0
        %3916 = vmatprep.subr.mxu0 0.0
        %3917 = vmatpush1.msra.mxu0 0.0
        %3918 = vmatprep.subr.mxu0 0.0
        %3919 = vmatpush1.msra.mxu0 0.0
        %3920 = vmatprep.subr.mxu0 0.0
        %3921 = vmatpush1.msra.mxu0 0.0
        %3922 = vmatprep.subr.mxu0 0.0
        %3923 = vmatpush1.msra.mxu0 0.0
        %3924 = vmatprep.subr.mxu0 0.0
        %3925 = vmatpush1.msra.mxu0 0.0
        %3926 = vmatprep.subr.mxu0 0.0
        %3927 = vmatpush1.msra.mxu0 0.0
        %3928 = vmatprep.mubr.f32.mxu0 0.0
        %3929 = vmatmul.mubr.f32.gmra.mrb[0].mxu0 %v3786
        %v3930 = vpop.f32.mrb[0].mxu0
        %v3931 = vadd.f32 0.0, %v3930
        %v3932 = vpop.f32.mrb[0].mxu0
        %3933 = vdwg.mxu0
        %3934 = vrot.lane.b32.xlu0 %v2575, 127
        %v3935 = vpop.permute.xlu0 %3934
        %v3936 = vsel %vm193, %v3935, 0
        %3938 = vmatprep.subr.mxu0 0.0
        %3939 = vmatpush1.msra.mxu0 %v3936
        %3940 = vmatprep.subr.mxu0 0.0
        %3941 = vmatpush1.msra.mxu0 0.0
        %3942 = vmatprep.subr.mxu0 0.0
        %3943 = vmatpush1.msra.mxu0 0.0
        %3944 = vmatprep.subr.mxu0 0.0
        %3945 = vmatpush1.msra.mxu0 0.0
        %3946 = vmatprep.subr.mxu0 0.0
        %3947 = vmatpush1.msra.mxu0 0.0
        %3948 = vmatprep.subr.mxu0 0.0
        %3949 = vmatpush1.msra.mxu0 0.0
        %3950 = vmatprep.subr.mxu0 0.0
        %3951 = vmatpush1.msra.mxu0 0.0
        %3952 = vmatprep.subr.mxu0 0.0
        %3953 = vmatpush1.msra.mxu0 0.0
        %3954 = vmatprep.subr.mxu0 0.0
        %3955 = vmatpush1.msra.mxu0 0.0
        %3956 = vmatprep.subr.mxu0 0.0
        %3957 = vmatpush1.msra.mxu0 0.0
        %3958 = vmatprep.subr.mxu0 0.0
        %3959 = vmatpush1.msra.mxu0 0.0
        %3960 = vmatprep.subr.mxu0 0.0
        %3961 = vmatpush1.msra.mxu0 0.0
        %3962 = vmatprep.subr.mxu0 0.0
        %3963 = vmatpush1.msra.mxu0 0.0
        %3964 = vmatprep.subr.mxu0 0.0
        %3965 = vmatpush1.msra.mxu0 0.0
        %3966 = vmatprep.subr.mxu0 0.0
        %3967 = vmatpush1.msra.mxu0 0.0
        %3968 = vmatprep.subr.mxu0 0.0
        %3969 = vmatpush1.msra.mxu0 0.0
        %3970 = vmatprep.subr.mxu0 0.0
        %3971 = vmatpush1.msra.mxu0 0.0
        %3972 = vmatprep.subr.mxu0 0.0
        %3973 = vmatpush1.msra.mxu0 0.0
        %3974 = vmatprep.subr.mxu0 0.0
        %3975 = vmatpush1.msra.mxu0 0.0
        %3976 = vmatprep.subr.mxu0 0.0
        %3977 = vmatpush1.msra.mxu0 0.0
        %3978 = vmatprep.subr.mxu0 0.0
        %3979 = vmatpush1.msra.mxu0 0.0
        %3980 = vmatprep.subr.mxu0 0.0
        %3981 = vmatpush1.msra.mxu0 0.0
        %3982 = vmatprep.subr.mxu0 0.0
        %3983 = vmatpush1.msra.mxu0 0.0
        %3984 = vmatprep.subr.mxu0 0.0
        %3985 = vmatpush1.msra.mxu0 0.0
        %3986 = vmatprep.subr.mxu0 0.0
        %3987 = vmatpush1.msra.mxu0 0.0
        %3988 = vmatprep.subr.mxu0 0.0
        %3989 = vmatpush1.msra.mxu0 0.0
        %3990 = vmatprep.subr.mxu0 0.0
        %3991 = vmatpush1.msra.mxu0 0.0
        %3992 = vmatprep.subr.mxu0 0.0
        %3993 = vmatpush1.msra.mxu0 0.0
        %3994 = vmatprep.subr.mxu0 0.0
        %3995 = vmatpush1.msra.mxu0 0.0
        %3996 = vmatprep.subr.mxu0 0.0
        %3997 = vmatpush1.msra.mxu0 0.0
        %3998 = vmatprep.subr.mxu0 0.0
        %3999 = vmatpush1.msra.mxu0 0.0
        %4000 = vmatprep.subr.mxu0 0.0
        %4001 = vmatpush1.msra.mxu0 0.0
        %4002 = vmatprep.mubr.f32.mxu0 0.0
        %4003 = vmatmul.mubr.f32.gmra.mrb[0].mxu0 %v3786
        %v4004 = vpop.f32.mrb[0].mxu0
        %v4005 = vadd.f32 0.0, %v4004
        %v4006 = vpop.f32.mrb[0].mxu0
        %4007 = vdwg.mxu0
        %4008 = vrot.lane.b32.xlu0 %v2576, 127
        %v4009 = vpop.permute.xlu0 %4008
        %v4010 = vsel %vm193, %v4009, 0
        %4012 = vmatprep.subr.mxu0 0.0
        %4013 = vmatpush1.msra.mxu0 %v4010
        %4014 = vmatprep.subr.mxu0 0.0
        %4015 = vmatpush1.msra.mxu0 0.0
        %4016 = vmatprep.subr.mxu0 0.0
        %4017 = vmatpush1.msra.mxu0 0.0
        %4018 = vmatprep.subr.mxu0 0.0
        %4019 = vmatpush1.msra.mxu0 0.0
        %4020 = vmatprep.subr.mxu0 0.0
        %4021 = vmatpush1.msra.mxu0 0.0
        %4022 = vmatprep.subr.mxu0 0.0
        %4023 = vmatpush1.msra.mxu0 0.0
        %4024 = vmatprep.subr.mxu0 0.0
        %4025 = vmatpush1.msra.mxu0 0.0
        %4026 = vmatprep.subr.mxu0 0.0
        %4027 = vmatpush1.msra.mxu0 0.0
        %4028 = vmatprep.subr.mxu0 0.0
        %4029 = vmatpush1.msra.mxu0 0.0
        %4030 = vmatprep.subr.mxu0 0.0
        %4031 = vmatpush1.msra.mxu0 0.0
        %4032 = vmatprep.subr.mxu0 0.0
        %4033 = vmatpush1.msra.mxu0 0.0
        %4034 = vmatprep.subr.mxu0 0.0
        %4035 = vmatpush1.msra.mxu0 0.0
        %4036 = vmatprep.subr.mxu0 0.0
        %4037 = vmatpush1.msra.mxu0 0.0
        %4038 = vmatprep.subr.mxu0 0.0
        %4039 = vmatpush1.msra.mxu0 0.0
        %4040 = vmatprep.subr.mxu0 0.0
        %4041 = vmatpush1.msra.mxu0 0.0
        %4042 = vmatprep.subr.mxu0 0.0
        %4043 = vmatpush1.msra.mxu0 0.0
        %4044 = vmatprep.subr.mxu0 0.0
        %4045 = vmatpush1.msra.mxu0 0.0
        %4046 = vmatprep.subr.mxu0 0.0
        %4047 = vmatpush1.msra.mxu0 0.0
        %4048 = vmatprep.subr.mxu0 0.0
        %4049 = vmatpush1.msra.mxu0 0.0
        %4050 = vmatprep.subr.mxu0 0.0
        %4051 = vmatpush1.msra.mxu0 0.0
        %4052 = vmatprep.subr.mxu0 0.0
        %4053 = vmatpush1.msra.mxu0 0.0
        %4054 = vmatprep.subr.mxu0 0.0
        %4055 = vmatpush1.msra.mxu0 0.0
        %4056 = vmatprep.subr.mxu0 0.0
        %4057 = vmatpush1.msra.mxu0 0.0
        %4058 = vmatprep.subr.mxu0 0.0
        %4059 = vmatpush1.msra.mxu0 0.0
        %4060 = vmatprep.subr.mxu0 0.0
        %4061 = vmatpush1.msra.mxu0 0.0
        %4062 = vmatprep.subr.mxu0 0.0
        %4063 = vmatpush1.msra.mxu0 0.0
        %4064 = vmatprep.subr.mxu0 0.0
        %4065 = vmatpush1.msra.mxu0 0.0
        %4066 = vmatprep.subr.mxu0 0.0
        %4067 = vmatpush1.msra.mxu0 0.0
        %4068 = vmatprep.subr.mxu0 0.0
        %4069 = vmatpush1.msra.mxu0 0.0
        %4070 = vmatprep.subr.mxu0 0.0
        %4071 = vmatpush1.msra.mxu0 0.0
        %4072 = vmatprep.subr.mxu0 0.0
        %4073 = vmatpush1.msra.mxu0 0.0
        %4074 = vmatprep.subr.mxu0 0.0
        %4075 = vmatpush1.msra.mxu0 0.0
        %4076 = vmatprep.mubr.f32.mxu0 0.0
        %4077 = vmatmul.mubr.f32.gmra.mrb[0].mxu0 %v3786
        %v4078 = vpop.f32.mrb[0].mxu0
        %v4079 = vadd.f32 0.0, %v4078
        %v4080 = vpop.f32.mrb[0].mxu0
        %4081 = vdwg.mxu0
        %4082 = vrot.lane.b32.xlu0 %v2577, 127
        %v4083 = vpop.permute.xlu0 %4082
        %v4084 = vsel %vm193, %v4083, 0
        %4086 = vmatprep.subr.mxu0 0.0
        %4087 = vmatpush1.msra.mxu0 %v4084
        %4088 = vmatprep.subr.mxu0 0.0
        %4089 = vmatpush1.msra.mxu0 0.0
        %4090 = vmatprep.subr.mxu0 0.0
        %4091 = vmatpush1.msra.mxu0 0.0
        %4092 = vmatprep.subr.mxu0 0.0
        %4093 = vmatpush1.msra.mxu0 0.0
        %4094 = vmatprep.subr.mxu0 0.0
        %4095 = vmatpush1.msra.mxu0 0.0
        %4096 = vmatprep.subr.mxu0 0.0
        %4097 = vmatpush1.msra.mxu0 0.0
        %4098 = vmatprep.subr.mxu0 0.0
        %4099 = vmatpush1.msra.mxu0 0.0
        %4100 = vmatprep.subr.mxu0 0.0
        %4101 = vmatpush1.msra.mxu0 0.0
        %4102 = vmatprep.subr.mxu0 0.0
        %4103 = vmatpush1.msra.mxu0 0.0
        %4104 = vmatprep.subr.mxu0 0.0
        %4105 = vmatpush1.msra.mxu0 0.0
        %4106 = vmatprep.subr.mxu0 0.0
        %4107 = vmatpush1.msra.mxu0 0.0
        %4108 = vmatprep.subr.mxu0 0.0
        %4109 = vmatpush1.msra.mxu0 0.0
        %4110 = vmatprep.subr.mxu0 0.0
        %4111 = vmatpush1.msra.mxu0 0.0
        %4112 = vmatprep.subr.mxu0 0.0
        %4113 = vmatpush1.msra.mxu0 0.0
        %4114 = vmatprep.subr.mxu0 0.0
        %4115 = vmatpush1.msra.mxu0 0.0
        %4116 = vmatprep.subr.mxu0 0.0
        %4117 = vmatpush1.msra.mxu0 0.0
        %4118 = vmatprep.subr.mxu0 0.0
        %4119 = vmatpush1.msra.mxu0 0.0
        %4120 = vmatprep.subr.mxu0 0.0
        %4121 = vmatpush1.msra.mxu0 0.0
        %4122 = vmatprep.subr.mxu0 0.0
        %4123 = vmatpush1.msra.mxu0 0.0
        %4124 = vmatprep.subr.mxu0 0.0
        %4125 = vmatpush1.msra.mxu0 0.0
        %4126 = vmatprep.subr.mxu0 0.0
        %4127 = vmatpush1.msra.mxu0 0.0
        %4128 = vmatprep.subr.mxu0 0.0
        %4129 = vmatpush1.msra.mxu0 0.0
        %4130 = vmatprep.subr.mxu0 0.0
        %4131 = vmatpush1.msra.mxu0 0.0
        %4132 = vmatprep.subr.mxu0 0.0
        %4133 = vmatpush1.msra.mxu0 0.0
        %4134 = vmatprep.subr.mxu0 0.0
        %4135 = vmatpush1.msra.mxu0 0.0
        %4136 = vmatprep.subr.mxu0 0.0
        %4137 = vmatpush1.msra.mxu0 0.0
        %4138 = vmatprep.subr.mxu0 0.0
        %4139 = vmatpush1.msra.mxu0 0.0
        %4140 = vmatprep.subr.mxu0 0.0
        %4141 = vmatpush1.msra.mxu0 0.0
        %4142 = vmatprep.subr.mxu0 0.0
        %4143 = vmatpush1.msra.mxu0 0.0
        %4144 = vmatprep.subr.mxu0 0.0
        %4145 = vmatpush1.msra.mxu0 0.0
        %4146 = vmatprep.subr.mxu0 0.0
        %4147 = vmatpush1.msra.mxu0 0.0
        %4148 = vmatprep.subr.mxu0 0.0
        %4149 = vmatpush1.msra.mxu0 0.0
        %4150 = vmatprep.mubr.f32.mxu0 0.0
        %4151 = vmatmul.mubr.f32.gmra.mrb[0].mxu0 %v3786
        %v4152 = vpop.f32.mrb[0].mxu0
        %v4153 = vadd.f32 0.0, %v4152
        %v4154 = vpop.f32.mrb[0].mxu0
        %4155 = vdwg.mxu0
        %4156 = vrot.lane.b32.xlu0 %v2578, 127
        %v4157 = vpop.permute.xlu0 %4156
        %v4158 = vsel %vm193, %v4157, 0
        %4160 = vmatprep.subr.mxu0 0.0
        %4161 = vmatpush1.msra.mxu0 %v4158
        %4162 = vmatprep.subr.mxu0 0.0
        %4163 = vmatpush1.msra.mxu0 0.0
        %4164 = vmatprep.subr.mxu0 0.0
        %4165 = vmatpush1.msra.mxu0 0.0
        %4166 = vmatprep.subr.mxu0 0.0
        %4167 = vmatpush1.msra.mxu0 0.0
        %4168 = vmatprep.subr.mxu0 0.0
        %4169 = vmatpush1.msra.mxu0 0.0
        %4170 = vmatprep.subr.mxu0 0.0
        %4171 = vmatpush1.msra.mxu0 0.0
        %4172 = vmatprep.subr.mxu0 0.0
        %4173 = vmatpush1.msra.mxu0 0.0
        %4174 = vmatprep.subr.mxu0 0.0
        %4175 = vmatpush1.msra.mxu0 0.0
        %4176 = vmatprep.subr.mxu0 0.0
        %4177 = vmatpush1.msra.mxu0 0.0
        %4178 = vmatprep.subr.mxu0 0.0
        %4179 = vmatpush1.msra.mxu0 0.0
        %4180 = vmatprep.subr.mxu0 0.0
        %4181 = vmatpush1.msra.mxu0 0.0
        %4182 = vmatprep.subr.mxu0 0.0
        %4183 = vmatpush1.msra.mxu0 0.0
        %4184 = vmatprep.subr.mxu0 0.0
        %4185 = vmatpush1.msra.mxu0 0.0
        %4186 = vmatprep.subr.mxu0 0.0
        %4187 = vmatpush1.msra.mxu0 0.0
        %4188 = vmatprep.subr.mxu0 0.0
        %4189 = vmatpush1.msra.mxu0 0.0
        %4190 = vmatprep.subr.mxu0 0.0
        %4191 = vmatpush1.msra.mxu0 0.0
        %4192 = vmatprep.subr.mxu0 0.0
        %4193 = vmatpush1.msra.mxu0 0.0
        %4194 = vmatprep.subr.mxu0 0.0
        %4195 = vmatpush1.msra.mxu0 0.0
        %4196 = vmatprep.subr.mxu0 0.0
        %4197 = vmatpush1.msra.mxu0 0.0
        %4198 = vmatprep.subr.mxu0 0.0
        %4199 = vmatpush1.msra.mxu0 0.0
        %4200 = vmatprep.subr.mxu0 0.0
        %4201 = vmatpush1.msra.mxu0 0.0
        %4202 = vmatprep.subr.mxu0 0.0
        %4203 = vmatpush1.msra.mxu0 0.0
        %4204 = vmatprep.subr.mxu0 0.0
        %4205 = vmatpush1.msra.mxu0 0.0
        %4206 = vmatprep.subr.mxu0 0.0
        %4207 = vmatpush1.msra.mxu0 0.0
        %4208 = vmatprep.subr.mxu0 0.0
        %4209 = vmatpush1.msra.mxu0 0.0
        %4210 = vmatprep.subr.mxu0 0.0
        %4211 = vmatpush1.msra.mxu0 0.0
        %4212 = vmatprep.subr.mxu0 0.0
        %4213 = vmatpush1.msra.mxu0 0.0
        %4214 = vmatprep.subr.mxu0 0.0
        %4215 = vmatpush1.msra.mxu0 0.0
        %4216 = vmatprep.subr.mxu0 0.0
        %4217 = vmatpush1.msra.mxu0 0.0
        %4218 = vmatprep.subr.mxu0 0.0
        %4219 = vmatpush1.msra.mxu0 0.0
        %4220 = vmatprep.subr.mxu0 0.0
        %4221 = vmatpush1.msra.mxu0 0.0
        %4222 = vmatprep.subr.mxu0 0.0
        %4223 = vmatpush1.msra.mxu0 0.0
        %4224 = vmatprep.mubr.f32.mxu0 0.0
        %4225 = vmatmul.mubr.f32.gmra.mrb[0].mxu0 %v3786
        %v4226 = vpop.f32.mrb[0].mxu0
        %v4227 = vadd.f32 0.0, %v4226
        %v4228 = vpop.f32.mrb[0].mxu0
        %4229 = vdwg.mxu0
        %4230 = vrot.lane.b32.xlu0 %v2579, 127
        %v4231 = vpop.permute.xlu0 %4230
        %v4232 = vsel %vm193, %v4231, 0
        %4234 = vmatprep.subr.mxu0 0.0
        %4235 = vmatpush1.msra.mxu0 %v4232
        %4236 = vmatprep.subr.mxu0 0.0
        %4237 = vmatpush1.msra.mxu0 0.0
        %4238 = vmatprep.subr.mxu0 0.0
        %4239 = vmatpush1.msra.mxu0 0.0
        %4240 = vmatprep.subr.mxu0 0.0
        %4241 = vmatpush1.msra.mxu0 0.0
        %4242 = vmatprep.subr.mxu0 0.0
        %4243 = vmatpush1.msra.mxu0 0.0
        %4244 = vmatprep.subr.mxu0 0.0
        %4245 = vmatpush1.msra.mxu0 0.0
        %4246 = vmatprep.subr.mxu0 0.0
        %4247 = vmatpush1.msra.mxu0 0.0
        %4248 = vmatprep.subr.mxu0 0.0
        %4249 = vmatpush1.msra.mxu0 0.0
        %4250 = vmatprep.subr.mxu0 0.0
        %4251 = vmatpush1.msra.mxu0 0.0
        %4252 = vmatprep.subr.mxu0 0.0
        %4253 = vmatpush1.msra.mxu0 0.0
        %4254 = vmatprep.subr.mxu0 0.0
        %4255 = vmatpush1.msra.mxu0 0.0
        %4256 = vmatprep.subr.mxu0 0.0
        %4257 = vmatpush1.msra.mxu0 0.0
        %4258 = vmatprep.subr.mxu0 0.0
        %4259 = vmatpush1.msra.mxu0 0.0
        %4260 = vmatprep.subr.mxu0 0.0
        %4261 = vmatpush1.msra.mxu0 0.0
        %4262 = vmatprep.subr.mxu0 0.0
        %4263 = vmatpush1.msra.mxu0 0.0
        %4264 = vmatprep.subr.mxu0 0.0
        %4265 = vmatpush1.msra.mxu0 0.0
        %4266 = vmatprep.subr.mxu0 0.0
        %4267 = vmatpush1.msra.mxu0 0.0
        %4268 = vmatprep.subr.mxu0 0.0
        %4269 = vmatpush1.msra.mxu0 0.0
        %4270 = vmatprep.subr.mxu0 0.0
        %4271 = vmatpush1.msra.mxu0 0.0
        %4272 = vmatprep.subr.mxu0 0.0
        %4273 = vmatpush1.msra.mxu0 0.0
        %4274 = vmatprep.subr.mxu0 0.0
        %4275 = vmatpush1.msra.mxu0 0.0
        %4276 = vmatprep.subr.mxu0 0.0
        %4277 = vmatpush1.msra.mxu0 0.0
        %4278 = vmatprep.subr.mxu0 0.0
        %4279 = vmatpush1.msra.mxu0 0.0
        %4280 = vmatprep.subr.mxu0 0.0
        %4281 = vmatpush1.msra.mxu0 0.0
        %4282 = vmatprep.subr.mxu0 0.0
        %4283 = vmatpush1.msra.mxu0 0.0
        %4284 = vmatprep.subr.mxu0 0.0
        %4285 = vmatpush1.msra.mxu0 0.0
        %4286 = vmatprep.subr.mxu0 0.0
        %4287 = vmatpush1.msra.mxu0 0.0
        %4288 = vmatprep.subr.mxu0 0.0
        %4289 = vmatpush1.msra.mxu0 0.0
        %4290 = vmatprep.subr.mxu0 0.0
        %4291 = vmatpush1.msra.mxu0 0.0
        %4292 = vmatprep.subr.mxu0 0.0
        %4293 = vmatpush1.msra.mxu0 0.0
        %4294 = vmatprep.subr.mxu0 0.0
        %4295 = vmatpush1.msra.mxu0 0.0
        %4296 = vmatprep.subr.mxu0 0.0
        %4297 = vmatpush1.msra.mxu0 0.0
        %4298 = vmatprep.mubr.f32.mxu0 0.0
        %4299 = vmatmul.mubr.f32.gmra.mrb[0].mxu0 %v3786
        %v4300 = vpop.f32.mrb[0].mxu0
        %v4301 = vadd.f32 0.0, %v4300
        %v4302 = vpop.f32.mrb[0].mxu0
        %4303 = vdwg.mxu0
        %4304 = vrot.lane.b32.xlu0 %v2580, 127
        %v4305 = vpop.permute.xlu0 %4304
        %v4306 = vsel %vm193, %v4305, 0
        %4308 = vmatprep.subr.mxu0 0.0
        %4309 = vmatpush1.msra.mxu0 %v4306
        %4310 = vmatprep.subr.mxu0 0.0
        %4311 = vmatpush1.msra.mxu0 0.0
        %4312 = vmatprep.subr.mxu0 0.0
        %4313 = vmatpush1.msra.mxu0 0.0
        %4314 = vmatprep.subr.mxu0 0.0
        %4315 = vmatpush1.msra.mxu0 0.0
        %4316 = vmatprep.subr.mxu0 0.0
        %4317 = vmatpush1.msra.mxu0 0.0
        %4318 = vmatprep.subr.mxu0 0.0
        %4319 = vmatpush1.msra.mxu0 0.0
        %4320 = vmatprep.subr.mxu0 0.0
        %4321 = vmatpush1.msra.mxu0 0.0
        %4322 = vmatprep.subr.mxu0 0.0
        %4323 = vmatpush1.msra.mxu0 0.0
        %4324 = vmatprep.subr.mxu0 0.0
        %4325 = vmatpush1.msra.mxu0 0.0
        %4326 = vmatprep.subr.mxu0 0.0
        %4327 = vmatpush1.msra.mxu0 0.0
        %4328 = vmatprep.subr.mxu0 0.0
        %4329 = vmatpush1.msra.mxu0 0.0
        %4330 = vmatprep.subr.mxu0 0.0
        %4331 = vmatpush1.msra.mxu0 0.0
        %4332 = vmatprep.subr.mxu0 0.0
        %4333 = vmatpush1.msra.mxu0 0.0
        %4334 = vmatprep.subr.mxu0 0.0
        %4335 = vmatpush1.msra.mxu0 0.0
        %4336 = vmatprep.subr.mxu0 0.0
        %4337 = vmatpush1.msra.mxu0 0.0
        %4338 = vmatprep.subr.mxu0 0.0
        %4339 = vmatpush1.msra.mxu0 0.0
        %4340 = vmatprep.subr.mxu0 0.0
        %4341 = vmatpush1.msra.mxu0 0.0
        %4342 = vmatprep.subr.mxu0 0.0
        %4343 = vmatpush1.msra.mxu0 0.0
        %4344 = vmatprep.subr.mxu0 0.0
        %4345 = vmatpush1.msra.mxu0 0.0
        %4346 = vmatprep.subr.mxu0 0.0
        %4347 = vmatpush1.msra.mxu0 0.0
        %4348 = vmatprep.subr.mxu0 0.0
        %4349 = vmatpush1.msra.mxu0 0.0
        %4350 = vmatprep.subr.mxu0 0.0
        %4351 = vmatpush1.msra.mxu0 0.0
        %4352 = vmatprep.subr.mxu0 0.0
        %4353 = vmatpush1.msra.mxu0 0.0
        %4354 = vmatprep.subr.mxu0 0.0
        %4355 = vmatpush1.msra.mxu0 0.0
        %4356 = vmatprep.subr.mxu0 0.0
        %4357 = vmatpush1.msra.mxu0 0.0
        %4358 = vmatprep.subr.mxu0 0.0
        %4359 = vmatpush1.msra.mxu0 0.0
        %4360 = vmatprep.subr.mxu0 0.0
        %4361 = vmatpush1.msra.mxu0 0.0
        %4362 = vmatprep.subr.mxu0 0.0
        %4363 = vmatpush1.msra.mxu0 0.0
        %4364 = vmatprep.subr.mxu0 0.0
        %4365 = vmatpush1.msra.mxu0 0.0
        %4366 = vmatprep.subr.mxu0 0.0
        %4367 = vmatpush1.msra.mxu0 0.0
        %4368 = vmatprep.subr.mxu0 0.0
        %4369 = vmatpush1.msra.mxu0 0.0
        %4370 = vmatprep.subr.mxu0 0.0
        %4371 = vmatpush1.msra.mxu0 0.0
        %4372 = vmatprep.mubr.f32.mxu0 0.0
        %4373 = vmatmul.mubr.f32.gmra.mrb[0].mxu0 %v3786
        %v4374 = vpop.f32.mrb[0].mxu0
        %v4375 = vadd.f32 0.0, %v4374
        %v4376 = vpop.f32.mrb[0].mxu0
        %4377 = vdwg.mxu0
        %v4378 = vadd.f32 %v3774, %v3857
        %v4379 = vadd.f32 %v3775, %v3931
        %v4380 = vadd.f32 %v3776, %v4005
        %v4381 = vadd.f32 %v3777, %v4079
        %v4382 = vadd.f32 %v3778, %v4153
        %v4383 = vadd.f32 %v3779, %v4227
        %v4384 = vadd.f32 %v3780, %v4301
        %v4385 = vadd.f32 %v3781, %v4375
        %4386 = vrot.lane.b32.xlu0 %v177, 100
        %v4387 = vpop.permute.xlu0 %4386
        %4388 = vrot.lane.b32.xlu0 %v3178, 127
        %v4389 = vpop.permute.xlu0 %4388
        %v4390 = vsel %vm190, %v4387, 0
        %v4392 = vsel %vm193, %v4389, 0
        %4394 = vmatprep.subr.mxu0 0.0
        %4395 = vmatpush1.msra.mxu0 %v4392
        %4396 = vmatprep.subr.mxu0 0.0
        %4397 = vmatpush1.msra.mxu0 0.0
        %4398 = vmatprep.subr.mxu0 0.0
        %4399 = vmatpush1.msra.mxu0 0.0
        %4400 = vmatprep.subr.mxu0 0.0
        %4401 = vmatpush1.msra.mxu0 0.0
        %4402 = vmatprep.subr.mxu0 0.0
        %4403 = vmatpush1.msra.mxu0 0.0
        %4404 = vmatprep.subr.mxu0 0.0
        %4405 = vmatpush1.msra.mxu0 0.0
        %4406 = vmatprep.subr.mxu0 0.0
        %4407 = vmatpush1.msra.mxu0 0.0
        %4408 = vmatprep.subr.mxu0 0.0
        %4409 = vmatpush1.msra.mxu0 0.0
        %4410 = vmatprep.subr.mxu0 0.0
        %4411 = vmatpush1.msra.mxu0 0.0
        %4412 = vmatprep.subr.mxu0 0.0
        %4413 = vmatpush1.msra.mxu0 0.0
        %4414 = vmatprep.subr.mxu0 0.0
        %4415 = vmatpush1.msra.mxu0 0.0
        %4416 = vmatprep.subr.mxu0 0.0
        %4417 = vmatpush1.msra.mxu0 0.0
        %4418 = vmatprep.subr.mxu0 0.0
        %4419 = vmatpush1.msra.mxu0 0.0
        %4420 = vmatprep.subr.mxu0 0.0
        %4421 = vmatpush1.msra.mxu0 0.0
        %4422 = vmatprep.subr.mxu0 0.0
        %4423 = vmatpush1.msra.mxu0 0.0
        %4424 = vmatprep.subr.mxu0 0.0
        %4425 = vmatpush1.msra.mxu0 0.0
        %4426 = vmatprep.subr.mxu0 0.0
        %4427 = vmatpush1.msra.mxu0 0.0
        %4428 = vmatprep.subr.mxu0 0.0
        %4429 = vmatpush1.msra.mxu0 0.0
        %4430 = vmatprep.subr.mxu0 0.0
        %4431 = vmatpush1.msra.mxu0 0.0
        %4432 = vmatprep.subr.mxu0 0.0
        %4433 = vmatpush1.msra.mxu0 0.0
        %4434 = vmatprep.subr.mxu0 0.0
        %4435 = vmatpush1.msra.mxu0 0.0
        %4436 = vmatprep.subr.mxu0 0.0
        %4437 = vmatpush1.msra.mxu0 0.0
        %4438 = vmatprep.subr.mxu0 0.0
        %4439 = vmatpush1.msra.mxu0 0.0
        %4440 = vmatprep.subr.mxu0 0.0
        %4441 = vmatpush1.msra.mxu0 0.0
        %4442 = vmatprep.subr.mxu0 0.0
        %4443 = vmatpush1.msra.mxu0 0.0
        %4444 = vmatprep.subr.mxu0 0.0
        %4445 = vmatpush1.msra.mxu0 0.0
        %4446 = vmatprep.subr.mxu0 0.0
        %4447 = vmatpush1.msra.mxu0 0.0
        %4448 = vmatprep.subr.mxu0 0.0
        %4449 = vmatpush1.msra.mxu0 0.0
        %4450 = vmatprep.subr.mxu0 0.0
        %4451 = vmatpush1.msra.mxu0 0.0
        %4452 = vmatprep.subr.mxu0 0.0
        %4453 = vmatpush1.msra.mxu0 0.0
        %4454 = vmatprep.subr.mxu0 0.0
        %4455 = vmatpush1.msra.mxu0 0.0
        %4456 = vmatprep.subr.mxu0 0.0
        %4457 = vmatpush1.msra.mxu0 0.0
        %4458 = vmatprep.mubr.f32.mxu0 0.0
        %4459 = vmatmul.mubr.f32.gmra.mrb[0].mxu0 %v4390
        %v4460 = vpop.f32.mrb[0].mxu0
        %v4461 = vadd.f32 0.0, %v4460
        %v4462 = vpop.f32.mrb[0].mxu0
        %4463 = vdwg.mxu0
        %4464 = vrot.lane.b32.xlu0 %v3179, 127
        %v4465 = vpop.permute.xlu0 %4464
        %v4466 = vsel %vm193, %v4465, 0
        %4468 = vmatprep.subr.mxu0 0.0
        %4469 = vmatpush1.msra.mxu0 %v4466
        %4470 = vmatprep.subr.mxu0 0.0
        %4471 = vmatpush1.msra.mxu0 0.0
        %4472 = vmatprep.subr.mxu0 0.0
        %4473 = vmatpush1.msra.mxu0 0.0
        %4474 = vmatprep.subr.mxu0 0.0
        %4475 = vmatpush1.msra.mxu0 0.0
        %4476 = vmatprep.subr.mxu0 0.0
        %4477 = vmatpush1.msra.mxu0 0.0
        %4478 = vmatprep.subr.mxu0 0.0
        %4479 = vmatpush1.msra.mxu0 0.0
        %4480 = vmatprep.subr.mxu0 0.0
        %4481 = vmatpush1.msra.mxu0 0.0
        %4482 = vmatprep.subr.mxu0 0.0
        %4483 = vmatpush1.msra.mxu0 0.0
        %4484 = vmatprep.subr.mxu0 0.0
        %4485 = vmatpush1.msra.mxu0 0.0
        %4486 = vmatprep.subr.mxu0 0.0
        %4487 = vmatpush1.msra.mxu0 0.0
        %4488 = vmatprep.subr.mxu0 0.0
        %4489 = vmatpush1.msra.mxu0 0.0
        %4490 = vmatprep.subr.mxu0 0.0
        %4491 = vmatpush1.msra.mxu0 0.0
        %4492 = vmatprep.subr.mxu0 0.0
        %4493 = vmatpush1.msra.mxu0 0.0
        %4494 = vmatprep.subr.mxu0 0.0
        %4495 = vmatpush1.msra.mxu0 0.0
        %4496 = vmatprep.subr.mxu0 0.0
        %4497 = vmatpush1.msra.mxu0 0.0
        %4498 = vmatprep.subr.mxu0 0.0
        %4499 = vmatpush1.msra.mxu0 0.0
        %4500 = vmatprep.subr.mxu0 0.0
        %4501 = vmatpush1.msra.mxu0 0.0
        %4502 = vmatprep.subr.mxu0 0.0
        %4503 = vmatpush1.msra.mxu0 0.0
        %4504 = vmatprep.subr.mxu0 0.0
        %4505 = vmatpush1.msra.mxu0 0.0
        %4506 = vmatprep.subr.mxu0 0.0
        %4507 = vmatpush1.msra.mxu0 0.0
        %4508 = vmatprep.subr.mxu0 0.0
        %4509 = vmatpush1.msra.mxu0 0.0
        %4510 = vmatprep.subr.mxu0 0.0
        %4511 = vmatpush1.msra.mxu0 0.0
        %4512 = vmatprep.subr.mxu0 0.0
        %4513 = vmatpush1.msra.mxu0 0.0
        %4514 = vmatprep.subr.mxu0 0.0
        %4515 = vmatpush1.msra.mxu0 0.0
        %4516 = vmatprep.subr.mxu0 0.0
        %4517 = vmatpush1.msra.mxu0 0.0
        %4518 = vmatprep.subr.mxu0 0.0
        %4519 = vmatpush1.msra.mxu0 0.0
        %4520 = vmatprep.subr.mxu0 0.0
        %4521 = vmatpush1.msra.mxu0 0.0
        %4522 = vmatprep.subr.mxu0 0.0
        %4523 = vmatpush1.msra.mxu0 0.0
        %4524 = vmatprep.subr.mxu0 0.0
        %4525 = vmatpush1.msra.mxu0 0.0
        %4526 = vmatprep.subr.mxu0 0.0
        %4527 = vmatpush1.msra.mxu0 0.0
        %4528 = vmatprep.subr.mxu0 0.0
        %4529 = vmatpush1.msra.mxu0 0.0
        %4530 = vmatprep.subr.mxu0 0.0
        %4531 = vmatpush1.msra.mxu0 0.0
        %4532 = vmatprep.mubr.f32.mxu0 0.0
        %4533 = vmatmul.mubr.f32.gmra.mrb[0].mxu0 %v4390
        %v4534 = vpop.f32.mrb[0].mxu0
        %v4535 = vadd.f32 0.0, %v4534
        %v4536 = vpop.f32.mrb[0].mxu0
        %4537 = vdwg.mxu0
        %4538 = vrot.lane.b32.xlu0 %v3180, 127
        %v4539 = vpop.permute.xlu0 %4538
        %v4540 = vsel %vm193, %v4539, 0
        %4542 = vmatprep.subr.mxu0 0.0
        %4543 = vmatpush1.msra.mxu0 %v4540
        %4544 = vmatprep.subr.mxu0 0.0
        %4545 = vmatpush1.msra.mxu0 0.0
        %4546 = vmatprep.subr.mxu0 0.0
        %4547 = vmatpush1.msra.mxu0 0.0
        %4548 = vmatprep.subr.mxu0 0.0
        %4549 = vmatpush1.msra.mxu0 0.0
        %4550 = vmatprep.subr.mxu0 0.0
        %4551 = vmatpush1.msra.mxu0 0.0
        %4552 = vmatprep.subr.mxu0 0.0
        %4553 = vmatpush1.msra.mxu0 0.0
        %4554 = vmatprep.subr.mxu0 0.0
        %4555 = vmatpush1.msra.mxu0 0.0
        %4556 = vmatprep.subr.mxu0 0.0
        %4557 = vmatpush1.msra.mxu0 0.0
        %4558 = vmatprep.subr.mxu0 0.0
        %4559 = vmatpush1.msra.mxu0 0.0
        %4560 = vmatprep.subr.mxu0 0.0
        %4561 = vmatpush1.msra.mxu0 0.0
        %4562 = vmatprep.subr.mxu0 0.0
        %4563 = vmatpush1.msra.mxu0 0.0
        %4564 = vmatprep.subr.mxu0 0.0
        %4565 = vmatpush1.msra.mxu0 0.0
        %4566 = vmatprep.subr.mxu0 0.0
        %4567 = vmatpush1.msra.mxu0 0.0
        %4568 = vmatprep.subr.mxu0 0.0
        %4569 = vmatpush1.msra.mxu0 0.0
        %4570 = vmatprep.subr.mxu0 0.0
        %4571 = vmatpush1.msra.mxu0 0.0
        %4572 = vmatprep.subr.mxu0 0.0
        %4573 = vmatpush1.msra.mxu0 0.0
        %4574 = vmatprep.subr.mxu0 0.0
        %4575 = vmatpush1.msra.mxu0 0.0
        %4576 = vmatprep.subr.mxu0 0.0
        %4577 = vmatpush1.msra.mxu0 0.0
        %4578 = vmatprep.subr.mxu0 0.0
        %4579 = vmatpush1.msra.mxu0 0.0
        %4580 = vmatprep.subr.mxu0 0.0
        %4581 = vmatpush1.msra.mxu0 0.0
        %4582 = vmatprep.subr.mxu0 0.0
        %4583 = vmatpush1.msra.mxu0 0.0
        %4584 = vmatprep.subr.mxu0 0.0
        %4585 = vmatpush1.msra.mxu0 0.0
        %4586 = vmatprep.subr.mxu0 0.0
        %4587 = vmatpush1.msra.mxu0 0.0
        %4588 = vmatprep.subr.mxu0 0.0
        %4589 = vmatpush1.msra.mxu0 0.0
        %4590 = vmatprep.subr.mxu0 0.0
        %4591 = vmatpush1.msra.mxu0 0.0
        %4592 = vmatprep.subr.mxu0 0.0
        %4593 = vmatpush1.msra.mxu0 0.0
        %4594 = vmatprep.subr.mxu0 0.0
        %4595 = vmatpush1.msra.mxu0 0.0
        %4596 = vmatprep.subr.mxu0 0.0
        %4597 = vmatpush1.msra.mxu0 0.0
        %4598 = vmatprep.subr.mxu0 0.0
        %4599 = vmatpush1.msra.mxu0 0.0
        %4600 = vmatprep.subr.mxu0 0.0
        %4601 = vmatpush1.msra.mxu0 0.0
        %4602 = vmatprep.subr.mxu0 0.0
        %4603 = vmatpush1.msra.mxu0 0.0
        %4604 = vmatprep.subr.mxu0 0.0
        %4605 = vmatpush1.msra.mxu0 0.0
        %4606 = vmatprep.mubr.f32.mxu0 0.0
        %4607 = vmatmul.mubr.f32.gmra.mrb[0].mxu0 %v4390
        %v4608 = vpop.f32.mrb[0].mxu0
        %v4609 = vadd.f32 0.0, %v4608
        %v4610 = vpop.f32.mrb[0].mxu0
        %4611 = vdwg.mxu0
        %4612 = vrot.lane.b32.xlu0 %v3181, 127
        %v4613 = vpop.permute.xlu0 %4612
        %v4614 = vsel %vm193, %v4613, 0
        %4616 = vmatprep.subr.mxu0 0.0
        %4617 = vmatpush1.msra.mxu0 %v4614
        %4618 = vmatprep.subr.mxu0 0.0
        %4619 = vmatpush1.msra.mxu0 0.0
        %4620 = vmatprep.subr.mxu0 0.0
        %4621 = vmatpush1.msra.mxu0 0.0
        %4622 = vmatprep.subr.mxu0 0.0
        %4623 = vmatpush1.msra.mxu0 0.0
        %4624 = vmatprep.subr.mxu0 0.0
        %4625 = vmatpush1.msra.mxu0 0.0
        %4626 = vmatprep.subr.mxu0 0.0
        %4627 = vmatpush1.msra.mxu0 0.0
        %4628 = vmatprep.subr.mxu0 0.0
        %4629 = vmatpush1.msra.mxu0 0.0
        %4630 = vmatprep.subr.mxu0 0.0
        %4631 = vmatpush1.msra.mxu0 0.0
        %4632 = vmatprep.subr.mxu0 0.0
        %4633 = vmatpush1.msra.mxu0 0.0
        %4634 = vmatprep.subr.mxu0 0.0
        %4635 = vmatpush1.msra.mxu0 0.0
        %4636 = vmatprep.subr.mxu0 0.0
        %4637 = vmatpush1.msra.mxu0 0.0
        %4638 = vmatprep.subr.mxu0 0.0
        %4639 = vmatpush1.msra.mxu0 0.0
        %4640 = vmatprep.subr.mxu0 0.0
        %4641 = vmatpush1.msra.mxu0 0.0
        %4642 = vmatprep.subr.mxu0 0.0
        %4643 = vmatpush1.msra.mxu0 0.0
        %4644 = vmatprep.subr.mxu0 0.0
        %4645 = vmatpush1.msra.mxu0 0.0
        %4646 = vmatprep.subr.mxu0 0.0
        %4647 = vmatpush1.msra.mxu0 0.0
        %4648 = vmatprep.subr.mxu0 0.0
        %4649 = vmatpush1.msra.mxu0 0.0
        %4650 = vmatprep.subr.mxu0 0.0
        %4651 = vmatpush1.msra.mxu0 0.0
        %4652 = vmatprep.subr.mxu0 0.0
        %4653 = vmatpush1.msra.mxu0 0.0
        %4654 = vmatprep.subr.mxu0 0.0
        %4655 = vmatpush1.msra.mxu0 0.0
        %4656 = vmatprep.subr.mxu0 0.0
        %4657 = vmatpush1.msra.mxu0 0.0
        %4658 = vmatprep.subr.mxu0 0.0
        %4659 = vmatpush1.msra.mxu0 0.0
        %4660 = vmatprep.subr.mxu0 0.0
        %4661 = vmatpush1.msra.mxu0 0.0
        %4662 = vmatprep.subr.mxu0 0.0
        %4663 = vmatpush1.msra.mxu0 0.0
        %4664 = vmatprep.subr.mxu0 0.0
        %4665 = vmatpush1.msra.mxu0 0.0
        %4666 = vmatprep.subr.mxu0 0.0
        %4667 = vmatpush1.msra.mxu0 0.0
        %4668 = vmatprep.subr.mxu0 0.0
        %4669 = vmatpush1.msra.mxu0 0.0
        %4670 = vmatprep.subr.mxu0 0.0
        %4671 = vmatpush1.msra.mxu0 0.0
        %4672 = vmatprep.subr.mxu0 0.0
        %4673 = vmatpush1.msra.mxu0 0.0
        %4674 = vmatprep.subr.mxu0 0.0
        %4675 = vmatpush1.msra.mxu0 0.0
        %4676 = vmatprep.subr.mxu0 0.0
        %4677 = vmatpush1.msra.mxu0 0.0
        %4678 = vmatprep.subr.mxu0 0.0
        %4679 = vmatpush1.msra.mxu0 0.0
        %4680 = vmatprep.mubr.f32.mxu0 0.0
        %4681 = vmatmul.mubr.f32.gmra.mrb[0].mxu0 %v4390
        %v4682 = vpop.f32.mrb[0].mxu0
        %v4683 = vadd.f32 0.0, %v4682
        %v4684 = vpop.f32.mrb[0].mxu0
        %4685 = vdwg.mxu0
        %4686 = vrot.lane.b32.xlu0 %v3182, 127
        %v4687 = vpop.permute.xlu0 %4686
        %v4688 = vsel %vm193, %v4687, 0
        %4690 = vmatprep.subr.mxu0 0.0
        %4691 = vmatpush1.msra.mxu0 %v4688
        %4692 = vmatprep.subr.mxu0 0.0
        %4693 = vmatpush1.msra.mxu0 0.0
        %4694 = vmatprep.subr.mxu0 0.0
        %4695 = vmatpush1.msra.mxu0 0.0
        %4696 = vmatprep.subr.mxu0 0.0
        %4697 = vmatpush1.msra.mxu0 0.0
        %4698 = vmatprep.subr.mxu0 0.0
        %4699 = vmatpush1.msra.mxu0 0.0
        %4700 = vmatprep.subr.mxu0 0.0
        %4701 = vmatpush1.msra.mxu0 0.0
        %4702 = vmatprep.subr.mxu0 0.0
        %4703 = vmatpush1.msra.mxu0 0.0
        %4704 = vmatprep.subr.mxu0 0.0
        %4705 = vmatpush1.msra.mxu0 0.0
        %4706 = vmatprep.subr.mxu0 0.0
        %4707 = vmatpush1.msra.mxu0 0.0
        %4708 = vmatprep.subr.mxu0 0.0
        %4709 = vmatpush1.msra.mxu0 0.0
        %4710 = vmatprep.subr.mxu0 0.0
        %4711 = vmatpush1.msra.mxu0 0.0
        %4712 = vmatprep.subr.mxu0 0.0
        %4713 = vmatpush1.msra.mxu0 0.0
        %4714 = vmatprep.subr.mxu0 0.0
        %4715 = vmatpush1.msra.mxu0 0.0
        %4716 = vmatprep.subr.mxu0 0.0
        %4717 = vmatpush1.msra.mxu0 0.0
        %4718 = vmatprep.subr.mxu0 0.0
        %4719 = vmatpush1.msra.mxu0 0.0
        %4720 = vmatprep.subr.mxu0 0.0
        %4721 = vmatpush1.msra.mxu0 0.0
        %4722 = vmatprep.subr.mxu0 0.0
        %4723 = vmatpush1.msra.mxu0 0.0
        %4724 = vmatprep.subr.mxu0 0.0
        %4725 = vmatpush1.msra.mxu0 0.0
        %4726 = vmatprep.subr.mxu0 0.0
        %4727 = vmatpush1.msra.mxu0 0.0
        %4728 = vmatprep.subr.mxu0 0.0
        %4729 = vmatpush1.msra.mxu0 0.0
        %4730 = vmatprep.subr.mxu0 0.0
        %4731 = vmatpush1.msra.mxu0 0.0
        %4732 = vmatprep.subr.mxu0 0.0
        %4733 = vmatpush1.msra.mxu0 0.0
        %4734 = vmatprep.subr.mxu0 0.0
        %4735 = vmatpush1.msra.mxu0 0.0
        %4736 = vmatprep.subr.mxu0 0.0
        %4737 = vmatpush1.msra.mxu0 0.0
        %4738 = vmatprep.subr.mxu0 0.0
        %4739 = vmatpush1.msra.mxu0 0.0
        %4740 = vmatprep.subr.mxu0 0.0
        %4741 = vmatpush1.msra.mxu0 0.0
        %4742 = vmatprep.subr.mxu0 0.0
        %4743 = vmatpush1.msra.mxu0 0.0
        %4744 = vmatprep.subr.mxu0 0.0
        %4745 = vmatpush1.msra.mxu0 0.0
        %4746 = vmatprep.subr.mxu0 0.0
        %4747 = vmatpush1.msra.mxu0 0.0
        %4748 = vmatprep.subr.mxu0 0.0
        %4749 = vmatpush1.msra.mxu0 0.0
        %4750 = vmatprep.subr.mxu0 0.0
        %4751 = vmatpush1.msra.mxu0 0.0
        %4752 = vmatprep.subr.mxu0 0.0
        %4753 = vmatpush1.msra.mxu0 0.0
        %4754 = vmatprep.mubr.f32.mxu0 0.0
        %4755 = vmatmul.mubr.f32.gmra.mrb[0].mxu0 %v4390
        %v4756 = vpop.f32.mrb[0].mxu0
        %v4757 = vadd.f32 0.0, %v4756
        %v4758 = vpop.f32.mrb[0].mxu0
        %4759 = vdwg.mxu0
        %4760 = vrot.lane.b32.xlu0 %v3183, 127
        %v4761 = vpop.permute.xlu0 %4760
        %v4762 = vsel %vm193, %v4761, 0
        %4764 = vmatprep.subr.mxu0 0.0
        %4765 = vmatpush1.msra.mxu0 %v4762
        %4766 = vmatprep.subr.mxu0 0.0
        %4767 = vmatpush1.msra.mxu0 0.0
        %4768 = vmatprep.subr.mxu0 0.0
        %4769 = vmatpush1.msra.mxu0 0.0
        %4770 = vmatprep.subr.mxu0 0.0
        %4771 = vmatpush1.msra.mxu0 0.0
        %4772 = vmatprep.subr.mxu0 0.0
        %4773 = vmatpush1.msra.mxu0 0.0
        %4774 = vmatprep.subr.mxu0 0.0
        %4775 = vmatpush1.msra.mxu0 0.0
        %4776 = vmatprep.subr.mxu0 0.0
        %4777 = vmatpush1.msra.mxu0 0.0
        %4778 = vmatprep.subr.mxu0 0.0
        %4779 = vmatpush1.msra.mxu0 0.0
        %4780 = vmatprep.subr.mxu0 0.0
        %4781 = vmatpush1.msra.mxu0 0.0
        %4782 = vmatprep.subr.mxu0 0.0
        %4783 = vmatpush1.msra.mxu0 0.0
        %4784 = vmatprep.subr.mxu0 0.0
        %4785 = vmatpush1.msra.mxu0 0.0
        %4786 = vmatprep.subr.mxu0 0.0
        %4787 = vmatpush1.msra.mxu0 0.0
        %4788 = vmatprep.subr.mxu0 0.0
        %4789 = vmatpush1.msra.mxu0 0.0
        %4790 = vmatprep.subr.mxu0 0.0
        %4791 = vmatpush1.msra.mxu0 0.0
        %4792 = vmatprep.subr.mxu0 0.0
        %4793 = vmatpush1.msra.mxu0 0.0
        %4794 = vmatprep.subr.mxu0 0.0
        %4795 = vmatpush1.msra.mxu0 0.0
        %4796 = vmatprep.subr.mxu0 0.0
        %4797 = vmatpush1.msra.mxu0 0.0
        %4798 = vmatprep.subr.mxu0 0.0
        %4799 = vmatpush1.msra.mxu0 0.0
        %4800 = vmatprep.subr.mxu0 0.0
        %4801 = vmatpush1.msra.mxu0 0.0
        %4802 = vmatprep.subr.mxu0 0.0
        %4803 = vmatpush1.msra.mxu0 0.0
        %4804 = vmatprep.subr.mxu0 0.0
        %4805 = vmatpush1.msra.mxu0 0.0
        %4806 = vmatprep.subr.mxu0 0.0
        %4807 = vmatpush1.msra.mxu0 0.0
        %4808 = vmatprep.subr.mxu0 0.0
        %4809 = vmatpush1.msra.mxu0 0.0
        %4810 = vmatprep.subr.mxu0 0.0
        %4811 = vmatpush1.msra.mxu0 0.0
        %4812 = vmatprep.subr.mxu0 0.0
        %4813 = vmatpush1.msra.mxu0 0.0
        %4814 = vmatprep.subr.mxu0 0.0
        %4815 = vmatpush1.msra.mxu0 0.0
        %4816 = vmatprep.subr.mxu0 0.0
        %4817 = vmatpush1.msra.mxu0 0.0
        %4818 = vmatprep.subr.mxu0 0.0
        %4819 = vmatpush1.msra.mxu0 0.0
        %4820 = vmatprep.subr.mxu0 0.0
        %4821 = vmatpush1.msra.mxu0 0.0
        %4822 = vmatprep.subr.mxu0 0.0
        %4823 = vmatpush1.msra.mxu0 0.0
        %4824 = vmatprep.subr.mxu0 0.0
        %4825 = vmatpush1.msra.mxu0 0.0
        %4826 = vmatprep.subr.mxu0 0.0
        %4827 = vmatpush1.msra.mxu0 0.0
        %4828 = vmatprep.mubr.f32.mxu0 0.0
        %4829 = vmatmul.mubr.f32.gmra.mrb[0].mxu0 %v4390
        %v4830 = vpop.f32.mrb[0].mxu0
        %v4831 = vadd.f32 0.0, %v4830
        %v4832 = vpop.f32.mrb[0].mxu0
        %4833 = vdwg.mxu0
        %4834 = vrot.lane.b32.xlu0 %v3184, 127
        %v4835 = vpop.permute.xlu0 %4834
        %v4836 = vsel %vm193, %v4835, 0
        %4838 = vmatprep.subr.mxu0 0.0
        %4839 = vmatpush1.msra.mxu0 %v4836
        %4840 = vmatprep.subr.mxu0 0.0
        %4841 = vmatpush1.msra.mxu0 0.0
        %4842 = vmatprep.subr.mxu0 0.0
        %4843 = vmatpush1.msra.mxu0 0.0
        %4844 = vmatprep.subr.mxu0 0.0
        %4845 = vmatpush1.msra.mxu0 0.0
        %4846 = vmatprep.subr.mxu0 0.0
        %4847 = vmatpush1.msra.mxu0 0.0
        %4848 = vmatprep.subr.mxu0 0.0
        %4849 = vmatpush1.msra.mxu0 0.0
        %4850 = vmatprep.subr.mxu0 0.0
        %4851 = vmatpush1.msra.mxu0 0.0
        %4852 = vmatprep.subr.mxu0 0.0
        %4853 = vmatpush1.msra.mxu0 0.0
        %4854 = vmatprep.subr.mxu0 0.0
        %4855 = vmatpush1.msra.mxu0 0.0
        %4856 = vmatprep.subr.mxu0 0.0
        %4857 = vmatpush1.msra.mxu0 0.0
        %4858 = vmatprep.subr.mxu0 0.0
        %4859 = vmatpush1.msra.mxu0 0.0
        %4860 = vmatprep.subr.mxu0 0.0
        %4861 = vmatpush1.msra.mxu0 0.0
        %4862 = vmatprep.subr.mxu0 0.0
        %4863 = vmatpush1.msra.mxu0 0.0
        %4864 = vmatprep.subr.mxu0 0.0
        %4865 = vmatpush1.msra.mxu0 0.0
        %4866 = vmatprep.subr.mxu0 0.0
        %4867 = vmatpush1.msra.mxu0 0.0
        %4868 = vmatprep.subr.mxu0 0.0
        %4869 = vmatpush1.msra.mxu0 0.0
        %4870 = vmatprep.subr.mxu0 0.0
        %4871 = vmatpush1.msra.mxu0 0.0
        %4872 = vmatprep.subr.mxu0 0.0
        %4873 = vmatpush1.msra.mxu0 0.0
        %4874 = vmatprep.subr.mxu0 0.0
        %4875 = vmatpush1.msra.mxu0 0.0
        %4876 = vmatprep.subr.mxu0 0.0
        %4877 = vmatpush1.msra.mxu0 0.0
        %4878 = vmatprep.subr.mxu0 0.0
        %4879 = vmatpush1.msra.mxu0 0.0
        %4880 = vmatprep.subr.mxu0 0.0
        %4881 = vmatpush1.msra.mxu0 0.0
        %4882 = vmatprep.subr.mxu0 0.0
        %4883 = vmatpush1.msra.mxu0 0.0
        %4884 = vmatprep.subr.mxu0 0.0
        %4885 = vmatpush1.msra.mxu0 0.0
        %4886 = vmatprep.subr.mxu0 0.0
        %4887 = vmatpush1.msra.mxu0 0.0
        %4888 = vmatprep.subr.mxu0 0.0
        %4889 = vmatpush1.msra.mxu0 0.0
        %4890 = vmatprep.subr.mxu0 0.0
        %4891 = vmatpush1.msra.mxu0 0.0
        %4892 = vmatprep.subr.mxu0 0.0
        %4893 = vmatpush1.msra.mxu0 0.0
        %4894 = vmatprep.subr.mxu0 0.0
        %4895 = vmatpush1.msra.mxu0 0.0
        %4896 = vmatprep.subr.mxu0 0.0
        %4897 = vmatpush1.msra.mxu0 0.0
        %4898 = vmatprep.subr.mxu0 0.0
        %4899 = vmatpush1.msra.mxu0 0.0
        %4900 = vmatprep.subr.mxu0 0.0
        %4901 = vmatpush1.msra.mxu0 0.0
        %4902 = vmatprep.mubr.f32.mxu0 0.0
        %4903 = vmatmul.mubr.f32.gmra.mrb[0].mxu0 %v4390
        %v4904 = vpop.f32.mrb[0].mxu0
        %v4905 = vadd.f32 0.0, %v4904
        %v4906 = vpop.f32.mrb[0].mxu0
        %4907 = vdwg.mxu0
        %4908 = vrot.lane.b32.xlu0 %v3185, 127
        %v4909 = vpop.permute.xlu0 %4908
        %v4910 = vsel %vm193, %v4909, 0
        %4912 = vmatprep.subr.mxu0 0.0
        %4913 = vmatpush1.msra.mxu0 %v4910
        %4914 = vmatprep.subr.mxu0 0.0
        %4915 = vmatpush1.msra.mxu0 0.0
        %4916 = vmatprep.subr.mxu0 0.0
        %4917 = vmatpush1.msra.mxu0 0.0
        %4918 = vmatprep.subr.mxu0 0.0
        %4919 = vmatpush1.msra.mxu0 0.0
        %4920 = vmatprep.subr.mxu0 0.0
        %4921 = vmatpush1.msra.mxu0 0.0
        %4922 = vmatprep.subr.mxu0 0.0
        %4923 = vmatpush1.msra.mxu0 0.0
        %4924 = vmatprep.subr.mxu0 0.0
        %4925 = vmatpush1.msra.mxu0 0.0
        %4926 = vmatprep.subr.mxu0 0.0
        %4927 = vmatpush1.msra.mxu0 0.0
        %4928 = vmatprep.subr.mxu0 0.0
        %4929 = vmatpush1.msra.mxu0 0.0
        %4930 = vmatprep.subr.mxu0 0.0
        %4931 = vmatpush1.msra.mxu0 0.0
        %4932 = vmatprep.subr.mxu0 0.0
        %4933 = vmatpush1.msra.mxu0 0.0
        %4934 = vmatprep.subr.mxu0 0.0
        %4935 = vmatpush1.msra.mxu0 0.0
        %4936 = vmatprep.subr.mxu0 0.0
        %4937 = vmatpush1.msra.mxu0 0.0
        %4938 = vmatprep.subr.mxu0 0.0
        %4939 = vmatpush1.msra.mxu0 0.0
        %4940 = vmatprep.subr.mxu0 0.0
        %4941 = vmatpush1.msra.mxu0 0.0
        %4942 = vmatprep.subr.mxu0 0.0
        %4943 = vmatpush1.msra.mxu0 0.0
        %4944 = vmatprep.subr.mxu0 0.0
        %4945 = vmatpush1.msra.mxu0 0.0
        %4946 = vmatprep.subr.mxu0 0.0
        %4947 = vmatpush1.msra.mxu0 0.0
        %4948 = vmatprep.subr.mxu0 0.0
        %4949 = vmatpush1.msra.mxu0 0.0
        %4950 = vmatprep.subr.mxu0 0.0
        %4951 = vmatpush1.msra.mxu0 0.0
        %4952 = vmatprep.subr.mxu0 0.0
        %4953 = vmatpush1.msra.mxu0 0.0
        %4954 = vmatprep.subr.mxu0 0.0
        %4955 = vmatpush1.msra.mxu0 0.0
        %4956 = vmatprep.subr.mxu0 0.0
        %4957 = vmatpush1.msra.mxu0 0.0
        %4958 = vmatprep.subr.mxu0 0.0
        %4959 = vmatpush1.msra.mxu0 0.0
        %4960 = vmatprep.subr.mxu0 0.0
        %4961 = vmatpush1.msra.mxu0 0.0
        %4962 = vmatprep.subr.mxu0 0.0
        %4963 = vmatpush1.msra.mxu0 0.0
        %4964 = vmatprep.subr.mxu0 0.0
        %4965 = vmatpush1.msra.mxu0 0.0
        %4966 = vmatprep.subr.mxu0 0.0
        %4967 = vmatpush1.msra.mxu0 0.0
        %4968 = vmatprep.subr.mxu0 0.0
        %4969 = vmatpush1.msra.mxu0 0.0
        %4970 = vmatprep.subr.mxu0 0.0
        %4971 = vmatpush1.msra.mxu0 0.0
        %4972 = vmatprep.subr.mxu0 0.0
        %4973 = vmatpush1.msra.mxu0 0.0
        %4974 = vmatprep.subr.mxu0 0.0
        %4975 = vmatpush1.msra.mxu0 0.0
        %4976 = vmatprep.mubr.f32.mxu0 0.0
        %4977 = vmatmul.mubr.f32.gmra.mrb[0].mxu0 %v4390
        %v4978 = vpop.f32.mrb[0].mxu0
        %v4979 = vadd.f32 0.0, %v4978
        %v4980 = vpop.f32.mrb[0].mxu0
        %4981 = vdwg.mxu0
        %v4982 = vadd.f32 %v4378, %v4461
        %v4983 = vadd.f32 %v4379, %v4535
        %v4984 = vadd.f32 %v4380, %v4609
        %v4985 = vadd.f32 %v4381, %v4683
        %v4986 = vadd.f32 %v4382, %v4757
        %v4987 = vadd.f32 %v4383, %v4831
        %v4988 = vadd.f32 %v4384, %v4905
        %v4989 = vadd.f32 %v4385, %v4979
        %s4990 = scalar_lea.vmem %s168, 4
        %v4991 = vld [vmem:[%s4990] sm:$0xf]
        %v4992 = vld [vmem:[%s4990 + $0x4] sm:$0xf]
        %v4993 = vld [vmem:[%s4990 + $0x8] sm:$0xf]
        %v4994 = vld [vmem:[%s4990 + $0xc] sm:$0xf]
        %v4995 = vld [vmem:[%s4990 + $0x10] sm:$0xf]
        %v4996 = vld [vmem:[%s4990 + $0x14] sm:$0xf]
        %v4997 = vld [vmem:[%s4990 + $0x18] sm:$0xf]
        %v4998 = vld [vmem:[%s4990 + $0x1c] sm:$0xf]
        %4999 = vrot.lane.b32.xlu0 %v177, 96
        %v5000 = vpop.permute.xlu0 %4999
        %v5001 = vsel %vm190, %v5000, 0
        %v5004 = vsel %vm193, %v4991, 0
        %5006 = vmatprep.subr.mxu0 0.0
        %5007 = vmatpush1.msra.mxu0 %v5004
        %5008 = vmatprep.subr.mxu0 0.0
        %5009 = vmatpush1.msra.mxu0 0.0
        %5010 = vmatprep.subr.mxu0 0.0
        %5011 = vmatpush1.msra.mxu0 0.0
        %5012 = vmatprep.subr.mxu0 0.0
        %5013 = vmatpush1.msra.mxu0 0.0
        %5014 = vmatprep.subr.mxu0 0.0
        %5015 = vmatpush1.msra.mxu0 0.0
        %5016 = vmatprep.subr.mxu0 0.0
        %5017 = vmatpush1.msra.mxu0 0.0
        %5018 = vmatprep.subr.mxu0 0.0
        %5019 = vmatpush1.msra.mxu0 0.0
        %5020 = vmatprep.subr.mxu0 0.0
        %5021 = vmatpush1.msra.mxu0 0.0
        %5022 = vmatprep.subr.mxu0 0.0
        %5023 = vmatpush1.msra.mxu0 0.0
        %5024 = vmatprep.subr.mxu0 0.0
        %5025 = vmatpush1.msra.mxu0 0.0
        %5026 = vmatprep.subr.mxu0 0.0
        %5027 = vmatpush1.msra.mxu0 0.0
        %5028 = vmatprep.subr.mxu0 0.0
        %5029 = vmatpush1.msra.mxu0 0.0
        %5030 = vmatprep.subr.mxu0 0.0
        %5031 = vmatpush1.msra.mxu0 0.0
        %5032 = vmatprep.subr.mxu0 0.0
        %5033 = vmatpush1.msra.mxu0 0.0
        %5034 = vmatprep.subr.mxu0 0.0
        %5035 = vmatpush1.msra.mxu0 0.0
        %5036 = vmatprep.subr.mxu0 0.0
        %5037 = vmatpush1.msra.mxu0 0.0
        %5038 = vmatprep.subr.mxu0 0.0
        %5039 = vmatpush1.msra.mxu0 0.0
        %5040 = vmatprep.subr.mxu0 0.0
        %5041 = vmatpush1.msra.mxu0 0.0
        %5042 = vmatprep.subr.mxu0 0.0
        %5043 = vmatpush1.msra.mxu0 0.0
        %5044 = vmatprep.subr.mxu0 0.0
        %5045 = vmatpush1.msra.mxu0 0.0
        %5046 = vmatprep.subr.mxu0 0.0
        %5047 = vmatpush1.msra.mxu0 0.0
        %5048 = vmatprep.subr.mxu0 0.0
        %5049 = vmatpush1.msra.mxu0 0.0
        %5050 = vmatprep.subr.mxu0 0.0
        %5051 = vmatpush1.msra.mxu0 0.0
        %5052 = vmatprep.subr.mxu0 0.0
        %5053 = vmatpush1.msra.mxu0 0.0
        %5054 = vmatprep.subr.mxu0 0.0
        %5055 = vmatpush1.msra.mxu0 0.0
        %5056 = vmatprep.subr.mxu0 0.0
        %5057 = vmatpush1.msra.mxu0 0.0
        %5058 = vmatprep.subr.mxu0 0.0
        %5059 = vmatpush1.msra.mxu0 0.0
        %5060 = vmatprep.subr.mxu0 0.0
        %5061 = vmatpush1.msra.mxu0 0.0
        %5062 = vmatprep.subr.mxu0 0.0
        %5063 = vmatpush1.msra.mxu0 0.0
        %5064 = vmatprep.subr.mxu0 0.0
        %5065 = vmatpush1.msra.mxu0 0.0
        %5066 = vmatprep.subr.mxu0 0.0
        %5067 = vmatpush1.msra.mxu0 0.0
        %5068 = vmatprep.subr.mxu0 0.0
        %5069 = vmatpush1.msra.mxu0 0.0
        %5070 = vmatprep.mubr.f32.mxu0 0.0
        %5071 = vmatmul.mubr.f32.gmra.mrb[0].mxu0 %v5001
        %v5072 = vpop.f32.mrb[0].mxu0
        %v5073 = vadd.f32 0.0, %v5072
        %v5074 = vpop.f32.mrb[0].mxu0
        %5075 = vdwg.mxu0
        %v5077 = vsel %vm193, %v4992, 0
        %5079 = vmatprep.subr.mxu0 0.0
        %5080 = vmatpush1.msra.mxu0 %v5077
        %5081 = vmatprep.subr.mxu0 0.0
        %5082 = vmatpush1.msra.mxu0 0.0
        %5083 = vmatprep.subr.mxu0 0.0
        %5084 = vmatpush1.msra.mxu0 0.0
        %5085 = vmatprep.subr.mxu0 0.0
        %5086 = vmatpush1.msra.mxu0 0.0
        %5087 = vmatprep.subr.mxu0 0.0
        %5088 = vmatpush1.msra.mxu0 0.0
        %5089 = vmatprep.subr.mxu0 0.0
        %5090 = vmatpush1.msra.mxu0 0.0
        %5091 = vmatprep.subr.mxu0 0.0
        %5092 = vmatpush1.msra.mxu0 0.0
        %5093 = vmatprep.subr.mxu0 0.0
        %5094 = vmatpush1.msra.mxu0 0.0
        %5095 = vmatprep.subr.mxu0 0.0
        %5096 = vmatpush1.msra.mxu0 0.0
        %5097 = vmatprep.subr.mxu0 0.0
        %5098 = vmatpush1.msra.mxu0 0.0
        %5099 = vmatprep.subr.mxu0 0.0
        %5100 = vmatpush1.msra.mxu0 0.0
        %5101 = vmatprep.subr.mxu0 0.0
        %5102 = vmatpush1.msra.mxu0 0.0
        %5103 = vmatprep.subr.mxu0 0.0
        %5104 = vmatpush1.msra.mxu0 0.0
        %5105 = vmatprep.subr.mxu0 0.0
        %5106 = vmatpush1.msra.mxu0 0.0
        %5107 = vmatprep.subr.mxu0 0.0
        %5108 = vmatpush1.msra.mxu0 0.0
        %5109 = vmatprep.subr.mxu0 0.0
        %5110 = vmatpush1.msra.mxu0 0.0
        %5111 = vmatprep.subr.mxu0 0.0
        %5112 = vmatpush1.msra.mxu0 0.0
        %5113 = vmatprep.subr.mxu0 0.0
        %5114 = vmatpush1.msra.mxu0 0.0
        %5115 = vmatprep.subr.mxu0 0.0
        %5116 = vmatpush1.msra.mxu0 0.0
        %5117 = vmatprep.subr.mxu0 0.0
        %5118 = vmatpush1.msra.mxu0 0.0
        %5119 = vmatprep.subr.mxu0 0.0
        %5120 = vmatpush1.msra.mxu0 0.0
        %5121 = vmatprep.subr.mxu0 0.0
        %5122 = vmatpush1.msra.mxu0 0.0
        %5123 = vmatprep.subr.mxu0 0.0
        %5124 = vmatpush1.msra.mxu0 0.0
        %5125 = vmatprep.subr.mxu0 0.0
        %5126 = vmatpush1.msra.mxu0 0.0
        %5127 = vmatprep.subr.mxu0 0.0
        %5128 = vmatpush1.msra.mxu0 0.0
        %5129 = vmatprep.subr.mxu0 0.0
        %5130 = vmatpush1.msra.mxu0 0.0
        %5131 = vmatprep.subr.mxu0 0.0
        %5132 = vmatpush1.msra.mxu0 0.0
        %5133 = vmatprep.subr.mxu0 0.0
        %5134 = vmatpush1.msra.mxu0 0.0
        %5135 = vmatprep.subr.mxu0 0.0
        %5136 = vmatpush1.msra.mxu0 0.0
        %5137 = vmatprep.subr.mxu0 0.0
        %5138 = vmatpush1.msra.mxu0 0.0
        %5139 = vmatprep.subr.mxu0 0.0
        %5140 = vmatpush1.msra.mxu0 0.0
        %5141 = vmatprep.subr.mxu0 0.0
        %5142 = vmatpush1.msra.mxu0 0.0
        %5143 = vmatprep.mubr.f32.mxu0 0.0
        %5144 = vmatmul.mubr.f32.gmra.mrb[0].mxu0 %v5001
        %v5145 = vpop.f32.mrb[0].mxu0
        %v5146 = vadd.f32 0.0, %v5145
        %v5147 = vpop.f32.mrb[0].mxu0
        %5148 = vdwg.mxu0
        %v5150 = vsel %vm193, %v4993, 0
        %5152 = vmatprep.subr.mxu0 0.0
        %5153 = vmatpush1.msra.mxu0 %v5150
        %5154 = vmatprep.subr.mxu0 0.0
        %5155 = vmatpush1.msra.mxu0 0.0
        %5156 = vmatprep.subr.mxu0 0.0
        %5157 = vmatpush1.msra.mxu0 0.0
        %5158 = vmatprep.subr.mxu0 0.0
        %5159 = vmatpush1.msra.mxu0 0.0
        %5160 = vmatprep.subr.mxu0 0.0
        %5161 = vmatpush1.msra.mxu0 0.0
        %5162 = vmatprep.subr.mxu0 0.0
        %5163 = vmatpush1.msra.mxu0 0.0
        %5164 = vmatprep.subr.mxu0 0.0
        %5165 = vmatpush1.msra.mxu0 0.0
        %5166 = vmatprep.subr.mxu0 0.0
        %5167 = vmatpush1.msra.mxu0 0.0
        %5168 = vmatprep.subr.mxu0 0.0
        %5169 = vmatpush1.msra.mxu0 0.0
        %5170 = vmatprep.subr.mxu0 0.0
        %5171 = vmatpush1.msra.mxu0 0.0
        %5172 = vmatprep.subr.mxu0 0.0
        %5173 = vmatpush1.msra.mxu0 0.0
        %5174 = vmatprep.subr.mxu0 0.0
        %5175 = vmatpush1.msra.mxu0 0.0
        %5176 = vmatprep.subr.mxu0 0.0
        %5177 = vmatpush1.msra.mxu0 0.0
        %5178 = vmatprep.subr.mxu0 0.0
        %5179 = vmatpush1.msra.mxu0 0.0
        %5180 = vmatprep.subr.mxu0 0.0
        %5181 = vmatpush1.msra.mxu0 0.0
        %5182 = vmatprep.subr.mxu0 0.0
        %5183 = vmatpush1.msra.mxu0 0.0
        %5184 = vmatprep.subr.mxu0 0.0
        %5185 = vmatpush1.msra.mxu0 0.0
        %5186 = vmatprep.subr.mxu0 0.0
        %5187 = vmatpush1.msra.mxu0 0.0
        %5188 = vmatprep.subr.mxu0 0.0
        %5189 = vmatpush1.msra.mxu0 0.0
        %5190 = vmatprep.subr.mxu0 0.0
        %5191 = vmatpush1.msra.mxu0 0.0
        %5192 = vmatprep.subr.mxu0 0.0
        %5193 = vmatpush1.msra.mxu0 0.0
        %5194 = vmatprep.subr.mxu0 0.0
        %5195 = vmatpush1.msra.mxu0 0.0
        %5196 = vmatprep.subr.mxu0 0.0
        %5197 = vmatpush1.msra.mxu0 0.0
        %5198 = vmatprep.subr.mxu0 0.0
        %5199 = vmatpush1.msra.mxu0 0.0
        %5200 = vmatprep.subr.mxu0 0.0
        %5201 = vmatpush1.msra.mxu0 0.0
        %5202 = vmatprep.subr.mxu0 0.0
        %5203 = vmatpush1.msra.mxu0 0.0
        %5204 = vmatprep.subr.mxu0 0.0
        %5205 = vmatpush1.msra.mxu0 0.0
        %5206 = vmatprep.subr.mxu0 0.0
        %5207 = vmatpush1.msra.mxu0 0.0
        %5208 = vmatprep.subr.mxu0 0.0
        %5209 = vmatpush1.msra.mxu0 0.0
        %5210 = vmatprep.subr.mxu0 0.0
        %5211 = vmatpush1.msra.mxu0 0.0
        %5212 = vmatprep.subr.mxu0 0.0
        %5213 = vmatpush1.msra.mxu0 0.0
        %5214 = vmatprep.subr.mxu0 0.0
        %5215 = vmatpush1.msra.mxu0 0.0
        %5216 = vmatprep.mubr.f32.mxu0 0.0
        %5217 = vmatmul.mubr.f32.gmra.mrb[0].mxu0 %v5001
        %v5218 = vpop.f32.mrb[0].mxu0
        %v5219 = vadd.f32 0.0, %v5218
        %v5220 = vpop.f32.mrb[0].mxu0
        %5221 = vdwg.mxu0
        %v5223 = vsel %vm193, %v4994, 0
        %5225 = vmatprep.subr.mxu0 0.0
        %5226 = vmatpush1.msra.mxu0 %v5223
        %5227 = vmatprep.subr.mxu0 0.0
        %5228 = vmatpush1.msra.mxu0 0.0
        %5229 = vmatprep.subr.mxu0 0.0
        %5230 = vmatpush1.msra.mxu0 0.0
        %5231 = vmatprep.subr.mxu0 0.0
        %5232 = vmatpush1.msra.mxu0 0.0
        %5233 = vmatprep.subr.mxu0 0.0
        %5234 = vmatpush1.msra.mxu0 0.0
        %5235 = vmatprep.subr.mxu0 0.0
        %5236 = vmatpush1.msra.mxu0 0.0
        %5237 = vmatprep.subr.mxu0 0.0
        %5238 = vmatpush1.msra.mxu0 0.0
        %5239 = vmatprep.subr.mxu0 0.0
        %5240 = vmatpush1.msra.mxu0 0.0
        %5241 = vmatprep.subr.mxu0 0.0
        %5242 = vmatpush1.msra.mxu0 0.0
        %5243 = vmatprep.subr.mxu0 0.0
        %5244 = vmatpush1.msra.mxu0 0.0
        %5245 = vmatprep.subr.mxu0 0.0
        %5246 = vmatpush1.msra.mxu0 0.0
        %5247 = vmatprep.subr.mxu0 0.0
        %5248 = vmatpush1.msra.mxu0 0.0
        %5249 = vmatprep.subr.mxu0 0.0
        %5250 = vmatpush1.msra.mxu0 0.0
        %5251 = vmatprep.subr.mxu0 0.0
        %5252 = vmatpush1.msra.mxu0 0.0
        %5253 = vmatprep.subr.mxu0 0.0
        %5254 = vmatpush1.msra.mxu0 0.0
        %5255 = vmatprep.subr.mxu0 0.0
        %5256 = vmatpush1.msra.mxu0 0.0
        %5257 = vmatprep.subr.mxu0 0.0
        %5258 = vmatpush1.msra.mxu0 0.0
        %5259 = vmatprep.subr.mxu0 0.0
        %5260 = vmatpush1.msra.mxu0 0.0
        %5261 = vmatprep.subr.mxu0 0.0
        %5262 = vmatpush1.msra.mxu0 0.0
        %5263 = vmatprep.subr.mxu0 0.0
        %5264 = vmatpush1.msra.mxu0 0.0
        %5265 = vmatprep.subr.mxu0 0.0
        %5266 = vmatpush1.msra.mxu0 0.0
        %5267 = vmatprep.subr.mxu0 0.0
        %5268 = vmatpush1.msra.mxu0 0.0
        %5269 = vmatprep.subr.mxu0 0.0
        %5270 = vmatpush1.msra.mxu0 0.0
        %5271 = vmatprep.subr.mxu0 0.0
        %5272 = vmatpush1.msra.mxu0 0.0
        %5273 = vmatprep.subr.mxu0 0.0
        %5274 = vmatpush1.msra.mxu0 0.0
        %5275 = vmatprep.subr.mxu0 0.0
        %5276 = vmatpush1.msra.mxu0 0.0
        %5277 = vmatprep.subr.mxu0 0.0
        %5278 = vmatpush1.msra.mxu0 0.0
        %5279 = vmatprep.subr.mxu0 0.0
        %5280 = vmatpush1.msra.mxu0 0.0
        %5281 = vmatprep.subr.mxu0 0.0
        %5282 = vmatpush1.msra.mxu0 0.0
        %5283 = vmatprep.subr.mxu0 0.0
        %5284 = vmatpush1.msra.mxu0 0.0
        %5285 = vmatprep.subr.mxu0 0.0
        %5286 = vmatpush1.msra.mxu0 0.0
        %5287 = vmatprep.subr.mxu0 0.0
        %5288 = vmatpush1.msra.mxu0 0.0
        %5289 = vmatprep.mubr.f32.mxu0 0.0
        %5290 = vmatmul.mubr.f32.gmra.mrb[0].mxu0 %v5001
        %v5291 = vpop.f32.mrb[0].mxu0
        %v5292 = vadd.f32 0.0, %v5291
        %v5293 = vpop.f32.mrb[0].mxu0
        %5294 = vdwg.mxu0
        %v5296 = vsel %vm193, %v4995, 0
        %5298 = vmatprep.subr.mxu0 0.0
        %5299 = vmatpush1.msra.mxu0 %v5296
        %5300 = vmatprep.subr.mxu0 0.0
        %5301 = vmatpush1.msra.mxu0 0.0
        %5302 = vmatprep.subr.mxu0 0.0
        %5303 = vmatpush1.msra.mxu0 0.0
        %5304 = vmatprep.subr.mxu0 0.0
        %5305 = vmatpush1.msra.mxu0 0.0
        %5306 = vmatprep.subr.mxu0 0.0
        %5307 = vmatpush1.msra.mxu0 0.0
        %5308 = vmatprep.subr.mxu0 0.0
        %5309 = vmatpush1.msra.mxu0 0.0
        %5310 = vmatprep.subr.mxu0 0.0
        %5311 = vmatpush1.msra.mxu0 0.0
        %5312 = vmatprep.subr.mxu0 0.0
        %5313 = vmatpush1.msra.mxu0 0.0
        %5314 = vmatprep.subr.mxu0 0.0
        %5315 = vmatpush1.msra.mxu0 0.0
        %5316 = vmatprep.subr.mxu0 0.0
        %5317 = vmatpush1.msra.mxu0 0.0
        %5318 = vmatprep.subr.mxu0 0.0
        %5319 = vmatpush1.msra.mxu0 0.0
        %5320 = vmatprep.subr.mxu0 0.0
        %5321 = vmatpush1.msra.mxu0 0.0
        %5322 = vmatprep.subr.mxu0 0.0
        %5323 = vmatpush1.msra.mxu0 0.0
        %5324 = vmatprep.subr.mxu0 0.0
        %5325 = vmatpush1.msra.mxu0 0.0
        %5326 = vmatprep.subr.mxu0 0.0
        %5327 = vmatpush1.msra.mxu0 0.0
        %5328 = vmatprep.subr.mxu0 0.0
        %5329 = vmatpush1.msra.mxu0 0.0
        %5330 = vmatprep.subr.mxu0 0.0
        %5331 = vmatpush1.msra.mxu0 0.0
        %5332 = vmatprep.subr.mxu0 0.0
        %5333 = vmatpush1.msra.mxu0 0.0
        %5334 = vmatprep.subr.mxu0 0.0
        %5335 = vmatpush1.msra.mxu0 0.0
        %5336 = vmatprep.subr.mxu0 0.0
        %5337 = vmatpush1.msra.mxu0 0.0
        %5338 = vmatprep.subr.mxu0 0.0
        %5339 = vmatpush1.msra.mxu0 0.0
        %5340 = vmatprep.subr.mxu0 0.0
        %5341 = vmatpush1.msra.mxu0 0.0
        %5342 = vmatprep.subr.mxu0 0.0
        %5343 = vmatpush1.msra.mxu0 0.0
        %5344 = vmatprep.subr.mxu0 0.0
        %5345 = vmatpush1.msra.mxu0 0.0
        %5346 = vmatprep.subr.mxu0 0.0
        %5347 = vmatpush1.msra.mxu0 0.0
        %5348 = vmatprep.subr.mxu0 0.0
        %5349 = vmatpush1.msra.mxu0 0.0
        %5350 = vmatprep.subr.mxu0 0.0
        %5351 = vmatpush1.msra.mxu0 0.0
        %5352 = vmatprep.subr.mxu0 0.0
        %5353 = vmatpush1.msra.mxu0 0.0
        %5354 = vmatprep.subr.mxu0 0.0
        %5355 = vmatpush1.msra.mxu0 0.0
        %5356 = vmatprep.subr.mxu0 0.0
        %5357 = vmatpush1.msra.mxu0 0.0
        %5358 = vmatprep.subr.mxu0 0.0
        %5359 = vmatpush1.msra.mxu0 0.0
        %5360 = vmatprep.subr.mxu0 0.0
        %5361 = vmatpush1.msra.mxu0 0.0
        %5362 = vmatprep.mubr.f32.mxu0 0.0
        %5363 = vmatmul.mubr.f32.gmra.mrb[0].mxu0 %v5001
        %v5364 = vpop.f32.mrb[0].mxu0
        %v5365 = vadd.f32 0.0, %v5364
        %v5366 = vpop.f32.mrb[0].mxu0
        %5367 = vdwg.mxu0
        %v5369 = vsel %vm193, %v4996, 0
        %5371 = vmatprep.subr.mxu0 0.0
        %5372 = vmatpush1.msra.mxu0 %v5369
        %5373 = vmatprep.subr.mxu0 0.0
        %5374 = vmatpush1.msra.mxu0 0.0
        %5375 = vmatprep.subr.mxu0 0.0
        %5376 = vmatpush1.msra.mxu0 0.0
        %5377 = vmatprep.subr.mxu0 0.0
        %5378 = vmatpush1.msra.mxu0 0.0
        %5379 = vmatprep.subr.mxu0 0.0
        %5380 = vmatpush1.msra.mxu0 0.0
        %5381 = vmatprep.subr.mxu0 0.0
        %5382 = vmatpush1.msra.mxu0 0.0
        %5383 = vmatprep.subr.mxu0 0.0
        %5384 = vmatpush1.msra.mxu0 0.0
        %5385 = vmatprep.subr.mxu0 0.0
        %5386 = vmatpush1.msra.mxu0 0.0
        %5387 = vmatprep.subr.mxu0 0.0
        %5388 = vmatpush1.msra.mxu0 0.0
        %5389 = vmatprep.subr.mxu0 0.0
        %5390 = vmatpush1.msra.mxu0 0.0
        %5391 = vmatprep.subr.mxu0 0.0
        %5392 = vmatpush1.msra.mxu0 0.0
        %5393 = vmatprep.subr.mxu0 0.0
        %5394 = vmatpush1.msra.mxu0 0.0
        %5395 = vmatprep.subr.mxu0 0.0
        %5396 = vmatpush1.msra.mxu0 0.0
        %5397 = vmatprep.subr.mxu0 0.0
        %5398 = vmatpush1.msra.mxu0 0.0
        %5399 = vmatprep.subr.mxu0 0.0
        %5400 = vmatpush1.msra.mxu0 0.0
        %5401 = vmatprep.subr.mxu0 0.0
        %5402 = vmatpush1.msra.mxu0 0.0
        %5403 = vmatprep.subr.mxu0 0.0
        %5404 = vmatpush1.msra.mxu0 0.0
        %5405 = vmatprep.subr.mxu0 0.0
        %5406 = vmatpush1.msra.mxu0 0.0
        %5407 = vmatprep.subr.mxu0 0.0
        %5408 = vmatpush1.msra.mxu0 0.0
        %5409 = vmatprep.subr.mxu0 0.0
        %5410 = vmatpush1.msra.mxu0 0.0
        %5411 = vmatprep.subr.mxu0 0.0
        %5412 = vmatpush1.msra.mxu0 0.0
        %5413 = vmatprep.subr.mxu0 0.0
        %5414 = vmatpush1.msra.mxu0 0.0
        %5415 = vmatprep.subr.mxu0 0.0
        %5416 = vmatpush1.msra.mxu0 0.0
        %5417 = vmatprep.subr.mxu0 0.0
        %5418 = vmatpush1.msra.mxu0 0.0
        %5419 = vmatprep.subr.mxu0 0.0
        %5420 = vmatpush1.msra.mxu0 0.0
        %5421 = vmatprep.subr.mxu0 0.0
        %5422 = vmatpush1.msra.mxu0 0.0
        %5423 = vmatprep.subr.mxu0 0.0
        %5424 = vmatpush1.msra.mxu0 0.0
        %5425 = vmatprep.subr.mxu0 0.0
        %5426 = vmatpush1.msra.mxu0 0.0
        %5427 = vmatprep.subr.mxu0 0.0
        %5428 = vmatpush1.msra.mxu0 0.0
        %5429 = vmatprep.subr.mxu0 0.0
        %5430 = vmatpush1.msra.mxu0 0.0
        %5431 = vmatprep.subr.mxu0 0.0
        %5432 = vmatpush1.msra.mxu0 0.0
        %5433 = vmatprep.subr.mxu0 0.0
        %5434 = vmatpush1.msra.mxu0 0.0
        %5435 = vmatprep.mubr.f32.mxu0 0.0
        %5436 = vmatmul.mubr.f32.gmra.mrb[0].mxu0 %v5001
        %v5437 = vpop.f32.mrb[0].mxu0
        %v5438 = vadd.f32 0.0, %v5437
        %v5439 = vpop.f32.mrb[0].mxu0
        %5440 = vdwg.mxu0
        %v5442 = vsel %vm193, %v4997, 0
        %5444 = vmatprep.subr.mxu0 0.0
        %5445 = vmatpush1.msra.mxu0 %v5442
        %5446 = vmatprep.subr.mxu0 0.0
        %5447 = vmatpush1.msra.mxu0 0.0
        %5448 = vmatprep.subr.mxu0 0.0
        %5449 = vmatpush1.msra.mxu0 0.0
        %5450 = vmatprep.subr.mxu0 0.0
        %5451 = vmatpush1.msra.mxu0 0.0
        %5452 = vmatprep.subr.mxu0 0.0
        %5453 = vmatpush1.msra.mxu0 0.0
        %5454 = vmatprep.subr.mxu0 0.0
        %5455 = vmatpush1.msra.mxu0 0.0
        %5456 = vmatprep.subr.mxu0 0.0
        %5457 = vmatpush1.msra.mxu0 0.0
        %5458 = vmatprep.subr.mxu0 0.0
        %5459 = vmatpush1.msra.mxu0 0.0
        %5460 = vmatprep.subr.mxu0 0.0
        %5461 = vmatpush1.msra.mxu0 0.0
        %5462 = vmatprep.subr.mxu0 0.0
        %5463 = vmatpush1.msra.mxu0 0.0
        %5464 = vmatprep.subr.mxu0 0.0
        %5465 = vmatpush1.msra.mxu0 0.0
        %5466 = vmatprep.subr.mxu0 0.0
        %5467 = vmatpush1.msra.mxu0 0.0
        %5468 = vmatprep.subr.mxu0 0.0
        %5469 = vmatpush1.msra.mxu0 0.0
        %5470 = vmatprep.subr.mxu0 0.0
        %5471 = vmatpush1.msra.mxu0 0.0
        %5472 = vmatprep.subr.mxu0 0.0
        %5473 = vmatpush1.msra.mxu0 0.0
        %5474 = vmatprep.subr.mxu0 0.0
        %5475 = vmatpush1.msra.mxu0 0.0
        %5476 = vmatprep.subr.mxu0 0.0
        %5477 = vmatpush1.msra.mxu0 0.0
        %5478 = vmatprep.subr.mxu0 0.0
        %5479 = vmatpush1.msra.mxu0 0.0
        %5480 = vmatprep.subr.mxu0 0.0
        %5481 = vmatpush1.msra.mxu0 0.0
        %5482 = vmatprep.subr.mxu0 0.0
        %5483 = vmatpush1.msra.mxu0 0.0
        %5484 = vmatprep.subr.mxu0 0.0
        %5485 = vmatpush1.msra.mxu0 0.0
        %5486 = vmatprep.subr.mxu0 0.0
        %5487 = vmatpush1.msra.mxu0 0.0
        %5488 = vmatprep.subr.mxu0 0.0
        %5489 = vmatpush1.msra.mxu0 0.0
        %5490 = vmatprep.subr.mxu0 0.0
        %5491 = vmatpush1.msra.mxu0 0.0
        %5492 = vmatprep.subr.mxu0 0.0
        %5493 = vmatpush1.msra.mxu0 0.0
        %5494 = vmatprep.subr.mxu0 0.0
        %5495 = vmatpush1.msra.mxu0 0.0
        %5496 = vmatprep.subr.mxu0 0.0
        %5497 = vmatpush1.msra.mxu0 0.0
        %5498 = vmatprep.subr.mxu0 0.0
        %5499 = vmatpush1.msra.mxu0 0.0
        %5500 = vmatprep.subr.mxu0 0.0
        %5501 = vmatpush1.msra.mxu0 0.0
        %5502 = vmatprep.subr.mxu0 0.0
        %5503 = vmatpush1.msra.mxu0 0.0
        %5504 = vmatprep.subr.mxu0 0.0
        %5505 = vmatpush1.msra.mxu0 0.0
        %5506 = vmatprep.subr.mxu0 0.0
        %5507 = vmatpush1.msra.mxu0 0.0
        %5508 = vmatprep.mubr.f32.mxu0 0.0
        %5509 = vmatmul.mubr.f32.gmra.mrb[0].mxu0 %v5001
        %v5510 = vpop.f32.mrb[0].mxu0
        %v5511 = vadd.f32 0.0, %v5510
        %v5512 = vpop.f32.mrb[0].mxu0
        %5513 = vdwg.mxu0
        %v5515 = vsel %vm193, %v4998, 0
        %5517 = vmatprep.subr.mxu0 0.0
        %5518 = vmatpush1.msra.mxu0 %v5515
        %5519 = vmatprep.subr.mxu0 0.0
        %5520 = vmatpush1.msra.mxu0 0.0
        %5521 = vmatprep.subr.mxu0 0.0
        %5522 = vmatpush1.msra.mxu0 0.0
        %5523 = vmatprep.subr.mxu0 0.0
        %5524 = vmatpush1.msra.mxu0 0.0
        %5525 = vmatprep.subr.mxu0 0.0
        %5526 = vmatpush1.msra.mxu0 0.0
        %5527 = vmatprep.subr.mxu0 0.0
        %5528 = vmatpush1.msra.mxu0 0.0
        %5529 = vmatprep.subr.mxu0 0.0
        %5530 = vmatpush1.msra.mxu0 0.0
        %5531 = vmatprep.subr.mxu0 0.0
        %5532 = vmatpush1.msra.mxu0 0.0
        %5533 = vmatprep.subr.mxu0 0.0
        %5534 = vmatpush1.msra.mxu0 0.0
        %5535 = vmatprep.subr.mxu0 0.0
        %5536 = vmatpush1.msra.mxu0 0.0
        %5537 = vmatprep.subr.mxu0 0.0
        %5538 = vmatpush1.msra.mxu0 0.0
        %5539 = vmatprep.subr.mxu0 0.0
        %5540 = vmatpush1.msra.mxu0 0.0
        %5541 = vmatprep.subr.mxu0 0.0
        %5542 = vmatpush1.msra.mxu0 0.0
        %5543 = vmatprep.subr.mxu0 0.0
        %5544 = vmatpush1.msra.mxu0 0.0
        %5545 = vmatprep.subr.mxu0 0.0
        %5546 = vmatpush1.msra.mxu0 0.0
        %5547 = vmatprep.subr.mxu0 0.0
        %5548 = vmatpush1.msra.mxu0 0.0
        %5549 = vmatprep.subr.mxu0 0.0
        %5550 = vmatpush1.msra.mxu0 0.0
        %5551 = vmatprep.subr.mxu0 0.0
        %5552 = vmatpush1.msra.mxu0 0.0
        %5553 = vmatprep.subr.mxu0 0.0
        %5554 = vmatpush1.msra.mxu0 0.0
        %5555 = vmatprep.subr.mxu0 0.0
        %5556 = vmatpush1.msra.mxu0 0.0
        %5557 = vmatprep.subr.mxu0 0.0
        %5558 = vmatpush1.msra.mxu0 0.0
        %5559 = vmatprep.subr.mxu0 0.0
        %5560 = vmatpush1.msra.mxu0 0.0
        %5561 = vmatprep.subr.mxu0 0.0
        %5562 = vmatpush1.msra.mxu0 0.0
        %5563 = vmatprep.subr.mxu0 0.0
        %5564 = vmatpush1.msra.mxu0 0.0
        %5565 = vmatprep.subr.mxu0 0.0
        %5566 = vmatpush1.msra.mxu0 0.0
        %5567 = vmatprep.subr.mxu0 0.0
        %5568 = vmatpush1.msra.mxu0 0.0
        %5569 = vmatprep.subr.mxu0 0.0
        %5570 = vmatpush1.msra.mxu0 0.0
        %5571 = vmatprep.subr.mxu0 0.0
        %5572 = vmatpush1.msra.mxu0 0.0
        %5573 = vmatprep.subr.mxu0 0.0
        %5574 = vmatpush1.msra.mxu0 0.0
        %5575 = vmatprep.subr.mxu0 0.0
        %5576 = vmatpush1.msra.mxu0 0.0
        %5577 = vmatprep.subr.mxu0 0.0
        %5578 = vmatpush1.msra.mxu0 0.0
        %5579 = vmatprep.subr.mxu0 0.0
        %5580 = vmatpush1.msra.mxu0 0.0
        %5581 = vmatprep.mubr.f32.mxu0 0.0
        %5582 = vmatmul.mubr.f32.gmra.mrb[0].mxu0 %v5001
        %v5583 = vpop.f32.mrb[0].mxu0
        %v5584 = vadd.f32 0.0, %v5583
        %v5585 = vpop.f32.mrb[0].mxu0
        %5586 = vdwg.mxu0
        %v5587 = vadd.f32 %v4982, %v5073
        %v5588 = vadd.f32 %v4983, %v5146
        %v5589 = vadd.f32 %v4984, %v5219
        %v5590 = vadd.f32 %v4985, %v5292
        %v5591 = vadd.f32 %v4986, %v5365
        %v5592 = vadd.f32 %v4987, %v5438
        %v5593 = vadd.f32 %v4988, %v5511
        %v5594 = vadd.f32 %v4989, %v5584
        %s5595 = scalar_lea.vmem %s168, 40
        %v5596 = vld [vmem:[%s5595] sm:$0xf]
        %v5597 = vld [vmem:[%s5595 + $0x4] sm:$0xf]
        %v5598 = vld [vmem:[%s5595 + $0x8] sm:$0xf]
        %v5599 = vld [vmem:[%s5595 + $0xc] sm:$0xf]
        %v5600 = vld [vmem:[%s5595 + $0x10] sm:$0xf]
        %v5601 = vld [vmem:[%s5595 + $0x14] sm:$0xf]
        %v5602 = vld [vmem:[%s5595 + $0x18] sm:$0xf]
        %v5603 = vld [vmem:[%s5595 + $0x1c] sm:$0xf]
        %5604 = vrot.lane.b32.xlu0 %v177, 92
        %v5605 = vpop.permute.xlu0 %5604
        %v5606 = vsel %vm190, %v5605, 0
        %v5609 = vsel %vm193, %v5596, 0
        %5611 = vmatprep.subr.mxu0 0.0
        %5612 = vmatpush1.msra.mxu0 %v5609
        %5613 = vmatprep.subr.mxu0 0.0
        %5614 = vmatpush1.msra.mxu0 0.0
        %5615 = vmatprep.subr.mxu0 0.0
        %5616 = vmatpush1.msra.mxu0 0.0
        %5617 = vmatprep.subr.mxu0 0.0
        %5618 = vmatpush1.msra.mxu0 0.0
        %5619 = vmatprep.subr.mxu0 0.0
        %5620 = vmatpush1.msra.mxu0 0.0
        %5621 = vmatprep.subr.mxu0 0.0
        %5622 = vmatpush1.msra.mxu0 0.0
        %5623 = vmatprep.subr.mxu0 0.0
        %5624 = vmatpush1.msra.mxu0 0.0
        %5625 = vmatprep.subr.mxu0 0.0
        %5626 = vmatpush1.msra.mxu0 0.0
        %5627 = vmatprep.subr.mxu0 0.0
        %5628 = vmatpush1.msra.mxu0 0.0
        %5629 = vmatprep.subr.mxu0 0.0
        %5630 = vmatpush1.msra.mxu0 0.0
        %5631 = vmatprep.subr.mxu0 0.0
        %5632 = vmatpush1.msra.mxu0 0.0
        %5633 = vmatprep.subr.mxu0 0.0
        %5634 = vmatpush1.msra.mxu0 0.0
        %5635 = vmatprep.subr.mxu0 0.0
        %5636 = vmatpush1.msra.mxu0 0.0
        %5637 = vmatprep.subr.mxu0 0.0
        %5638 = vmatpush1.msra.mxu0 0.0
        %5639 = vmatprep.subr.mxu0 0.0
        %5640 = vmatpush1.msra.mxu0 0.0
        %5641 = vmatprep.subr.mxu0 0.0
        %5642 = vmatpush1.msra.mxu0 0.0
        %5643 = vmatprep.subr.mxu0 0.0
        %5644 = vmatpush1.msra.mxu0 0.0
        %5645 = vmatprep.subr.mxu0 0.0
        %5646 = vmatpush1.msra.mxu0 0.0
        %5647 = vmatprep.subr.mxu0 0.0
        %5648 = vmatpush1.msra.mxu0 0.0
        %5649 = vmatprep.subr.mxu0 0.0
        %5650 = vmatpush1.msra.mxu0 0.0
        %5651 = vmatprep.subr.mxu0 0.0
        %5652 = vmatpush1.msra.mxu0 0.0
        %5653 = vmatprep.subr.mxu0 0.0
        %5654 = vmatpush1.msra.mxu0 0.0
        %5655 = vmatprep.subr.mxu0 0.0
        %5656 = vmatpush1.msra.mxu0 0.0
        %5657 = vmatprep.subr.mxu0 0.0
        %5658 = vmatpush1.msra.mxu0 0.0
        %5659 = vmatprep.subr.mxu0 0.0
        %5660 = vmatpush1.msra.mxu0 0.0
        %5661 = vmatprep.subr.mxu0 0.0
        %5662 = vmatpush1.msra.mxu0 0.0
        %5663 = vmatprep.subr.mxu0 0.0
        %5664 = vmatpush1.msra.mxu0 0.0
        %5665 = vmatprep.subr.mxu0 0.0
        %5666 = vmatpush1.msra.mxu0 0.0
        %5667 = vmatprep.subr.mxu0 0.0
        %5668 = vmatpush1.msra.mxu0 0.0
        %5669 = vmatprep.subr.mxu0 0.0
        %5670 = vmatpush1.msra.mxu0 0.0
        %5671 = vmatprep.subr.mxu0 0.0
        %5672 = vmatpush1.msra.mxu0 0.0
        %5673 = vmatprep.subr.mxu0 0.0
        %5674 = vmatpush1.msra.mxu0 0.0
        %5675 = vmatprep.mubr.f32.mxu0 0.0
        %5676 = vmatmul.mubr.f32.gmra.mrb[0].mxu0 %v5606
        %v5677 = vpop.f32.mrb[0].mxu0
        %v5678 = vadd.f32 0.0, %v5677
        %v5679 = vpop.f32.mrb[0].mxu0
        %5680 = vdwg.mxu0
        %v5682 = vsel %vm193, %v5597, 0
        %5684 = vmatprep.subr.mxu0 0.0
        %5685 = vmatpush1.msra.mxu0 %v5682
        %5686 = vmatprep.subr.mxu0 0.0
        %5687 = vmatpush1.msra.mxu0 0.0
        %5688 = vmatprep.subr.mxu0 0.0
        %5689 = vmatpush1.msra.mxu0 0.0
        %5690 = vmatprep.subr.mxu0 0.0
        %5691 = vmatpush1.msra.mxu0 0.0
        %5692 = vmatprep.subr.mxu0 0.0
        %5693 = vmatpush1.msra.mxu0 0.0
        %5694 = vmatprep.subr.mxu0 0.0
        %5695 = vmatpush1.msra.mxu0 0.0
        %5696 = vmatprep.subr.mxu0 0.0
        %5697 = vmatpush1.msra.mxu0 0.0
        %5698 = vmatprep.subr.mxu0 0.0
        %5699 = vmatpush1.msra.mxu0 0.0
        %5700 = vmatprep.subr.mxu0 0.0
        %5701 = vmatpush1.msra.mxu0 0.0
        %5702 = vmatprep.subr.mxu0 0.0
        %5703 = vmatpush1.msra.mxu0 0.0
        %5704 = vmatprep.subr.mxu0 0.0
        %5705 = vmatpush1.msra.mxu0 0.0
        %5706 = vmatprep.subr.mxu0 0.0
        %5707 = vmatpush1.msra.mxu0 0.0
        %5708 = vmatprep.subr.mxu0 0.0
        %5709 = vmatpush1.msra.mxu0 0.0
        %5710 = vmatprep.subr.mxu0 0.0
        %5711 = vmatpush1.msra.mxu0 0.0
        %5712 = vmatprep.subr.mxu0 0.0
        %5713 = vmatpush1.msra.mxu0 0.0
        %5714 = vmatprep.subr.mxu0 0.0
        %5715 = vmatpush1.msra.mxu0 0.0
        %5716 = vmatprep.subr.mxu0 0.0
        %5717 = vmatpush1.msra.mxu0 0.0
        %5718 = vmatprep.subr.mxu0 0.0
        %5719 = vmatpush1.msra.mxu0 0.0
        %5720 = vmatprep.subr.mxu0 0.0
        %5721 = vmatpush1.msra.mxu0 0.0
        %5722 = vmatprep.subr.mxu0 0.0
        %5723 = vmatpush1.msra.mxu0 0.0
        %5724 = vmatprep.subr.mxu0 0.0
        %5725 = vmatpush1.msra.mxu0 0.0
        %5726 = vmatprep.subr.mxu0 0.0
        %5727 = vmatpush1.msra.mxu0 0.0
        %5728 = vmatprep.subr.mxu0 0.0
        %5729 = vmatpush1.msra.mxu0 0.0
        %5730 = vmatprep.subr.mxu0 0.0
        %5731 = vmatpush1.msra.mxu0 0.0
        %5732 = vmatprep.subr.mxu0 0.0
        %5733 = vmatpush1.msra.mxu0 0.0
        %5734 = vmatprep.subr.mxu0 0.0
        %5735 = vmatpush1.msra.mxu0 0.0
        %5736 = vmatprep.subr.mxu0 0.0
        %5737 = vmatpush1.msra.mxu0 0.0
        %5738 = vmatprep.subr.mxu0 0.0
        %5739 = vmatpush1.msra.mxu0 0.0
        %5740 = vmatprep.subr.mxu0 0.0
        %5741 = vmatpush1.msra.mxu0 0.0
        %5742 = vmatprep.subr.mxu0 0.0
        %5743 = vmatpush1.msra.mxu0 0.0
        %5744 = vmatprep.subr.mxu0 0.0
        %5745 = vmatpush1.msra.mxu0 0.0
        %5746 = vmatprep.subr.mxu0 0.0
        %5747 = vmatpush1.msra.mxu0 0.0
        %5748 = vmatprep.mubr.f32.mxu0 0.0
        %5749 = vmatmul.mubr.f32.gmra.mrb[0].mxu0 %v5606
        %v5750 = vpop.f32.mrb[0].mxu0
        %v5751 = vadd.f32 0.0, %v5750
        %v5752 = vpop.f32.mrb[0].mxu0
        %5753 = vdwg.mxu0
        %v5755 = vsel %vm193, %v5598, 0
        %5757 = vmatprep.subr.mxu0 0.0
        %5758 = vmatpush1.msra.mxu0 %v5755
        %5759 = vmatprep.subr.mxu0 0.0
        %5760 = vmatpush1.msra.mxu0 0.0
        %5761 = vmatprep.subr.mxu0 0.0
        %5762 = vmatpush1.msra.mxu0 0.0
        %5763 = vmatprep.subr.mxu0 0.0
        %5764 = vmatpush1.msra.mxu0 0.0
        %5765 = vmatprep.subr.mxu0 0.0
        %5766 = vmatpush1.msra.mxu0 0.0
        %5767 = vmatprep.subr.mxu0 0.0
        %5768 = vmatpush1.msra.mxu0 0.0
        %5769 = vmatprep.subr.mxu0 0.0
        %5770 = vmatpush1.msra.mxu0 0.0
        %5771 = vmatprep.subr.mxu0 0.0
        %5772 = vmatpush1.msra.mxu0 0.0
        %5773 = vmatprep.subr.mxu0 0.0
        %5774 = vmatpush1.msra.mxu0 0.0
        %5775 = vmatprep.subr.mxu0 0.0
        %5776 = vmatpush1.msra.mxu0 0.0
        %5777 = vmatprep.subr.mxu0 0.0
        %5778 = vmatpush1.msra.mxu0 0.0
        %5779 = vmatprep.subr.mxu0 0.0
        %5780 = vmatpush1.msra.mxu0 0.0
        %5781 = vmatprep.subr.mxu0 0.0
        %5782 = vmatpush1.msra.mxu0 0.0
        %5783 = vmatprep.subr.mxu0 0.0
        %5784 = vmatpush1.msra.mxu0 0.0
        %5785 = vmatprep.subr.mxu0 0.0
        %5786 = vmatpush1.msra.mxu0 0.0
        %5787 = vmatprep.subr.mxu0 0.0
        %5788 = vmatpush1.msra.mxu0 0.0
        %5789 = vmatprep.subr.mxu0 0.0
        %5790 = vmatpush1.msra.mxu0 0.0
        %5791 = vmatprep.subr.mxu0 0.0
        %5792 = vmatpush1.msra.mxu0 0.0
        %5793 = vmatprep.subr.mxu0 0.0
        %5794 = vmatpush1.msra.mxu0 0.0
        %5795 = vmatprep.subr.mxu0 0.0
        %5796 = vmatpush1.msra.mxu0 0.0
        %5797 = vmatprep.subr.mxu0 0.0
        %5798 = vmatpush1.msra.mxu0 0.0
        %5799 = vmatprep.subr.mxu0 0.0
        %5800 = vmatpush1.msra.mxu0 0.0
        %5801 = vmatprep.subr.mxu0 0.0
        %5802 = vmatpush1.msra.mxu0 0.0
        %5803 = vmatprep.subr.mxu0 0.0
        %5804 = vmatpush1.msra.mxu0 0.0
        %5805 = vmatprep.subr.mxu0 0.0
        %5806 = vmatpush1.msra.mxu0 0.0
        %5807 = vmatprep.subr.mxu0 0.0
        %5808 = vmatpush1.msra.mxu0 0.0
        %5809 = vmatprep.subr.mxu0 0.0
        %5810 = vmatpush1.msra.mxu0 0.0
        %5811 = vmatprep.subr.mxu0 0.0
        %5812 = vmatpush1.msra.mxu0 0.0
        %5813 = vmatprep.subr.mxu0 0.0
        %5814 = vmatpush1.msra.mxu0 0.0
        %5815 = vmatprep.subr.mxu0 0.0
        %5816 = vmatpush1.msra.mxu0 0.0
        %5817 = vmatprep.subr.mxu0 0.0
        %5818 = vmatpush1.msra.mxu0 0.0
        %5819 = vmatprep.subr.mxu0 0.0
        %5820 = vmatpush1.msra.mxu0 0.0
        %5821 = vmatprep.mubr.f32.mxu0 0.0
        %5822 = vmatmul.mubr.f32.gmra.mrb[0].mxu0 %v5606
        %v5823 = vpop.f32.mrb[0].mxu0
        %v5824 = vadd.f32 0.0, %v5823
        %v5825 = vpop.f32.mrb[0].mxu0
        %5826 = vdwg.mxu0
        %v5828 = vsel %vm193, %v5599, 0
        %5830 = vmatprep.subr.mxu0 0.0
        %5831 = vmatpush1.msra.mxu0 %v5828
        %5832 = vmatprep.subr.mxu0 0.0
        %5833 = vmatpush1.msra.mxu0 0.0
        %5834 = vmatprep.subr.mxu0 0.0
        %5835 = vmatpush1.msra.mxu0 0.0
        %5836 = vmatprep.subr.mxu0 0.0
        %5837 = vmatpush1.msra.mxu0 0.0
        %5838 = vmatprep.subr.mxu0 0.0
        %5839 = vmatpush1.msra.mxu0 0.0
        %5840 = vmatprep.subr.mxu0 0.0
        %5841 = vmatpush1.msra.mxu0 0.0
        %5842 = vmatprep.subr.mxu0 0.0
        %5843 = vmatpush1.msra.mxu0 0.0
        %5844 = vmatprep.subr.mxu0 0.0
        %5845 = vmatpush1.msra.mxu0 0.0
        %5846 = vmatprep.subr.mxu0 0.0
        %5847 = vmatpush1.msra.mxu0 0.0
        %5848 = vmatprep.subr.mxu0 0.0
        %5849 = vmatpush1.msra.mxu0 0.0
        %5850 = vmatprep.subr.mxu0 0.0
        %5851 = vmatpush1.msra.mxu0 0.0
        %5852 = vmatprep.subr.mxu0 0.0
        %5853 = vmatpush1.msra.mxu0 0.0
        %5854 = vmatprep.subr.mxu0 0.0
        %5855 = vmatpush1.msra.mxu0 0.0
        %5856 = vmatprep.subr.mxu0 0.0
        %5857 = vmatpush1.msra.mxu0 0.0
        %5858 = vmatprep.subr.mxu0 0.0
        %5859 = vmatpush1.msra.mxu0 0.0
        %5860 = vmatprep.subr.mxu0 0.0
        %5861 = vmatpush1.msra.mxu0 0.0
        %5862 = vmatprep.subr.mxu0 0.0
        %5863 = vmatpush1.msra.mxu0 0.0
        %5864 = vmatprep.subr.mxu0 0.0
        %5865 = vmatpush1.msra.mxu0 0.0
        %5866 = vmatprep.subr.mxu0 0.0
        %5867 = vmatpush1.msra.mxu0 0.0
        %5868 = vmatprep.subr.mxu0 0.0
        %5869 = vmatpush1.msra.mxu0 0.0
        %5870 = vmatprep.subr.mxu0 0.0
        %5871 = vmatpush1.msra.mxu0 0.0
        %5872 = vmatprep.subr.mxu0 0.0
        %5873 = vmatpush1.msra.mxu0 0.0
        %5874 = vmatprep.subr.mxu0 0.0
        %5875 = vmatpush1.msra.mxu0 0.0
        %5876 = vmatprep.subr.mxu0 0.0
        %5877 = vmatpush1.msra.mxu0 0.0
        %5878 = vmatprep.subr.mxu0 0.0
        %5879 = vmatpush1.msra.mxu0 0.0
        %5880 = vmatprep.subr.mxu0 0.0
        %5881 = vmatpush1.msra.mxu0 0.0
        %5882 = vmatprep.subr.mxu0 0.0
        %5883 = vmatpush1.msra.mxu0 0.0
        %5884 = vmatprep.subr.mxu0 0.0
        %5885 = vmatpush1.msra.mxu0 0.0
        %5886 = vmatprep.subr.mxu0 0.0
        %5887 = vmatpush1.msra.mxu0 0.0
        %5888 = vmatprep.subr.mxu0 0.0
        %5889 = vmatpush1.msra.mxu0 0.0
        %5890 = vmatprep.subr.mxu0 0.0
        %5891 = vmatpush1.msra.mxu0 0.0
        %5892 = vmatprep.subr.mxu0 0.0
        %5893 = vmatpush1.msra.mxu0 0.0
        %5894 = vmatprep.mubr.f32.mxu0 0.0
        %5895 = vmatmul.mubr.f32.gmra.mrb[0].mxu0 %v5606
        %v5896 = vpop.f32.mrb[0].mxu0
        %v5897 = vadd.f32 0.0, %v5896
        %v5898 = vpop.f32.mrb[0].mxu0
        %5899 = vdwg.mxu0
        %v5901 = vsel %vm193, %v5600, 0
        %5903 = vmatprep.subr.mxu0 0.0
        %5904 = vmatpush1.msra.mxu0 %v5901
        %5905 = vmatprep.subr.mxu0 0.0
        %5906 = vmatpush1.msra.mxu0 0.0
        %5907 = vmatprep.subr.mxu0 0.0
        %5908 = vmatpush1.msra.mxu0 0.0
        %5909 = vmatprep.subr.mxu0 0.0
        %5910 = vmatpush1.msra.mxu0 0.0
        %5911 = vmatprep.subr.mxu0 0.0
        %5912 = vmatpush1.msra.mxu0 0.0
        %5913 = vmatprep.subr.mxu0 0.0
        %5914 = vmatpush1.msra.mxu0 0.0
        %5915 = vmatprep.subr.mxu0 0.0
        %5916 = vmatpush1.msra.mxu0 0.0
        %5917 = vmatprep.subr.mxu0 0.0
        %5918 = vmatpush1.msra.mxu0 0.0
        %5919 = vmatprep.subr.mxu0 0.0
        %5920 = vmatpush1.msra.mxu0 0.0
        %5921 = vmatprep.subr.mxu0 0.0
        %5922 = vmatpush1.msra.mxu0 0.0
        %5923 = vmatprep.subr.mxu0 0.0
        %5924 = vmatpush1.msra.mxu0 0.0
        %5925 = vmatprep.subr.mxu0 0.0
        %5926 = vmatpush1.msra.mxu0 0.0
        %5927 = vmatprep.subr.mxu0 0.0
        %5928 = vmatpush1.msra.mxu0 0.0
        %5929 = vmatprep.subr.mxu0 0.0
        %5930 = vmatpush1.msra.mxu0 0.0
        %5931 = vmatprep.subr.mxu0 0.0
        %5932 = vmatpush1.msra.mxu0 0.0
        %5933 = vmatprep.subr.mxu0 0.0
        %5934 = vmatpush1.msra.mxu0 0.0
        %5935 = vmatprep.subr.mxu0 0.0
        %5936 = vmatpush1.msra.mxu0 0.0
        %5937 = vmatprep.subr.mxu0 0.0
        %5938 = vmatpush1.msra.mxu0 0.0
        %5939 = vmatprep.subr.mxu0 0.0
        %5940 = vmatpush1.msra.mxu0 0.0
        %5941 = vmatprep.subr.mxu0 0.0
        %5942 = vmatpush1.msra.mxu0 0.0
        %5943 = vmatprep.subr.mxu0 0.0
        %5944 = vmatpush1.msra.mxu0 0.0
        %5945 = vmatprep.subr.mxu0 0.0
        %5946 = vmatpush1.msra.mxu0 0.0
        %5947 = vmatprep.subr.mxu0 0.0
        %5948 = vmatpush1.msra.mxu0 0.0
        %5949 = vmatprep.subr.mxu0 0.0
        %5950 = vmatpush1.msra.mxu0 0.0
        %5951 = vmatprep.subr.mxu0 0.0
        %5952 = vmatpush1.msra.mxu0 0.0
        %5953 = vmatprep.subr.mxu0 0.0
        %5954 = vmatpush1.msra.mxu0 0.0
        %5955 = vmatprep.subr.mxu0 0.0
        %5956 = vmatpush1.msra.mxu0 0.0
        %5957 = vmatprep.subr.mxu0 0.0
        %5958 = vmatpush1.msra.mxu0 0.0
        %5959 = vmatprep.subr.mxu0 0.0
        %5960 = vmatpush1.msra.mxu0 0.0
        %5961 = vmatprep.subr.mxu0 0.0
        %5962 = vmatpush1.msra.mxu0 0.0
        %5963 = vmatprep.subr.mxu0 0.0
        %5964 = vmatpush1.msra.mxu0 0.0
        %5965 = vmatprep.subr.mxu0 0.0
        %5966 = vmatpush1.msra.mxu0 0.0
        %5967 = vmatprep.mubr.f32.mxu0 0.0
        %5968 = vmatmul.mubr.f32.gmra.mrb[0].mxu0 %v5606
        %v5969 = vpop.f32.mrb[0].mxu0
        %v5970 = vadd.f32 0.0, %v5969
        %v5971 = vpop.f32.mrb[0].mxu0
        %5972 = vdwg.mxu0
        %v5974 = vsel %vm193, %v5601, 0
        %5976 = vmatprep.subr.mxu0 0.0
        %5977 = vmatpush1.msra.mxu0 %v5974
        %5978 = vmatprep.subr.mxu0 0.0
        %5979 = vmatpush1.msra.mxu0 0.0
        %5980 = vmatprep.subr.mxu0 0.0
        %5981 = vmatpush1.msra.mxu0 0.0
        %5982 = vmatprep.subr.mxu0 0.0
        %5983 = vmatpush1.msra.mxu0 0.0
        %5984 = vmatprep.subr.mxu0 0.0
        %5985 = vmatpush1.msra.mxu0 0.0
        %5986 = vmatprep.subr.mxu0 0.0
        %5987 = vmatpush1.msra.mxu0 0.0
        %5988 = vmatprep.subr.mxu0 0.0
        %5989 = vmatpush1.msra.mxu0 0.0
        %5990 = vmatprep.subr.mxu0 0.0
        %5991 = vmatpush1.msra.mxu0 0.0
        %5992 = vmatprep.subr.mxu0 0.0
        %5993 = vmatpush1.msra.mxu0 0.0
        %5994 = vmatprep.subr.mxu0 0.0
        %5995 = vmatpush1.msra.mxu0 0.0
        %5996 = vmatprep.subr.mxu0 0.0
        %5997 = vmatpush1.msra.mxu0 0.0
        %5998 = vmatprep.subr.mxu0 0.0
        %5999 = vmatpush1.msra.mxu0 0.0
        %6000 = vmatprep.subr.mxu0 0.0
        %6001 = vmatpush1.msra.mxu0 0.0
        %6002 = vmatprep.subr.mxu0 0.0
        %6003 = vmatpush1.msra.mxu0 0.0
        %6004 = vmatprep.subr.mxu0 0.0
        %6005 = vmatpush1.msra.mxu0 0.0
        %6006 = vmatprep.subr.mxu0 0.0
        %6007 = vmatpush1.msra.mxu0 0.0
        %6008 = vmatprep.subr.mxu0 0.0
        %6009 = vmatpush1.msra.mxu0 0.0
        %6010 = vmatprep.subr.mxu0 0.0
        %6011 = vmatpush1.msra.mxu0 0.0
        %6012 = vmatprep.subr.mxu0 0.0
        %6013 = vmatpush1.msra.mxu0 0.0
        %6014 = vmatprep.subr.mxu0 0.0
        %6015 = vmatpush1.msra.mxu0 0.0
        %6016 = vmatprep.subr.mxu0 0.0
        %6017 = vmatpush1.msra.mxu0 0.0
        %6018 = vmatprep.subr.mxu0 0.0
        %6019 = vmatpush1.msra.mxu0 0.0
        %6020 = vmatprep.subr.mxu0 0.0
        %6021 = vmatpush1.msra.mxu0 0.0
        %6022 = vmatprep.subr.mxu0 0.0
        %6023 = vmatpush1.msra.mxu0 0.0
        %6024 = vmatprep.subr.mxu0 0.0
        %6025 = vmatpush1.msra.mxu0 0.0
        %6026 = vmatprep.subr.mxu0 0.0
        %6027 = vmatpush1.msra.mxu0 0.0
        %6028 = vmatprep.subr.mxu0 0.0
        %6029 = vmatpush1.msra.mxu0 0.0
        %6030 = vmatprep.subr.mxu0 0.0
        %6031 = vmatpush1.msra.mxu0 0.0
        %6032 = vmatprep.subr.mxu0 0.0
        %6033 = vmatpush1.msra.mxu0 0.0
        %6034 = vmatprep.subr.mxu0 0.0
        %6035 = vmatpush1.msra.mxu0 0.0
        %6036 = vmatprep.subr.mxu0 0.0
        %6037 = vmatpush1.msra.mxu0 0.0
        %6038 = vmatprep.subr.mxu0 0.0
        %6039 = vmatpush1.msra.mxu0 0.0
        %6040 = vmatprep.mubr.f32.mxu0 0.0
        %6041 = vmatmul.mubr.f32.gmra.mrb[0].mxu0 %v5606
        %v6042 = vpop.f32.mrb[0].mxu0
        %v6043 = vadd.f32 0.0, %v6042
        %v6044 = vpop.f32.mrb[0].mxu0
        %6045 = vdwg.mxu0
        %v6047 = vsel %vm193, %v5602, 0
        %6049 = vmatprep.subr.mxu0 0.0
        %6050 = vmatpush1.msra.mxu0 %v6047
        %6051 = vmatprep.subr.mxu0 0.0
        %6052 = vmatpush1.msra.mxu0 0.0
        %6053 = vmatprep.subr.mxu0 0.0
        %6054 = vmatpush1.msra.mxu0 0.0
        %6055 = vmatprep.subr.mxu0 0.0
        %6056 = vmatpush1.msra.mxu0 0.0
        %6057 = vmatprep.subr.mxu0 0.0
        %6058 = vmatpush1.msra.mxu0 0.0
        %6059 = vmatprep.subr.mxu0 0.0
        %6060 = vmatpush1.msra.mxu0 0.0
        %6061 = vmatprep.subr.mxu0 0.0
        %6062 = vmatpush1.msra.mxu0 0.0
        %6063 = vmatprep.subr.mxu0 0.0
        %6064 = vmatpush1.msra.mxu0 0.0
        %6065 = vmatprep.subr.mxu0 0.0
        %6066 = vmatpush1.msra.mxu0 0.0
        %6067 = vmatprep.subr.mxu0 0.0
        %6068 = vmatpush1.msra.mxu0 0.0
        %6069 = vmatprep.subr.mxu0 0.0
        %6070 = vmatpush1.msra.mxu0 0.0
        %6071 = vmatprep.subr.mxu0 0.0
        %6072 = vmatpush1.msra.mxu0 0.0
        %6073 = vmatprep.subr.mxu0 0.0
        %6074 = vmatpush1.msra.mxu0 0.0
        %6075 = vmatprep.subr.mxu0 0.0
        %6076 = vmatpush1.msra.mxu0 0.0
        %6077 = vmatprep.subr.mxu0 0.0
        %6078 = vmatpush1.msra.mxu0 0.0
        %6079 = vmatprep.subr.mxu0 0.0
        %6080 = vmatpush1.msra.mxu0 0.0
        %6081 = vmatprep.subr.mxu0 0.0
        %6082 = vmatpush1.msra.mxu0 0.0
        %6083 = vmatprep.subr.mxu0 0.0
        %6084 = vmatpush1.msra.mxu0 0.0
        %6085 = vmatprep.subr.mxu0 0.0
        %6086 = vmatpush1.msra.mxu0 0.0
        %6087 = vmatprep.subr.mxu0 0.0
        %6088 = vmatpush1.msra.mxu0 0.0
        %6089 = vmatprep.subr.mxu0 0.0
        %6090 = vmatpush1.msra.mxu0 0.0
        %6091 = vmatprep.subr.mxu0 0.0
        %6092 = vmatpush1.msra.mxu0 0.0
        %6093 = vmatprep.subr.mxu0 0.0
        %6094 = vmatpush1.msra.mxu0 0.0
        %6095 = vmatprep.subr.mxu0 0.0
        %6096 = vmatpush1.msra.mxu0 0.0
        %6097 = vmatprep.subr.mxu0 0.0
        %6098 = vmatpush1.msra.mxu0 0.0
        %6099 = vmatprep.subr.mxu0 0.0
        %6100 = vmatpush1.msra.mxu0 0.0
        %6101 = vmatprep.subr.mxu0 0.0
        %6102 = vmatpush1.msra.mxu0 0.0
        %6103 = vmatprep.subr.mxu0 0.0
        %6104 = vmatpush1.msra.mxu0 0.0
        %6105 = vmatprep.subr.mxu0 0.0
        %6106 = vmatpush1.msra.mxu0 0.0
        %6107 = vmatprep.subr.mxu0 0.0
        %6108 = vmatpush1.msra.mxu0 0.0
        %6109 = vmatprep.subr.mxu0 0.0
        %6110 = vmatpush1.msra.mxu0 0.0
        %6111 = vmatprep.subr.mxu0 0.0
        %6112 = vmatpush1.msra.mxu0 0.0
        %6113 = vmatprep.mubr.f32.mxu0 0.0
        %6114 = vmatmul.mubr.f32.gmra.mrb[0].mxu0 %v5606
        %v6115 = vpop.f32.mrb[0].mxu0
        %v6116 = vadd.f32 0.0, %v6115
        %v6117 = vpop.f32.mrb[0].mxu0
        %6118 = vdwg.mxu0
        %v6120 = vsel %vm193, %v5603, 0
        %6122 = vmatprep.subr.mxu0 0.0
        %6123 = vmatpush1.msra.mxu0 %v6120
        %6124 = vmatprep.subr.mxu0 0.0
        %6125 = vmatpush1.msra.mxu0 0.0
        %6126 = vmatprep.subr.mxu0 0.0
        %6127 = vmatpush1.msra.mxu0 0.0
        %6128 = vmatprep.subr.mxu0 0.0
        %6129 = vmatpush1.msra.mxu0 0.0
        %6130 = vmatprep.subr.mxu0 0.0
        %6131 = vmatpush1.msra.mxu0 0.0
        %6132 = vmatprep.subr.mxu0 0.0
        %6133 = vmatpush1.msra.mxu0 0.0
        %6134 = vmatprep.subr.mxu0 0.0
        %6135 = vmatpush1.msra.mxu0 0.0
        %6136 = vmatprep.subr.mxu0 0.0
        %6137 = vmatpush1.msra.mxu0 0.0
        %6138 = vmatprep.subr.mxu0 0.0
        %6139 = vmatpush1.msra.mxu0 0.0
        %6140 = vmatprep.subr.mxu0 0.0
        %6141 = vmatpush1.msra.mxu0 0.0
        %6142 = vmatprep.subr.mxu0 0.0
        %6143 = vmatpush1.msra.mxu0 0.0
        %6144 = vmatprep.subr.mxu0 0.0
        %6145 = vmatpush1.msra.mxu0 0.0
        %6146 = vmatprep.subr.mxu0 0.0
        %6147 = vmatpush1.msra.mxu0 0.0
        %6148 = vmatprep.subr.mxu0 0.0
        %6149 = vmatpush1.msra.mxu0 0.0
        %6150 = vmatprep.subr.mxu0 0.0
        %6151 = vmatpush1.msra.mxu0 0.0
        %6152 = vmatprep.subr.mxu0 0.0
        %6153 = vmatpush1.msra.mxu0 0.0
        %6154 = vmatprep.subr.mxu0 0.0
        %6155 = vmatpush1.msra.mxu0 0.0
        %6156 = vmatprep.subr.mxu0 0.0
        %6157 = vmatpush1.msra.mxu0 0.0
        %6158 = vmatprep.subr.mxu0 0.0
        %6159 = vmatpush1.msra.mxu0 0.0
        %6160 = vmatprep.subr.mxu0 0.0
        %6161 = vmatpush1.msra.mxu0 0.0
        %6162 = vmatprep.subr.mxu0 0.0
        %6163 = vmatpush1.msra.mxu0 0.0
        %6164 = vmatprep.subr.mxu0 0.0
        %6165 = vmatpush1.msra.mxu0 0.0
        %6166 = vmatprep.subr.mxu0 0.0
        %6167 = vmatpush1.msra.mxu0 0.0
        %6168 = vmatprep.subr.mxu0 0.0
        %6169 = vmatpush1.msra.mxu0 0.0
        %6170 = vmatprep.subr.mxu0 0.0
        %6171 = vmatpush1.msra.mxu0 0.0
        %6172 = vmatprep.subr.mxu0 0.0
        %6173 = vmatpush1.msra.mxu0 0.0
        %6174 = vmatprep.subr.mxu0 0.0
        %6175 = vmatpush1.msra.mxu0 0.0
        %6176 = vmatprep.subr.mxu0 0.0
        %6177 = vmatpush1.msra.mxu0 0.0
        %6178 = vmatprep.subr.mxu0 0.0
        %6179 = vmatpush1.msra.mxu0 0.0
        %6180 = vmatprep.subr.mxu0 0.0
        %6181 = vmatpush1.msra.mxu0 0.0
        %6182 = vmatprep.subr.mxu0 0.0
        %6183 = vmatpush1.msra.mxu0 0.0
        %6184 = vmatprep.subr.mxu0 0.0
        %6185 = vmatpush1.msra.mxu0 0.0
        %6186 = vmatprep.mubr.f32.mxu0 0.0
        %6187 = vmatmul.mubr.f32.gmra.mrb[0].mxu0 %v5606
        %v6188 = vpop.f32.mrb[0].mxu0
        %v6189 = vadd.f32 0.0, %v6188
        %v6190 = vpop.f32.mrb[0].mxu0
        %6191 = vdwg.mxu0
        %v6192 = vadd.f32 %v5587, %v5678
        %v6193 = vadd.f32 %v5588, %v5751
        %v6194 = vadd.f32 %v5589, %v5824
        %v6195 = vadd.f32 %v5590, %v5897
        %v6196 = vadd.f32 %v5591, %v5970
        %v6197 = vadd.f32 %v5592, %v6043
        %v6198 = vadd.f32 %v5593, %v6116
        %v6199 = vadd.f32 %v5594, %v6189
        %6200 = vrot.lane.b32.xlu0 %v177, 88
        %v6201 = vpop.permute.xlu0 %6200
        %6202 = vrot.lane.b32.xlu0 %v4991, 127
        %v6203 = vpop.permute.xlu0 %6202
        %v6204 = vsel %vm190, %v6201, 0
        %v6206 = vsel %vm193, %v6203, 0
        %6208 = vmatprep.subr.mxu0 0.0
        %6209 = vmatpush1.msra.mxu0 %v6206
        %6210 = vmatprep.subr.mxu0 0.0
        %6211 = vmatpush1.msra.mxu0 0.0
        %6212 = vmatprep.subr.mxu0 0.0
        %6213 = vmatpush1.msra.mxu0 0.0
        %6214 = vmatprep.subr.mxu0 0.0
        %6215 = vmatpush1.msra.mxu0 0.0
        %6216 = vmatprep.subr.mxu0 0.0
        %6217 = vmatpush1.msra.mxu0 0.0
        %6218 = vmatprep.subr.mxu0 0.0
        %6219 = vmatpush1.msra.mxu0 0.0
        %6220 = vmatprep.subr.mxu0 0.0
        %6221 = vmatpush1.msra.mxu0 0.0
        %6222 = vmatprep.subr.mxu0 0.0
        %6223 = vmatpush1.msra.mxu0 0.0
        %6224 = vmatprep.subr.mxu0 0.0
        %6225 = vmatpush1.msra.mxu0 0.0
        %6226 = vmatprep.subr.mxu0 0.0
        %6227 = vmatpush1.msra.mxu0 0.0
        %6228 = vmatprep.subr.mxu0 0.0
        %6229 = vmatpush1.msra.mxu0 0.0
        %6230 = vmatprep.subr.mxu0 0.0
        %6231 = vmatpush1.msra.mxu0 0.0
        %6232 = vmatprep.subr.mxu0 0.0
        %6233 = vmatpush1.msra.mxu0 0.0
        %6234 = vmatprep.subr.mxu0 0.0
        %6235 = vmatpush1.msra.mxu0 0.0
        %6236 = vmatprep.subr.mxu0 0.0
        %6237 = vmatpush1.msra.mxu0 0.0
        %6238 = vmatprep.subr.mxu0 0.0
        %6239 = vmatpush1.msra.mxu0 0.0
        %6240 = vmatprep.subr.mxu0 0.0
        %6241 = vmatpush1.msra.mxu0 0.0
        %6242 = vmatprep.subr.mxu0 0.0
        %6243 = vmatpush1.msra.mxu0 0.0
        %6244 = vmatprep.subr.mxu0 0.0
        %6245 = vmatpush1.msra.mxu0 0.0
        %6246 = vmatprep.subr.mxu0 0.0
        %6247 = vmatpush1.msra.mxu0 0.0
        %6248 = vmatprep.subr.mxu0 0.0
        %6249 = vmatpush1.msra.mxu0 0.0
        %6250 = vmatprep.subr.mxu0 0.0
        %6251 = vmatpush1.msra.mxu0 0.0
        %6252 = vmatprep.subr.mxu0 0.0
        %6253 = vmatpush1.msra.mxu0 0.0
        %6254 = vmatprep.subr.mxu0 0.0
        %6255 = vmatpush1.msra.mxu0 0.0
        %6256 = vmatprep.subr.mxu0 0.0
        %6257 = vmatpush1.msra.mxu0 0.0
        %6258 = vmatprep.subr.mxu0 0.0
        %6259 = vmatpush1.msra.mxu0 0.0
        %6260 = vmatprep.subr.mxu0 0.0
        %6261 = vmatpush1.msra.mxu0 0.0
        %6262 = vmatprep.subr.mxu0 0.0
        %6263 = vmatpush1.msra.mxu0 0.0
        %6264 = vmatprep.subr.mxu0 0.0
        %6265 = vmatpush1.msra.mxu0 0.0
        %6266 = vmatprep.subr.mxu0 0.0
        %6267 = vmatpush1.msra.mxu0 0.0
        %6268 = vmatprep.subr.mxu0 0.0
        %6269 = vmatpush1.msra.mxu0 0.0
        %6270 = vmatprep.subr.mxu0 0.0
        %6271 = vmatpush1.msra.mxu0 0.0
        %6272 = vmatprep.mubr.f32.mxu0 0.0
        %6273 = vmatmul.mubr.f32.gmra.mrb[0].mxu0 %v6204
        %v6274 = vpop.f32.mrb[0].mxu0
        %v6275 = vadd.f32 0.0, %v6274
        %v6276 = vpop.f32.mrb[0].mxu0
        %6277 = vdwg.mxu0
        %6278 = vrot.lane.b32.xlu0 %v4992, 127
        %v6279 = vpop.permute.xlu0 %6278
        %v6280 = vsel %vm193, %v6279, 0
        %6282 = vmatprep.subr.mxu0 0.0
        %6283 = vmatpush1.msra.mxu0 %v6280
        %6284 = vmatprep.subr.mxu0 0.0
        %6285 = vmatpush1.msra.mxu0 0.0
        %6286 = vmatprep.subr.mxu0 0.0
        %6287 = vmatpush1.msra.mxu0 0.0
        %6288 = vmatprep.subr.mxu0 0.0
        %6289 = vmatpush1.msra.mxu0 0.0
        %6290 = vmatprep.subr.mxu0 0.0
        %6291 = vmatpush1.msra.mxu0 0.0
        %6292 = vmatprep.subr.mxu0 0.0
        %6293 = vmatpush1.msra.mxu0 0.0
        %6294 = vmatprep.subr.mxu0 0.0
        %6295 = vmatpush1.msra.mxu0 0.0
        %6296 = vmatprep.subr.mxu0 0.0
        %6297 = vmatpush1.msra.mxu0 0.0
        %6298 = vmatprep.subr.mxu0 0.0
        %6299 = vmatpush1.msra.mxu0 0.0
        %6300 = vmatprep.subr.mxu0 0.0
        %6301 = vmatpush1.msra.mxu0 0.0
        %6302 = vmatprep.subr.mxu0 0.0
        %6303 = vmatpush1.msra.mxu0 0.0
        %6304 = vmatprep.subr.mxu0 0.0
        %6305 = vmatpush1.msra.mxu0 0.0
        %6306 = vmatprep.subr.mxu0 0.0
        %6307 = vmatpush1.msra.mxu0 0.0
        %6308 = vmatprep.subr.mxu0 0.0
        %6309 = vmatpush1.msra.mxu0 0.0
        %6310 = vmatprep.subr.mxu0 0.0
        %6311 = vmatpush1.msra.mxu0 0.0
        %6312 = vmatprep.subr.mxu0 0.0
        %6313 = vmatpush1.msra.mxu0 0.0
        %6314 = vmatprep.subr.mxu0 0.0
        %6315 = vmatpush1.msra.mxu0 0.0
        %6316 = vmatprep.subr.mxu0 0.0
        %6317 = vmatpush1.msra.mxu0 0.0
        %6318 = vmatprep.subr.mxu0 0.0
        %6319 = vmatpush1.msra.mxu0 0.0
        %6320 = vmatprep.subr.mxu0 0.0
        %6321 = vmatpush1.msra.mxu0 0.0
        %6322 = vmatprep.subr.mxu0 0.0
        %6323 = vmatpush1.msra.mxu0 0.0
        %6324 = vmatprep.subr.mxu0 0.0
        %6325 = vmatpush1.msra.mxu0 0.0
        %6326 = vmatprep.subr.mxu0 0.0
        %6327 = vmatpush1.msra.mxu0 0.0
        %6328 = vmatprep.subr.mxu0 0.0
        %6329 = vmatpush1.msra.mxu0 0.0
        %6330 = vmatprep.subr.mxu0 0.0
        %6331 = vmatpush1.msra.mxu0 0.0
        %6332 = vmatprep.subr.mxu0 0.0
        %6333 = vmatpush1.msra.mxu0 0.0
        %6334 = vmatprep.subr.mxu0 0.0
        %6335 = vmatpush1.msra.mxu0 0.0
        %6336 = vmatprep.subr.mxu0 0.0
        %6337 = vmatpush1.msra.mxu0 0.0
        %6338 = vmatprep.subr.mxu0 0.0
        %6339 = vmatpush1.msra.mxu0 0.0
        %6340 = vmatprep.subr.mxu0 0.0
        %6341 = vmatpush1.msra.mxu0 0.0
        %6342 = vmatprep.subr.mxu0 0.0
        %6343 = vmatpush1.msra.mxu0 0.0
        %6344 = vmatprep.subr.mxu0 0.0
        %6345 = vmatpush1.msra.mxu0 0.0
        %6346 = vmatprep.mubr.f32.mxu0 0.0
        %6347 = vmatmul.mubr.f32.gmra.mrb[0].mxu0 %v6204
        %v6348 = vpop.f32.mrb[0].mxu0
        %v6349 = vadd.f32 0.0, %v6348
        %v6350 = vpop.f32.mrb[0].mxu0
        %6351 = vdwg.mxu0
        %6352 = vrot.lane.b32.xlu0 %v4993, 127
        %v6353 = vpop.permute.xlu0 %6352
        %v6354 = vsel %vm193, %v6353, 0
        %6356 = vmatprep.subr.mxu0 0.0
        %6357 = vmatpush1.msra.mxu0 %v6354
        %6358 = vmatprep.subr.mxu0 0.0
        %6359 = vmatpush1.msra.mxu0 0.0
        %6360 = vmatprep.subr.mxu0 0.0
        %6361 = vmatpush1.msra.mxu0 0.0
        %6362 = vmatprep.subr.mxu0 0.0
        %6363 = vmatpush1.msra.mxu0 0.0
        %6364 = vmatprep.subr.mxu0 0.0
        %6365 = vmatpush1.msra.mxu0 0.0
        %6366 = vmatprep.subr.mxu0 0.0
        %6367 = vmatpush1.msra.mxu0 0.0
        %6368 = vmatprep.subr.mxu0 0.0
        %6369 = vmatpush1.msra.mxu0 0.0
        %6370 = vmatprep.subr.mxu0 0.0
        %6371 = vmatpush1.msra.mxu0 0.0
        %6372 = vmatprep.subr.mxu0 0.0
        %6373 = vmatpush1.msra.mxu0 0.0
        %6374 = vmatprep.subr.mxu0 0.0
        %6375 = vmatpush1.msra.mxu0 0.0
        %6376 = vmatprep.subr.mxu0 0.0
        %6377 = vmatpush1.msra.mxu0 0.0
        %6378 = vmatprep.subr.mxu0 0.0
        %6379 = vmatpush1.msra.mxu0 0.0
        %6380 = vmatprep.subr.mxu0 0.0
        %6381 = vmatpush1.msra.mxu0 0.0
        %6382 = vmatprep.subr.mxu0 0.0
        %6383 = vmatpush1.msra.mxu0 0.0
        %6384 = vmatprep.subr.mxu0 0.0
        %6385 = vmatpush1.msra.mxu0 0.0
        %6386 = vmatprep.subr.mxu0 0.0
        %6387 = vmatpush1.msra.mxu0 0.0
        %6388 = vmatprep.subr.mxu0 0.0
        %6389 = vmatpush1.msra.mxu0 0.0
        %6390 = vmatprep.subr.mxu0 0.0
        %6391 = vmatpush1.msra.mxu0 0.0
        %6392 = vmatprep.subr.mxu0 0.0
        %6393 = vmatpush1.msra.mxu0 0.0
        %6394 = vmatprep.subr.mxu0 0.0
        %6395 = vmatpush1.msra.mxu0 0.0
        %6396 = vmatprep.subr.mxu0 0.0
        %6397 = vmatpush1.msra.mxu0 0.0
        %6398 = vmatprep.subr.mxu0 0.0
        %6399 = vmatpush1.msra.mxu0 0.0
        %6400 = vmatprep.subr.mxu0 0.0
        %6401 = vmatpush1.msra.mxu0 0.0
        %6402 = vmatprep.subr.mxu0 0.0
        %6403 = vmatpush1.msra.mxu0 0.0
        %6404 = vmatprep.subr.mxu0 0.0
        %6405 = vmatpush1.msra.mxu0 0.0
        %6406 = vmatprep.subr.mxu0 0.0
        %6407 = vmatpush1.msra.mxu0 0.0
        %6408 = vmatprep.subr.mxu0 0.0
        %6409 = vmatpush1.msra.mxu0 0.0
        %6410 = vmatprep.subr.mxu0 0.0
        %6411 = vmatpush1.msra.mxu0 0.0
        %6412 = vmatprep.subr.mxu0 0.0
        %6413 = vmatpush1.msra.mxu0 0.0
        %6414 = vmatprep.subr.mxu0 0.0
        %6415 = vmatpush1.msra.mxu0 0.0
        %6416 = vmatprep.subr.mxu0 0.0
        %6417 = vmatpush1.msra.mxu0 0.0
        %6418 = vmatprep.subr.mxu0 0.0
        %6419 = vmatpush1.msra.mxu0 0.0
        %6420 = vmatprep.mubr.f32.mxu0 0.0
        %6421 = vmatmul.mubr.f32.gmra.mrb[0].mxu0 %v6204
        %v6422 = vpop.f32.mrb[0].mxu0
        %v6423 = vadd.f32 0.0, %v6422
        %v6424 = vpop.f32.mrb[0].mxu0
        %6425 = vdwg.mxu0
        %6426 = vrot.lane.b32.xlu0 %v4994, 127
        %v6427 = vpop.permute.xlu0 %6426
        %v6428 = vsel %vm193, %v6427, 0
        %6430 = vmatprep.subr.mxu0 0.0
        %6431 = vmatpush1.msra.mxu0 %v6428
        %6432 = vmatprep.subr.mxu0 0.0
        %6433 = vmatpush1.msra.mxu0 0.0
        %6434 = vmatprep.subr.mxu0 0.0
        %6435 = vmatpush1.msra.mxu0 0.0
        %6436 = vmatprep.subr.mxu0 0.0
        %6437 = vmatpush1.msra.mxu0 0.0
        %6438 = vmatprep.subr.mxu0 0.0
        %6439 = vmatpush1.msra.mxu0 0.0
        %6440 = vmatprep.subr.mxu0 0.0
        %6441 = vmatpush1.msra.mxu0 0.0
        %6442 = vmatprep.subr.mxu0 0.0
        %6443 = vmatpush1.msra.mxu0 0.0
        %6444 = vmatprep.subr.mxu0 0.0
        %6445 = vmatpush1.msra.mxu0 0.0
        %6446 = vmatprep.subr.mxu0 0.0
        %6447 = vmatpush1.msra.mxu0 0.0
        %6448 = vmatprep.subr.mxu0 0.0
        %6449 = vmatpush1.msra.mxu0 0.0
        %6450 = vmatprep.subr.mxu0 0.0
        %6451 = vmatpush1.msra.mxu0 0.0
        %6452 = vmatprep.subr.mxu0 0.0
        %6453 = vmatpush1.msra.mxu0 0.0
        %6454 = vmatprep.subr.mxu0 0.0
        %6455 = vmatpush1.msra.mxu0 0.0
        %6456 = vmatprep.subr.mxu0 0.0
        %6457 = vmatpush1.msra.mxu0 0.0
        %6458 = vmatprep.subr.mxu0 0.0
        %6459 = vmatpush1.msra.mxu0 0.0
        %6460 = vmatprep.subr.mxu0 0.0
        %6461 = vmatpush1.msra.mxu0 0.0
        %6462 = vmatprep.subr.mxu0 0.0
        %6463 = vmatpush1.msra.mxu0 0.0
        %6464 = vmatprep.subr.mxu0 0.0
        %6465 = vmatpush1.msra.mxu0 0.0
        %6466 = vmatprep.subr.mxu0 0.0
        %6467 = vmatpush1.msra.mxu0 0.0
        %6468 = vmatprep.subr.mxu0 0.0
        %6469 = vmatpush1.msra.mxu0 0.0
        %6470 = vmatprep.subr.mxu0 0.0
        %6471 = vmatpush1.msra.mxu0 0.0
        %6472 = vmatprep.subr.mxu0 0.0
        %6473 = vmatpush1.msra.mxu0 0.0
        %6474 = vmatprep.subr.mxu0 0.0
        %6475 = vmatpush1.msra.mxu0 0.0
        %6476 = vmatprep.subr.mxu0 0.0
        %6477 = vmatpush1.msra.mxu0 0.0
        %6478 = vmatprep.subr.mxu0 0.0
        %6479 = vmatpush1.msra.mxu0 0.0
        %6480 = vmatprep.subr.mxu0 0.0
        %6481 = vmatpush1.msra.mxu0 0.0
        %6482 = vmatprep.subr.mxu0 0.0
        %6483 = vmatpush1.msra.mxu0 0.0
        %6484 = vmatprep.subr.mxu0 0.0
        %6485 = vmatpush1.msra.mxu0 0.0
        %6486 = vmatprep.subr.mxu0 0.0
        %6487 = vmatpush1.msra.mxu0 0.0
        %6488 = vmatprep.subr.mxu0 0.0
        %6489 = vmatpush1.msra.mxu0 0.0
        %6490 = vmatprep.subr.mxu0 0.0
        %6491 = vmatpush1.msra.mxu0 0.0
        %6492 = vmatprep.subr.mxu0 0.0
        %6493 = vmatpush1.msra.mxu0 0.0
        %6494 = vmatprep.mubr.f32.mxu0 0.0
        %6495 = vmatmul.mubr.f32.gmra.mrb[0].mxu0 %v6204
        %v6496 = vpop.f32.mrb[0].mxu0
        %v6497 = vadd.f32 0.0, %v6496
        %v6498 = vpop.f32.mrb[0].mxu0
        %6499 = vdwg.mxu0
        %6500 = vrot.lane.b32.xlu0 %v4995, 127
        %v6501 = vpop.permute.xlu0 %6500
        %v6502 = vsel %vm193, %v6501, 0
        %6504 = vmatprep.subr.mxu0 0.0
        %6505 = vmatpush1.msra.mxu0 %v6502
        %6506 = vmatprep.subr.mxu0 0.0
        %6507 = vmatpush1.msra.mxu0 0.0
        %6508 = vmatprep.subr.mxu0 0.0
        %6509 = vmatpush1.msra.mxu0 0.0
        %6510 = vmatprep.subr.mxu0 0.0
        %6511 = vmatpush1.msra.mxu0 0.0
        %6512 = vmatprep.subr.mxu0 0.0
        %6513 = vmatpush1.msra.mxu0 0.0
        %6514 = vmatprep.subr.mxu0 0.0
        %6515 = vmatpush1.msra.mxu0 0.0
        %6516 = vmatprep.subr.mxu0 0.0
        %6517 = vmatpush1.msra.mxu0 0.0
        %6518 = vmatprep.subr.mxu0 0.0
        %6519 = vmatpush1.msra.mxu0 0.0
        %6520 = vmatprep.subr.mxu0 0.0
        %6521 = vmatpush1.msra.mxu0 0.0
        %6522 = vmatprep.subr.mxu0 0.0
        %6523 = vmatpush1.msra.mxu0 0.0
        %6524 = vmatprep.subr.mxu0 0.0
        %6525 = vmatpush1.msra.mxu0 0.0
        %6526 = vmatprep.subr.mxu0 0.0
        %6527 = vmatpush1.msra.mxu0 0.0
        %6528 = vmatprep.subr.mxu0 0.0
        %6529 = vmatpush1.msra.mxu0 0.0
        %6530 = vmatprep.subr.mxu0 0.0
        %6531 = vmatpush1.msra.mxu0 0.0
        %6532 = vmatprep.subr.mxu0 0.0
        %6533 = vmatpush1.msra.mxu0 0.0
        %6534 = vmatprep.subr.mxu0 0.0
        %6535 = vmatpush1.msra.mxu0 0.0
        %6536 = vmatprep.subr.mxu0 0.0
        %6537 = vmatpush1.msra.mxu0 0.0
        %6538 = vmatprep.subr.mxu0 0.0
        %6539 = vmatpush1.msra.mxu0 0.0
        %6540 = vmatprep.subr.mxu0 0.0
        %6541 = vmatpush1.msra.mxu0 0.0
        %6542 = vmatprep.subr.mxu0 0.0
        %6543 = vmatpush1.msra.mxu0 0.0
        %6544 = vmatprep.subr.mxu0 0.0
        %6545 = vmatpush1.msra.mxu0 0.0
        %6546 = vmatprep.subr.mxu0 0.0
        %6547 = vmatpush1.msra.mxu0 0.0
        %6548 = vmatprep.subr.mxu0 0.0
        %6549 = vmatpush1.msra.mxu0 0.0
        %6550 = vmatprep.subr.mxu0 0.0
        %6551 = vmatpush1.msra.mxu0 0.0
        %6552 = vmatprep.subr.mxu0 0.0
        %6553 = vmatpush1.msra.mxu0 0.0
        %6554 = vmatprep.subr.mxu0 0.0
        %6555 = vmatpush1.msra.mxu0 0.0
        %6556 = vmatprep.subr.mxu0 0.0
        %6557 = vmatpush1.msra.mxu0 0.0
        %6558 = vmatprep.subr.mxu0 0.0
        %6559 = vmatpush1.msra.mxu0 0.0
        %6560 = vmatprep.subr.mxu0 0.0
        %6561 = vmatpush1.msra.mxu0 0.0
        %6562 = vmatprep.subr.mxu0 0.0
        %6563 = vmatpush1.msra.mxu0 0.0
        %6564 = vmatprep.subr.mxu0 0.0
        %6565 = vmatpush1.msra.mxu0 0.0
        %6566 = vmatprep.subr.mxu0 0.0
        %6567 = vmatpush1.msra.mxu0 0.0
        %6568 = vmatprep.mubr.f32.mxu0 0.0
        %6569 = vmatmul.mubr.f32.gmra.mrb[0].mxu0 %v6204
        %v6570 = vpop.f32.mrb[0].mxu0
        %v6571 = vadd.f32 0.0, %v6570
        %v6572 = vpop.f32.mrb[0].mxu0
        %6573 = vdwg.mxu0
        %6574 = vrot.lane.b32.xlu0 %v4996, 127
        %v6575 = vpop.permute.xlu0 %6574
        %v6576 = vsel %vm193, %v6575, 0
        %6578 = vmatprep.subr.mxu0 0.0
        %6579 = vmatpush1.msra.mxu0 %v6576
        %6580 = vmatprep.subr.mxu0 0.0
        %6581 = vmatpush1.msra.mxu0 0.0
        %6582 = vmatprep.subr.mxu0 0.0
        %6583 = vmatpush1.msra.mxu0 0.0
        %6584 = vmatprep.subr.mxu0 0.0
        %6585 = vmatpush1.msra.mxu0 0.0
        %6586 = vmatprep.subr.mxu0 0.0
        %6587 = vmatpush1.msra.mxu0 0.0
        %6588 = vmatprep.subr.mxu0 0.0
        %6589 = vmatpush1.msra.mxu0 0.0
        %6590 = vmatprep.subr.mxu0 0.0
        %6591 = vmatpush1.msra.mxu0 0.0
        %6592 = vmatprep.subr.mxu0 0.0
        %6593 = vmatpush1.msra.mxu0 0.0
        %6594 = vmatprep.subr.mxu0 0.0
        %6595 = vmatpush1.msra.mxu0 0.0
        %6596 = vmatprep.subr.mxu0 0.0
        %6597 = vmatpush1.msra.mxu0 0.0
        %6598 = vmatprep.subr.mxu0 0.0
        %6599 = vmatpush1.msra.mxu0 0.0
        %6600 = vmatprep.subr.mxu0 0.0
        %6601 = vmatpush1.msra.mxu0 0.0
        %6602 = vmatprep.subr.mxu0 0.0
        %6603 = vmatpush1.msra.mxu0 0.0
        %6604 = vmatprep.subr.mxu0 0.0
        %6605 = vmatpush1.msra.mxu0 0.0
        %6606 = vmatprep.subr.mxu0 0.0
        %6607 = vmatpush1.msra.mxu0 0.0
        %6608 = vmatprep.subr.mxu0 0.0
        %6609 = vmatpush1.msra.mxu0 0.0
        %6610 = vmatprep.subr.mxu0 0.0
        %6611 = vmatpush1.msra.mxu0 0.0
        %6612 = vmatprep.subr.mxu0 0.0
        %6613 = vmatpush1.msra.mxu0 0.0
        %6614 = vmatprep.subr.mxu0 0.0
        %6615 = vmatpush1.msra.mxu0 0.0
        %6616 = vmatprep.subr.mxu0 0.0
        %6617 = vmatpush1.msra.mxu0 0.0
        %6618 = vmatprep.subr.mxu0 0.0
        %6619 = vmatpush1.msra.mxu0 0.0
        %6620 = vmatprep.subr.mxu0 0.0
        %6621 = vmatpush1.msra.mxu0 0.0
        %6622 = vmatprep.subr.mxu0 0.0
        %6623 = vmatpush1.msra.mxu0 0.0
        %6624 = vmatprep.subr.mxu0 0.0
        %6625 = vmatpush1.msra.mxu0 0.0
        %6626 = vmatprep.subr.mxu0 0.0
        %6627 = vmatpush1.msra.mxu0 0.0
        %6628 = vmatprep.subr.mxu0 0.0
        %6629 = vmatpush1.msra.mxu0 0.0
        %6630 = vmatprep.subr.mxu0 0.0
        %6631 = vmatpush1.msra.mxu0 0.0
        %6632 = vmatprep.subr.mxu0 0.0
        %6633 = vmatpush1.msra.mxu0 0.0
        %6634 = vmatprep.subr.mxu0 0.0
        %6635 = vmatpush1.msra.mxu0 0.0
        %6636 = vmatprep.subr.mxu0 0.0
        %6637 = vmatpush1.msra.mxu0 0.0
        %6638 = vmatprep.subr.mxu0 0.0
        %6639 = vmatpush1.msra.mxu0 0.0
        %6640 = vmatprep.subr.mxu0 0.0
        %6641 = vmatpush1.msra.mxu0 0.0
        %6642 = vmatprep.mubr.f32.mxu0 0.0
        %6643 = vmatmul.mubr.f32.gmra.mrb[0].mxu0 %v6204
        %v6644 = vpop.f32.mrb[0].mxu0
        %v6645 = vadd.f32 0.0, %v6644
        %v6646 = vpop.f32.mrb[0].mxu0
        %6647 = vdwg.mxu0
        %6648 = vrot.lane.b32.xlu0 %v4997, 127
        %v6649 = vpop.permute.xlu0 %6648
        %v6650 = vsel %vm193, %v6649, 0
        %6652 = vmatprep.subr.mxu0 0.0
        %6653 = vmatpush1.msra.mxu0 %v6650
        %6654 = vmatprep.subr.mxu0 0.0
        %6655 = vmatpush1.msra.mxu0 0.0
        %6656 = vmatprep.subr.mxu0 0.0
        %6657 = vmatpush1.msra.mxu0 0.0
        %6658 = vmatprep.subr.mxu0 0.0
        %6659 = vmatpush1.msra.mxu0 0.0
        %6660 = vmatprep.subr.mxu0 0.0
        %6661 = vmatpush1.msra.mxu0 0.0
        %6662 = vmatprep.subr.mxu0 0.0
        %6663 = vmatpush1.msra.mxu0 0.0
        %6664 = vmatprep.subr.mxu0 0.0
        %6665 = vmatpush1.msra.mxu0 0.0
        %6666 = vmatprep.subr.mxu0 0.0
        %6667 = vmatpush1.msra.mxu0 0.0
        %6668 = vmatprep.subr.mxu0 0.0
        %6669 = vmatpush1.msra.mxu0 0.0
        %6670 = vmatprep.subr.mxu0 0.0
        %6671 = vmatpush1.msra.mxu0 0.0
        %6672 = vmatprep.subr.mxu0 0.0
        %6673 = vmatpush1.msra.mxu0 0.0
        %6674 = vmatprep.subr.mxu0 0.0
        %6675 = vmatpush1.msra.mxu0 0.0
        %6676 = vmatprep.subr.mxu0 0.0
        %6677 = vmatpush1.msra.mxu0 0.0
        %6678 = vmatprep.subr.mxu0 0.0
        %6679 = vmatpush1.msra.mxu0 0.0
        %6680 = vmatprep.subr.mxu0 0.0
        %6681 = vmatpush1.msra.mxu0 0.0
        %6682 = vmatprep.subr.mxu0 0.0
        %6683 = vmatpush1.msra.mxu0 0.0
        %6684 = vmatprep.subr.mxu0 0.0
        %6685 = vmatpush1.msra.mxu0 0.0
        %6686 = vmatprep.subr.mxu0 0.0
        %6687 = vmatpush1.msra.mxu0 0.0
        %6688 = vmatprep.subr.mxu0 0.0
        %6689 = vmatpush1.msra.mxu0 0.0
        %6690 = vmatprep.subr.mxu0 0.0
        %6691 = vmatpush1.msra.mxu0 0.0
        %6692 = vmatprep.subr.mxu0 0.0
        %6693 = vmatpush1.msra.mxu0 0.0
        %6694 = vmatprep.subr.mxu0 0.0
        %6695 = vmatpush1.msra.mxu0 0.0
        %6696 = vmatprep.subr.mxu0 0.0
        %6697 = vmatpush1.msra.mxu0 0.0
        %6698 = vmatprep.subr.mxu0 0.0
        %6699 = vmatpush1.msra.mxu0 0.0
        %6700 = vmatprep.subr.mxu0 0.0
        %6701 = vmatpush1.msra.mxu0 0.0
        %6702 = vmatprep.subr.mxu0 0.0
        %6703 = vmatpush1.msra.mxu0 0.0
        %6704 = vmatprep.subr.mxu0 0.0
        %6705 = vmatpush1.msra.mxu0 0.0
        %6706 = vmatprep.subr.mxu0 0.0
        %6707 = vmatpush1.msra.mxu0 0.0
        %6708 = vmatprep.subr.mxu0 0.0
        %6709 = vmatpush1.msra.mxu0 0.0
        %6710 = vmatprep.subr.mxu0 0.0
        %6711 = vmatpush1.msra.mxu0 0.0
        %6712 = vmatprep.subr.mxu0 0.0
        %6713 = vmatpush1.msra.mxu0 0.0
        %6714 = vmatprep.subr.mxu0 0.0
        %6715 = vmatpush1.msra.mxu0 0.0
        %6716 = vmatprep.mubr.f32.mxu0 0.0
        %6717 = vmatmul.mubr.f32.gmra.mrb[0].mxu0 %v6204
        %v6718 = vpop.f32.mrb[0].mxu0
        %v6719 = vadd.f32 0.0, %v6718
        %v6720 = vpop.f32.mrb[0].mxu0
        %6721 = vdwg.mxu0
        %6722 = vrot.lane.b32.xlu0 %v4998, 127
        %v6723 = vpop.permute.xlu0 %6722
        %v6724 = vsel %vm193, %v6723, 0
        %6726 = vmatprep.subr.mxu0 0.0
        %6727 = vmatpush1.msra.mxu0 %v6724
        %6728 = vmatprep.subr.mxu0 0.0
        %6729 = vmatpush1.msra.mxu0 0.0
        %6730 = vmatprep.subr.mxu0 0.0
        %6731 = vmatpush1.msra.mxu0 0.0
        %6732 = vmatprep.subr.mxu0 0.0
        %6733 = vmatpush1.msra.mxu0 0.0
        %6734 = vmatprep.subr.mxu0 0.0
        %6735 = vmatpush1.msra.mxu0 0.0
        %6736 = vmatprep.subr.mxu0 0.0
        %6737 = vmatpush1.msra.mxu0 0.0
        %6738 = vmatprep.subr.mxu0 0.0
        %6739 = vmatpush1.msra.mxu0 0.0
        %6740 = vmatprep.subr.mxu0 0.0
        %6741 = vmatpush1.msra.mxu0 0.0
        %6742 = vmatprep.subr.mxu0 0.0
        %6743 = vmatpush1.msra.mxu0 0.0
        %6744 = vmatprep.subr.mxu0 0.0
        %6745 = vmatpush1.msra.mxu0 0.0
        %6746 = vmatprep.subr.mxu0 0.0
        %6747 = vmatpush1.msra.mxu0 0.0
        %6748 = vmatprep.subr.mxu0 0.0
        %6749 = vmatpush1.msra.mxu0 0.0
        %6750 = vmatprep.subr.mxu0 0.0
        %6751 = vmatpush1.msra.mxu0 0.0
        %6752 = vmatprep.subr.mxu0 0.0
        %6753 = vmatpush1.msra.mxu0 0.0
        %6754 = vmatprep.subr.mxu0 0.0
        %6755 = vmatpush1.msra.mxu0 0.0
        %6756 = vmatprep.subr.mxu0 0.0
        %6757 = vmatpush1.msra.mxu0 0.0
        %6758 = vmatprep.subr.mxu0 0.0
        %6759 = vmatpush1.msra.mxu0 0.0
        %6760 = vmatprep.subr.mxu0 0.0
        %6761 = vmatpush1.msra.mxu0 0.0
        %6762 = vmatprep.subr.mxu0 0.0
        %6763 = vmatpush1.msra.mxu0 0.0
        %6764 = vmatprep.subr.mxu0 0.0
        %6765 = vmatpush1.msra.mxu0 0.0
        %6766 = vmatprep.subr.mxu0 0.0
        %6767 = vmatpush1.msra.mxu0 0.0
        %6768 = vmatprep.subr.mxu0 0.0
        %6769 = vmatpush1.msra.mxu0 0.0
        %6770 = vmatprep.subr.mxu0 0.0
        %6771 = vmatpush1.msra.mxu0 0.0
        %6772 = vmatprep.subr.mxu0 0.0
        %6773 = vmatpush1.msra.mxu0 0.0
        %6774 = vmatprep.subr.mxu0 0.0
        %6775 = vmatpush1.msra.mxu0 0.0
        %6776 = vmatprep.subr.mxu0 0.0
        %6777 = vmatpush1.msra.mxu0 0.0
        %6778 = vmatprep.subr.mxu0 0.0
        %6779 = vmatpush1.msra.mxu0 0.0
        %6780 = vmatprep.subr.mxu0 0.0
        %6781 = vmatpush1.msra.mxu0 0.0
        %6782 = vmatprep.subr.mxu0 0.0
        %6783 = vmatpush1.msra.mxu0 0.0
        %6784 = vmatprep.subr.mxu0 0.0
        %6785 = vmatpush1.msra.mxu0 0.0
        %6786 = vmatprep.subr.mxu0 0.0
        %6787 = vmatpush1.msra.mxu0 0.0
        %6788 = vmatprep.subr.mxu0 0.0
        %6789 = vmatpush1.msra.mxu0 0.0
        %6790 = vmatprep.mubr.f32.mxu0 0.0
        %6791 = vmatmul.mubr.f32.gmra.mrb[0].mxu0 %v6204
        %v6792 = vpop.f32.mrb[0].mxu0
        %v6793 = vadd.f32 0.0, %v6792
        %v6794 = vpop.f32.mrb[0].mxu0
        %6795 = vdwg.mxu0
        %v6796 = vadd.f32 %v6192, %v6275
        %v6797 = vadd.f32 %v6193, %v6349
        %v6798 = vadd.f32 %v6194, %v6423
        %v6799 = vadd.f32 %v6195, %v6497
        %v6800 = vadd.f32 %v6196, %v6571
        %v6801 = vadd.f32 %v6197, %v6645
        %v6802 = vadd.f32 %v6198, %v6719
        %v6803 = vadd.f32 %v6199, %v6793
        %6804 = vrot.lane.b32.xlu0 %v177, 84
        %v6805 = vpop.permute.xlu0 %6804
        %6806 = vrot.lane.b32.xlu0 %v5596, 127
        %v6807 = vpop.permute.xlu0 %6806
        %v6808 = vsel %vm190, %v6805, 0
        %v6810 = vsel %vm193, %v6807, 0
        %6812 = vmatprep.subr.mxu0 0.0
        %6813 = vmatpush1.msra.mxu0 %v6810
        %6814 = vmatprep.subr.mxu0 0.0
        %6815 = vmatpush1.msra.mxu0 0.0
        %6816 = vmatprep.subr.mxu0 0.0
        %6817 = vmatpush1.msra.mxu0 0.0
        %6818 = vmatprep.subr.mxu0 0.0
        %6819 = vmatpush1.msra.mxu0 0.0
        %6820 = vmatprep.subr.mxu0 0.0
        %6821 = vmatpush1.msra.mxu0 0.0
        %6822 = vmatprep.subr.mxu0 0.0
        %6823 = vmatpush1.msra.mxu0 0.0
        %6824 = vmatprep.subr.mxu0 0.0
        %6825 = vmatpush1.msra.mxu0 0.0
        %6826 = vmatprep.subr.mxu0 0.0
        %6827 = vmatpush1.msra.mxu0 0.0
        %6828 = vmatprep.subr.mxu0 0.0
        %6829 = vmatpush1.msra.mxu0 0.0
        %6830 = vmatprep.subr.mxu0 0.0
        %6831 = vmatpush1.msra.mxu0 0.0
        %6832 = vmatprep.subr.mxu0 0.0
        %6833 = vmatpush1.msra.mxu0 0.0
        %6834 = vmatprep.subr.mxu0 0.0
        %6835 = vmatpush1.msra.mxu0 0.0
        %6836 = vmatprep.subr.mxu0 0.0
        %6837 = vmatpush1.msra.mxu0 0.0
        %6838 = vmatprep.subr.mxu0 0.0
        %6839 = vmatpush1.msra.mxu0 0.0
        %6840 = vmatprep.subr.mxu0 0.0
        %6841 = vmatpush1.msra.mxu0 0.0
        %6842 = vmatprep.subr.mxu0 0.0
        %6843 = vmatpush1.msra.mxu0 0.0
        %6844 = vmatprep.subr.mxu0 0.0
        %6845 = vmatpush1.msra.mxu0 0.0
        %6846 = vmatprep.subr.mxu0 0.0
        %6847 = vmatpush1.msra.mxu0 0.0
        %6848 = vmatprep.subr.mxu0 0.0
        %6849 = vmatpush1.msra.mxu0 0.0
        %6850 = vmatprep.subr.mxu0 0.0
        %6851 = vmatpush1.msra.mxu0 0.0
        %6852 = vmatprep.subr.mxu0 0.0
        %6853 = vmatpush1.msra.mxu0 0.0
        %6854 = vmatprep.subr.mxu0 0.0
        %6855 = vmatpush1.msra.mxu0 0.0
        %6856 = vmatprep.subr.mxu0 0.0
        %6857 = vmatpush1.msra.mxu0 0.0
        %6858 = vmatprep.subr.mxu0 0.0
        %6859 = vmatpush1.msra.mxu0 0.0
        %6860 = vmatprep.subr.mxu0 0.0
        %6861 = vmatpush1.msra.mxu0 0.0
        %6862 = vmatprep.subr.mxu0 0.0
        %6863 = vmatpush1.msra.mxu0 0.0
        %6864 = vmatprep.subr.mxu0 0.0
        %6865 = vmatpush1.msra.mxu0 0.0
        %6866 = vmatprep.subr.mxu0 0.0
        %6867 = vmatpush1.msra.mxu0 0.0
        %6868 = vmatprep.subr.mxu0 0.0
        %6869 = vmatpush1.msra.mxu0 0.0
        %6870 = vmatprep.subr.mxu0 0.0
        %6871 = vmatpush1.msra.mxu0 0.0
        %6872 = vmatprep.subr.mxu0 0.0
        %6873 = vmatpush1.msra.mxu0 0.0
        %6874 = vmatprep.subr.mxu0 0.0
        %6875 = vmatpush1.msra.mxu0 0.0
        %6876 = vmatprep.mubr.f32.mxu0 0.0
        %6877 = vmatmul.mubr.f32.gmra.mrb[0].mxu0 %v6808
        %v6878 = vpop.f32.mrb[0].mxu0
        %v6879 = vadd.f32 0.0, %v6878
        %v6880 = vpop.f32.mrb[0].mxu0
        %6881 = vdwg.mxu0
        %6882 = vrot.lane.b32.xlu0 %v5597, 127
        %v6883 = vpop.permute.xlu0 %6882
        %v6884 = vsel %vm193, %v6883, 0
        %6886 = vmatprep.subr.mxu0 0.0
        %6887 = vmatpush1.msra.mxu0 %v6884
        %6888 = vmatprep.subr.mxu0 0.0
        %6889 = vmatpush1.msra.mxu0 0.0
        %6890 = vmatprep.subr.mxu0 0.0
        %6891 = vmatpush1.msra.mxu0 0.0
        %6892 = vmatprep.subr.mxu0 0.0
        %6893 = vmatpush1.msra.mxu0 0.0
        %6894 = vmatprep.subr.mxu0 0.0
        %6895 = vmatpush1.msra.mxu0 0.0
        %6896 = vmatprep.subr.mxu0 0.0
        %6897 = vmatpush1.msra.mxu0 0.0
        %6898 = vmatprep.subr.mxu0 0.0
        %6899 = vmatpush1.msra.mxu0 0.0
        %6900 = vmatprep.subr.mxu0 0.0
        %6901 = vmatpush1.msra.mxu0 0.0
        %6902 = vmatprep.subr.mxu0 0.0
        %6903 = vmatpush1.msra.mxu0 0.0
        %6904 = vmatprep.subr.mxu0 0.0
        %6905 = vmatpush1.msra.mxu0 0.0
        %6906 = vmatprep.subr.mxu0 0.0
        %6907 = vmatpush1.msra.mxu0 0.0
        %6908 = vmatprep.subr.mxu0 0.0
        %6909 = vmatpush1.msra.mxu0 0.0
        %6910 = vmatprep.subr.mxu0 0.0
        %6911 = vmatpush1.msra.mxu0 0.0
        %6912 = vmatprep.subr.mxu0 0.0
        %6913 = vmatpush1.msra.mxu0 0.0
        %6914 = vmatprep.subr.mxu0 0.0
        %6915 = vmatpush1.msra.mxu0 0.0
        %6916 = vmatprep.subr.mxu0 0.0
        %6917 = vmatpush1.msra.mxu0 0.0
        %6918 = vmatprep.subr.mxu0 0.0
        %6919 = vmatpush1.msra.mxu0 0.0
        %6920 = vmatprep.subr.mxu0 0.0
        %6921 = vmatpush1.msra.mxu0 0.0
        %6922 = vmatprep.subr.mxu0 0.0
        %6923 = vmatpush1.msra.mxu0 0.0
        %6924 = vmatprep.subr.mxu0 0.0
        %6925 = vmatpush1.msra.mxu0 0.0
        %6926 = vmatprep.subr.mxu0 0.0
        %6927 = vmatpush1.msra.mxu0 0.0
        %6928 = vmatprep.subr.mxu0 0.0
        %6929 = vmatpush1.msra.mxu0 0.0
        %6930 = vmatprep.subr.mxu0 0.0
        %6931 = vmatpush1.msra.mxu0 0.0
        %6932 = vmatprep.subr.mxu0 0.0
        %6933 = vmatpush1.msra.mxu0 0.0
        %6934 = vmatprep.subr.mxu0 0.0
        %6935 = vmatpush1.msra.mxu0 0.0
        %6936 = vmatprep.subr.mxu0 0.0
        %6937 = vmatpush1.msra.mxu0 0.0
        %6938 = vmatprep.subr.mxu0 0.0
        %6939 = vmatpush1.msra.mxu0 0.0
        %6940 = vmatprep.subr.mxu0 0.0
        %6941 = vmatpush1.msra.mxu0 0.0
        %6942 = vmatprep.subr.mxu0 0.0
        %6943 = vmatpush1.msra.mxu0 0.0
        %6944 = vmatprep.subr.mxu0 0.0
        %6945 = vmatpush1.msra.mxu0 0.0
        %6946 = vmatprep.subr.mxu0 0.0
        %6947 = vmatpush1.msra.mxu0 0.0
        %6948 = vmatprep.subr.mxu0 0.0
        %6949 = vmatpush1.msra.mxu0 0.0
        %6950 = vmatprep.mubr.f32.mxu0 0.0
        %6951 = vmatmul.mubr.f32.gmra.mrb[0].mxu0 %v6808
        %v6952 = vpop.f32.mrb[0].mxu0
        %v6953 = vadd.f32 0.0, %v6952
        %v6954 = vpop.f32.mrb[0].mxu0
        %6955 = vdwg.mxu0
        %6956 = vrot.lane.b32.xlu0 %v5598, 127
        %v6957 = vpop.permute.xlu0 %6956
        %v6958 = vsel %vm193, %v6957, 0
        %6960 = vmatprep.subr.mxu0 0.0
        %6961 = vmatpush1.msra.mxu0 %v6958
        %6962 = vmatprep.subr.mxu0 0.0
        %6963 = vmatpush1.msra.mxu0 0.0
        %6964 = vmatprep.subr.mxu0 0.0
        %6965 = vmatpush1.msra.mxu0 0.0
        %6966 = vmatprep.subr.mxu0 0.0
        %6967 = vmatpush1.msra.mxu0 0.0
        %6968 = vmatprep.subr.mxu0 0.0
        %6969 = vmatpush1.msra.mxu0 0.0
        %6970 = vmatprep.subr.mxu0 0.0
        %6971 = vmatpush1.msra.mxu0 0.0
        %6972 = vmatprep.subr.mxu0 0.0
        %6973 = vmatpush1.msra.mxu0 0.0
        %6974 = vmatprep.subr.mxu0 0.0
        %6975 = vmatpush1.msra.mxu0 0.0
        %6976 = vmatprep.subr.mxu0 0.0
        %6977 = vmatpush1.msra.mxu0 0.0
        %6978 = vmatprep.subr.mxu0 0.0
        %6979 = vmatpush1.msra.mxu0 0.0
        %6980 = vmatprep.subr.mxu0 0.0
        %6981 = vmatpush1.msra.mxu0 0.0
        %6982 = vmatprep.subr.mxu0 0.0
        %6983 = vmatpush1.msra.mxu0 0.0
        %6984 = vmatprep.subr.mxu0 0.0
        %6985 = vmatpush1.msra.mxu0 0.0
        %6986 = vmatprep.subr.mxu0 0.0
        %6987 = vmatpush1.msra.mxu0 0.0
        %6988 = vmatprep.subr.mxu0 0.0
        %6989 = vmatpush1.msra.mxu0 0.0
        %6990 = vmatprep.subr.mxu0 0.0
        %6991 = vmatpush1.msra.mxu0 0.0
        %6992 = vmatprep.subr.mxu0 0.0
        %6993 = vmatpush1.msra.mxu0 0.0
        %6994 = vmatprep.subr.mxu0 0.0
        %6995 = vmatpush1.msra.mxu0 0.0
        %6996 = vmatprep.subr.mxu0 0.0
        %6997 = vmatpush1.msra.mxu0 0.0
        %6998 = vmatprep.subr.mxu0 0.0
        %6999 = vmatpush1.msra.mxu0 0.0
        %7000 = vmatprep.subr.mxu0 0.0
        %7001 = vmatpush1.msra.mxu0 0.0
        %7002 = vmatprep.subr.mxu0 0.0
        %7003 = vmatpush1.msra.mxu0 0.0
        %7004 = vmatprep.subr.mxu0 0.0
        %7005 = vmatpush1.msra.mxu0 0.0
        %7006 = vmatprep.subr.mxu0 0.0
        %7007 = vmatpush1.msra.mxu0 0.0
        %7008 = vmatprep.subr.mxu0 0.0
        %7009 = vmatpush1.msra.mxu0 0.0
        %7010 = vmatprep.subr.mxu0 0.0
        %7011 = vmatpush1.msra.mxu0 0.0
        %7012 = vmatprep.subr.mxu0 0.0
        %7013 = vmatpush1.msra.mxu0 0.0
        %7014 = vmatprep.subr.mxu0 0.0
        %7015 = vmatpush1.msra.mxu0 0.0
        %7016 = vmatprep.subr.mxu0 0.0
        %7017 = vmatpush1.msra.mxu0 0.0
        %7018 = vmatprep.subr.mxu0 0.0
        %7019 = vmatpush1.msra.mxu0 0.0
        %7020 = vmatprep.subr.mxu0 0.0
        %7021 = vmatpush1.msra.mxu0 0.0
        %7022 = vmatprep.subr.mxu0 0.0
        %7023 = vmatpush1.msra.mxu0 0.0
        %7024 = vmatprep.mubr.f32.mxu0 0.0
        %7025 = vmatmul.mubr.f32.gmra.mrb[0].mxu0 %v6808
        %v7026 = vpop.f32.mrb[0].mxu0
        %v7027 = vadd.f32 0.0, %v7026
        %v7028 = vpop.f32.mrb[0].mxu0
        %7029 = vdwg.mxu0
        %7030 = vrot.lane.b32.xlu0 %v5599, 127
        %v7031 = vpop.permute.xlu0 %7030
        %v7032 = vsel %vm193, %v7031, 0
        %7034 = vmatprep.subr.mxu0 0.0
        %7035 = vmatpush1.msra.mxu0 %v7032
        %7036 = vmatprep.subr.mxu0 0.0
        %7037 = vmatpush1.msra.mxu0 0.0
        %7038 = vmatprep.subr.mxu0 0.0
        %7039 = vmatpush1.msra.mxu0 0.0
        %7040 = vmatprep.subr.mxu0 0.0
        %7041 = vmatpush1.msra.mxu0 0.0
        %7042 = vmatprep.subr.mxu0 0.0
        %7043 = vmatpush1.msra.mxu0 0.0
        %7044 = vmatprep.subr.mxu0 0.0
        %7045 = vmatpush1.msra.mxu0 0.0
        %7046 = vmatprep.subr.mxu0 0.0
        %7047 = vmatpush1.msra.mxu0 0.0
        %7048 = vmatprep.subr.mxu0 0.0
        %7049 = vmatpush1.msra.mxu0 0.0
        %7050 = vmatprep.subr.mxu0 0.0
        %7051 = vmatpush1.msra.mxu0 0.0
        %7052 = vmatprep.subr.mxu0 0.0
        %7053 = vmatpush1.msra.mxu0 0.0
        %7054 = vmatprep.subr.mxu0 0.0
        %7055 = vmatpush1.msra.mxu0 0.0
        %7056 = vmatprep.subr.mxu0 0.0
        %7057 = vmatpush1.msra.mxu0 0.0
        %7058 = vmatprep.subr.mxu0 0.0
        %7059 = vmatpush1.msra.mxu0 0.0
        %7060 = vmatprep.subr.mxu0 0.0
        %7061 = vmatpush1.msra.mxu0 0.0
        %7062 = vmatprep.subr.mxu0 0.0
        %7063 = vmatpush1.msra.mxu0 0.0
        %7064 = vmatprep.subr.mxu0 0.0
        %7065 = vmatpush1.msra.mxu0 0.0
        %7066 = vmatprep.subr.mxu0 0.0
        %7067 = vmatpush1.msra.mxu0 0.0
        %7068 = vmatprep.subr.mxu0 0.0
        %7069 = vmatpush1.msra.mxu0 0.0
        %7070 = vmatprep.subr.mxu0 0.0
        %7071 = vmatpush1.msra.mxu0 0.0
        %7072 = vmatprep.subr.mxu0 0.0
        %7073 = vmatpush1.msra.mxu0 0.0
        %7074 = vmatprep.subr.mxu0 0.0
        %7075 = vmatpush1.msra.mxu0 0.0
        %7076 = vmatprep.subr.mxu0 0.0
        %7077 = vmatpush1.msra.mxu0 0.0
        %7078 = vmatprep.subr.mxu0 0.0
        %7079 = vmatpush1.msra.mxu0 0.0
        %7080 = vmatprep.subr.mxu0 0.0
        %7081 = vmatpush1.msra.mxu0 0.0
        %7082 = vmatprep.subr.mxu0 0.0
        %7083 = vmatpush1.msra.mxu0 0.0
        %7084 = vmatprep.subr.mxu0 0.0
        %7085 = vmatpush1.msra.mxu0 0.0
        %7086 = vmatprep.subr.mxu0 0.0
        %7087 = vmatpush1.msra.mxu0 0.0
        %7088 = vmatprep.subr.mxu0 0.0
        %7089 = vmatpush1.msra.mxu0 0.0
        %7090 = vmatprep.subr.mxu0 0.0
        %7091 = vmatpush1.msra.mxu0 0.0
        %7092 = vmatprep.subr.mxu0 0.0
        %7093 = vmatpush1.msra.mxu0 0.0
        %7094 = vmatprep.subr.mxu0 0.0
        %7095 = vmatpush1.msra.mxu0 0.0
        %7096 = vmatprep.subr.mxu0 0.0
        %7097 = vmatpush1.msra.mxu0 0.0
        %7098 = vmatprep.mubr.f32.mxu0 0.0
        %7099 = vmatmul.mubr.f32.gmra.mrb[0].mxu0 %v6808
        %v7100 = vpop.f32.mrb[0].mxu0
        %v7101 = vadd.f32 0.0, %v7100
        %v7102 = vpop.f32.mrb[0].mxu0
        %7103 = vdwg.mxu0
        %7104 = vrot.lane.b32.xlu0 %v5600, 127
        %v7105 = vpop.permute.xlu0 %7104
        %v7106 = vsel %vm193, %v7105, 0
        %7108 = vmatprep.subr.mxu0 0.0
        %7109 = vmatpush1.msra.mxu0 %v7106
        %7110 = vmatprep.subr.mxu0 0.0
        %7111 = vmatpush1.msra.mxu0 0.0
        %7112 = vmatprep.subr.mxu0 0.0
        %7113 = vmatpush1.msra.mxu0 0.0
        %7114 = vmatprep.subr.mxu0 0.0
        %7115 = vmatpush1.msra.mxu0 0.0
        %7116 = vmatprep.subr.mxu0 0.0
        %7117 = vmatpush1.msra.mxu0 0.0
        %7118 = vmatprep.subr.mxu0 0.0
        %7119 = vmatpush1.msra.mxu0 0.0
        %7120 = vmatprep.subr.mxu0 0.0
        %7121 = vmatpush1.msra.mxu0 0.0
        %7122 = vmatprep.subr.mxu0 0.0
        %7123 = vmatpush1.msra.mxu0 0.0
        %7124 = vmatprep.subr.mxu0 0.0
        %7125 = vmatpush1.msra.mxu0 0.0
        %7126 = vmatprep.subr.mxu0 0.0
        %7127 = vmatpush1.msra.mxu0 0.0
        %7128 = vmatprep.subr.mxu0 0.0
        %7129 = vmatpush1.msra.mxu0 0.0
        %7130 = vmatprep.subr.mxu0 0.0
        %7131 = vmatpush1.msra.mxu0 0.0
        %7132 = vmatprep.subr.mxu0 0.0
        %7133 = vmatpush1.msra.mxu0 0.0
        %7134 = vmatprep.subr.mxu0 0.0
        %7135 = vmatpush1.msra.mxu0 0.0
        %7136 = vmatprep.subr.mxu0 0.0
        %7137 = vmatpush1.msra.mxu0 0.0
        %7138 = vmatprep.subr.mxu0 0.0
        %7139 = vmatpush1.msra.mxu0 0.0
        %7140 = vmatprep.subr.mxu0 0.0
        %7141 = vmatpush1.msra.mxu0 0.0
        %7142 = vmatprep.subr.mxu0 0.0
        %7143 = vmatpush1.msra.mxu0 0.0
        %7144 = vmatprep.subr.mxu0 0.0
        %7145 = vmatpush1.msra.mxu0 0.0
        %7146 = vmatprep.subr.mxu0 0.0
        %7147 = vmatpush1.msra.mxu0 0.0
        %7148 = vmatprep.subr.mxu0 0.0
        %7149 = vmatpush1.msra.mxu0 0.0
        %7150 = vmatprep.subr.mxu0 0.0
        %7151 = vmatpush1.msra.mxu0 0.0
        %7152 = vmatprep.subr.mxu0 0.0
        %7153 = vmatpush1.msra.mxu0 0.0
        %7154 = vmatprep.subr.mxu0 0.0
        %7155 = vmatpush1.msra.mxu0 0.0
        %7156 = vmatprep.subr.mxu0 0.0
        %7157 = vmatpush1.msra.mxu0 0.0
        %7158 = vmatprep.subr.mxu0 0.0
        %7159 = vmatpush1.msra.mxu0 0.0
        %7160 = vmatprep.subr.mxu0 0.0
        %7161 = vmatpush1.msra.mxu0 0.0
        %7162 = vmatprep.subr.mxu0 0.0
        %7163 = vmatpush1.msra.mxu0 0.0
        %7164 = vmatprep.subr.mxu0 0.0
        %7165 = vmatpush1.msra.mxu0 0.0
        %7166 = vmatprep.subr.mxu0 0.0
        %7167 = vmatpush1.msra.mxu0 0.0
        %7168 = vmatprep.subr.mxu0 0.0
        %7169 = vmatpush1.msra.mxu0 0.0
        %7170 = vmatprep.subr.mxu0 0.0
        %7171 = vmatpush1.msra.mxu0 0.0
        %7172 = vmatprep.mubr.f32.mxu0 0.0
        %7173 = vmatmul.mubr.f32.gmra.mrb[0].mxu0 %v6808
        %v7174 = vpop.f32.mrb[0].mxu0
        %v7175 = vadd.f32 0.0, %v7174
        %v7176 = vpop.f32.mrb[0].mxu0
        %7177 = vdwg.mxu0
        %7178 = vrot.lane.b32.xlu0 %v5601, 127
        %v7179 = vpop.permute.xlu0 %7178
        %v7180 = vsel %vm193, %v7179, 0
        %7182 = vmatprep.subr.mxu0 0.0
        %7183 = vmatpush1.msra.mxu0 %v7180
        %7184 = vmatprep.subr.mxu0 0.0
        %7185 = vmatpush1.msra.mxu0 0.0
        %7186 = vmatprep.subr.mxu0 0.0
        %7187 = vmatpush1.msra.mxu0 0.0
        %7188 = vmatprep.subr.mxu0 0.0
        %7189 = vmatpush1.msra.mxu0 0.0
        %7190 = vmatprep.subr.mxu0 0.0
        %7191 = vmatpush1.msra.mxu0 0.0
        %7192 = vmatprep.subr.mxu0 0.0
        %7193 = vmatpush1.msra.mxu0 0.0
        %7194 = vmatprep.subr.mxu0 0.0
        %7195 = vmatpush1.msra.mxu0 0.0
        %7196 = vmatprep.subr.mxu0 0.0
        %7197 = vmatpush1.msra.mxu0 0.0
        %7198 = vmatprep.subr.mxu0 0.0
        %7199 = vmatpush1.msra.mxu0 0.0
        %7200 = vmatprep.subr.mxu0 0.0
        %7201 = vmatpush1.msra.mxu0 0.0
        %7202 = vmatprep.subr.mxu0 0.0
        %7203 = vmatpush1.msra.mxu0 0.0
        %7204 = vmatprep.subr.mxu0 0.0
        %7205 = vmatpush1.msra.mxu0 0.0
        %7206 = vmatprep.subr.mxu0 0.0
        %7207 = vmatpush1.msra.mxu0 0.0
        %7208 = vmatprep.subr.mxu0 0.0
        %7209 = vmatpush1.msra.mxu0 0.0
        %7210 = vmatprep.subr.mxu0 0.0
        %7211 = vmatpush1.msra.mxu0 0.0
        %7212 = vmatprep.subr.mxu0 0.0
        %7213 = vmatpush1.msra.mxu0 0.0
        %7214 = vmatprep.subr.mxu0 0.0
        %7215 = vmatpush1.msra.mxu0 0.0
        %7216 = vmatprep.subr.mxu0 0.0
        %7217 = vmatpush1.msra.mxu0 0.0
        %7218 = vmatprep.subr.mxu0 0.0
        %7219 = vmatpush1.msra.mxu0 0.0
        %7220 = vmatprep.subr.mxu0 0.0
        %7221 = vmatpush1.msra.mxu0 0.0
        %7222 = vmatprep.subr.mxu0 0.0
        %7223 = vmatpush1.msra.mxu0 0.0
        %7224 = vmatprep.subr.mxu0 0.0
        %7225 = vmatpush1.msra.mxu0 0.0
        %7226 = vmatprep.subr.mxu0 0.0
        %7227 = vmatpush1.msra.mxu0 0.0
        %7228 = vmatprep.subr.mxu0 0.0
        %7229 = vmatpush1.msra.mxu0 0.0
        %7230 = vmatprep.subr.mxu0 0.0
        %7231 = vmatpush1.msra.mxu0 0.0
        %7232 = vmatprep.subr.mxu0 0.0
        %7233 = vmatpush1.msra.mxu0 0.0
        %7234 = vmatprep.subr.mxu0 0.0
        %7235 = vmatpush1.msra.mxu0 0.0
        %7236 = vmatprep.subr.mxu0 0.0
        %7237 = vmatpush1.msra.mxu0 0.0
        %7238 = vmatprep.subr.mxu0 0.0
        %7239 = vmatpush1.msra.mxu0 0.0
        %7240 = vmatprep.subr.mxu0 0.0
        %7241 = vmatpush1.msra.mxu0 0.0
        %7242 = vmatprep.subr.mxu0 0.0
        %7243 = vmatpush1.msra.mxu0 0.0
        %7244 = vmatprep.subr.mxu0 0.0
        %7245 = vmatpush1.msra.mxu0 0.0
        %7246 = vmatprep.mubr.f32.mxu0 0.0
        %7247 = vmatmul.mubr.f32.gmra.mrb[0].mxu0 %v6808
        %v7248 = vpop.f32.mrb[0].mxu0
        %v7249 = vadd.f32 0.0, %v7248
        %v7250 = vpop.f32.mrb[0].mxu0
        %7251 = vdwg.mxu0
        %7252 = vrot.lane.b32.xlu0 %v5602, 127
        %v7253 = vpop.permute.xlu0 %7252
        %v7254 = vsel %vm193, %v7253, 0
        %7256 = vmatprep.subr.mxu0 0.0
        %7257 = vmatpush1.msra.mxu0 %v7254
        %7258 = vmatprep.subr.mxu0 0.0
        %7259 = vmatpush1.msra.mxu0 0.0
        %7260 = vmatprep.subr.mxu0 0.0
        %7261 = vmatpush1.msra.mxu0 0.0
        %7262 = vmatprep.subr.mxu0 0.0
        %7263 = vmatpush1.msra.mxu0 0.0
        %7264 = vmatprep.subr.mxu0 0.0
        %7265 = vmatpush1.msra.mxu0 0.0
        %7266 = vmatprep.subr.mxu0 0.0
        %7267 = vmatpush1.msra.mxu0 0.0
        %7268 = vmatprep.subr.mxu0 0.0
        %7269 = vmatpush1.msra.mxu0 0.0
        %7270 = vmatprep.subr.mxu0 0.0
        %7271 = vmatpush1.msra.mxu0 0.0
        %7272 = vmatprep.subr.mxu0 0.0
        %7273 = vmatpush1.msra.mxu0 0.0
        %7274 = vmatprep.subr.mxu0 0.0
        %7275 = vmatpush1.msra.mxu0 0.0
        %7276 = vmatprep.subr.mxu0 0.0
        %7277 = vmatpush1.msra.mxu0 0.0
        %7278 = vmatprep.subr.mxu0 0.0
        %7279 = vmatpush1.msra.mxu0 0.0
        %7280 = vmatprep.subr.mxu0 0.0
        %7281 = vmatpush1.msra.mxu0 0.0
        %7282 = vmatprep.subr.mxu0 0.0
        %7283 = vmatpush1.msra.mxu0 0.0
        %7284 = vmatprep.subr.mxu0 0.0
        %7285 = vmatpush1.msra.mxu0 0.0
        %7286 = vmatprep.subr.mxu0 0.0
        %7287 = vmatpush1.msra.mxu0 0.0
        %7288 = vmatprep.subr.mxu0 0.0
        %7289 = vmatpush1.msra.mxu0 0.0
        %7290 = vmatprep.subr.mxu0 0.0
        %7291 = vmatpush1.msra.mxu0 0.0
        %7292 = vmatprep.subr.mxu0 0.0
        %7293 = vmatpush1.msra.mxu0 0.0
        %7294 = vmatprep.subr.mxu0 0.0
        %7295 = vmatpush1.msra.mxu0 0.0
        %7296 = vmatprep.subr.mxu0 0.0
        %7297 = vmatpush1.msra.mxu0 0.0
        %7298 = vmatprep.subr.mxu0 0.0
        %7299 = vmatpush1.msra.mxu0 0.0
        %7300 = vmatprep.subr.mxu0 0.0
        %7301 = vmatpush1.msra.mxu0 0.0
        %7302 = vmatprep.subr.mxu0 0.0
        %7303 = vmatpush1.msra.mxu0 0.0
        %7304 = vmatprep.subr.mxu0 0.0
        %7305 = vmatpush1.msra.mxu0 0.0
        %7306 = vmatprep.subr.mxu0 0.0
        %7307 = vmatpush1.msra.mxu0 0.0
        %7308 = vmatprep.subr.mxu0 0.0
        %7309 = vmatpush1.msra.mxu0 0.0
        %7310 = vmatprep.subr.mxu0 0.0
        %7311 = vmatpush1.msra.mxu0 0.0
        %7312 = vmatprep.subr.mxu0 0.0
        %7313 = vmatpush1.msra.mxu0 0.0
        %7314 = vmatprep.subr.mxu0 0.0
        %7315 = vmatpush1.msra.mxu0 0.0
        %7316 = vmatprep.subr.mxu0 0.0
        %7317 = vmatpush1.msra.mxu0 0.0
        %7318 = vmatprep.subr.mxu0 0.0
        %7319 = vmatpush1.msra.mxu0 0.0
        %7320 = vmatprep.mubr.f32.mxu0 0.0
        %7321 = vmatmul.mubr.f32.gmra.mrb[0].mxu0 %v6808
        %v7322 = vpop.f32.mrb[0].mxu0
        %v7323 = vadd.f32 0.0, %v7322
        %v7324 = vpop.f32.mrb[0].mxu0
        %7325 = vdwg.mxu0
        %7326 = vrot.lane.b32.xlu0 %v5603, 127
        %v7327 = vpop.permute.xlu0 %7326
        %v7328 = vsel %vm193, %v7327, 0
        %7330 = vmatprep.subr.mxu0 0.0
        %7331 = vmatpush1.msra.mxu0 %v7328
        %7332 = vmatprep.subr.mxu0 0.0
        %7333 = vmatpush1.msra.mxu0 0.0
        %7334 = vmatprep.subr.mxu0 0.0
        %7335 = vmatpush1.msra.mxu0 0.0
        %7336 = vmatprep.subr.mxu0 0.0
        %7337 = vmatpush1.msra.mxu0 0.0
        %7338 = vmatprep.subr.mxu0 0.0
        %7339 = vmatpush1.msra.mxu0 0.0
        %7340 = vmatprep.subr.mxu0 0.0
        %7341 = vmatpush1.msra.mxu0 0.0
        %7342 = vmatprep.subr.mxu0 0.0
        %7343 = vmatpush1.msra.mxu0 0.0
        %7344 = vmatprep.subr.mxu0 0.0
        %7345 = vmatpush1.msra.mxu0 0.0
        %7346 = vmatprep.subr.mxu0 0.0
        %7347 = vmatpush1.msra.mxu0 0.0
        %7348 = vmatprep.subr.mxu0 0.0
        %7349 = vmatpush1.msra.mxu0 0.0
        %7350 = vmatprep.subr.mxu0 0.0
        %7351 = vmatpush1.msra.mxu0 0.0
        %7352 = vmatprep.subr.mxu0 0.0
        %7353 = vmatpush1.msra.mxu0 0.0
        %7354 = vmatprep.subr.mxu0 0.0
        %7355 = vmatpush1.msra.mxu0 0.0
        %7356 = vmatprep.subr.mxu0 0.0
        %7357 = vmatpush1.msra.mxu0 0.0
        %7358 = vmatprep.subr.mxu0 0.0
        %7359 = vmatpush1.msra.mxu0 0.0
        %7360 = vmatprep.subr.mxu0 0.0
        %7361 = vmatpush1.msra.mxu0 0.0
        %7362 = vmatprep.subr.mxu0 0.0
        %7363 = vmatpush1.msra.mxu0 0.0
        %7364 = vmatprep.subr.mxu0 0.0
        %7365 = vmatpush1.msra.mxu0 0.0
        %7366 = vmatprep.subr.mxu0 0.0
        %7367 = vmatpush1.msra.mxu0 0.0
        %7368 = vmatprep.subr.mxu0 0.0
        %7369 = vmatpush1.msra.mxu0 0.0
        %7370 = vmatprep.subr.mxu0 0.0
        %7371 = vmatpush1.msra.mxu0 0.0
        %7372 = vmatprep.subr.mxu0 0.0
        %7373 = vmatpush1.msra.mxu0 0.0
        %7374 = vmatprep.subr.mxu0 0.0
        %7375 = vmatpush1.msra.mxu0 0.0
        %7376 = vmatprep.subr.mxu0 0.0
        %7377 = vmatpush1.msra.mxu0 0.0
        %7378 = vmatprep.subr.mxu0 0.0
        %7379 = vmatpush1.msra.mxu0 0.0
        %7380 = vmatprep.subr.mxu0 0.0
        %7381 = vmatpush1.msra.mxu0 0.0
        %7382 = vmatprep.subr.mxu0 0.0
        %7383 = vmatpush1.msra.mxu0 0.0
        %7384 = vmatprep.subr.mxu0 0.0
        %7385 = vmatpush1.msra.mxu0 0.0
        %7386 = vmatprep.subr.mxu0 0.0
        %7387 = vmatpush1.msra.mxu0 0.0
        %7388 = vmatprep.subr.mxu0 0.0
        %7389 = vmatpush1.msra.mxu0 0.0
        %7390 = vmatprep.subr.mxu0 0.0
        %7391 = vmatpush1.msra.mxu0 0.0
        %7392 = vmatprep.subr.mxu0 0.0
        %7393 = vmatpush1.msra.mxu0 0.0
        %7394 = vmatprep.mubr.f32.mxu0 0.0
        %7395 = vmatmul.mubr.f32.gmra.mrb[0].mxu0 %v6808
        %v7396 = vpop.f32.mrb[0].mxu0
        %v7397 = vadd.f32 0.0, %v7396
        %v7398 = vpop.f32.mrb[0].mxu0
        %7399 = vdwg.mxu0
        %v7400 = vadd.f32 %v6796, %v6879
        %v7401 = vadd.f32 %v6797, %v6953
        %v7402 = vadd.f32 %v6798, %v7027
        %v7403 = vadd.f32 %v6799, %v7101
        %v7404 = vadd.f32 %v6800, %v7175
        %v7405 = vadd.f32 %v6801, %v7249
        %v7406 = vadd.f32 %v6802, %v7323
        %v7407 = vadd.f32 %v6803, %v7397
        %s7408 = scalar_lea.vmem %s168, 76
        %v7409 = vld [vmem:[%s7408] sm:$0xf]
        %v7410 = vld [vmem:[%s7408 + $0x4] sm:$0xf]
        %v7411 = vld [vmem:[%s7408 + $0x8] sm:$0xf]
        %v7412 = vld [vmem:[%s7408 + $0xc] sm:$0xf]
        %v7413 = vld [vmem:[%s7408 + $0x10] sm:$0xf]
        %v7414 = vld [vmem:[%s7408 + $0x14] sm:$0xf]
        %v7415 = vld [vmem:[%s7408 + $0x18] sm:$0xf]
        %v7416 = vld [vmem:[%s7408 + $0x1c] sm:$0xf]
        %7417 = vrot.lane.b32.xlu0 %v177, 80
        %v7418 = vpop.permute.xlu0 %7417
        %v7419 = vsel %vm190, %v7418, 0
        %v7422 = vsel %vm193, %v7409, 0
        %7424 = vmatprep.subr.mxu0 0.0
        %7425 = vmatpush1.msra.mxu0 %v7422
        %7426 = vmatprep.subr.mxu0 0.0
        %7427 = vmatpush1.msra.mxu0 0.0
        %7428 = vmatprep.subr.mxu0 0.0
        %7429 = vmatpush1.msra.mxu0 0.0
        %7430 = vmatprep.subr.mxu0 0.0
        %7431 = vmatpush1.msra.mxu0 0.0
        %7432 = vmatprep.subr.mxu0 0.0
        %7433 = vmatpush1.msra.mxu0 0.0
        %7434 = vmatprep.subr.mxu0 0.0
        %7435 = vmatpush1.msra.mxu0 0.0
        %7436 = vmatprep.subr.mxu0 0.0
        %7437 = vmatpush1.msra.mxu0 0.0
        %7438 = vmatprep.subr.mxu0 0.0
        %7439 = vmatpush1.msra.mxu0 0.0
        %7440 = vmatprep.subr.mxu0 0.0
        %7441 = vmatpush1.msra.mxu0 0.0
        %7442 = vmatprep.subr.mxu0 0.0
        %7443 = vmatpush1.msra.mxu0 0.0
        %7444 = vmatprep.subr.mxu0 0.0
        %7445 = vmatpush1.msra.mxu0 0.0
        %7446 = vmatprep.subr.mxu0 0.0
        %7447 = vmatpush1.msra.mxu0 0.0
        %7448 = vmatprep.subr.mxu0 0.0
        %7449 = vmatpush1.msra.mxu0 0.0
        %7450 = vmatprep.subr.mxu0 0.0
        %7451 = vmatpush1.msra.mxu0 0.0
        %7452 = vmatprep.subr.mxu0 0.0
        %7453 = vmatpush1.msra.mxu0 0.0
        %7454 = vmatprep.subr.mxu0 0.0
        %7455 = vmatpush1.msra.mxu0 0.0
        %7456 = vmatprep.subr.mxu0 0.0
        %7457 = vmatpush1.msra.mxu0 0.0
        %7458 = vmatprep.subr.mxu0 0.0
        %7459 = vmatpush1.msra.mxu0 0.0
        %7460 = vmatprep.subr.mxu0 0.0
        %7461 = vmatpush1.msra.mxu0 0.0
        %7462 = vmatprep.subr.mxu0 0.0
        %7463 = vmatpush1.msra.mxu0 0.0
        %7464 = vmatprep.subr.mxu0 0.0
        %7465 = vmatpush1.msra.mxu0 0.0
        %7466 = vmatprep.subr.mxu0 0.0
        %7467 = vmatpush1.msra.mxu0 0.0
        %7468 = vmatprep.subr.mxu0 0.0
        %7469 = vmatpush1.msra.mxu0 0.0
        %7470 = vmatprep.subr.mxu0 0.0
        %7471 = vmatpush1.msra.mxu0 0.0
        %7472 = vmatprep.subr.mxu0 0.0
        %7473 = vmatpush1.msra.mxu0 0.0
        %7474 = vmatprep.subr.mxu0 0.0
        %7475 = vmatpush1.msra.mxu0 0.0
        %7476 = vmatprep.subr.mxu0 0.0
        %7477 = vmatpush1.msra.mxu0 0.0
        %7478 = vmatprep.subr.mxu0 0.0
        %7479 = vmatpush1.msra.mxu0 0.0
        %7480 = vmatprep.subr.mxu0 0.0
        %7481 = vmatpush1.msra.mxu0 0.0
        %7482 = vmatprep.subr.mxu0 0.0
        %7483 = vmatpush1.msra.mxu0 0.0
        %7484 = vmatprep.subr.mxu0 0.0
        %7485 = vmatpush1.msra.mxu0 0.0
        %7486 = vmatprep.subr.mxu0 0.0
        %7487 = vmatpush1.msra.mxu0 0.0
        %7488 = vmatprep.mubr.f32.mxu0 0.0
        %7489 = vmatmul.mubr.f32.gmra.mrb[0].mxu0 %v7419
        %v7490 = vpop.f32.mrb[0].mxu0
        %v7491 = vadd.f32 0.0, %v7490
        %v7492 = vpop.f32.mrb[0].mxu0
        %7493 = vdwg.mxu0
        %v7495 = vsel %vm193, %v7410, 0
        %7497 = vmatprep.subr.mxu0 0.0
        %7498 = vmatpush1.msra.mxu0 %v7495
        %7499 = vmatprep.subr.mxu0 0.0
        %7500 = vmatpush1.msra.mxu0 0.0
        %7501 = vmatprep.subr.mxu0 0.0
        %7502 = vmatpush1.msra.mxu0 0.0
        %7503 = vmatprep.subr.mxu0 0.0
        %7504 = vmatpush1.msra.mxu0 0.0
        %7505 = vmatprep.subr.mxu0 0.0
        %7506 = vmatpush1.msra.mxu0 0.0
        %7507 = vmatprep.subr.mxu0 0.0
        %7508 = vmatpush1.msra.mxu0 0.0
        %7509 = vmatprep.subr.mxu0 0.0
        %7510 = vmatpush1.msra.mxu0 0.0
        %7511 = vmatprep.subr.mxu0 0.0
        %7512 = vmatpush1.msra.mxu0 0.0
        %7513 = vmatprep.subr.mxu0 0.0
        %7514 = vmatpush1.msra.mxu0 0.0
        %7515 = vmatprep.subr.mxu0 0.0
        %7516 = vmatpush1.msra.mxu0 0.0
        %7517 = vmatprep.subr.mxu0 0.0
        %7518 = vmatpush1.msra.mxu0 0.0
        %7519 = vmatprep.subr.mxu0 0.0
        %7520 = vmatpush1.msra.mxu0 0.0
        %7521 = vmatprep.subr.mxu0 0.0
        %7522 = vmatpush1.msra.mxu0 0.0
        %7523 = vmatprep.subr.mxu0 0.0
        %7524 = vmatpush1.msra.mxu0 0.0
        %7525 = vmatprep.subr.mxu0 0.0
        %7526 = vmatpush1.msra.mxu0 0.0
        %7527 = vmatprep.subr.mxu0 0.0
        %7528 = vmatpush1.msra.mxu0 0.0
        %7529 = vmatprep.subr.mxu0 0.0
        %7530 = vmatpush1.msra.mxu0 0.0
        %7531 = vmatprep.subr.mxu0 0.0
        %7532 = vmatpush1.msra.mxu0 0.0
        %7533 = vmatprep.subr.mxu0 0.0
        %7534 = vmatpush1.msra.mxu0 0.0
        %7535 = vmatprep.subr.mxu0 0.0
        %7536 = vmatpush1.msra.mxu0 0.0
        %7537 = vmatprep.subr.mxu0 0.0
        %7538 = vmatpush1.msra.mxu0 0.0
        %7539 = vmatprep.subr.mxu0 0.0
        %7540 = vmatpush1.msra.mxu0 0.0
        %7541 = vmatprep.subr.mxu0 0.0
        %7542 = vmatpush1.msra.mxu0 0.0
        %7543 = vmatprep.subr.mxu0 0.0
        %7544 = vmatpush1.msra.mxu0 0.0
        %7545 = vmatprep.subr.mxu0 0.0
        %7546 = vmatpush1.msra.mxu0 0.0
        %7547 = vmatprep.subr.mxu0 0.0
        %7548 = vmatpush1.msra.mxu0 0.0
        %7549 = vmatprep.subr.mxu0 0.0
        %7550 = vmatpush1.msra.mxu0 0.0
        %7551 = vmatprep.subr.mxu0 0.0
        %7552 = vmatpush1.msra.mxu0 0.0
        %7553 = vmatprep.subr.mxu0 0.0
        %7554 = vmatpush1.msra.mxu0 0.0
        %7555 = vmatprep.subr.mxu0 0.0
        %7556 = vmatpush1.msra.mxu0 0.0
        %7557 = vmatprep.subr.mxu0 0.0
        %7558 = vmatpush1.msra.mxu0 0.0
        %7559 = vmatprep.subr.mxu0 0.0
        %7560 = vmatpush1.msra.mxu0 0.0
        %7561 = vmatprep.mubr.f32.mxu0 0.0
        %7562 = vmatmul.mubr.f32.gmra.mrb[0].mxu0 %v7419
        %v7563 = vpop.f32.mrb[0].mxu0
        %v7564 = vadd.f32 0.0, %v7563
        %v7565 = vpop.f32.mrb[0].mxu0
        %7566 = vdwg.mxu0
        %v7568 = vsel %vm193, %v7411, 0
        %7570 = vmatprep.subr.mxu0 0.0
        %7571 = vmatpush1.msra.mxu0 %v7568
        %7572 = vmatprep.subr.mxu0 0.0
        %7573 = vmatpush1.msra.mxu0 0.0
        %7574 = vmatprep.subr.mxu0 0.0
        %7575 = vmatpush1.msra.mxu0 0.0
        %7576 = vmatprep.subr.mxu0 0.0
        %7577 = vmatpush1.msra.mxu0 0.0
        %7578 = vmatprep.subr.mxu0 0.0
        %7579 = vmatpush1.msra.mxu0 0.0
        %7580 = vmatprep.subr.mxu0 0.0
        %7581 = vmatpush1.msra.mxu0 0.0
        %7582 = vmatprep.subr.mxu0 0.0
        %7583 = vmatpush1.msra.mxu0 0.0
        %7584 = vmatprep.subr.mxu0 0.0
        %7585 = vmatpush1.msra.mxu0 0.0
        %7586 = vmatprep.subr.mxu0 0.0
        %7587 = vmatpush1.msra.mxu0 0.0
        %7588 = vmatprep.subr.mxu0 0.0
        %7589 = vmatpush1.msra.mxu0 0.0
        %7590 = vmatprep.subr.mxu0 0.0
        %7591 = vmatpush1.msra.mxu0 0.0
        %7592 = vmatprep.subr.mxu0 0.0
        %7593 = vmatpush1.msra.mxu0 0.0
        %7594 = vmatprep.subr.mxu0 0.0
        %7595 = vmatpush1.msra.mxu0 0.0
        %7596 = vmatprep.subr.mxu0 0.0
        %7597 = vmatpush1.msra.mxu0 0.0
        %7598 = vmatprep.subr.mxu0 0.0
        %7599 = vmatpush1.msra.mxu0 0.0
        %7600 = vmatprep.subr.mxu0 0.0
        %7601 = vmatpush1.msra.mxu0 0.0
        %7602 = vmatprep.subr.mxu0 0.0
        %7603 = vmatpush1.msra.mxu0 0.0
        %7604 = vmatprep.subr.mxu0 0.0
        %7605 = vmatpush1.msra.mxu0 0.0
        %7606 = vmatprep.subr.mxu0 0.0
        %7607 = vmatpush1.msra.mxu0 0.0
        %7608 = vmatprep.subr.mxu0 0.0
        %7609 = vmatpush1.msra.mxu0 0.0
        %7610 = vmatprep.subr.mxu0 0.0
        %7611 = vmatpush1.msra.mxu0 0.0
        %7612 = vmatprep.subr.mxu0 0.0
        %7613 = vmatpush1.msra.mxu0 0.0
        %7614 = vmatprep.subr.mxu0 0.0
        %7615 = vmatpush1.msra.mxu0 0.0
        %7616 = vmatprep.subr.mxu0 0.0
        %7617 = vmatpush1.msra.mxu0 0.0
        %7618 = vmatprep.subr.mxu0 0.0
        %7619 = vmatpush1.msra.mxu0 0.0
        %7620 = vmatprep.subr.mxu0 0.0
        %7621 = vmatpush1.msra.mxu0 0.0
        %7622 = vmatprep.subr.mxu0 0.0
        %7623 = vmatpush1.msra.mxu0 0.0
        %7624 = vmatprep.subr.mxu0 0.0
        %7625 = vmatpush1.msra.mxu0 0.0
        %7626 = vmatprep.subr.mxu0 0.0
        %7627 = vmatpush1.msra.mxu0 0.0
        %7628 = vmatprep.subr.mxu0 0.0
        %7629 = vmatpush1.msra.mxu0 0.0
        %7630 = vmatprep.subr.mxu0 0.0
        %7631 = vmatpush1.msra.mxu0 0.0
        %7632 = vmatprep.subr.mxu0 0.0
        %7633 = vmatpush1.msra.mxu0 0.0
        %7634 = vmatprep.mubr.f32.mxu0 0.0
        %7635 = vmatmul.mubr.f32.gmra.mrb[0].mxu0 %v7419
        %v7636 = vpop.f32.mrb[0].mxu0
        %v7637 = vadd.f32 0.0, %v7636
        %v7638 = vpop.f32.mrb[0].mxu0
        %7639 = vdwg.mxu0
        %v7641 = vsel %vm193, %v7412, 0
        %7643 = vmatprep.subr.mxu0 0.0
        %7644 = vmatpush1.msra.mxu0 %v7641
        %7645 = vmatprep.subr.mxu0 0.0
        %7646 = vmatpush1.msra.mxu0 0.0
        %7647 = vmatprep.subr.mxu0 0.0
        %7648 = vmatpush1.msra.mxu0 0.0
        %7649 = vmatprep.subr.mxu0 0.0
        %7650 = vmatpush1.msra.mxu0 0.0
        %7651 = vmatprep.subr.mxu0 0.0
        %7652 = vmatpush1.msra.mxu0 0.0
        %7653 = vmatprep.subr.mxu0 0.0
        %7654 = vmatpush1.msra.mxu0 0.0
        %7655 = vmatprep.subr.mxu0 0.0
        %7656 = vmatpush1.msra.mxu0 0.0
        %7657 = vmatprep.subr.mxu0 0.0
        %7658 = vmatpush1.msra.mxu0 0.0
        %7659 = vmatprep.subr.mxu0 0.0
        %7660 = vmatpush1.msra.mxu0 0.0
        %7661 = vmatprep.subr.mxu0 0.0
        %7662 = vmatpush1.msra.mxu0 0.0
        %7663 = vmatprep.subr.mxu0 0.0
        %7664 = vmatpush1.msra.mxu0 0.0
        %7665 = vmatprep.subr.mxu0 0.0
        %7666 = vmatpush1.msra.mxu0 0.0
        %7667 = vmatprep.subr.mxu0 0.0
        %7668 = vmatpush1.msra.mxu0 0.0
        %7669 = vmatprep.subr.mxu0 0.0
        %7670 = vmatpush1.msra.mxu0 0.0
        %7671 = vmatprep.subr.mxu0 0.0
        %7672 = vmatpush1.msra.mxu0 0.0
        %7673 = vmatprep.subr.mxu0 0.0
        %7674 = vmatpush1.msra.mxu0 0.0
        %7675 = vmatprep.subr.mxu0 0.0
        %7676 = vmatpush1.msra.mxu0 0.0
        %7677 = vmatprep.subr.mxu0 0.0
        %7678 = vmatpush1.msra.mxu0 0.0
        %7679 = vmatprep.subr.mxu0 0.0
        %7680 = vmatpush1.msra.mxu0 0.0
        %7681 = vmatprep.subr.mxu0 0.0
        %7682 = vmatpush1.msra.mxu0 0.0
        %7683 = vmatprep.subr.mxu0 0.0
        %7684 = vmatpush1.msra.mxu0 0.0
        %7685 = vmatprep.subr.mxu0 0.0
        %7686 = vmatpush1.msra.mxu0 0.0
        %7687 = vmatprep.subr.mxu0 0.0
        %7688 = vmatpush1.msra.mxu0 0.0
        %7689 = vmatprep.subr.mxu0 0.0
        %7690 = vmatpush1.msra.mxu0 0.0
        %7691 = vmatprep.subr.mxu0 0.0
        %7692 = vmatpush1.msra.mxu0 0.0
        %7693 = vmatprep.subr.mxu0 0.0
        %7694 = vmatpush1.msra.mxu0 0.0
        %7695 = vmatprep.subr.mxu0 0.0
        %7696 = vmatpush1.msra.mxu0 0.0
        %7697 = vmatprep.subr.mxu0 0.0
        %7698 = vmatpush1.msra.mxu0 0.0
        %7699 = vmatprep.subr.mxu0 0.0
        %7700 = vmatpush1.msra.mxu0 0.0
        %7701 = vmatprep.subr.mxu0 0.0
        %7702 = vmatpush1.msra.mxu0 0.0
        %7703 = vmatprep.subr.mxu0 0.0
        %7704 = vmatpush1.msra.mxu0 0.0
        %7705 = vmatprep.subr.mxu0 0.0
        %7706 = vmatpush1.msra.mxu0 0.0
        %7707 = vmatprep.mubr.f32.mxu0 0.0
        %7708 = vmatmul.mubr.f32.gmra.mrb[0].mxu0 %v7419
        %v7709 = vpop.f32.mrb[0].mxu0
        %v7710 = vadd.f32 0.0, %v7709
        %v7711 = vpop.f32.mrb[0].mxu0
        %7712 = vdwg.mxu0
        %v7714 = vsel %vm193, %v7413, 0
        %7716 = vmatprep.subr.mxu0 0.0
        %7717 = vmatpush1.msra.mxu0 %v7714
        %7718 = vmatprep.subr.mxu0 0.0
        %7719 = vmatpush1.msra.mxu0 0.0
        %7720 = vmatprep.subr.mxu0 0.0
        %7721 = vmatpush1.msra.mxu0 0.0
        %7722 = vmatprep.subr.mxu0 0.0
        %7723 = vmatpush1.msra.mxu0 0.0
        %7724 = vmatprep.subr.mxu0 0.0
        %7725 = vmatpush1.msra.mxu0 0.0
        %7726 = vmatprep.subr.mxu0 0.0
        %7727 = vmatpush1.msra.mxu0 0.0
        %7728 = vmatprep.subr.mxu0 0.0
        %7729 = vmatpush1.msra.mxu0 0.0
        %7730 = vmatprep.subr.mxu0 0.0
        %7731 = vmatpush1.msra.mxu0 0.0
        %7732 = vmatprep.subr.mxu0 0.0
        %7733 = vmatpush1.msra.mxu0 0.0
        %7734 = vmatprep.subr.mxu0 0.0
        %7735 = vmatpush1.msra.mxu0 0.0
        %7736 = vmatprep.subr.mxu0 0.0
        %7737 = vmatpush1.msra.mxu0 0.0
        %7738 = vmatprep.subr.mxu0 0.0
        %7739 = vmatpush1.msra.mxu0 0.0
        %7740 = vmatprep.subr.mxu0 0.0
        %7741 = vmatpush1.msra.mxu0 0.0
        %7742 = vmatprep.subr.mxu0 0.0
        %7743 = vmatpush1.msra.mxu0 0.0
        %7744 = vmatprep.subr.mxu0 0.0
        %7745 = vmatpush1.msra.mxu0 0.0
        %7746 = vmatprep.subr.mxu0 0.0
        %7747 = vmatpush1.msra.mxu0 0.0
        %7748 = vmatprep.subr.mxu0 0.0
        %7749 = vmatpush1.msra.mxu0 0.0
        %7750 = vmatprep.subr.mxu0 0.0
        %7751 = vmatpush1.msra.mxu0 0.0
        %7752 = vmatprep.subr.mxu0 0.0
        %7753 = vmatpush1.msra.mxu0 0.0
        %7754 = vmatprep.subr.mxu0 0.0
        %7755 = vmatpush1.msra.mxu0 0.0
        %7756 = vmatprep.subr.mxu0 0.0
        %7757 = vmatpush1.msra.mxu0 0.0
        %7758 = vmatprep.subr.mxu0 0.0
        %7759 = vmatpush1.msra.mxu0 0.0
        %7760 = vmatprep.subr.mxu0 0.0
        %7761 = vmatpush1.msra.mxu0 0.0
        %7762 = vmatprep.subr.mxu0 0.0
        %7763 = vmatpush1.msra.mxu0 0.0
        %7764 = vmatprep.subr.mxu0 0.0
        %7765 = vmatpush1.msra.mxu0 0.0
        %7766 = vmatprep.subr.mxu0 0.0
        %7767 = vmatpush1.msra.mxu0 0.0
        %7768 = vmatprep.subr.mxu0 0.0
        %7769 = vmatpush1.msra.mxu0 0.0
        %7770 = vmatprep.subr.mxu0 0.0
        %7771 = vmatpush1.msra.mxu0 0.0
        %7772 = vmatprep.subr.mxu0 0.0
        %7773 = vmatpush1.msra.mxu0 0.0
        %7774 = vmatprep.subr.mxu0 0.0
        %7775 = vmatpush1.msra.mxu0 0.0
        %7776 = vmatprep.subr.mxu0 0.0
        %7777 = vmatpush1.msra.mxu0 0.0
        %7778 = vmatprep.subr.mxu0 0.0
        %7779 = vmatpush1.msra.mxu0 0.0
        %7780 = vmatprep.mubr.f32.mxu0 0.0
        %7781 = vmatmul.mubr.f32.gmra.mrb[0].mxu0 %v7419
        %v7782 = vpop.f32.mrb[0].mxu0
        %v7783 = vadd.f32 0.0, %v7782
        %v7784 = vpop.f32.mrb[0].mxu0
        %7785 = vdwg.mxu0
        %v7787 = vsel %vm193, %v7414, 0
        %7789 = vmatprep.subr.mxu0 0.0
        %7790 = vmatpush1.msra.mxu0 %v7787
        %7791 = vmatprep.subr.mxu0 0.0
        %7792 = vmatpush1.msra.mxu0 0.0
        %7793 = vmatprep.subr.mxu0 0.0
        %7794 = vmatpush1.msra.mxu0 0.0
        %7795 = vmatprep.subr.mxu0 0.0
        %7796 = vmatpush1.msra.mxu0 0.0
        %7797 = vmatprep.subr.mxu0 0.0
        %7798 = vmatpush1.msra.mxu0 0.0
        %7799 = vmatprep.subr.mxu0 0.0
        %7800 = vmatpush1.msra.mxu0 0.0
        %7801 = vmatprep.subr.mxu0 0.0
        %7802 = vmatpush1.msra.mxu0 0.0
        %7803 = vmatprep.subr.mxu0 0.0
        %7804 = vmatpush1.msra.mxu0 0.0
        %7805 = vmatprep.subr.mxu0 0.0
        %7806 = vmatpush1.msra.mxu0 0.0
        %7807 = vmatprep.subr.mxu0 0.0
        %7808 = vmatpush1.msra.mxu0 0.0
        %7809 = vmatprep.subr.mxu0 0.0
        %7810 = vmatpush1.msra.mxu0 0.0
        %7811 = vmatprep.subr.mxu0 0.0
        %7812 = vmatpush1.msra.mxu0 0.0
        %7813 = vmatprep.subr.mxu0 0.0
        %7814 = vmatpush1.msra.mxu0 0.0
        %7815 = vmatprep.subr.mxu0 0.0
        %7816 = vmatpush1.msra.mxu0 0.0
        %7817 = vmatprep.subr.mxu0 0.0
        %7818 = vmatpush1.msra.mxu0 0.0
        %7819 = vmatprep.subr.mxu0 0.0
        %7820 = vmatpush1.msra.mxu0 0.0
        %7821 = vmatprep.subr.mxu0 0.0
        %7822 = vmatpush1.msra.mxu0 0.0
        %7823 = vmatprep.subr.mxu0 0.0
        %7824 = vmatpush1.msra.mxu0 0.0
        %7825 = vmatprep.subr.mxu0 0.0
        %7826 = vmatpush1.msra.mxu0 0.0
        %7827 = vmatprep.subr.mxu0 0.0
        %7828 = vmatpush1.msra.mxu0 0.0
        %7829 = vmatprep.subr.mxu0 0.0
        %7830 = vmatpush1.msra.mxu0 0.0
        %7831 = vmatprep.subr.mxu0 0.0
        %7832 = vmatpush1.msra.mxu0 0.0
        %7833 = vmatprep.subr.mxu0 0.0
        %7834 = vmatpush1.msra.mxu0 0.0
        %7835 = vmatprep.subr.mxu0 0.0
        %7836 = vmatpush1.msra.mxu0 0.0
        %7837 = vmatprep.subr.mxu0 0.0
        %7838 = vmatpush1.msra.mxu0 0.0
        %7839 = vmatprep.subr.mxu0 0.0
        %7840 = vmatpush1.msra.mxu0 0.0
        %7841 = vmatprep.subr.mxu0 0.0
        %7842 = vmatpush1.msra.mxu0 0.0
        %7843 = vmatprep.subr.mxu0 0.0
        %7844 = vmatpush1.msra.mxu0 0.0
        %7845 = vmatprep.subr.mxu0 0.0
        %7846 = vmatpush1.msra.mxu0 0.0
        %7847 = vmatprep.subr.mxu0 0.0
        %7848 = vmatpush1.msra.mxu0 0.0
        %7849 = vmatprep.subr.mxu0 0.0
        %7850 = vmatpush1.msra.mxu0 0.0
        %7851 = vmatprep.subr.mxu0 0.0
        %7852 = vmatpush1.msra.mxu0 0.0
        %7853 = vmatprep.mubr.f32.mxu0 0.0
        %7854 = vmatmul.mubr.f32.gmra.mrb[0].mxu0 %v7419
        %v7855 = vpop.f32.mrb[0].mxu0
        %v7856 = vadd.f32 0.0, %v7855
        %v7857 = vpop.f32.mrb[0].mxu0
        %7858 = vdwg.mxu0
        %v7860 = vsel %vm193, %v7415, 0
        %7862 = vmatprep.subr.mxu0 0.0
        %7863 = vmatpush1.msra.mxu0 %v7860
        %7864 = vmatprep.subr.mxu0 0.0
        %7865 = vmatpush1.msra.mxu0 0.0
        %7866 = vmatprep.subr.mxu0 0.0
        %7867 = vmatpush1.msra.mxu0 0.0
        %7868 = vmatprep.subr.mxu0 0.0
        %7869 = vmatpush1.msra.mxu0 0.0
        %7870 = vmatprep.subr.mxu0 0.0
        %7871 = vmatpush1.msra.mxu0 0.0
        %7872 = vmatprep.subr.mxu0 0.0
        %7873 = vmatpush1.msra.mxu0 0.0
        %7874 = vmatprep.subr.mxu0 0.0
        %7875 = vmatpush1.msra.mxu0 0.0
        %7876 = vmatprep.subr.mxu0 0.0
        %7877 = vmatpush1.msra.mxu0 0.0
        %7878 = vmatprep.subr.mxu0 0.0
        %7879 = vmatpush1.msra.mxu0 0.0
        %7880 = vmatprep.subr.mxu0 0.0
        %7881 = vmatpush1.msra.mxu0 0.0
        %7882 = vmatprep.subr.mxu0 0.0
        %7883 = vmatpush1.msra.mxu0 0.0
        %7884 = vmatprep.subr.mxu0 0.0
        %7885 = vmatpush1.msra.mxu0 0.0
        %7886 = vmatprep.subr.mxu0 0.0
        %7887 = vmatpush1.msra.mxu0 0.0
        %7888 = vmatprep.subr.mxu0 0.0
        %7889 = vmatpush1.msra.mxu0 0.0
        %7890 = vmatprep.subr.mxu0 0.0
        %7891 = vmatpush1.msra.mxu0 0.0
        %7892 = vmatprep.subr.mxu0 0.0
        %7893 = vmatpush1.msra.mxu0 0.0
        %7894 = vmatprep.subr.mxu0 0.0
        %7895 = vmatpush1.msra.mxu0 0.0
        %7896 = vmatprep.subr.mxu0 0.0
        %7897 = vmatpush1.msra.mxu0 0.0
        %7898 = vmatprep.subr.mxu0 0.0
        %7899 = vmatpush1.msra.mxu0 0.0
        %7900 = vmatprep.subr.mxu0 0.0
        %7901 = vmatpush1.msra.mxu0 0.0
        %7902 = vmatprep.subr.mxu0 0.0
        %7903 = vmatpush1.msra.mxu0 0.0
        %7904 = vmatprep.subr.mxu0 0.0
        %7905 = vmatpush1.msra.mxu0 0.0
        %7906 = vmatprep.subr.mxu0 0.0
        %7907 = vmatpush1.msra.mxu0 0.0
        %7908 = vmatprep.subr.mxu0 0.0
        %7909 = vmatpush1.msra.mxu0 0.0
        %7910 = vmatprep.subr.mxu0 0.0
        %7911 = vmatpush1.msra.mxu0 0.0
        %7912 = vmatprep.subr.mxu0 0.0
        %7913 = vmatpush1.msra.mxu0 0.0
        %7914 = vmatprep.subr.mxu0 0.0
        %7915 = vmatpush1.msra.mxu0 0.0
        %7916 = vmatprep.subr.mxu0 0.0
        %7917 = vmatpush1.msra.mxu0 0.0
        %7918 = vmatprep.subr.mxu0 0.0
        %7919 = vmatpush1.msra.mxu0 0.0
        %7920 = vmatprep.subr.mxu0 0.0
        %7921 = vmatpush1.msra.mxu0 0.0
        %7922 = vmatprep.subr.mxu0 0.0
        %7923 = vmatpush1.msra.mxu0 0.0
        %7924 = vmatprep.subr.mxu0 0.0
        %7925 = vmatpush1.msra.mxu0 0.0
        %7926 = vmatprep.mubr.f32.mxu0 0.0
        %7927 = vmatmul.mubr.f32.gmra.mrb[0].mxu0 %v7419
        %v7928 = vpop.f32.mrb[0].mxu0
        %v7929 = vadd.f32 0.0, %v7928
        %v7930 = vpop.f32.mrb[0].mxu0
        %7931 = vdwg.mxu0
        %v7933 = vsel %vm193, %v7416, 0
        %7935 = vmatprep.subr.mxu0 0.0
        %7936 = vmatpush1.msra.mxu0 %v7933
        %7937 = vmatprep.subr.mxu0 0.0
        %7938 = vmatpush1.msra.mxu0 0.0
        %7939 = vmatprep.subr.mxu0 0.0
        %7940 = vmatpush1.msra.mxu0 0.0
        %7941 = vmatprep.subr.mxu0 0.0
        %7942 = vmatpush1.msra.mxu0 0.0
        %7943 = vmatprep.subr.mxu0 0.0
        %7944 = vmatpush1.msra.mxu0 0.0
        %7945 = vmatprep.subr.mxu0 0.0
        %7946 = vmatpush1.msra.mxu0 0.0
        %7947 = vmatprep.subr.mxu0 0.0
        %7948 = vmatpush1.msra.mxu0 0.0
        %7949 = vmatprep.subr.mxu0 0.0
        %7950 = vmatpush1.msra.mxu0 0.0
        %7951 = vmatprep.subr.mxu0 0.0
        %7952 = vmatpush1.msra.mxu0 0.0
        %7953 = vmatprep.subr.mxu0 0.0
        %7954 = vmatpush1.msra.mxu0 0.0
        %7955 = vmatprep.subr.mxu0 0.0
        %7956 = vmatpush1.msra.mxu0 0.0
        %7957 = vmatprep.subr.mxu0 0.0
        %7958 = vmatpush1.msra.mxu0 0.0
        %7959 = vmatprep.subr.mxu0 0.0
        %7960 = vmatpush1.msra.mxu0 0.0
        %7961 = vmatprep.subr.mxu0 0.0
        %7962 = vmatpush1.msra.mxu0 0.0
        %7963 = vmatprep.subr.mxu0 0.0
        %7964 = vmatpush1.msra.mxu0 0.0
        %7965 = vmatprep.subr.mxu0 0.0
        %7966 = vmatpush1.msra.mxu0 0.0
        %7967 = vmatprep.subr.mxu0 0.0
        %7968 = vmatpush1.msra.mxu0 0.0
        %7969 = vmatprep.subr.mxu0 0.0
        %7970 = vmatpush1.msra.mxu0 0.0
        %7971 = vmatprep.subr.mxu0 0.0
        %7972 = vmatpush1.msra.mxu0 0.0
        %7973 = vmatprep.subr.mxu0 0.0
        %7974 = vmatpush1.msra.mxu0 0.0
        %7975 = vmatprep.subr.mxu0 0.0
        %7976 = vmatpush1.msra.mxu0 0.0
        %7977 = vmatprep.subr.mxu0 0.0
        %7978 = vmatpush1.msra.mxu0 0.0
        %7979 = vmatprep.subr.mxu0 0.0
        %7980 = vmatpush1.msra.mxu0 0.0
        %7981 = vmatprep.subr.mxu0 0.0
        %7982 = vmatpush1.msra.mxu0 0.0
        %7983 = vmatprep.subr.mxu0 0.0
        %7984 = vmatpush1.msra.mxu0 0.0
        %7985 = vmatprep.subr.mxu0 0.0
        %7986 = vmatpush1.msra.mxu0 0.0
        %7987 = vmatprep.subr.mxu0 0.0
        %7988 = vmatpush1.msra.mxu0 0.0
        %7989 = vmatprep.subr.mxu0 0.0
        %7990 = vmatpush1.msra.mxu0 0.0
        %7991 = vmatprep.subr.mxu0 0.0
        %7992 = vmatpush1.msra.mxu0 0.0
        %7993 = vmatprep.subr.mxu0 0.0
        %7994 = vmatpush1.msra.mxu0 0.0
        %7995 = vmatprep.subr.mxu0 0.0
        %7996 = vmatpush1.msra.mxu0 0.0
        %7997 = vmatprep.subr.mxu0 0.0
        %7998 = vmatpush1.msra.mxu0 0.0
        %7999 = vmatprep.mubr.f32.mxu0 0.0
        %8000 = vmatmul.mubr.f32.gmra.mrb[0].mxu0 %v7419
        %v8001 = vpop.f32.mrb[0].mxu0
        %v8002 = vadd.f32 0.0, %v8001
        %v8003 = vpop.f32.mrb[0].mxu0
        %8004 = vdwg.mxu0
        %v8005 = vadd.f32 %v7400, %v7491
        %v8006 = vadd.f32 %v7401, %v7564
        %v8007 = vadd.f32 %v7402, %v7637
        %v8008 = vadd.f32 %v7403, %v7710
        %v8009 = vadd.f32 %v7404, %v7783
        %v8010 = vadd.f32 %v7405, %v7856
        %v8011 = vadd.f32 %v7406, %v7929
        %v8012 = vadd.f32 %v7407, %v8002
        %s8013 = scalar_lea.vmem %s168, 112
        %v8014 = vld [vmem:[%s8013] sm:$0xf]
        %v8015 = vld [vmem:[%s8013 + $0x4] sm:$0xf]
        %v8016 = vld [vmem:[%s8013 + $0x8] sm:$0xf]
        %v8017 = vld [vmem:[%s8013 + $0xc] sm:$0xf]
        %v8018 = vld [vmem:[%s8013 + $0x10] sm:$0xf]
        %v8019 = vld [vmem:[%s8013 + $0x14] sm:$0xf]
        %v8020 = vld [vmem:[%s8013 + $0x18] sm:$0xf]
        %v8021 = vld [vmem:[%s8013 + $0x1c] sm:$0xf]
        %8022 = vrot.lane.b32.xlu0 %v177, 76
        %v8023 = vpop.permute.xlu0 %8022
        %v8024 = vsel %vm190, %v8023, 0
        %v8027 = vsel %vm193, %v8014, 0
        %8029 = vmatprep.subr.mxu0 0.0
        %8030 = vmatpush1.msra.mxu0 %v8027
        %8031 = vmatprep.subr.mxu0 0.0
        %8032 = vmatpush1.msra.mxu0 0.0
        %8033 = vmatprep.subr.mxu0 0.0
        %8034 = vmatpush1.msra.mxu0 0.0
        %8035 = vmatprep.subr.mxu0 0.0
        %8036 = vmatpush1.msra.mxu0 0.0
        %8037 = vmatprep.subr.mxu0 0.0
        %8038 = vmatpush1.msra.mxu0 0.0
        %8039 = vmatprep.subr.mxu0 0.0
        %8040 = vmatpush1.msra.mxu0 0.0
        %8041 = vmatprep.subr.mxu0 0.0
        %8042 = vmatpush1.msra.mxu0 0.0
        %8043 = vmatprep.subr.mxu0 0.0
        %8044 = vmatpush1.msra.mxu0 0.0
        %8045 = vmatprep.subr.mxu0 0.0
        %8046 = vmatpush1.msra.mxu0 0.0
        %8047 = vmatprep.subr.mxu0 0.0
        %8048 = vmatpush1.msra.mxu0 0.0
        %8049 = vmatprep.subr.mxu0 0.0
        %8050 = vmatpush1.msra.mxu0 0.0
        %8051 = vmatprep.subr.mxu0 0.0
        %8052 = vmatpush1.msra.mxu0 0.0
        %8053 = vmatprep.subr.mxu0 0.0
        %8054 = vmatpush1.msra.mxu0 0.0
        %8055 = vmatprep.subr.mxu0 0.0
        %8056 = vmatpush1.msra.mxu0 0.0
        %8057 = vmatprep.subr.mxu0 0.0
        %8058 = vmatpush1.msra.mxu0 0.0
        %8059 = vmatprep.subr.mxu0 0.0
        %8060 = vmatpush1.msra.mxu0 0.0
        %8061 = vmatprep.subr.mxu0 0.0
        %8062 = vmatpush1.msra.mxu0 0.0
        %8063 = vmatprep.subr.mxu0 0.0
        %8064 = vmatpush1.msra.mxu0 0.0
        %8065 = vmatprep.subr.mxu0 0.0
        %8066 = vmatpush1.msra.mxu0 0.0
        %8067 = vmatprep.subr.mxu0 0.0
        %8068 = vmatpush1.msra.mxu0 0.0
        %8069 = vmatprep.subr.mxu0 0.0
        %8070 = vmatpush1.msra.mxu0 0.0
        %8071 = vmatprep.subr.mxu0 0.0
        %8072 = vmatpush1.msra.mxu0 0.0
        %8073 = vmatprep.subr.mxu0 0.0
        %8074 = vmatpush1.msra.mxu0 0.0
        %8075 = vmatprep.subr.mxu0 0.0
        %8076 = vmatpush1.msra.mxu0 0.0
        %8077 = vmatprep.subr.mxu0 0.0
        %8078 = vmatpush1.msra.mxu0 0.0
        %8079 = vmatprep.subr.mxu0 0.0
        %8080 = vmatpush1.msra.mxu0 0.0
        %8081 = vmatprep.subr.mxu0 0.0
        %8082 = vmatpush1.msra.mxu0 0.0
        %8083 = vmatprep.subr.mxu0 0.0
        %8084 = vmatpush1.msra.mxu0 0.0
        %8085 = vmatprep.subr.mxu0 0.0
        %8086 = vmatpush1.msra.mxu0 0.0
        %8087 = vmatprep.subr.mxu0 0.0
        %8088 = vmatpush1.msra.mxu0 0.0
        %8089 = vmatprep.subr.mxu0 0.0
        %8090 = vmatpush1.msra.mxu0 0.0
        %8091 = vmatprep.subr.mxu0 0.0
        %8092 = vmatpush1.msra.mxu0 0.0
        %8093 = vmatprep.mubr.f32.mxu0 0.0
        %8094 = vmatmul.mubr.f32.gmra.mrb[0].mxu0 %v8024
        %v8095 = vpop.f32.mrb[0].mxu0
        %v8096 = vadd.f32 0.0, %v8095
        %v8097 = vpop.f32.mrb[0].mxu0
        %8098 = vdwg.mxu0
        %v8100 = vsel %vm193, %v8015, 0
        %8102 = vmatprep.subr.mxu0 0.0
        %8103 = vmatpush1.msra.mxu0 %v8100
        %8104 = vmatprep.subr.mxu0 0.0
        %8105 = vmatpush1.msra.mxu0 0.0
        %8106 = vmatprep.subr.mxu0 0.0
        %8107 = vmatpush1.msra.mxu0 0.0
        %8108 = vmatprep.subr.mxu0 0.0
        %8109 = vmatpush1.msra.mxu0 0.0
        %8110 = vmatprep.subr.mxu0 0.0
        %8111 = vmatpush1.msra.mxu0 0.0
        %8112 = vmatprep.subr.mxu0 0.0
        %8113 = vmatpush1.msra.mxu0 0.0
        %8114 = vmatprep.subr.mxu0 0.0
        %8115 = vmatpush1.msra.mxu0 0.0
        %8116 = vmatprep.subr.mxu0 0.0
        %8117 = vmatpush1.msra.mxu0 0.0
        %8118 = vmatprep.subr.mxu0 0.0
        %8119 = vmatpush1.msra.mxu0 0.0
        %8120 = vmatprep.subr.mxu0 0.0
        %8121 = vmatpush1.msra.mxu0 0.0
        %8122 = vmatprep.subr.mxu0 0.0
        %8123 = vmatpush1.msra.mxu0 0.0
        %8124 = vmatprep.subr.mxu0 0.0
        %8125 = vmatpush1.msra.mxu0 0.0
        %8126 = vmatprep.subr.mxu0 0.0
        %8127 = vmatpush1.msra.mxu0 0.0
        %8128 = vmatprep.subr.mxu0 0.0
        %8129 = vmatpush1.msra.mxu0 0.0
        %8130 = vmatprep.subr.mxu0 0.0
        %8131 = vmatpush1.msra.mxu0 0.0
        %8132 = vmatprep.subr.mxu0 0.0
        %8133 = vmatpush1.msra.mxu0 0.0
        %8134 = vmatprep.subr.mxu0 0.0
        %8135 = vmatpush1.msra.mxu0 0.0
        %8136 = vmatprep.subr.mxu0 0.0
        %8137 = vmatpush1.msra.mxu0 0.0
        %8138 = vmatprep.subr.mxu0 0.0
        %8139 = vmatpush1.msra.mxu0 0.0
        %8140 = vmatprep.subr.mxu0 0.0
        %8141 = vmatpush1.msra.mxu0 0.0
        %8142 = vmatprep.subr.mxu0 0.0
        %8143 = vmatpush1.msra.mxu0 0.0
        %8144 = vmatprep.subr.mxu0 0.0
        %8145 = vmatpush1.msra.mxu0 0.0
        %8146 = vmatprep.subr.mxu0 0.0
        %8147 = vmatpush1.msra.mxu0 0.0
        %8148 = vmatprep.subr.mxu0 0.0
        %8149 = vmatpush1.msra.mxu0 0.0
        %8150 = vmatprep.subr.mxu0 0.0
        %8151 = vmatpush1.msra.mxu0 0.0
        %8152 = vmatprep.subr.mxu0 0.0
        %8153 = vmatpush1.msra.mxu0 0.0
        %8154 = vmatprep.subr.mxu0 0.0
        %8155 = vmatpush1.msra.mxu0 0.0
        %8156 = vmatprep.subr.mxu0 0.0
        %8157 = vmatpush1.msra.mxu0 0.0
        %8158 = vmatprep.subr.mxu0 0.0
        %8159 = vmatpush1.msra.mxu0 0.0
        %8160 = vmatprep.subr.mxu0 0.0
        %8161 = vmatpush1.msra.mxu0 0.0
        %8162 = vmatprep.subr.mxu0 0.0
        %8163 = vmatpush1.msra.mxu0 0.0
        %8164 = vmatprep.subr.mxu0 0.0
        %8165 = vmatpush1.msra.mxu0 0.0
        %8166 = vmatprep.mubr.f32.mxu0 0.0
        %8167 = vmatmul.mubr.f32.gmra.mrb[0].mxu0 %v8024
        %v8168 = vpop.f32.mrb[0].mxu0
        %v8169 = vadd.f32 0.0, %v8168
        %v8170 = vpop.f32.mrb[0].mxu0
        %8171 = vdwg.mxu0
        %v8173 = vsel %vm193, %v8016, 0
        %8175 = vmatprep.subr.mxu0 0.0
        %8176 = vmatpush1.msra.mxu0 %v8173
        %8177 = vmatprep.subr.mxu0 0.0
        %8178 = vmatpush1.msra.mxu0 0.0
        %8179 = vmatprep.subr.mxu0 0.0
        %8180 = vmatpush1.msra.mxu0 0.0
        %8181 = vmatprep.subr.mxu0 0.0
        %8182 = vmatpush1.msra.mxu0 0.0
        %8183 = vmatprep.subr.mxu0 0.0
        %8184 = vmatpush1.msra.mxu0 0.0
        %8185 = vmatprep.subr.mxu0 0.0
        %8186 = vmatpush1.msra.mxu0 0.0
        %8187 = vmatprep.subr.mxu0 0.0
        %8188 = vmatpush1.msra.mxu0 0.0
        %8189 = vmatprep.subr.mxu0 0.0
        %8190 = vmatpush1.msra.mxu0 0.0
        %8191 = vmatprep.subr.mxu0 0.0
        %8192 = vmatpush1.msra.mxu0 0.0
        %8193 = vmatprep.subr.mxu0 0.0
        %8194 = vmatpush1.msra.mxu0 0.0
        %8195 = vmatprep.subr.mxu0 0.0
        %8196 = vmatpush1.msra.mxu0 0.0
        %8197 = vmatprep.subr.mxu0 0.0
        %8198 = vmatpush1.msra.mxu0 0.0
        %8199 = vmatprep.subr.mxu0 0.0
        %8200 = vmatpush1.msra.mxu0 0.0
        %8201 = vmatprep.subr.mxu0 0.0
        %8202 = vmatpush1.msra.mxu0 0.0
        %8203 = vmatprep.subr.mxu0 0.0
        %8204 = vmatpush1.msra.mxu0 0.0
        %8205 = vmatprep.subr.mxu0 0.0
        %8206 = vmatpush1.msra.mxu0 0.0
        %8207 = vmatprep.subr.mxu0 0.0
        %8208 = vmatpush1.msra.mxu0 0.0
        %8209 = vmatprep.subr.mxu0 0.0
        %8210 = vmatpush1.msra.mxu0 0.0
        %8211 = vmatprep.subr.mxu0 0.0
        %8212 = vmatpush1.msra.mxu0 0.0
        %8213 = vmatprep.subr.mxu0 0.0
        %8214 = vmatpush1.msra.mxu0 0.0
        %8215 = vmatprep.subr.mxu0 0.0
        %8216 = vmatpush1.msra.mxu0 0.0
        %8217 = vmatprep.subr.mxu0 0.0
        %8218 = vmatpush1.msra.mxu0 0.0
        %8219 = vmatprep.subr.mxu0 0.0
        %8220 = vmatpush1.msra.mxu0 0.0
        %8221 = vmatprep.subr.mxu0 0.0
        %8222 = vmatpush1.msra.mxu0 0.0
        %8223 = vmatprep.subr.mxu0 0.0
        %8224 = vmatpush1.msra.mxu0 0.0
        %8225 = vmatprep.subr.mxu0 0.0
        %8226 = vmatpush1.msra.mxu0 0.0
        %8227 = vmatprep.subr.mxu0 0.0
        %8228 = vmatpush1.msra.mxu0 0.0
        %8229 = vmatprep.subr.mxu0 0.0
        %8230 = vmatpush1.msra.mxu0 0.0
        %8231 = vmatprep.subr.mxu0 0.0
        %8232 = vmatpush1.msra.mxu0 0.0
        %8233 = vmatprep.subr.mxu0 0.0
        %8234 = vmatpush1.msra.mxu0 0.0
        %8235 = vmatprep.subr.mxu0 0.0
        %8236 = vmatpush1.msra.mxu0 0.0
        %8237 = vmatprep.subr.mxu0 0.0
        %8238 = vmatpush1.msra.mxu0 0.0
        %8239 = vmatprep.mubr.f32.mxu0 0.0
        %8240 = vmatmul.mubr.f32.gmra.mrb[0].mxu0 %v8024
        %v8241 = vpop.f32.mrb[0].mxu0
        %v8242 = vadd.f32 0.0, %v8241
        %v8243 = vpop.f32.mrb[0].mxu0
        %8244 = vdwg.mxu0
        %v8246 = vsel %vm193, %v8017, 0
        %8248 = vmatprep.subr.mxu0 0.0
        %8249 = vmatpush1.msra.mxu0 %v8246
        %8250 = vmatprep.subr.mxu0 0.0
        %8251 = vmatpush1.msra.mxu0 0.0
        %8252 = vmatprep.subr.mxu0 0.0
        %8253 = vmatpush1.msra.mxu0 0.0
        %8254 = vmatprep.subr.mxu0 0.0
        %8255 = vmatpush1.msra.mxu0 0.0
        %8256 = vmatprep.subr.mxu0 0.0
        %8257 = vmatpush1.msra.mxu0 0.0
        %8258 = vmatprep.subr.mxu0 0.0
        %8259 = vmatpush1.msra.mxu0 0.0
        %8260 = vmatprep.subr.mxu0 0.0
        %8261 = vmatpush1.msra.mxu0 0.0
        %8262 = vmatprep.subr.mxu0 0.0
        %8263 = vmatpush1.msra.mxu0 0.0
        %8264 = vmatprep.subr.mxu0 0.0
        %8265 = vmatpush1.msra.mxu0 0.0
        %8266 = vmatprep.subr.mxu0 0.0
        %8267 = vmatpush1.msra.mxu0 0.0
        %8268 = vmatprep.subr.mxu0 0.0
        %8269 = vmatpush1.msra.mxu0 0.0
        %8270 = vmatprep.subr.mxu0 0.0
        %8271 = vmatpush1.msra.mxu0 0.0
        %8272 = vmatprep.subr.mxu0 0.0
        %8273 = vmatpush1.msra.mxu0 0.0
        %8274 = vmatprep.subr.mxu0 0.0
        %8275 = vmatpush1.msra.mxu0 0.0
        %8276 = vmatprep.subr.mxu0 0.0
        %8277 = vmatpush1.msra.mxu0 0.0
        %8278 = vmatprep.subr.mxu0 0.0
        %8279 = vmatpush1.msra.mxu0 0.0
        %8280 = vmatprep.subr.mxu0 0.0
        %8281 = vmatpush1.msra.mxu0 0.0
        %8282 = vmatprep.subr.mxu0 0.0
        %8283 = vmatpush1.msra.mxu0 0.0
        %8284 = vmatprep.subr.mxu0 0.0
        %8285 = vmatpush1.msra.mxu0 0.0
        %8286 = vmatprep.subr.mxu0 0.0
        %8287 = vmatpush1.msra.mxu0 0.0
        %8288 = vmatprep.subr.mxu0 0.0
        %8289 = vmatpush1.msra.mxu0 0.0
        %8290 = vmatprep.subr.mxu0 0.0
        %8291 = vmatpush1.msra.mxu0 0.0
        %8292 = vmatprep.subr.mxu0 0.0
        %8293 = vmatpush1.msra.mxu0 0.0
        %8294 = vmatprep.subr.mxu0 0.0
        %8295 = vmatpush1.msra.mxu0 0.0
        %8296 = vmatprep.subr.mxu0 0.0
        %8297 = vmatpush1.msra.mxu0 0.0
        %8298 = vmatprep.subr.mxu0 0.0
        %8299 = vmatpush1.msra.mxu0 0.0
        %8300 = vmatprep.subr.mxu0 0.0
        %8301 = vmatpush1.msra.mxu0 0.0
        %8302 = vmatprep.subr.mxu0 0.0
        %8303 = vmatpush1.msra.mxu0 0.0
        %8304 = vmatprep.subr.mxu0 0.0
        %8305 = vmatpush1.msra.mxu0 0.0
        %8306 = vmatprep.subr.mxu0 0.0
        %8307 = vmatpush1.msra.mxu0 0.0
        %8308 = vmatprep.subr.mxu0 0.0
        %8309 = vmatpush1.msra.mxu0 0.0
        %8310 = vmatprep.subr.mxu0 0.0
        %8311 = vmatpush1.msra.mxu0 0.0
        %8312 = vmatprep.mubr.f32.mxu0 0.0
        %8313 = vmatmul.mubr.f32.gmra.mrb[0].mxu0 %v8024
        %v8314 = vpop.f32.mrb[0].mxu0
        %v8315 = vadd.f32 0.0, %v8314
        %v8316 = vpop.f32.mrb[0].mxu0
        %8317 = vdwg.mxu0
        %v8319 = vsel %vm193, %v8018, 0
        %8321 = vmatprep.subr.mxu0 0.0
        %8322 = vmatpush1.msra.mxu0 %v8319
        %8323 = vmatprep.subr.mxu0 0.0
        %8324 = vmatpush1.msra.mxu0 0.0
        %8325 = vmatprep.subr.mxu0 0.0
        %8326 = vmatpush1.msra.mxu0 0.0
        %8327 = vmatprep.subr.mxu0 0.0
        %8328 = vmatpush1.msra.mxu0 0.0
        %8329 = vmatprep.subr.mxu0 0.0
        %8330 = vmatpush1.msra.mxu0 0.0
        %8331 = vmatprep.subr.mxu0 0.0
        %8332 = vmatpush1.msra.mxu0 0.0
        %8333 = vmatprep.subr.mxu0 0.0
        %8334 = vmatpush1.msra.mxu0 0.0
        %8335 = vmatprep.subr.mxu0 0.0
        %8336 = vmatpush1.msra.mxu0 0.0
        %8337 = vmatprep.subr.mxu0 0.0
        %8338 = vmatpush1.msra.mxu0 0.0
        %8339 = vmatprep.subr.mxu0 0.0
        %8340 = vmatpush1.msra.mxu0 0.0
        %8341 = vmatprep.subr.mxu0 0.0
        %8342 = vmatpush1.msra.mxu0 0.0
        %8343 = vmatprep.subr.mxu0 0.0
        %8344 = vmatpush1.msra.mxu0 0.0
        %8345 = vmatprep.subr.mxu0 0.0
        %8346 = vmatpush1.msra.mxu0 0.0
        %8347 = vmatprep.subr.mxu0 0.0
        %8348 = vmatpush1.msra.mxu0 0.0
        %8349 = vmatprep.subr.mxu0 0.0
        %8350 = vmatpush1.msra.mxu0 0.0
        %8351 = vmatprep.subr.mxu0 0.0
        %8352 = vmatpush1.msra.mxu0 0.0
        %8353 = vmatprep.subr.mxu0 0.0
        %8354 = vmatpush1.msra.mxu0 0.0
        %8355 = vmatprep.subr.mxu0 0.0
        %8356 = vmatpush1.msra.mxu0 0.0
        %8357 = vmatprep.subr.mxu0 0.0
        %8358 = vmatpush1.msra.mxu0 0.0
        %8359 = vmatprep.subr.mxu0 0.0
        %8360 = vmatpush1.msra.mxu0 0.0
        %8361 = vmatprep.subr.mxu0 0.0
        %8362 = vmatpush1.msra.mxu0 0.0
        %8363 = vmatprep.subr.mxu0 0.0
        %8364 = vmatpush1.msra.mxu0 0.0
        %8365 = vmatprep.subr.mxu0 0.0
        %8366 = vmatpush1.msra.mxu0 0.0
        %8367 = vmatprep.subr.mxu0 0.0
        %8368 = vmatpush1.msra.mxu0 0.0
        %8369 = vmatprep.subr.mxu0 0.0
        %8370 = vmatpush1.msra.mxu0 0.0
        %8371 = vmatprep.subr.mxu0 0.0
        %8372 = vmatpush1.msra.mxu0 0.0
        %8373 = vmatprep.subr.mxu0 0.0
        %8374 = vmatpush1.msra.mxu0 0.0
        %8375 = vmatprep.subr.mxu0 0.0
        %8376 = vmatpush1.msra.mxu0 0.0
        %8377 = vmatprep.subr.mxu0 0.0
        %8378 = vmatpush1.msra.mxu0 0.0
        %8379 = vmatprep.subr.mxu0 0.0
        %8380 = vmatpush1.msra.mxu0 0.0
        %8381 = vmatprep.subr.mxu0 0.0
        %8382 = vmatpush1.msra.mxu0 0.0
        %8383 = vmatprep.subr.mxu0 0.0
        %8384 = vmatpush1.msra.mxu0 0.0
        %8385 = vmatprep.mubr.f32.mxu0 0.0
        %8386 = vmatmul.mubr.f32.gmra.mrb[0].mxu0 %v8024
        %v8387 = vpop.f32.mrb[0].mxu0
        %v8388 = vadd.f32 0.0, %v8387
        %v8389 = vpop.f32.mrb[0].mxu0
        %8390 = vdwg.mxu0
        %v8392 = vsel %vm193, %v8019, 0
        %8394 = vmatprep.subr.mxu0 0.0
        %8395 = vmatpush1.msra.mxu0 %v8392
        %8396 = vmatprep.subr.mxu0 0.0
        %8397 = vmatpush1.msra.mxu0 0.0
        %8398 = vmatprep.subr.mxu0 0.0
        %8399 = vmatpush1.msra.mxu0 0.0
        %8400 = vmatprep.subr.mxu0 0.0
        %8401 = vmatpush1.msra.mxu0 0.0
        %8402 = vmatprep.subr.mxu0 0.0
        %8403 = vmatpush1.msra.mxu0 0.0
        %8404 = vmatprep.subr.mxu0 0.0
        %8405 = vmatpush1.msra.mxu0 0.0
        %8406 = vmatprep.subr.mxu0 0.0
        %8407 = vmatpush1.msra.mxu0 0.0
        %8408 = vmatprep.subr.mxu0 0.0
        %8409 = vmatpush1.msra.mxu0 0.0
        %8410 = vmatprep.subr.mxu0 0.0
        %8411 = vmatpush1.msra.mxu0 0.0
        %8412 = vmatprep.subr.mxu0 0.0
        %8413 = vmatpush1.msra.mxu0 0.0
        %8414 = vmatprep.subr.mxu0 0.0
        %8415 = vmatpush1.msra.mxu0 0.0
        %8416 = vmatprep.subr.mxu0 0.0
        %8417 = vmatpush1.msra.mxu0 0.0
        %8418 = vmatprep.subr.mxu0 0.0
        %8419 = vmatpush1.msra.mxu0 0.0
        %8420 = vmatprep.subr.mxu0 0.0
        %8421 = vmatpush1.msra.mxu0 0.0
        %8422 = vmatprep.subr.mxu0 0.0
        %8423 = vmatpush1.msra.mxu0 0.0
        %8424 = vmatprep.subr.mxu0 0.0
        %8425 = vmatpush1.msra.mxu0 0.0
        %8426 = vmatprep.subr.mxu0 0.0
        %8427 = vmatpush1.msra.mxu0 0.0
        %8428 = vmatprep.subr.mxu0 0.0
        %8429 = vmatpush1.msra.mxu0 0.0
        %8430 = vmatprep.subr.mxu0 0.0
        %8431 = vmatpush1.msra.mxu0 0.0
        %8432 = vmatprep.subr.mxu0 0.0
        %8433 = vmatpush1.msra.mxu0 0.0
        %8434 = vmatprep.subr.mxu0 0.0
        %8435 = vmatpush1.msra.mxu0 0.0
        %8436 = vmatprep.subr.mxu0 0.0
        %8437 = vmatpush1.msra.mxu0 0.0
        %8438 = vmatprep.subr.mxu0 0.0
        %8439 = vmatpush1.msra.mxu0 0.0
        %8440 = vmatprep.subr.mxu0 0.0
        %8441 = vmatpush1.msra.mxu0 0.0
        %8442 = vmatprep.subr.mxu0 0.0
        %8443 = vmatpush1.msra.mxu0 0.0
        %8444 = vmatprep.subr.mxu0 0.0
        %8445 = vmatpush1.msra.mxu0 0.0
        %8446 = vmatprep.subr.mxu0 0.0
        %8447 = vmatpush1.msra.mxu0 0.0
        %8448 = vmatprep.subr.mxu0 0.0
        %8449 = vmatpush1.msra.mxu0 0.0
        %8450 = vmatprep.subr.mxu0 0.0
        %8451 = vmatpush1.msra.mxu0 0.0
        %8452 = vmatprep.subr.mxu0 0.0
        %8453 = vmatpush1.msra.mxu0 0.0
        %8454 = vmatprep.subr.mxu0 0.0
        %8455 = vmatpush1.msra.mxu0 0.0
        %8456 = vmatprep.subr.mxu0 0.0
        %8457 = vmatpush1.msra.mxu0 0.0
        %8458 = vmatprep.mubr.f32.mxu0 0.0
        %8459 = vmatmul.mubr.f32.gmra.mrb[0].mxu0 %v8024
        %v8460 = vpop.f32.mrb[0].mxu0
        %v8461 = vadd.f32 0.0, %v8460
        %v8462 = vpop.f32.mrb[0].mxu0
        %8463 = vdwg.mxu0
        %v8465 = vsel %vm193, %v8020, 0
        %8467 = vmatprep.subr.mxu0 0.0
        %8468 = vmatpush1.msra.mxu0 %v8465
        %8469 = vmatprep.subr.mxu0 0.0
        %8470 = vmatpush1.msra.mxu0 0.0
        %8471 = vmatprep.subr.mxu0 0.0
        %8472 = vmatpush1.msra.mxu0 0.0
        %8473 = vmatprep.subr.mxu0 0.0
        %8474 = vmatpush1.msra.mxu0 0.0
        %8475 = vmatprep.subr.mxu0 0.0
        %8476 = vmatpush1.msra.mxu0 0.0
        %8477 = vmatprep.subr.mxu0 0.0
        %8478 = vmatpush1.msra.mxu0 0.0
        %8479 = vmatprep.subr.mxu0 0.0
        %8480 = vmatpush1.msra.mxu0 0.0
        %8481 = vmatprep.subr.mxu0 0.0
        %8482 = vmatpush1.msra.mxu0 0.0
        %8483 = vmatprep.subr.mxu0 0.0
        %8484 = vmatpush1.msra.mxu0 0.0
        %8485 = vmatprep.subr.mxu0 0.0
        %8486 = vmatpush1.msra.mxu0 0.0
        %8487 = vmatprep.subr.mxu0 0.0
        %8488 = vmatpush1.msra.mxu0 0.0
        %8489 = vmatprep.subr.mxu0 0.0
        %8490 = vmatpush1.msra.mxu0 0.0
        %8491 = vmatprep.subr.mxu0 0.0
        %8492 = vmatpush1.msra.mxu0 0.0
        %8493 = vmatprep.subr.mxu0 0.0
        %8494 = vmatpush1.msra.mxu0 0.0
        %8495 = vmatprep.subr.mxu0 0.0
        %8496 = vmatpush1.msra.mxu0 0.0
        %8497 = vmatprep.subr.mxu0 0.0
        %8498 = vmatpush1.msra.mxu0 0.0
        %8499 = vmatprep.subr.mxu0 0.0
        %8500 = vmatpush1.msra.mxu0 0.0
        %8501 = vmatprep.subr.mxu0 0.0
        %8502 = vmatpush1.msra.mxu0 0.0
        %8503 = vmatprep.subr.mxu0 0.0
        %8504 = vmatpush1.msra.mxu0 0.0
        %8505 = vmatprep.subr.mxu0 0.0
        %8506 = vmatpush1.msra.mxu0 0.0
        %8507 = vmatprep.subr.mxu0 0.0
        %8508 = vmatpush1.msra.mxu0 0.0
        %8509 = vmatprep.subr.mxu0 0.0
        %8510 = vmatpush1.msra.mxu0 0.0
        %8511 = vmatprep.subr.mxu0 0.0
        %8512 = vmatpush1.msra.mxu0 0.0
        %8513 = vmatprep.subr.mxu0 0.0
        %8514 = vmatpush1.msra.mxu0 0.0
        %8515 = vmatprep.subr.mxu0 0.0
        %8516 = vmatpush1.msra.mxu0 0.0
        %8517 = vmatprep.subr.mxu0 0.0
        %8518 = vmatpush1.msra.mxu0 0.0
        %8519 = vmatprep.subr.mxu0 0.0
        %8520 = vmatpush1.msra.mxu0 0.0
        %8521 = vmatprep.subr.mxu0 0.0
        %8522 = vmatpush1.msra.mxu0 0.0
        %8523 = vmatprep.subr.mxu0 0.0
        %8524 = vmatpush1.msra.mxu0 0.0
        %8525 = vmatprep.subr.mxu0 0.0
        %8526 = vmatpush1.msra.mxu0 0.0
        %8527 = vmatprep.subr.mxu0 0.0
        %8528 = vmatpush1.msra.mxu0 0.0
        %8529 = vmatprep.subr.mxu0 0.0
        %8530 = vmatpush1.msra.mxu0 0.0
        %8531 = vmatprep.mubr.f32.mxu0 0.0
        %8532 = vmatmul.mubr.f32.gmra.mrb[0].mxu0 %v8024
        %v8533 = vpop.f32.mrb[0].mxu0
        %v8534 = vadd.f32 0.0, %v8533
        %v8535 = vpop.f32.mrb[0].mxu0
        %8536 = vdwg.mxu0
        %v8538 = vsel %vm193, %v8021, 0
        %8540 = vmatprep.subr.mxu0 0.0
        %8541 = vmatpush1.msra.mxu0 %v8538
        %8542 = vmatprep.subr.mxu0 0.0
        %8543 = vmatpush1.msra.mxu0 0.0
        %8544 = vmatprep.subr.mxu0 0.0
        %8545 = vmatpush1.msra.mxu0 0.0
        %8546 = vmatprep.subr.mxu0 0.0
        %8547 = vmatpush1.msra.mxu0 0.0
        %8548 = vmatprep.subr.mxu0 0.0
        %8549 = vmatpush1.msra.mxu0 0.0
        %8550 = vmatprep.subr.mxu0 0.0
        %8551 = vmatpush1.msra.mxu0 0.0
        %8552 = vmatprep.subr.mxu0 0.0
        %8553 = vmatpush1.msra.mxu0 0.0
        %8554 = vmatprep.subr.mxu0 0.0
        %8555 = vmatpush1.msra.mxu0 0.0
        %8556 = vmatprep.subr.mxu0 0.0
        %8557 = vmatpush1.msra.mxu0 0.0
        %8558 = vmatprep.subr.mxu0 0.0
        %8559 = vmatpush1.msra.mxu0 0.0
        %8560 = vmatprep.subr.mxu0 0.0
        %8561 = vmatpush1.msra.mxu0 0.0
        %8562 = vmatprep.subr.mxu0 0.0
        %8563 = vmatpush1.msra.mxu0 0.0
        %8564 = vmatprep.subr.mxu0 0.0
        %8565 = vmatpush1.msra.mxu0 0.0
        %8566 = vmatprep.subr.mxu0 0.0
        %8567 = vmatpush1.msra.mxu0 0.0
        %8568 = vmatprep.subr.mxu0 0.0
        %8569 = vmatpush1.msra.mxu0 0.0
        %8570 = vmatprep.subr.mxu0 0.0
        %8571 = vmatpush1.msra.mxu0 0.0
        %8572 = vmatprep.subr.mxu0 0.0
        %8573 = vmatpush1.msra.mxu0 0.0
        %8574 = vmatprep.subr.mxu0 0.0
        %8575 = vmatpush1.msra.mxu0 0.0
        %8576 = vmatprep.subr.mxu0 0.0
        %8577 = vmatpush1.msra.mxu0 0.0
        %8578 = vmatprep.subr.mxu0 0.0
        %8579 = vmatpush1.msra.mxu0 0.0
        %8580 = vmatprep.subr.mxu0 0.0
        %8581 = vmatpush1.msra.mxu0 0.0
        %8582 = vmatprep.subr.mxu0 0.0
        %8583 = vmatpush1.msra.mxu0 0.0
        %8584 = vmatprep.subr.mxu0 0.0
        %8585 = vmatpush1.msra.mxu0 0.0
        %8586 = vmatprep.subr.mxu0 0.0
        %8587 = vmatpush1.msra.mxu0 0.0
        %8588 = vmatprep.subr.mxu0 0.0
        %8589 = vmatpush1.msra.mxu0 0.0
        %8590 = vmatprep.subr.mxu0 0.0
        %8591 = vmatpush1.msra.mxu0 0.0
        %8592 = vmatprep.subr.mxu0 0.0
        %8593 = vmatpush1.msra.mxu0 0.0
        %8594 = vmatprep.subr.mxu0 0.0
        %8595 = vmatpush1.msra.mxu0 0.0
        %8596 = vmatprep.subr.mxu0 0.0
        %8597 = vmatpush1.msra.mxu0 0.0
        %8598 = vmatprep.subr.mxu0 0.0
        %8599 = vmatpush1.msra.mxu0 0.0
        %8600 = vmatprep.subr.mxu0 0.0
        %8601 = vmatpush1.msra.mxu0 0.0
        %8602 = vmatprep.subr.mxu0 0.0
        %8603 = vmatpush1.msra.mxu0 0.0
        %8604 = vmatprep.mubr.f32.mxu0 0.0
        %8605 = vmatmul.mubr.f32.gmra.mrb[0].mxu0 %v8024
        %v8606 = vpop.f32.mrb[0].mxu0
        %v8607 = vadd.f32 0.0, %v8606
        %v8608 = vpop.f32.mrb[0].mxu0
        %8609 = vdwg.mxu0
        %v8610 = vadd.f32 %v8005, %v8096
        %v8611 = vadd.f32 %v8006, %v8169
        %v8612 = vadd.f32 %v8007, %v8242
        %v8613 = vadd.f32 %v8008, %v8315
        %v8614 = vadd.f32 %v8009, %v8388
        %v8615 = vadd.f32 %v8010, %v8461
        %v8616 = vadd.f32 %v8011, %v8534
        %v8617 = vadd.f32 %v8012, %v8607
        %8618 = vrot.lane.b32.xlu0 %v177, 72
        %v8619 = vpop.permute.xlu0 %8618
        %8620 = vrot.lane.b32.xlu0 %v7409, 127
        %v8621 = vpop.permute.xlu0 %8620
        %v8622 = vsel %vm190, %v8619, 0
        %v8624 = vsel %vm193, %v8621, 0
        %8626 = vmatprep.subr.mxu0 0.0
        %8627 = vmatpush1.msra.mxu0 %v8624
        %8628 = vmatprep.subr.mxu0 0.0
        %8629 = vmatpush1.msra.mxu0 0.0
        %8630 = vmatprep.subr.mxu0 0.0
        %8631 = vmatpush1.msra.mxu0 0.0
        %8632 = vmatprep.subr.mxu0 0.0
        %8633 = vmatpush1.msra.mxu0 0.0
        %8634 = vmatprep.subr.mxu0 0.0
        %8635 = vmatpush1.msra.mxu0 0.0
        %8636 = vmatprep.subr.mxu0 0.0
        %8637 = vmatpush1.msra.mxu0 0.0
        %8638 = vmatprep.subr.mxu0 0.0
        %8639 = vmatpush1.msra.mxu0 0.0
        %8640 = vmatprep.subr.mxu0 0.0
        %8641 = vmatpush1.msra.mxu0 0.0
        %8642 = vmatprep.subr.mxu0 0.0
        %8643 = vmatpush1.msra.mxu0 0.0
        %8644 = vmatprep.subr.mxu0 0.0
        %8645 = vmatpush1.msra.mxu0 0.0
        %8646 = vmatprep.subr.mxu0 0.0
        %8647 = vmatpush1.msra.mxu0 0.0
        %8648 = vmatprep.subr.mxu0 0.0
        %8649 = vmatpush1.msra.mxu0 0.0
        %8650 = vmatprep.subr.mxu0 0.0
        %8651 = vmatpush1.msra.mxu0 0.0
        %8652 = vmatprep.subr.mxu0 0.0
        %8653 = vmatpush1.msra.mxu0 0.0
        %8654 = vmatprep.subr.mxu0 0.0
        %8655 = vmatpush1.msra.mxu0 0.0
        %8656 = vmatprep.subr.mxu0 0.0
        %8657 = vmatpush1.msra.mxu0 0.0
        %8658 = vmatprep.subr.mxu0 0.0
        %8659 = vmatpush1.msra.mxu0 0.0
        %8660 = vmatprep.subr.mxu0 0.0
        %8661 = vmatpush1.msra.mxu0 0.0
        %8662 = vmatprep.subr.mxu0 0.0
        %8663 = vmatpush1.msra.mxu0 0.0
        %8664 = vmatprep.subr.mxu0 0.0
        %8665 = vmatpush1.msra.mxu0 0.0
        %8666 = vmatprep.subr.mxu0 0.0
        %8667 = vmatpush1.msra.mxu0 0.0
        %8668 = vmatprep.subr.mxu0 0.0
        %8669 = vmatpush1.msra.mxu0 0.0
        %8670 = vmatprep.subr.mxu0 0.0
        %8671 = vmatpush1.msra.mxu0 0.0
        %8672 = vmatprep.subr.mxu0 0.0
        %8673 = vmatpush1.msra.mxu0 0.0
        %8674 = vmatprep.subr.mxu0 0.0
        %8675 = vmatpush1.msra.mxu0 0.0
        %8676 = vmatprep.subr.mxu0 0.0
        %8677 = vmatpush1.msra.mxu0 0.0
        %8678 = vmatprep.subr.mxu0 0.0
        %8679 = vmatpush1.msra.mxu0 0.0
        %8680 = vmatprep.subr.mxu0 0.0
        %8681 = vmatpush1.msra.mxu0 0.0
        %8682 = vmatprep.subr.mxu0 0.0
        %8683 = vmatpush1.msra.mxu0 0.0
        %8684 = vmatprep.subr.mxu0 0.0
        %8685 = vmatpush1.msra.mxu0 0.0
        %8686 = vmatprep.subr.mxu0 0.0
        %8687 = vmatpush1.msra.mxu0 0.0
        %8688 = vmatprep.subr.mxu0 0.0
        %8689 = vmatpush1.msra.mxu0 0.0
        %8690 = vmatprep.mubr.f32.mxu0 0.0
        %8691 = vmatmul.mubr.f32.gmra.mrb[0].mxu0 %v8622
        %v8692 = vpop.f32.mrb[0].mxu0
        %v8693 = vadd.f32 0.0, %v8692
        %v8694 = vpop.f32.mrb[0].mxu0
        %8695 = vdwg.mxu0
        %8696 = vrot.lane.b32.xlu0 %v7410, 127
        %v8697 = vpop.permute.xlu0 %8696
        %v8698 = vsel %vm193, %v8697, 0
        %8700 = vmatprep.subr.mxu0 0.0
        %8701 = vmatpush1.msra.mxu0 %v8698
        %8702 = vmatprep.subr.mxu0 0.0
        %8703 = vmatpush1.msra.mxu0 0.0
        %8704 = vmatprep.subr.mxu0 0.0
        %8705 = vmatpush1.msra.mxu0 0.0
        %8706 = vmatprep.subr.mxu0 0.0
        %8707 = vmatpush1.msra.mxu0 0.0
        %8708 = vmatprep.subr.mxu0 0.0
        %8709 = vmatpush1.msra.mxu0 0.0
        %8710 = vmatprep.subr.mxu0 0.0
        %8711 = vmatpush1.msra.mxu0 0.0
        %8712 = vmatprep.subr.mxu0 0.0
        %8713 = vmatpush1.msra.mxu0 0.0
        %8714 = vmatprep.subr.mxu0 0.0
        %8715 = vmatpush1.msra.mxu0 0.0
        %8716 = vmatprep.subr.mxu0 0.0
        %8717 = vmatpush1.msra.mxu0 0.0
        %8718 = vmatprep.subr.mxu0 0.0
        %8719 = vmatpush1.msra.mxu0 0.0
        %8720 = vmatprep.subr.mxu0 0.0
        %8721 = vmatpush1.msra.mxu0 0.0
        %8722 = vmatprep.subr.mxu0 0.0
        %8723 = vmatpush1.msra.mxu0 0.0
        %8724 = vmatprep.subr.mxu0 0.0
        %8725 = vmatpush1.msra.mxu0 0.0
        %8726 = vmatprep.subr.mxu0 0.0
        %8727 = vmatpush1.msra.mxu0 0.0
        %8728 = vmatprep.subr.mxu0 0.0
        %8729 = vmatpush1.msra.mxu0 0.0
        %8730 = vmatprep.subr.mxu0 0.0
        %8731 = vmatpush1.msra.mxu0 0.0
        %8732 = vmatprep.subr.mxu0 0.0
        %8733 = vmatpush1.msra.mxu0 0.0
        %8734 = vmatprep.subr.mxu0 0.0
        %8735 = vmatpush1.msra.mxu0 0.0
        %8736 = vmatprep.subr.mxu0 0.0
        %8737 = vmatpush1.msra.mxu0 0.0
        %8738 = vmatprep.subr.mxu0 0.0
        %8739 = vmatpush1.msra.mxu0 0.0
        %8740 = vmatprep.subr.mxu0 0.0
        %8741 = vmatpush1.msra.mxu0 0.0
        %8742 = vmatprep.subr.mxu0 0.0
        %8743 = vmatpush1.msra.mxu0 0.0
        %8744 = vmatprep.subr.mxu0 0.0
        %8745 = vmatpush1.msra.mxu0 0.0
        %8746 = vmatprep.subr.mxu0 0.0
        %8747 = vmatpush1.msra.mxu0 0.0
        %8748 = vmatprep.subr.mxu0 0.0
        %8749 = vmatpush1.msra.mxu0 0.0
        %8750 = vmatprep.subr.mxu0 0.0
        %8751 = vmatpush1.msra.mxu0 0.0
        %8752 = vmatprep.subr.mxu0 0.0
        %8753 = vmatpush1.msra.mxu0 0.0
        %8754 = vmatprep.subr.mxu0 0.0
        %8755 = vmatpush1.msra.mxu0 0.0
        %8756 = vmatprep.subr.mxu0 0.0
        %8757 = vmatpush1.msra.mxu0 0.0
        %8758 = vmatprep.subr.mxu0 0.0
        %8759 = vmatpush1.msra.mxu0 0.0
        %8760 = vmatprep.subr.mxu0 0.0
        %8761 = vmatpush1.msra.mxu0 0.0
        %8762 = vmatprep.subr.mxu0 0.0
        %8763 = vmatpush1.msra.mxu0 0.0
        %8764 = vmatprep.mubr.f32.mxu0 0.0
        %8765 = vmatmul.mubr.f32.gmra.mrb[0].mxu0 %v8622
        %v8766 = vpop.f32.mrb[0].mxu0
        %v8767 = vadd.f32 0.0, %v8766
        %v8768 = vpop.f32.mrb[0].mxu0
        %8769 = vdwg.mxu0
        %8770 = vrot.lane.b32.xlu0 %v7411, 127
        %v8771 = vpop.permute.xlu0 %8770
        %v8772 = vsel %vm193, %v8771, 0
        %8774 = vmatprep.subr.mxu0 0.0
        %8775 = vmatpush1.msra.mxu0 %v8772
        %8776 = vmatprep.subr.mxu0 0.0
        %8777 = vmatpush1.msra.mxu0 0.0
        %8778 = vmatprep.subr.mxu0 0.0
        %8779 = vmatpush1.msra.mxu0 0.0
        %8780 = vmatprep.subr.mxu0 0.0
        %8781 = vmatpush1.msra.mxu0 0.0
        %8782 = vmatprep.subr.mxu0 0.0
        %8783 = vmatpush1.msra.mxu0 0.0
        %8784 = vmatprep.subr.mxu0 0.0
        %8785 = vmatpush1.msra.mxu0 0.0
        %8786 = vmatprep.subr.mxu0 0.0
        %8787 = vmatpush1.msra.mxu0 0.0
        %8788 = vmatprep.subr.mxu0 0.0
        %8789 = vmatpush1.msra.mxu0 0.0
        %8790 = vmatprep.subr.mxu0 0.0
        %8791 = vmatpush1.msra.mxu0 0.0
        %8792 = vmatprep.subr.mxu0 0.0
        %8793 = vmatpush1.msra.mxu0 0.0
        %8794 = vmatprep.subr.mxu0 0.0
        %8795 = vmatpush1.msra.mxu0 0.0
        %8796 = vmatprep.subr.mxu0 0.0
        %8797 = vmatpush1.msra.mxu0 0.0
        %8798 = vmatprep.subr.mxu0 0.0
        %8799 = vmatpush1.msra.mxu0 0.0
        %8800 = vmatprep.subr.mxu0 0.0
        %8801 = vmatpush1.msra.mxu0 0.0
        %8802 = vmatprep.subr.mxu0 0.0
        %8803 = vmatpush1.msra.mxu0 0.0
        %8804 = vmatprep.subr.mxu0 0.0
        %8805 = vmatpush1.msra.mxu0 0.0
        %8806 = vmatprep.subr.mxu0 0.0
        %8807 = vmatpush1.msra.mxu0 0.0
        %8808 = vmatprep.subr.mxu0 0.0
        %8809 = vmatpush1.msra.mxu0 0.0
        %8810 = vmatprep.subr.mxu0 0.0
        %8811 = vmatpush1.msra.mxu0 0.0
        %8812 = vmatprep.subr.mxu0 0.0
        %8813 = vmatpush1.msra.mxu0 0.0
        %8814 = vmatprep.subr.mxu0 0.0
        %8815 = vmatpush1.msra.mxu0 0.0
        %8816 = vmatprep.subr.mxu0 0.0
        %8817 = vmatpush1.msra.mxu0 0.0
        %8818 = vmatprep.subr.mxu0 0.0
        %8819 = vmatpush1.msra.mxu0 0.0
        %8820 = vmatprep.subr.mxu0 0.0
        %8821 = vmatpush1.msra.mxu0 0.0
        %8822 = vmatprep.subr.mxu0 0.0
        %8823 = vmatpush1.msra.mxu0 0.0
        %8824 = vmatprep.subr.mxu0 0.0
        %8825 = vmatpush1.msra.mxu0 0.0
        %8826 = vmatprep.subr.mxu0 0.0
        %8827 = vmatpush1.msra.mxu0 0.0
        %8828 = vmatprep.subr.mxu0 0.0
        %8829 = vmatpush1.msra.mxu0 0.0
        %8830 = vmatprep.subr.mxu0 0.0
        %8831 = vmatpush1.msra.mxu0 0.0
        %8832 = vmatprep.subr.mxu0 0.0
        %8833 = vmatpush1.msra.mxu0 0.0
        %8834 = vmatprep.subr.mxu0 0.0
        %8835 = vmatpush1.msra.mxu0 0.0
        %8836 = vmatprep.subr.mxu0 0.0
        %8837 = vmatpush1.msra.mxu0 0.0
        %8838 = vmatprep.mubr.f32.mxu0 0.0
        %8839 = vmatmul.mubr.f32.gmra.mrb[0].mxu0 %v8622
        %v8840 = vpop.f32.mrb[0].mxu0
        %v8841 = vadd.f32 0.0, %v8840
        %v8842 = vpop.f32.mrb[0].mxu0
        %8843 = vdwg.mxu0
        %8844 = vrot.lane.b32.xlu0 %v7412, 127
        %v8845 = vpop.permute.xlu0 %8844
        %v8846 = vsel %vm193, %v8845, 0
        %8848 = vmatprep.subr.mxu0 0.0
        %8849 = vmatpush1.msra.mxu0 %v8846
        %8850 = vmatprep.subr.mxu0 0.0
        %8851 = vmatpush1.msra.mxu0 0.0
        %8852 = vmatprep.subr.mxu0 0.0
        %8853 = vmatpush1.msra.mxu0 0.0
        %8854 = vmatprep.subr.mxu0 0.0
        %8855 = vmatpush1.msra.mxu0 0.0
        %8856 = vmatprep.subr.mxu0 0.0
        %8857 = vmatpush1.msra.mxu0 0.0
        %8858 = vmatprep.subr.mxu0 0.0
        %8859 = vmatpush1.msra.mxu0 0.0
        %8860 = vmatprep.subr.mxu0 0.0
        %8861 = vmatpush1.msra.mxu0 0.0
        %8862 = vmatprep.subr.mxu0 0.0
        %8863 = vmatpush1.msra.mxu0 0.0
        %8864 = vmatprep.subr.mxu0 0.0
        %8865 = vmatpush1.msra.mxu0 0.0
        %8866 = vmatprep.subr.mxu0 0.0
        %8867 = vmatpush1.msra.mxu0 0.0
        %8868 = vmatprep.subr.mxu0 0.0
        %8869 = vmatpush1.msra.mxu0 0.0
        %8870 = vmatprep.subr.mxu0 0.0
        %8871 = vmatpush1.msra.mxu0 0.0
        %8872 = vmatprep.subr.mxu0 0.0
        %8873 = vmatpush1.msra.mxu0 0.0
        %8874 = vmatprep.subr.mxu0 0.0
        %8875 = vmatpush1.msra.mxu0 0.0
        %8876 = vmatprep.subr.mxu0 0.0
        %8877 = vmatpush1.msra.mxu0 0.0
        %8878 = vmatprep.subr.mxu0 0.0
        %8879 = vmatpush1.msra.mxu0 0.0
        %8880 = vmatprep.subr.mxu0 0.0
        %8881 = vmatpush1.msra.mxu0 0.0
        %8882 = vmatprep.subr.mxu0 0.0
        %8883 = vmatpush1.msra.mxu0 0.0
        %8884 = vmatprep.subr.mxu0 0.0
        %8885 = vmatpush1.msra.mxu0 0.0
        %8886 = vmatprep.subr.mxu0 0.0
        %8887 = vmatpush1.msra.mxu0 0.0
        %8888 = vmatprep.subr.mxu0 0.0
        %8889 = vmatpush1.msra.mxu0 0.0
        %8890 = vmatprep.subr.mxu0 0.0
        %8891 = vmatpush1.msra.mxu0 0.0
        %8892 = vmatprep.subr.mxu0 0.0
        %8893 = vmatpush1.msra.mxu0 0.0
        %8894 = vmatprep.subr.mxu0 0.0
        %8895 = vmatpush1.msra.mxu0 0.0
        %8896 = vmatprep.subr.mxu0 0.0
        %8897 = vmatpush1.msra.mxu0 0.0
        %8898 = vmatprep.subr.mxu0 0.0
        %8899 = vmatpush1.msra.mxu0 0.0
        %8900 = vmatprep.subr.mxu0 0.0
        %8901 = vmatpush1.msra.mxu0 0.0
        %8902 = vmatprep.subr.mxu0 0.0
        %8903 = vmatpush1.msra.mxu0 0.0
        %8904 = vmatprep.subr.mxu0 0.0
        %8905 = vmatpush1.msra.mxu0 0.0
        %8906 = vmatprep.subr.mxu0 0.0
        %8907 = vmatpush1.msra.mxu0 0.0
        %8908 = vmatprep.subr.mxu0 0.0
        %8909 = vmatpush1.msra.mxu0 0.0
        %8910 = vmatprep.subr.mxu0 0.0
        %8911 = vmatpush1.msra.mxu0 0.0
        %8912 = vmatprep.mubr.f32.mxu0 0.0
        %8913 = vmatmul.mubr.f32.gmra.mrb[0].mxu0 %v8622
        %v8914 = vpop.f32.mrb[0].mxu0
        %v8915 = vadd.f32 0.0, %v8914
        %v8916 = vpop.f32.mrb[0].mxu0
        %8917 = vdwg.mxu0
        %8918 = vrot.lane.b32.xlu0 %v7413, 127
        %v8919 = vpop.permute.xlu0 %8918
        %v8920 = vsel %vm193, %v8919, 0
        %8922 = vmatprep.subr.mxu0 0.0
        %8923 = vmatpush1.msra.mxu0 %v8920
        %8924 = vmatprep.subr.mxu0 0.0
        %8925 = vmatpush1.msra.mxu0 0.0
        %8926 = vmatprep.subr.mxu0 0.0
        %8927 = vmatpush1.msra.mxu0 0.0
        %8928 = vmatprep.subr.mxu0 0.0
        %8929 = vmatpush1.msra.mxu0 0.0
        %8930 = vmatprep.subr.mxu0 0.0
        %8931 = vmatpush1.msra.mxu0 0.0
        %8932 = vmatprep.subr.mxu0 0.0
        %8933 = vmatpush1.msra.mxu0 0.0
        %8934 = vmatprep.subr.mxu0 0.0
        %8935 = vmatpush1.msra.mxu0 0.0
        %8936 = vmatprep.subr.mxu0 0.0
        %8937 = vmatpush1.msra.mxu0 0.0
        %8938 = vmatprep.subr.mxu0 0.0
        %8939 = vmatpush1.msra.mxu0 0.0
        %8940 = vmatprep.subr.mxu0 0.0
        %8941 = vmatpush1.msra.mxu0 0.0
        %8942 = vmatprep.subr.mxu0 0.0
        %8943 = vmatpush1.msra.mxu0 0.0
        %8944 = vmatprep.subr.mxu0 0.0
        %8945 = vmatpush1.msra.mxu0 0.0
        %8946 = vmatprep.subr.mxu0 0.0
        %8947 = vmatpush1.msra.mxu0 0.0
        %8948 = vmatprep.subr.mxu0 0.0
        %8949 = vmatpush1.msra.mxu0 0.0
        %8950 = vmatprep.subr.mxu0 0.0
        %8951 = vmatpush1.msra.mxu0 0.0
        %8952 = vmatprep.subr.mxu0 0.0
        %8953 = vmatpush1.msra.mxu0 0.0
        %8954 = vmatprep.subr.mxu0 0.0
        %8955 = vmatpush1.msra.mxu0 0.0
        %8956 = vmatprep.subr.mxu0 0.0
        %8957 = vmatpush1.msra.mxu0 0.0
        %8958 = vmatprep.subr.mxu0 0.0
        %8959 = vmatpush1.msra.mxu0 0.0
        %8960 = vmatprep.subr.mxu0 0.0
        %8961 = vmatpush1.msra.mxu0 0.0
        %8962 = vmatprep.subr.mxu0 0.0
        %8963 = vmatpush1.msra.mxu0 0.0
        %8964 = vmatprep.subr.mxu0 0.0
        %8965 = vmatpush1.msra.mxu0 0.0
        %8966 = vmatprep.subr.mxu0 0.0
        %8967 = vmatpush1.msra.mxu0 0.0
        %8968 = vmatprep.subr.mxu0 0.0
        %8969 = vmatpush1.msra.mxu0 0.0
        %8970 = vmatprep.subr.mxu0 0.0
        %8971 = vmatpush1.msra.mxu0 0.0
        %8972 = vmatprep.subr.mxu0 0.0
        %8973 = vmatpush1.msra.mxu0 0.0
        %8974 = vmatprep.subr.mxu0 0.0
        %8975 = vmatpush1.msra.mxu0 0.0
        %8976 = vmatprep.subr.mxu0 0.0
        %8977 = vmatpush1.msra.mxu0 0.0
        %8978 = vmatprep.subr.mxu0 0.0
        %8979 = vmatpush1.msra.mxu0 0.0
        %8980 = vmatprep.subr.mxu0 0.0
        %8981 = vmatpush1.msra.mxu0 0.0
        %8982 = vmatprep.subr.mxu0 0.0
        %8983 = vmatpush1.msra.mxu0 0.0
        %8984 = vmatprep.subr.mxu0 0.0
        %8985 = vmatpush1.msra.mxu0 0.0
        %8986 = vmatprep.mubr.f32.mxu0 0.0
        %8987 = vmatmul.mubr.f32.gmra.mrb[0].mxu0 %v8622
        %v8988 = vpop.f32.mrb[0].mxu0
        %v8989 = vadd.f32 0.0, %v8988
        %v8990 = vpop.f32.mrb[0].mxu0
        %8991 = vdwg.mxu0
        %8992 = vrot.lane.b32.xlu0 %v7414, 127
        %v8993 = vpop.permute.xlu0 %8992
        %v8994 = vsel %vm193, %v8993, 0
        %8996 = vmatprep.subr.mxu0 0.0
        %8997 = vmatpush1.msra.mxu0 %v8994
        %8998 = vmatprep.subr.mxu0 0.0
        %8999 = vmatpush1.msra.mxu0 0.0
        %9000 = vmatprep.subr.mxu0 0.0
        %9001 = vmatpush1.msra.mxu0 0.0
        %9002 = vmatprep.subr.mxu0 0.0
        %9003 = vmatpush1.msra.mxu0 0.0
        %9004 = vmatprep.subr.mxu0 0.0
        %9005 = vmatpush1.msra.mxu0 0.0
        %9006 = vmatprep.subr.mxu0 0.0
        %9007 = vmatpush1.msra.mxu0 0.0
        %9008 = vmatprep.subr.mxu0 0.0
        %9009 = vmatpush1.msra.mxu0 0.0
        %9010 = vmatprep.subr.mxu0 0.0
        %9011 = vmatpush1.msra.mxu0 0.0
        %9012 = vmatprep.subr.mxu0 0.0
        %9013 = vmatpush1.msra.mxu0 0.0
        %9014 = vmatprep.subr.mxu0 0.0
        %9015 = vmatpush1.msra.mxu0 0.0
        %9016 = vmatprep.subr.mxu0 0.0
        %9017 = vmatpush1.msra.mxu0 0.0
        %9018 = vmatprep.subr.mxu0 0.0
        %9019 = vmatpush1.msra.mxu0 0.0
        %9020 = vmatprep.subr.mxu0 0.0
        %9021 = vmatpush1.msra.mxu0 0.0
        %9022 = vmatprep.subr.mxu0 0.0
        %9023 = vmatpush1.msra.mxu0 0.0
        %9024 = vmatprep.subr.mxu0 0.0
        %9025 = vmatpush1.msra.mxu0 0.0
        %9026 = vmatprep.subr.mxu0 0.0
        %9027 = vmatpush1.msra.mxu0 0.0
        %9028 = vmatprep.subr.mxu0 0.0
        %9029 = vmatpush1.msra.mxu0 0.0
        %9030 = vmatprep.subr.mxu0 0.0
        %9031 = vmatpush1.msra.mxu0 0.0
        %9032 = vmatprep.subr.mxu0 0.0
        %9033 = vmatpush1.msra.mxu0 0.0
        %9034 = vmatprep.subr.mxu0 0.0
        %9035 = vmatpush1.msra.mxu0 0.0
        %9036 = vmatprep.subr.mxu0 0.0
        %9037 = vmatpush1.msra.mxu0 0.0
        %9038 = vmatprep.subr.mxu0 0.0
        %9039 = vmatpush1.msra.mxu0 0.0
        %9040 = vmatprep.subr.mxu0 0.0
        %9041 = vmatpush1.msra.mxu0 0.0
        %9042 = vmatprep.subr.mxu0 0.0
        %9043 = vmatpush1.msra.mxu0 0.0
        %9044 = vmatprep.subr.mxu0 0.0
        %9045 = vmatpush1.msra.mxu0 0.0
        %9046 = vmatprep.subr.mxu0 0.0
        %9047 = vmatpush1.msra.mxu0 0.0
        %9048 = vmatprep.subr.mxu0 0.0
        %9049 = vmatpush1.msra.mxu0 0.0
        %9050 = vmatprep.subr.mxu0 0.0
        %9051 = vmatpush1.msra.mxu0 0.0
        %9052 = vmatprep.subr.mxu0 0.0
        %9053 = vmatpush1.msra.mxu0 0.0
        %9054 = vmatprep.subr.mxu0 0.0
        %9055 = vmatpush1.msra.mxu0 0.0
        %9056 = vmatprep.subr.mxu0 0.0
        %9057 = vmatpush1.msra.mxu0 0.0
        %9058 = vmatprep.subr.mxu0 0.0
        %9059 = vmatpush1.msra.mxu0 0.0
        %9060 = vmatprep.mubr.f32.mxu0 0.0
        %9061 = vmatmul.mubr.f32.gmra.mrb[0].mxu0 %v8622
        %v9062 = vpop.f32.mrb[0].mxu0
        %v9063 = vadd.f32 0.0, %v9062
        %v9064 = vpop.f32.mrb[0].mxu0
        %9065 = vdwg.mxu0
        %9066 = vrot.lane.b32.xlu0 %v7415, 127
        %v9067 = vpop.permute.xlu0 %9066
        %v9068 = vsel %vm193, %v9067, 0
        %9070 = vmatprep.subr.mxu0 0.0
        %9071 = vmatpush1.msra.mxu0 %v9068
        %9072 = vmatprep.subr.mxu0 0.0
        %9073 = vmatpush1.msra.mxu0 0.0
        %9074 = vmatprep.subr.mxu0 0.0
        %9075 = vmatpush1.msra.mxu0 0.0
        %9076 = vmatprep.subr.mxu0 0.0
        %9077 = vmatpush1.msra.mxu0 0.0
        %9078 = vmatprep.subr.mxu0 0.0
        %9079 = vmatpush1.msra.mxu0 0.0
        %9080 = vmatprep.subr.mxu0 0.0
        %9081 = vmatpush1.msra.mxu0 0.0
        %9082 = vmatprep.subr.mxu0 0.0
        %9083 = vmatpush1.msra.mxu0 0.0
        %9084 = vmatprep.subr.mxu0 0.0
        %9085 = vmatpush1.msra.mxu0 0.0
        %9086 = vmatprep.subr.mxu0 0.0
        %9087 = vmatpush1.msra.mxu0 0.0
        %9088 = vmatprep.subr.mxu0 0.0
        %9089 = vmatpush1.msra.mxu0 0.0
        %9090 = vmatprep.subr.mxu0 0.0
        %9091 = vmatpush1.msra.mxu0 0.0
        %9092 = vmatprep.subr.mxu0 0.0
        %9093 = vmatpush1.msra.mxu0 0.0
        %9094 = vmatprep.subr.mxu0 0.0
        %9095 = vmatpush1.msra.mxu0 0.0
        %9096 = vmatprep.subr.mxu0 0.0
        %9097 = vmatpush1.msra.mxu0 0.0
        %9098 = vmatprep.subr.mxu0 0.0
        %9099 = vmatpush1.msra.mxu0 0.0
        %9100 = vmatprep.subr.mxu0 0.0
        %9101 = vmatpush1.msra.mxu0 0.0
        %9102 = vmatprep.subr.mxu0 0.0
        %9103 = vmatpush1.msra.mxu0 0.0
        %9104 = vmatprep.subr.mxu0 0.0
        %9105 = vmatpush1.msra.mxu0 0.0
        %9106 = vmatprep.subr.mxu0 0.0
        %9107 = vmatpush1.msra.mxu0 0.0
        %9108 = vmatprep.subr.mxu0 0.0
        %9109 = vmatpush1.msra.mxu0 0.0
        %9110 = vmatprep.subr.mxu0 0.0
        %9111 = vmatpush1.msra.mxu0 0.0
        %9112 = vmatprep.subr.mxu0 0.0
        %9113 = vmatpush1.msra.mxu0 0.0
        %9114 = vmatprep.subr.mxu0 0.0
        %9115 = vmatpush1.msra.mxu0 0.0
        %9116 = vmatprep.subr.mxu0 0.0
        %9117 = vmatpush1.msra.mxu0 0.0
        %9118 = vmatprep.subr.mxu0 0.0
        %9119 = vmatpush1.msra.mxu0 0.0
        %9120 = vmatprep.subr.mxu0 0.0
        %9121 = vmatpush1.msra.mxu0 0.0
        %9122 = vmatprep.subr.mxu0 0.0
        %9123 = vmatpush1.msra.mxu0 0.0
        %9124 = vmatprep.subr.mxu0 0.0
        %9125 = vmatpush1.msra.mxu0 0.0
        %9126 = vmatprep.subr.mxu0 0.0
        %9127 = vmatpush1.msra.mxu0 0.0
        %9128 = vmatprep.subr.mxu0 0.0
        %9129 = vmatpush1.msra.mxu0 0.0
        %9130 = vmatprep.subr.mxu0 0.0
        %9131 = vmatpush1.msra.mxu0 0.0
        %9132 = vmatprep.subr.mxu0 0.0
        %9133 = vmatpush1.msra.mxu0 0.0
        %9134 = vmatprep.mubr.f32.mxu0 0.0
        %9135 = vmatmul.mubr.f32.gmra.mrb[0].mxu0 %v8622
        %v9136 = vpop.f32.mrb[0].mxu0
        %v9137 = vadd.f32 0.0, %v9136
        %v9138 = vpop.f32.mrb[0].mxu0
        %9139 = vdwg.mxu0
        %9140 = vrot.lane.b32.xlu0 %v7416, 127
        %v9141 = vpop.permute.xlu0 %9140
        %v9142 = vsel %vm193, %v9141, 0
        %9144 = vmatprep.subr.mxu0 0.0
        %9145 = vmatpush1.msra.mxu0 %v9142
        %9146 = vmatprep.subr.mxu0 0.0
        %9147 = vmatpush1.msra.mxu0 0.0
        %9148 = vmatprep.subr.mxu0 0.0
        %9149 = vmatpush1.msra.mxu0 0.0
        %9150 = vmatprep.subr.mxu0 0.0
        %9151 = vmatpush1.msra.mxu0 0.0
        %9152 = vmatprep.subr.mxu0 0.0
        %9153 = vmatpush1.msra.mxu0 0.0
        %9154 = vmatprep.subr.mxu0 0.0
        %9155 = vmatpush1.msra.mxu0 0.0
        %9156 = vmatprep.subr.mxu0 0.0
        %9157 = vmatpush1.msra.mxu0 0.0
        %9158 = vmatprep.subr.mxu0 0.0
        %9159 = vmatpush1.msra.mxu0 0.0
        %9160 = vmatprep.subr.mxu0 0.0
        %9161 = vmatpush1.msra.mxu0 0.0
        %9162 = vmatprep.subr.mxu0 0.0
        %9163 = vmatpush1.msra.mxu0 0.0
        %9164 = vmatprep.subr.mxu0 0.0
        %9165 = vmatpush1.msra.mxu0 0.0
        %9166 = vmatprep.subr.mxu0 0.0
        %9167 = vmatpush1.msra.mxu0 0.0
        %9168 = vmatprep.subr.mxu0 0.0
        %9169 = vmatpush1.msra.mxu0 0.0
        %9170 = vmatprep.subr.mxu0 0.0
        %9171 = vmatpush1.msra.mxu0 0.0
        %9172 = vmatprep.subr.mxu0 0.0
        %9173 = vmatpush1.msra.mxu0 0.0
        %9174 = vmatprep.subr.mxu0 0.0
        %9175 = vmatpush1.msra.mxu0 0.0
        %9176 = vmatprep.subr.mxu0 0.0
        %9177 = vmatpush1.msra.mxu0 0.0
        %9178 = vmatprep.subr.mxu0 0.0
        %9179 = vmatpush1.msra.mxu0 0.0
        %9180 = vmatprep.subr.mxu0 0.0
        %9181 = vmatpush1.msra.mxu0 0.0
        %9182 = vmatprep.subr.mxu0 0.0
        %9183 = vmatpush1.msra.mxu0 0.0
        %9184 = vmatprep.subr.mxu0 0.0
        %9185 = vmatpush1.msra.mxu0 0.0
        %9186 = vmatprep.subr.mxu0 0.0
        %9187 = vmatpush1.msra.mxu0 0.0
        %9188 = vmatprep.subr.mxu0 0.0
        %9189 = vmatpush1.msra.mxu0 0.0
        %9190 = vmatprep.subr.mxu0 0.0
        %9191 = vmatpush1.msra.mxu0 0.0
        %9192 = vmatprep.subr.mxu0 0.0
        %9193 = vmatpush1.msra.mxu0 0.0
        %9194 = vmatprep.subr.mxu0 0.0
        %9195 = vmatpush1.msra.mxu0 0.0
        %9196 = vmatprep.subr.mxu0 0.0
        %9197 = vmatpush1.msra.mxu0 0.0
        %9198 = vmatprep.subr.mxu0 0.0
        %9199 = vmatpush1.msra.mxu0 0.0
        %9200 = vmatprep.subr.mxu0 0.0
        %9201 = vmatpush1.msra.mxu0 0.0
        %9202 = vmatprep.subr.mxu0 0.0
        %9203 = vmatpush1.msra.mxu0 0.0
        %9204 = vmatprep.subr.mxu0 0.0
        %9205 = vmatpush1.msra.mxu0 0.0
        %9206 = vmatprep.subr.mxu0 0.0
        %9207 = vmatpush1.msra.mxu0 0.0
        %9208 = vmatprep.mubr.f32.mxu0 0.0
        %9209 = vmatmul.mubr.f32.gmra.mrb[0].mxu0 %v8622
        %v9210 = vpop.f32.mrb[0].mxu0
        %v9211 = vadd.f32 0.0, %v9210
        %v9212 = vpop.f32.mrb[0].mxu0
        %9213 = vdwg.mxu0
        %v9214 = vadd.f32 %v8610, %v8693
        %v9215 = vadd.f32 %v8611, %v8767
        %v9216 = vadd.f32 %v8612, %v8841
        %v9217 = vadd.f32 %v8613, %v8915
        %v9218 = vadd.f32 %v8614, %v8989
        %v9219 = vadd.f32 %v8615, %v9063
        %v9220 = vadd.f32 %v8616, %v9137
        %v9221 = vadd.f32 %v8617, %v9211
        %9222 = vrot.lane.b32.xlu0 %v177, 68
        %v9223 = vpop.permute.xlu0 %9222
        %9224 = vrot.lane.b32.xlu0 %v8014, 127
        %v9225 = vpop.permute.xlu0 %9224
        %v9226 = vsel %vm190, %v9223, 0
        %v9228 = vsel %vm193, %v9225, 0
        %9230 = vmatprep.subr.mxu0 0.0
        %9231 = vmatpush1.msra.mxu0 %v9228
        %9232 = vmatprep.subr.mxu0 0.0
        %9233 = vmatpush1.msra.mxu0 0.0
        %9234 = vmatprep.subr.mxu0 0.0
        %9235 = vmatpush1.msra.mxu0 0.0
        %9236 = vmatprep.subr.mxu0 0.0
        %9237 = vmatpush1.msra.mxu0 0.0
        %9238 = vmatprep.subr.mxu0 0.0
        %9239 = vmatpush1.msra.mxu0 0.0
        %9240 = vmatprep.subr.mxu0 0.0
        %9241 = vmatpush1.msra.mxu0 0.0
        %9242 = vmatprep.subr.mxu0 0.0
        %9243 = vmatpush1.msra.mxu0 0.0
        %9244 = vmatprep.subr.mxu0 0.0
        %9245 = vmatpush1.msra.mxu0 0.0
        %9246 = vmatprep.subr.mxu0 0.0
        %9247 = vmatpush1.msra.mxu0 0.0
        %9248 = vmatprep.subr.mxu0 0.0
        %9249 = vmatpush1.msra.mxu0 0.0
        %9250 = vmatprep.subr.mxu0 0.0
        %9251 = vmatpush1.msra.mxu0 0.0
        %9252 = vmatprep.subr.mxu0 0.0
        %9253 = vmatpush1.msra.mxu0 0.0
        %9254 = vmatprep.subr.mxu0 0.0
        %9255 = vmatpush1.msra.mxu0 0.0
        %9256 = vmatprep.subr.mxu0 0.0
        %9257 = vmatpush1.msra.mxu0 0.0
        %9258 = vmatprep.subr.mxu0 0.0
        %9259 = vmatpush1.msra.mxu0 0.0
        %9260 = vmatprep.subr.mxu0 0.0
        %9261 = vmatpush1.msra.mxu0 0.0
        %9262 = vmatprep.subr.mxu0 0.0
        %9263 = vmatpush1.msra.mxu0 0.0
        %9264 = vmatprep.subr.mxu0 0.0
        %9265 = vmatpush1.msra.mxu0 0.0
        %9266 = vmatprep.subr.mxu0 0.0
        %9267 = vmatpush1.msra.mxu0 0.0
        %9268 = vmatprep.subr.mxu0 0.0
        %9269 = vmatpush1.msra.mxu0 0.0
        %9270 = vmatprep.subr.mxu0 0.0
        %9271 = vmatpush1.msra.mxu0 0.0
        %9272 = vmatprep.subr.mxu0 0.0
        %9273 = vmatpush1.msra.mxu0 0.0
        %9274 = vmatprep.subr.mxu0 0.0
        %9275 = vmatpush1.msra.mxu0 0.0
        %9276 = vmatprep.subr.mxu0 0.0
        %9277 = vmatpush1.msra.mxu0 0.0
        %9278 = vmatprep.subr.mxu0 0.0
        %9279 = vmatpush1.msra.mxu0 0.0
        %9280 = vmatprep.subr.mxu0 0.0
        %9281 = vmatpush1.msra.mxu0 0.0
        %9282 = vmatprep.subr.mxu0 0.0
        %9283 = vmatpush1.msra.mxu0 0.0
        %9284 = vmatprep.subr.mxu0 0.0
        %9285 = vmatpush1.msra.mxu0 0.0
        %9286 = vmatprep.subr.mxu0 0.0
        %9287 = vmatpush1.msra.mxu0 0.0
        %9288 = vmatprep.subr.mxu0 0.0
        %9289 = vmatpush1.msra.mxu0 0.0
        %9290 = vmatprep.subr.mxu0 0.0
        %9291 = vmatpush1.msra.mxu0 0.0
        %9292 = vmatprep.subr.mxu0 0.0
        %9293 = vmatpush1.msra.mxu0 0.0
        %9294 = vmatprep.mubr.f32.mxu0 0.0
        %9295 = vmatmul.mubr.f32.gmra.mrb[0].mxu0 %v9226
        %v9296 = vpop.f32.mrb[0].mxu0
        %v9297 = vadd.f32 0.0, %v9296
        %v9298 = vpop.f32.mrb[0].mxu0
        %9299 = vdwg.mxu0
        %9300 = vrot.lane.b32.xlu0 %v8015, 127
        %v9301 = vpop.permute.xlu0 %9300
        %v9302 = vsel %vm193, %v9301, 0
        %9304 = vmatprep.subr.mxu0 0.0
        %9305 = vmatpush1.msra.mxu0 %v9302
        %9306 = vmatprep.subr.mxu0 0.0
        %9307 = vmatpush1.msra.mxu0 0.0
        %9308 = vmatprep.subr.mxu0 0.0
        %9309 = vmatpush1.msra.mxu0 0.0
        %9310 = vmatprep.subr.mxu0 0.0
        %9311 = vmatpush1.msra.mxu0 0.0
        %9312 = vmatprep.subr.mxu0 0.0
        %9313 = vmatpush1.msra.mxu0 0.0
        %9314 = vmatprep.subr.mxu0 0.0
        %9315 = vmatpush1.msra.mxu0 0.0
        %9316 = vmatprep.subr.mxu0 0.0
        %9317 = vmatpush1.msra.mxu0 0.0
        %9318 = vmatprep.subr.mxu0 0.0
        %9319 = vmatpush1.msra.mxu0 0.0
        %9320 = vmatprep.subr.mxu0 0.0
        %9321 = vmatpush1.msra.mxu0 0.0
        %9322 = vmatprep.subr.mxu0 0.0
        %9323 = vmatpush1.msra.mxu0 0.0
        %9324 = vmatprep.subr.mxu0 0.0
        %9325 = vmatpush1.msra.mxu0 0.0
        %9326 = vmatprep.subr.mxu0 0.0
        %9327 = vmatpush1.msra.mxu0 0.0
        %9328 = vmatprep.subr.mxu0 0.0
        %9329 = vmatpush1.msra.mxu0 0.0
        %9330 = vmatprep.subr.mxu0 0.0
        %9331 = vmatpush1.msra.mxu0 0.0
        %9332 = vmatprep.subr.mxu0 0.0
        %9333 = vmatpush1.msra.mxu0 0.0
        %9334 = vmatprep.subr.mxu0 0.0
        %9335 = vmatpush1.msra.mxu0 0.0
        %9336 = vmatprep.subr.mxu0 0.0
        %9337 = vmatpush1.msra.mxu0 0.0
        %9338 = vmatprep.subr.mxu0 0.0
        %9339 = vmatpush1.msra.mxu0 0.0
        %9340 = vmatprep.subr.mxu0 0.0
        %9341 = vmatpush1.msra.mxu0 0.0
        %9342 = vmatprep.subr.mxu0 0.0
        %9343 = vmatpush1.msra.mxu0 0.0
        %9344 = vmatprep.subr.mxu0 0.0
        %9345 = vmatpush1.msra.mxu0 0.0
        %9346 = vmatprep.subr.mxu0 0.0
        %9347 = vmatpush1.msra.mxu0 0.0
        %9348 = vmatprep.subr.mxu0 0.0
        %9349 = vmatpush1.msra.mxu0 0.0
        %9350 = vmatprep.subr.mxu0 0.0
        %9351 = vmatpush1.msra.mxu0 0.0
        %9352 = vmatprep.subr.mxu0 0.0
        %9353 = vmatpush1.msra.mxu0 0.0
        %9354 = vmatprep.subr.mxu0 0.0
        %9355 = vmatpush1.msra.mxu0 0.0
        %9356 = vmatprep.subr.mxu0 0.0
        %9357 = vmatpush1.msra.mxu0 0.0
        %9358 = vmatprep.subr.mxu0 0.0
        %9359 = vmatpush1.msra.mxu0 0.0
        %9360 = vmatprep.subr.mxu0 0.0
        %9361 = vmatpush1.msra.mxu0 0.0
        %9362 = vmatprep.subr.mxu0 0.0
        %9363 = vmatpush1.msra.mxu0 0.0
        %9364 = vmatprep.subr.mxu0 0.0
        %9365 = vmatpush1.msra.mxu0 0.0
        %9366 = vmatprep.subr.mxu0 0.0
        %9367 = vmatpush1.msra.mxu0 0.0
        %9368 = vmatprep.mubr.f32.mxu0 0.0
        %9369 = vmatmul.mubr.f32.gmra.mrb[0].mxu0 %v9226
        %v9370 = vpop.f32.mrb[0].mxu0
        %v9371 = vadd.f32 0.0, %v9370
        %v9372 = vpop.f32.mrb[0].mxu0
        %9373 = vdwg.mxu0
        %9374 = vrot.lane.b32.xlu0 %v8016, 127
        %v9375 = vpop.permute.xlu0 %9374
        %v9376 = vsel %vm193, %v9375, 0
        %9378 = vmatprep.subr.mxu0 0.0
        %9379 = vmatpush1.msra.mxu0 %v9376
        %9380 = vmatprep.subr.mxu0 0.0
        %9381 = vmatpush1.msra.mxu0 0.0
        %9382 = vmatprep.subr.mxu0 0.0
        %9383 = vmatpush1.msra.mxu0 0.0
        %9384 = vmatprep.subr.mxu0 0.0
        %9385 = vmatpush1.msra.mxu0 0.0
        %9386 = vmatprep.subr.mxu0 0.0
        %9387 = vmatpush1.msra.mxu0 0.0
        %9388 = vmatprep.subr.mxu0 0.0
        %9389 = vmatpush1.msra.mxu0 0.0
        %9390 = vmatprep.subr.mxu0 0.0
        %9391 = vmatpush1.msra.mxu0 0.0
        %9392 = vmatprep.subr.mxu0 0.0
        %9393 = vmatpush1.msra.mxu0 0.0
        %9394 = vmatprep.subr.mxu0 0.0
        %9395 = vmatpush1.msra.mxu0 0.0
        %9396 = vmatprep.subr.mxu0 0.0
        %9397 = vmatpush1.msra.mxu0 0.0
        %9398 = vmatprep.subr.mxu0 0.0
        %9399 = vmatpush1.msra.mxu0 0.0
        %9400 = vmatprep.subr.mxu0 0.0
        %9401 = vmatpush1.msra.mxu0 0.0
        %9402 = vmatprep.subr.mxu0 0.0
        %9403 = vmatpush1.msra.mxu0 0.0
        %9404 = vmatprep.subr.mxu0 0.0
        %9405 = vmatpush1.msra.mxu0 0.0
        %9406 = vmatprep.subr.mxu0 0.0
        %9407 = vmatpush1.msra.mxu0 0.0
        %9408 = vmatprep.subr.mxu0 0.0
        %9409 = vmatpush1.msra.mxu0 0.0
        %9410 = vmatprep.subr.mxu0 0.0
        %9411 = vmatpush1.msra.mxu0 0.0
        %9412 = vmatprep.subr.mxu0 0.0
        %9413 = vmatpush1.msra.mxu0 0.0
        %9414 = vmatprep.subr.mxu0 0.0
        %9415 = vmatpush1.msra.mxu0 0.0
        %9416 = vmatprep.subr.mxu0 0.0
        %9417 = vmatpush1.msra.mxu0 0.0
        %9418 = vmatprep.subr.mxu0 0.0
        %9419 = vmatpush1.msra.mxu0 0.0
        %9420 = vmatprep.subr.mxu0 0.0
        %9421 = vmatpush1.msra.mxu0 0.0
        %9422 = vmatprep.subr.mxu0 0.0
        %9423 = vmatpush1.msra.mxu0 0.0
        %9424 = vmatprep.subr.mxu0 0.0
        %9425 = vmatpush1.msra.mxu0 0.0
        %9426 = vmatprep.subr.mxu0 0.0
        %9427 = vmatpush1.msra.mxu0 0.0
        %9428 = vmatprep.subr.mxu0 0.0
        %9429 = vmatpush1.msra.mxu0 0.0
        %9430 = vmatprep.subr.mxu0 0.0
        %9431 = vmatpush1.msra.mxu0 0.0
        %9432 = vmatprep.subr.mxu0 0.0
        %9433 = vmatpush1.msra.mxu0 0.0
        %9434 = vmatprep.subr.mxu0 0.0
        %9435 = vmatpush1.msra.mxu0 0.0
        %9436 = vmatprep.subr.mxu0 0.0
        %9437 = vmatpush1.msra.mxu0 0.0
        %9438 = vmatprep.subr.mxu0 0.0
        %9439 = vmatpush1.msra.mxu0 0.0
        %9440 = vmatprep.subr.mxu0 0.0
        %9441 = vmatpush1.msra.mxu0 0.0
        %9442 = vmatprep.mubr.f32.mxu0 0.0
        %9443 = vmatmul.mubr.f32.gmra.mrb[0].mxu0 %v9226
        %v9444 = vpop.f32.mrb[0].mxu0
        %v9445 = vadd.f32 0.0, %v9444
        %v9446 = vpop.f32.mrb[0].mxu0
        %9447 = vdwg.mxu0
        %9448 = vrot.lane.b32.xlu0 %v8017, 127
        %v9449 = vpop.permute.xlu0 %9448
        %v9450 = vsel %vm193, %v9449, 0
        %9452 = vmatprep.subr.mxu0 0.0
        %9453 = vmatpush1.msra.mxu0 %v9450
        %9454 = vmatprep.subr.mxu0 0.0
        %9455 = vmatpush1.msra.mxu0 0.0
        %9456 = vmatprep.subr.mxu0 0.0
        %9457 = vmatpush1.msra.mxu0 0.0
        %9458 = vmatprep.subr.mxu0 0.0
        %9459 = vmatpush1.msra.mxu0 0.0
        %9460 = vmatprep.subr.mxu0 0.0
        %9461 = vmatpush1.msra.mxu0 0.0
        %9462 = vmatprep.subr.mxu0 0.0
        %9463 = vmatpush1.msra.mxu0 0.0
        %9464 = vmatprep.subr.mxu0 0.0
        %9465 = vmatpush1.msra.mxu0 0.0
        %9466 = vmatprep.subr.mxu0 0.0
        %9467 = vmatpush1.msra.mxu0 0.0
        %9468 = vmatprep.subr.mxu0 0.0
        %9469 = vmatpush1.msra.mxu0 0.0
        %9470 = vmatprep.subr.mxu0 0.0
        %9471 = vmatpush1.msra.mxu0 0.0
        %9472 = vmatprep.subr.mxu0 0.0
        %9473 = vmatpush1.msra.mxu0 0.0
        %9474 = vmatprep.subr.mxu0 0.0
        %9475 = vmatpush1.msra.mxu0 0.0
        %9476 = vmatprep.subr.mxu0 0.0
        %9477 = vmatpush1.msra.mxu0 0.0
        %9478 = vmatprep.subr.mxu0 0.0
        %9479 = vmatpush1.msra.mxu0 0.0
        %9480 = vmatprep.subr.mxu0 0.0
        %9481 = vmatpush1.msra.mxu0 0.0
        %9482 = vmatprep.subr.mxu0 0.0
        %9483 = vmatpush1.msra.mxu0 0.0
        %9484 = vmatprep.subr.mxu0 0.0
        %9485 = vmatpush1.msra.mxu0 0.0
        %9486 = vmatprep.subr.mxu0 0.0
        %9487 = vmatpush1.msra.mxu0 0.0
        %9488 = vmatprep.subr.mxu0 0.0
        %9489 = vmatpush1.msra.mxu0 0.0
        %9490 = vmatprep.subr.mxu0 0.0
        %9491 = vmatpush1.msra.mxu0 0.0
        %9492 = vmatprep.subr.mxu0 0.0
        %9493 = vmatpush1.msra.mxu0 0.0
        %9494 = vmatprep.subr.mxu0 0.0
        %9495 = vmatpush1.msra.mxu0 0.0
        %9496 = vmatprep.subr.mxu0 0.0
        %9497 = vmatpush1.msra.mxu0 0.0
        %9498 = vmatprep.subr.mxu0 0.0
        %9499 = vmatpush1.msra.mxu0 0.0
        %9500 = vmatprep.subr.mxu0 0.0
        %9501 = vmatpush1.msra.mxu0 0.0
        %9502 = vmatprep.subr.mxu0 0.0
        %9503 = vmatpush1.msra.mxu0 0.0
        %9504 = vmatprep.subr.mxu0 0.0
        %9505 = vmatpush1.msra.mxu0 0.0
        %9506 = vmatprep.subr.mxu0 0.0
        %9507 = vmatpush1.msra.mxu0 0.0
        %9508 = vmatprep.subr.mxu0 0.0
        %9509 = vmatpush1.msra.mxu0 0.0
        %9510 = vmatprep.subr.mxu0 0.0
        %9511 = vmatpush1.msra.mxu0 0.0
        %9512 = vmatprep.subr.mxu0 0.0
        %9513 = vmatpush1.msra.mxu0 0.0
        %9514 = vmatprep.subr.mxu0 0.0
        %9515 = vmatpush1.msra.mxu0 0.0
        %9516 = vmatprep.mubr.f32.mxu0 0.0
        %9517 = vmatmul.mubr.f32.gmra.mrb[0].mxu0 %v9226
        %v9518 = vpop.f32.mrb[0].mxu0
        %v9519 = vadd.f32 0.0, %v9518
        %v9520 = vpop.f32.mrb[0].mxu0
        %9521 = vdwg.mxu0
        %9522 = vrot.lane.b32.xlu0 %v8018, 127
        %v9523 = vpop.permute.xlu0 %9522
        %v9524 = vsel %vm193, %v9523, 0
        %9526 = vmatprep.subr.mxu0 0.0
        %9527 = vmatpush1.msra.mxu0 %v9524
        %9528 = vmatprep.subr.mxu0 0.0
        %9529 = vmatpush1.msra.mxu0 0.0
        %9530 = vmatprep.subr.mxu0 0.0
        %9531 = vmatpush1.msra.mxu0 0.0
        %9532 = vmatprep.subr.mxu0 0.0
        %9533 = vmatpush1.msra.mxu0 0.0
        %9534 = vmatprep.subr.mxu0 0.0
        %9535 = vmatpush1.msra.mxu0 0.0
        %9536 = vmatprep.subr.mxu0 0.0
        %9537 = vmatpush1.msra.mxu0 0.0
        %9538 = vmatprep.subr.mxu0 0.0
        %9539 = vmatpush1.msra.mxu0 0.0
        %9540 = vmatprep.subr.mxu0 0.0
        %9541 = vmatpush1.msra.mxu0 0.0
        %9542 = vmatprep.subr.mxu0 0.0
        %9543 = vmatpush1.msra.mxu0 0.0
        %9544 = vmatprep.subr.mxu0 0.0
        %9545 = vmatpush1.msra.mxu0 0.0
        %9546 = vmatprep.subr.mxu0 0.0
        %9547 = vmatpush1.msra.mxu0 0.0
        %9548 = vmatprep.subr.mxu0 0.0
        %9549 = vmatpush1.msra.mxu0 0.0
        %9550 = vmatprep.subr.mxu0 0.0
        %9551 = vmatpush1.msra.mxu0 0.0
        %9552 = vmatprep.subr.mxu0 0.0
        %9553 = vmatpush1.msra.mxu0 0.0
        %9554 = vmatprep.subr.mxu0 0.0
        %9555 = vmatpush1.msra.mxu0 0.0
        %9556 = vmatprep.subr.mxu0 0.0
        %9557 = vmatpush1.msra.mxu0 0.0
        %9558 = vmatprep.subr.mxu0 0.0
        %9559 = vmatpush1.msra.mxu0 0.0
        %9560 = vmatprep.subr.mxu0 0.0
        %9561 = vmatpush1.msra.mxu0 0.0
        %9562 = vmatprep.subr.mxu0 0.0
        %9563 = vmatpush1.msra.mxu0 0.0
        %9564 = vmatprep.subr.mxu0 0.0
        %9565 = vmatpush1.msra.mxu0 0.0
        %9566 = vmatprep.subr.mxu0 0.0
        %9567 = vmatpush1.msra.mxu0 0.0
        %9568 = vmatprep.subr.mxu0 0.0
        %9569 = vmatpush1.msra.mxu0 0.0
        %9570 = vmatprep.subr.mxu0 0.0
        %9571 = vmatpush1.msra.mxu0 0.0
        %9572 = vmatprep.subr.mxu0 0.0
        %9573 = vmatpush1.msra.mxu0 0.0
        %9574 = vmatprep.subr.mxu0 0.0
        %9575 = vmatpush1.msra.mxu0 0.0
        %9576 = vmatprep.subr.mxu0 0.0
        %9577 = vmatpush1.msra.mxu0 0.0
        %9578 = vmatprep.subr.mxu0 0.0
        %9579 = vmatpush1.msra.mxu0 0.0
        %9580 = vmatprep.subr.mxu0 0.0
        %9581 = vmatpush1.msra.mxu0 0.0
        %9582 = vmatprep.subr.mxu0 0.0
        %9583 = vmatpush1.msra.mxu0 0.0
        %9584 = vmatprep.subr.mxu0 0.0
        %9585 = vmatpush1.msra.mxu0 0.0
        %9586 = vmatprep.subr.mxu0 0.0
        %9587 = vmatpush1.msra.mxu0 0.0
        %9588 = vmatprep.subr.mxu0 0.0
        %9589 = vmatpush1.msra.mxu0 0.0
        %9590 = vmatprep.mubr.f32.mxu0 0.0
        %9591 = vmatmul.mubr.f32.gmra.mrb[0].mxu0 %v9226
        %v9592 = vpop.f32.mrb[0].mxu0
        %v9593 = vadd.f32 0.0, %v9592
        %v9594 = vpop.f32.mrb[0].mxu0
        %9595 = vdwg.mxu0
        %9596 = vrot.lane.b32.xlu0 %v8019, 127
        %v9597 = vpop.permute.xlu0 %9596
        %v9598 = vsel %vm193, %v9597, 0
        %9600 = vmatprep.subr.mxu0 0.0
        %9601 = vmatpush1.msra.mxu0 %v9598
        %9602 = vmatprep.subr.mxu0 0.0
        %9603 = vmatpush1.msra.mxu0 0.0
        %9604 = vmatprep.subr.mxu0 0.0
        %9605 = vmatpush1.msra.mxu0 0.0
        %9606 = vmatprep.subr.mxu0 0.0
        %9607 = vmatpush1.msra.mxu0 0.0
        %9608 = vmatprep.subr.mxu0 0.0
        %9609 = vmatpush1.msra.mxu0 0.0
        %9610 = vmatprep.subr.mxu0 0.0
        %9611 = vmatpush1.msra.mxu0 0.0
        %9612 = vmatprep.subr.mxu0 0.0
        %9613 = vmatpush1.msra.mxu0 0.0
        %9614 = vmatprep.subr.mxu0 0.0
        %9615 = vmatpush1.msra.mxu0 0.0
        %9616 = vmatprep.subr.mxu0 0.0
        %9617 = vmatpush1.msra.mxu0 0.0
        %9618 = vmatprep.subr.mxu0 0.0
        %9619 = vmatpush1.msra.mxu0 0.0
        %9620 = vmatprep.subr.mxu0 0.0
        %9621 = vmatpush1.msra.mxu0 0.0
        %9622 = vmatprep.subr.mxu0 0.0
        %9623 = vmatpush1.msra.mxu0 0.0
        %9624 = vmatprep.subr.mxu0 0.0
        %9625 = vmatpush1.msra.mxu0 0.0
        %9626 = vmatprep.subr.mxu0 0.0
        %9627 = vmatpush1.msra.mxu0 0.0
        %9628 = vmatprep.subr.mxu0 0.0
        %9629 = vmatpush1.msra.mxu0 0.0
        %9630 = vmatprep.subr.mxu0 0.0
        %9631 = vmatpush1.msra.mxu0 0.0
        %9632 = vmatprep.subr.mxu0 0.0
        %9633 = vmatpush1.msra.mxu0 0.0
        %9634 = vmatprep.subr.mxu0 0.0
        %9635 = vmatpush1.msra.mxu0 0.0
        %9636 = vmatprep.subr.mxu0 0.0
        %9637 = vmatpush1.msra.mxu0 0.0
        %9638 = vmatprep.subr.mxu0 0.0
        %9639 = vmatpush1.msra.mxu0 0.0
        %9640 = vmatprep.subr.mxu0 0.0
        %9641 = vmatpush1.msra.mxu0 0.0
        %9642 = vmatprep.subr.mxu0 0.0
        %9643 = vmatpush1.msra.mxu0 0.0
        %9644 = vmatprep.subr.mxu0 0.0
        %9645 = vmatpush1.msra.mxu0 0.0
        %9646 = vmatprep.subr.mxu0 0.0
        %9647 = vmatpush1.msra.mxu0 0.0
        %9648 = vmatprep.subr.mxu0 0.0
        %9649 = vmatpush1.msra.mxu0 0.0
        %9650 = vmatprep.subr.mxu0 0.0
        %9651 = vmatpush1.msra.mxu0 0.0
        %9652 = vmatprep.subr.mxu0 0.0
        %9653 = vmatpush1.msra.mxu0 0.0
        %9654 = vmatprep.subr.mxu0 0.0
        %9655 = vmatpush1.msra.mxu0 0.0
        %9656 = vmatprep.subr.mxu0 0.0
        %9657 = vmatpush1.msra.mxu0 0.0
        %9658 = vmatprep.subr.mxu0 0.0
        %9659 = vmatpush1.msra.mxu0 0.0
        %9660 = vmatprep.subr.mxu0 0.0
        %9661 = vmatpush1.msra.mxu0 0.0
        %9662 = vmatprep.subr.mxu0 0.0
        %9663 = vmatpush1.msra.mxu0 0.0
        %9664 = vmatprep.mubr.f32.mxu0 0.0
        %9665 = vmatmul.mubr.f32.gmra.mrb[0].mxu0 %v9226
        %v9666 = vpop.f32.mrb[0].mxu0
        %v9667 = vadd.f32 0.0, %v9666
        %v9668 = vpop.f32.mrb[0].mxu0
        %9669 = vdwg.mxu0
        %9670 = vrot.lane.b32.xlu0 %v8020, 127
        %v9671 = vpop.permute.xlu0 %9670
        %v9672 = vsel %vm193, %v9671, 0
        %9674 = vmatprep.subr.mxu0 0.0
        %9675 = vmatpush1.msra.mxu0 %v9672
        %9676 = vmatprep.subr.mxu0 0.0
        %9677 = vmatpush1.msra.mxu0 0.0
        %9678 = vmatprep.subr.mxu0 0.0
        %9679 = vmatpush1.msra.mxu0 0.0
        %9680 = vmatprep.subr.mxu0 0.0
        %9681 = vmatpush1.msra.mxu0 0.0
        %9682 = vmatprep.subr.mxu0 0.0
        %9683 = vmatpush1.msra.mxu0 0.0
        %9684 = vmatprep.subr.mxu0 0.0
        %9685 = vmatpush1.msra.mxu0 0.0
        %9686 = vmatprep.subr.mxu0 0.0
        %9687 = vmatpush1.msra.mxu0 0.0
        %9688 = vmatprep.subr.mxu0 0.0
        %9689 = vmatpush1.msra.mxu0 0.0
        %9690 = vmatprep.subr.mxu0 0.0
        %9691 = vmatpush1.msra.mxu0 0.0
        %9692 = vmatprep.subr.mxu0 0.0
        %9693 = vmatpush1.msra.mxu0 0.0
        %9694 = vmatprep.subr.mxu0 0.0
        %9695 = vmatpush1.msra.mxu0 0.0
        %9696 = vmatprep.subr.mxu0 0.0
        %9697 = vmatpush1.msra.mxu0 0.0
        %9698 = vmatprep.subr.mxu0 0.0
        %9699 = vmatpush1.msra.mxu0 0.0
        %9700 = vmatprep.subr.mxu0 0.0
        %9701 = vmatpush1.msra.mxu0 0.0
        %9702 = vmatprep.subr.mxu0 0.0
        %9703 = vmatpush1.msra.mxu0 0.0
        %9704 = vmatprep.subr.mxu0 0.0
        %9705 = vmatpush1.msra.mxu0 0.0
        %9706 = vmatprep.subr.mxu0 0.0
        %9707 = vmatpush1.msra.mxu0 0.0
        %9708 = vmatprep.subr.mxu0 0.0
        %9709 = vmatpush1.msra.mxu0 0.0
        %9710 = vmatprep.subr.mxu0 0.0
        %9711 = vmatpush1.msra.mxu0 0.0
        %9712 = vmatprep.subr.mxu0 0.0
        %9713 = vmatpush1.msra.mxu0 0.0
        %9714 = vmatprep.subr.mxu0 0.0
        %9715 = vmatpush1.msra.mxu0 0.0
        %9716 = vmatprep.subr.mxu0 0.0
        %9717 = vmatpush1.msra.mxu0 0.0
        %9718 = vmatprep.subr.mxu0 0.0
        %9719 = vmatpush1.msra.mxu0 0.0
        %9720 = vmatprep.subr.mxu0 0.0
        %9721 = vmatpush1.msra.mxu0 0.0
        %9722 = vmatprep.subr.mxu0 0.0
        %9723 = vmatpush1.msra.mxu0 0.0
        %9724 = vmatprep.subr.mxu0 0.0
        %9725 = vmatpush1.msra.mxu0 0.0
        %9726 = vmatprep.subr.mxu0 0.0
        %9727 = vmatpush1.msra.mxu0 0.0
        %9728 = vmatprep.subr.mxu0 0.0
        %9729 = vmatpush1.msra.mxu0 0.0
        %9730 = vmatprep.subr.mxu0 0.0
        %9731 = vmatpush1.msra.mxu0 0.0
        %9732 = vmatprep.subr.mxu0 0.0
        %9733 = vmatpush1.msra.mxu0 0.0
        %9734 = vmatprep.subr.mxu0 0.0
        %9735 = vmatpush1.msra.mxu0 0.0
        %9736 = vmatprep.subr.mxu0 0.0
        %9737 = vmatpush1.msra.mxu0 0.0
        %9738 = vmatprep.mubr.f32.mxu0 0.0
        %9739 = vmatmul.mubr.f32.gmra.mrb[0].mxu0 %v9226
        %v9740 = vpop.f32.mrb[0].mxu0
        %v9741 = vadd.f32 0.0, %v9740
        %v9742 = vpop.f32.mrb[0].mxu0
        %9743 = vdwg.mxu0
        %9744 = vrot.lane.b32.xlu0 %v8021, 127
        %v9745 = vpop.permute.xlu0 %9744
        %v9746 = vsel %vm193, %v9745, 0
        %9748 = vmatprep.subr.mxu0 0.0
        %9749 = vmatpush1.msra.mxu0 %v9746
        %9750 = vmatprep.subr.mxu0 0.0
        %9751 = vmatpush1.msra.mxu0 0.0
        %9752 = vmatprep.subr.mxu0 0.0
        %9753 = vmatpush1.msra.mxu0 0.0
        %9754 = vmatprep.subr.mxu0 0.0
        %9755 = vmatpush1.msra.mxu0 0.0
        %9756 = vmatprep.subr.mxu0 0.0
        %9757 = vmatpush1.msra.mxu0 0.0
        %9758 = vmatprep.subr.mxu0 0.0
        %9759 = vmatpush1.msra.mxu0 0.0
        %9760 = vmatprep.subr.mxu0 0.0
        %9761 = vmatpush1.msra.mxu0 0.0
        %9762 = vmatprep.subr.mxu0 0.0
        %9763 = vmatpush1.msra.mxu0 0.0
        %9764 = vmatprep.subr.mxu0 0.0
        %9765 = vmatpush1.msra.mxu0 0.0
        %9766 = vmatprep.subr.mxu0 0.0
        %9767 = vmatpush1.msra.mxu0 0.0
        %9768 = vmatprep.subr.mxu0 0.0
        %9769 = vmatpush1.msra.mxu0 0.0
        %9770 = vmatprep.subr.mxu0 0.0
        %9771 = vmatpush1.msra.mxu0 0.0
        %9772 = vmatprep.subr.mxu0 0.0
        %9773 = vmatpush1.msra.mxu0 0.0
        %9774 = vmatprep.subr.mxu0 0.0
        %9775 = vmatpush1.msra.mxu0 0.0
        %9776 = vmatprep.subr.mxu0 0.0
        %9777 = vmatpush1.msra.mxu0 0.0
        %9778 = vmatprep.subr.mxu0 0.0
        %9779 = vmatpush1.msra.mxu0 0.0
        %9780 = vmatprep.subr.mxu0 0.0
        %9781 = vmatpush1.msra.mxu0 0.0
        %9782 = vmatprep.subr.mxu0 0.0
        %9783 = vmatpush1.msra.mxu0 0.0
        %9784 = vmatprep.subr.mxu0 0.0
        %9785 = vmatpush1.msra.mxu0 0.0
        %9786 = vmatprep.subr.mxu0 0.0
        %9787 = vmatpush1.msra.mxu0 0.0
        %9788 = vmatprep.subr.mxu0 0.0
        %9789 = vmatpush1.msra.mxu0 0.0
        %9790 = vmatprep.subr.mxu0 0.0
        %9791 = vmatpush1.msra.mxu0 0.0
        %9792 = vmatprep.subr.mxu0 0.0
        %9793 = vmatpush1.msra.mxu0 0.0
        %9794 = vmatprep.subr.mxu0 0.0
        %9795 = vmatpush1.msra.mxu0 0.0
        %9796 = vmatprep.subr.mxu0 0.0
        %9797 = vmatpush1.msra.mxu0 0.0
        %9798 = vmatprep.subr.mxu0 0.0
        %9799 = vmatpush1.msra.mxu0 0.0
        %9800 = vmatprep.subr.mxu0 0.0
        %9801 = vmatpush1.msra.mxu0 0.0
        %9802 = vmatprep.subr.mxu0 0.0
        %9803 = vmatpush1.msra.mxu0 0.0
        %9804 = vmatprep.subr.mxu0 0.0
        %9805 = vmatpush1.msra.mxu0 0.0
        %9806 = vmatprep.subr.mxu0 0.0
        %9807 = vmatpush1.msra.mxu0 0.0
        %9808 = vmatprep.subr.mxu0 0.0
        %9809 = vmatpush1.msra.mxu0 0.0
        %9810 = vmatprep.subr.mxu0 0.0
        %9811 = vmatpush1.msra.mxu0 0.0
        %9812 = vmatprep.mubr.f32.mxu0 0.0
        %9813 = vmatmul.mubr.f32.gmra.mrb[0].mxu0 %v9226
        %v9814 = vpop.f32.mrb[0].mxu0
        %v9815 = vadd.f32 0.0, %v9814
        %v9816 = vpop.f32.mrb[0].mxu0
        %9817 = vdwg.mxu0
        %v9818 = vadd.f32 %v9214, %v9297
        %v9819 = vadd.f32 %v9215, %v9371
        %v9820 = vadd.f32 %v9216, %v9445
        %v9821 = vadd.f32 %v9217, %v9519
        %v9822 = vadd.f32 %v9218, %v9593
        %v9823 = vadd.f32 %v9219, %v9667
        %v9824 = vadd.f32 %v9220, %v9741
        %v9825 = vadd.f32 %v9221, %v9815
        %v9826 = vld [vmem:[%s1] sm:$0xff]
        %9828 = vset.pattern.permute.xlu0 0
        %9829 = vperm.xlu0 %9828, %v9826
        %v9830 = vpop.permute.xlu0 %9829
        %v9832 = vadd.f32 %v9818, %v9830
        %v9833 = vadd.f32 %v9819, %v9830
        %v9834 = vadd.f32 %v9820, %v9830
        %v9835 = vadd.f32 %v9821, %v9830
        %v9836 = vadd.f32 %v9822, %v9830
        %v9837 = vadd.f32 %v9823, %v9830
        %v9838 = vadd.f32 %v9824, %v9830
        %v9839 = vadd.f32 %v9825, %v9830
        %vm9840 = vcmp.gt.f32.partialorder %v9832, 0.0
        %vm9841 = vcmp.gt.f32.partialorder %v9833, 0.0
        %vm9842 = vcmp.gt.f32.partialorder %v9834, 0.0
        %vm9843 = vcmp.gt.f32.partialorder %v9835, 0.0
        %vm9844 = vcmp.gt.f32.partialorder %v9836, 0.0
        %vm9845 = vcmp.gt.f32.partialorder %v9837, 0.0
        %vm9846 = vcmp.gt.f32.partialorder %v9838, 0.0
        %vm9847 = vcmp.gt.f32.partialorder %v9839, 0.0
        %v9848 = vmul.f32 %v9832, 0.2
        %v9849 = vmul.f32 %v9833, 0.2
        %v9850 = vmul.f32 %v9834, 0.2
        %v9851 = vmul.f32 %v9835, 0.2
        %v9852 = vmul.f32 %v9836, 0.2
        %v9853 = vmul.f32 %v9837, 0.2
        %v9854 = vmul.f32 %v9838, 0.2
        %v9855 = vmul.f32 %v9839, 0.2
        %v9856 = vsel %vm9840, %v9832, %v9848
        %v9857 = vsel %vm9841, %v9833, %v9849
        %v9858 = vsel %vm9842, %v9834, %v9850
        %v9859 = vsel %vm9843, %v9835, %v9851
        %v9860 = vsel %vm9844, %v9836, %v9852
        %v9861 = vsel %vm9845, %v9837, %v9853
        %v9862 = vsel %vm9846, %v9838, %v9854
        %v9863 = vsel %vm9847, %v9839, %v9855
        %v9865 = vcombine.high %v9856, %v9856
        %v9867 = vunpack.c.l.s4 1966171168
        %v9868 = vunpack.c.0.s8 %v9867
        %v9869 = vlaneseq
        %v9870 = vshrl.u32 %v9869, 7
        %v9871 = vsub.s32 %v9868, %v9870
        %v9872 = vrot.slane %v9856, %v9871
        %v9874 = vunpack.c.l.s4 1966171168
        %v9875 = vunpack.c.0.s8 %v9874
        %v9876 = vlaneseq
        %v9877 = vshrl.u32 %v9876, 7
        %v9878 = vsub.s32 %v9875, %v9877
        %v9879 = vrot.slane %v9865, %v9878
        %v9880 = vcombine.high %v9872, %v9872
        %v9881 = vcombine.high %v9879, %v9879
        %v9883 = vunpack.c.l.s4 1966171168
        %v9884 = vunpack.c.0.s8 %v9883
        %v9885 = vlaneseq
        %v9886 = vshrl.u32 %v9885, 7
        %v9887 = vsub.s32 %v9884, %v9886
        %v9888 = vrot.slane %v9872, %v9887
        %v9890 = vunpack.c.l.s4 1966171168
        %v9891 = vunpack.c.0.s8 %v9890
        %v9892 = vlaneseq
        %v9893 = vshrl.u32 %v9892, 7
        %v9894 = vsub.s32 %v9891, %v9893
        %v9895 = vrot.slane %v9879, %v9894
        %v9897 = vunpack.c.l.s4 1966171168
        %v9898 = vunpack.c.0.s8 %v9897
        %v9899 = vlaneseq
        %v9900 = vshrl.u32 %v9899, 7
        %v9901 = vsub.s32 %v9898, %v9900
        %v9902 = vrot.slane %v9880, %v9901
        %v9904 = vunpack.c.l.s4 1966171168
        %v9905 = vunpack.c.0.s8 %v9904
        %v9906 = vlaneseq
        %v9907 = vshrl.u32 %v9906, 7
        %v9908 = vsub.s32 %v9905, %v9907
        %v9909 = vrot.slane %v9881, %v9908
        %v9910 = vcombine.high %v9888, %v9888
        %v9911 = vcombine.high %v9895, %v9895
        %v9912 = vcombine.high %v9902, %v9902
        %v9913 = vcombine.high %v9909, %v9909
        %vm9922 = vcmask 57344
        %9923 = vst.msk [vmem:[%s163] sm:$0x1] %vm9922, %v9888
        %9924 = vst.msk [vmem:[%s163 + $0x8] sm:$0x1] %vm9922, %v9902
        %9925 = vst.msk [vmem:[%s163 + $0x10] sm:$0x1] %vm9922, %v9910
        %9926 = vst.msk [vmem:[%s163 + $0x18] sm:$0x1] %vm9922, %v9912
        %9927 = vst.msk [vmem:[%s163 + $0x20] sm:$0x1] %vm9922, %v9895
        %9928 = vst.msk [vmem:[%s163 + $0x28] sm:$0x1] %vm9922, %v9909
        %9929 = vst.msk [vmem:[%s163 + $0x30] sm:$0x1] %vm9922, %v9911
        %9930 = vst.msk [vmem:[%s163 + $0x38] sm:$0x1] %vm9922, %v9913
        %v9932 = vcombine.high %v9857, %v9857
        %v9934 = vunpack.c.l.s4 1966171168
        %v9935 = vunpack.c.0.s8 %v9934
        %v9936 = vlaneseq
        %v9937 = vshrl.u32 %v9936, 7
        %v9938 = vsub.s32 %v9935, %v9937
        %v9939 = vrot.slane %v9857, %v9938
        %v9941 = vunpack.c.l.s4 1966171168
        %v9942 = vunpack.c.0.s8 %v9941
        %v9943 = vlaneseq
        %v9944 = vshrl.u32 %v9943, 7
        %v9945 = vsub.s32 %v9942, %v9944
        %v9946 = vrot.slane %v9932, %v9945
        %v9947 = vcombine.high %v9939, %v9939
        %v9948 = vcombine.high %v9946, %v9946
        %v9950 = vunpack.c.l.s4 1966171168
        %v9951 = vunpack.c.0.s8 %v9950
        %v9952 = vlaneseq
        %v9953 = vshrl.u32 %v9952, 7
        %v9954 = vsub.s32 %v9951, %v9953
        %v9955 = vrot.slane %v9939, %v9954
        %v9957 = vunpack.c.l.s4 1966171168
        %v9958 = vunpack.c.0.s8 %v9957
        %v9959 = vlaneseq
        %v9960 = vshrl.u32 %v9959, 7
        %v9961 = vsub.s32 %v9958, %v9960
        %v9962 = vrot.slane %v9946, %v9961
        %v9964 = vunpack.c.l.s4 1966171168
        %v9965 = vunpack.c.0.s8 %v9964
        %v9966 = vlaneseq
        %v9967 = vshrl.u32 %v9966, 7
        %v9968 = vsub.s32 %v9965, %v9967
        %v9969 = vrot.slane %v9947, %v9968
        %v9971 = vunpack.c.l.s4 1966171168
        %v9972 = vunpack.c.0.s8 %v9971
        %v9973 = vlaneseq
        %v9974 = vshrl.u32 %v9973, 7
        %v9975 = vsub.s32 %v9972, %v9974
        %v9976 = vrot.slane %v9948, %v9975
        %v9977 = vcombine.high %v9955, %v9955
        %v9978 = vcombine.high %v9962, %v9962
        %v9979 = vcombine.high %v9969, %v9969
        %v9980 = vcombine.high %v9976, %v9976
        %9989 = vst.msk [vmem:[%s163 + $0x1] sm:$0x1] %vm9922, %v9955
        %9990 = vst.msk [vmem:[%s163 + $0x9] sm:$0x1] %vm9922, %v9969
        %9991 = vst.msk [vmem:[%s163 + $0x11] sm:$0x1] %vm9922, %v9977
        %9992 = vst.msk [vmem:[%s163 + $0x19] sm:$0x1] %vm9922, %v9979
        %9993 = vst.msk [vmem:[%s163 + $0x21] sm:$0x1] %vm9922, %v9962
        %9994 = vst.msk [vmem:[%s163 + $0x29] sm:$0x1] %vm9922, %v9976
        %9995 = vst.msk [vmem:[%s163 + $0x31] sm:$0x1] %vm9922, %v9978
        %9996 = vst.msk [vmem:[%s163 + $0x39] sm:$0x1] %vm9922, %v9980
        %v9998 = vcombine.high %v9858, %v9858
        %v10000 = vunpack.c.l.s4 1966171168
        %v10001 = vunpack.c.0.s8 %v10000
        %v10002 = vlaneseq
        %v10003 = vshrl.u32 %v10002, 7
        %v10004 = vsub.s32 %v10001, %v10003
        %v10005 = vrot.slane %v9858, %v10004
        %v10007 = vunpack.c.l.s4 1966171168
        %v10008 = vunpack.c.0.s8 %v10007
        %v10009 = vlaneseq
        %v10010 = vshrl.u32 %v10009, 7
        %v10011 = vsub.s32 %v10008, %v10010
        %v10012 = vrot.slane %v9998, %v10011
        %v10013 = vcombine.high %v10005, %v10005
        %v10014 = vcombine.high %v10012, %v10012
        %v10016 = vunpack.c.l.s4 1966171168
        %v10017 = vunpack.c.0.s8 %v10016
        %v10018 = vlaneseq
        %v10019 = vshrl.u32 %v10018, 7
        %v10020 = vsub.s32 %v10017, %v10019
        %v10021 = vrot.slane %v10005, %v10020
        %v10023 = vunpack.c.l.s4 1966171168
        %v10024 = vunpack.c.0.s8 %v10023
        %v10025 = vlaneseq
        %v10026 = vshrl.u32 %v10025, 7
        %v10027 = vsub.s32 %v10024, %v10026
        %v10028 = vrot.slane %v10012, %v10027
        %v10030 = vunpack.c.l.s4 1966171168
        %v10031 = vunpack.c.0.s8 %v10030
        %v10032 = vlaneseq
        %v10033 = vshrl.u32 %v10032, 7
        %v10034 = vsub.s32 %v10031, %v10033
        %v10035 = vrot.slane %v10013, %v10034
        %v10037 = vunpack.c.l.s4 1966171168
        %v10038 = vunpack.c.0.s8 %v10037
        %v10039 = vlaneseq
        %v10040 = vshrl.u32 %v10039, 7
        %v10041 = vsub.s32 %v10038, %v10040
        %v10042 = vrot.slane %v10014, %v10041
        %v10043 = vcombine.high %v10021, %v10021
        %v10044 = vcombine.high %v10028, %v10028
        %v10045 = vcombine.high %v10035, %v10035
        %v10046 = vcombine.high %v10042, %v10042
        %10055 = vst.msk [vmem:[%s163 + $0x2] sm:$0x1] %vm9922, %v10021
        %10056 = vst.msk [vmem:[%s163 + $0xa] sm:$0x1] %vm9922, %v10035
        %10057 = vst.msk [vmem:[%s163 + $0x12] sm:$0x1] %vm9922, %v10043
        %10058 = vst.msk [vmem:[%s163 + $0x1a] sm:$0x1] %vm9922, %v10045
        %10059 = vst.msk [vmem:[%s163 + $0x22] sm:$0x1] %vm9922, %v10028
        %10060 = vst.msk [vmem:[%s163 + $0x2a] sm:$0x1] %vm9922, %v10042
        %10061 = vst.msk [vmem:[%s163 + $0x32] sm:$0x1] %vm9922, %v10044
        %10062 = vst.msk [vmem:[%s163 + $0x3a] sm:$0x1] %vm9922, %v10046
        %v10064 = vcombine.high %v9859, %v9859
        %v10066 = vunpack.c.l.s4 1966171168
        %v10067 = vunpack.c.0.s8 %v10066
        %v10068 = vlaneseq
        %v10069 = vshrl.u32 %v10068, 7
        %v10070 = vsub.s32 %v10067, %v10069
        %v10071 = vrot.slane %v9859, %v10070
        %v10073 = vunpack.c.l.s4 1966171168
        %v10074 = vunpack.c.0.s8 %v10073
        %v10075 = vlaneseq
        %v10076 = vshrl.u32 %v10075, 7
        %v10077 = vsub.s32 %v10074, %v10076
        %v10078 = vrot.slane %v10064, %v10077
        %v10079 = vcombine.high %v10071, %v10071
        %v10080 = vcombine.high %v10078, %v10078
        %v10082 = vunpack.c.l.s4 1966171168
        %v10083 = vunpack.c.0.s8 %v10082
        %v10084 = vlaneseq
        %v10085 = vshrl.u32 %v10084, 7
        %v10086 = vsub.s32 %v10083, %v10085
        %v10087 = vrot.slane %v10071, %v10086
        %v10089 = vunpack.c.l.s4 1966171168
        %v10090 = vunpack.c.0.s8 %v10089
        %v10091 = vlaneseq
        %v10092 = vshrl.u32 %v10091, 7
        %v10093 = vsub.s32 %v10090, %v10092
        %v10094 = vrot.slane %v10078, %v10093
        %v10096 = vunpack.c.l.s4 1966171168
        %v10097 = vunpack.c.0.s8 %v10096
        %v10098 = vlaneseq
        %v10099 = vshrl.u32 %v10098, 7
        %v10100 = vsub.s32 %v10097, %v10099
        %v10101 = vrot.slane %v10079, %v10100
        %v10103 = vunpack.c.l.s4 1966171168
        %v10104 = vunpack.c.0.s8 %v10103
        %v10105 = vlaneseq
        %v10106 = vshrl.u32 %v10105, 7
        %v10107 = vsub.s32 %v10104, %v10106
        %v10108 = vrot.slane %v10080, %v10107
        %v10109 = vcombine.high %v10087, %v10087
        %v10110 = vcombine.high %v10094, %v10094
        %v10111 = vcombine.high %v10101, %v10101
        %v10112 = vcombine.high %v10108, %v10108
        %10121 = vst.msk [vmem:[%s163 + $0x3] sm:$0x1] %vm9922, %v10087
        %10122 = vst.msk [vmem:[%s163 + $0xb] sm:$0x1] %vm9922, %v10101
        %10123 = vst.msk [vmem:[%s163 + $0x13] sm:$0x1] %vm9922, %v10109
        %10124 = vst.msk [vmem:[%s163 + $0x1b] sm:$0x1] %vm9922, %v10111
        %10125 = vst.msk [vmem:[%s163 + $0x23] sm:$0x1] %vm9922, %v10094
        %10126 = vst.msk [vmem:[%s163 + $0x2b] sm:$0x1] %vm9922, %v10108
        %10127 = vst.msk [vmem:[%s163 + $0x33] sm:$0x1] %vm9922, %v10110
        %10128 = vst.msk [vmem:[%s163 + $0x3b] sm:$0x1] %vm9922, %v10112
        %v10130 = vcombine.high %v9860, %v9860
        %v10132 = vunpack.c.l.s4 1966171168
        %v10133 = vunpack.c.0.s8 %v10132
        %v10134 = vlaneseq
        %v10135 = vshrl.u32 %v10134, 7
        %v10136 = vsub.s32 %v10133, %v10135
        %v10137 = vrot.slane %v9860, %v10136
        %v10139 = vunpack.c.l.s4 1966171168
        %v10140 = vunpack.c.0.s8 %v10139
        %v10141 = vlaneseq
        %v10142 = vshrl.u32 %v10141, 7
        %v10143 = vsub.s32 %v10140, %v10142
        %v10144 = vrot.slane %v10130, %v10143
        %v10145 = vcombine.high %v10137, %v10137
        %v10146 = vcombine.high %v10144, %v10144
        %v10148 = vunpack.c.l.s4 1966171168
        %v10149 = vunpack.c.0.s8 %v10148
        %v10150 = vlaneseq
        %v10151 = vshrl.u32 %v10150, 7
        %v10152 = vsub.s32 %v10149, %v10151
        %v10153 = vrot.slane %v10137, %v10152
        %v10155 = vunpack.c.l.s4 1966171168
        %v10156 = vunpack.c.0.s8 %v10155
        %v10157 = vlaneseq
        %v10158 = vshrl.u32 %v10157, 7
        %v10159 = vsub.s32 %v10156, %v10158
        %v10160 = vrot.slane %v10144, %v10159
        %v10162 = vunpack.c.l.s4 1966171168
        %v10163 = vunpack.c.0.s8 %v10162
        %v10164 = vlaneseq
        %v10165 = vshrl.u32 %v10164, 7
        %v10166 = vsub.s32 %v10163, %v10165
        %v10167 = vrot.slane %v10145, %v10166
        %v10169 = vunpack.c.l.s4 1966171168
        %v10170 = vunpack.c.0.s8 %v10169
        %v10171 = vlaneseq
        %v10172 = vshrl.u32 %v10171, 7
        %v10173 = vsub.s32 %v10170, %v10172
        %v10174 = vrot.slane %v10146, %v10173
        %v10175 = vcombine.high %v10153, %v10153
        %v10176 = vcombine.high %v10160, %v10160
        %v10177 = vcombine.high %v10167, %v10167
        %v10178 = vcombine.high %v10174, %v10174
        %10187 = vst.msk [vmem:[%s163 + $0x4] sm:$0x1] %vm9922, %v10153
        %10188 = vst.msk [vmem:[%s163 + $0xc] sm:$0x1] %vm9922, %v10167
        %10189 = vst.msk [vmem:[%s163 + $0x14] sm:$0x1] %vm9922, %v10175
        %10190 = vst.msk [vmem:[%s163 + $0x1c] sm:$0x1] %vm9922, %v10177
        %10191 = vst.msk [vmem:[%s163 + $0x24] sm:$0x1] %vm9922, %v10160
        %10192 = vst.msk [vmem:[%s163 + $0x2c] sm:$0x1] %vm9922, %v10174
        %10193 = vst.msk [vmem:[%s163 + $0x34] sm:$0x1] %vm9922, %v10176
        %10194 = vst.msk [vmem:[%s163 + $0x3c] sm:$0x1] %vm9922, %v10178
        %v10196 = vcombine.high %v9861, %v9861
        %v10198 = vunpack.c.l.s4 1966171168
        %v10199 = vunpack.c.0.s8 %v10198
        %v10200 = vlaneseq
        %v10201 = vshrl.u32 %v10200, 7
        %v10202 = vsub.s32 %v10199, %v10201
        %v10203 = vrot.slane %v9861, %v10202
        %v10205 = vunpack.c.l.s4 1966171168
        %v10206 = vunpack.c.0.s8 %v10205
        %v10207 = vlaneseq
        %v10208 = vshrl.u32 %v10207, 7
        %v10209 = vsub.s32 %v10206, %v10208
        %v10210 = vrot.slane %v10196, %v10209
        %v10211 = vcombine.high %v10203, %v10203
        %v10212 = vcombine.high %v10210, %v10210
        %v10214 = vunpack.c.l.s4 1966171168
        %v10215 = vunpack.c.0.s8 %v10214
        %v10216 = vlaneseq
        %v10217 = vshrl.u32 %v10216, 7
        %v10218 = vsub.s32 %v10215, %v10217
        %v10219 = vrot.slane %v10203, %v10218
        %v10221 = vunpack.c.l.s4 1966171168
        %v10222 = vunpack.c.0.s8 %v10221
        %v10223 = vlaneseq
        %v10224 = vshrl.u32 %v10223, 7
        %v10225 = vsub.s32 %v10222, %v10224
        %v10226 = vrot.slane %v10210, %v10225
        %v10228 = vunpack.c.l.s4 1966171168
        %v10229 = vunpack.c.0.s8 %v10228
        %v10230 = vlaneseq
        %v10231 = vshrl.u32 %v10230, 7
        %v10232 = vsub.s32 %v10229, %v10231
        %v10233 = vrot.slane %v10211, %v10232
        %v10235 = vunpack.c.l.s4 1966171168
        %v10236 = vunpack.c.0.s8 %v10235
        %v10237 = vlaneseq
        %v10238 = vshrl.u32 %v10237, 7
        %v10239 = vsub.s32 %v10236, %v10238
        %v10240 = vrot.slane %v10212, %v10239
        %v10241 = vcombine.high %v10219, %v10219
        %v10242 = vcombine.high %v10226, %v10226
        %v10243 = vcombine.high %v10233, %v10233
        %v10244 = vcombine.high %v10240, %v10240
        %10253 = vst.msk [vmem:[%s163 + $0x5] sm:$0x1] %vm9922, %v10219
        %10254 = vst.msk [vmem:[%s163 + $0xd] sm:$0x1] %vm9922, %v10233
        %10255 = vst.msk [vmem:[%s163 + $0x15] sm:$0x1] %vm9922, %v10241
        %10256 = vst.msk [vmem:[%s163 + $0x1d] sm:$0x1] %vm9922, %v10243
        %10257 = vst.msk [vmem:[%s163 + $0x25] sm:$0x1] %vm9922, %v10226
        %10258 = vst.msk [vmem:[%s163 + $0x2d] sm:$0x1] %vm9922, %v10240
        %10259 = vst.msk [vmem:[%s163 + $0x35] sm:$0x1] %vm9922, %v10242
        %10260 = vst.msk [vmem:[%s163 + $0x3d] sm:$0x1] %vm9922, %v10244
        %v10262 = vcombine.high %v9862, %v9862
        %v10264 = vunpack.c.l.s4 1966171168
        %v10265 = vunpack.c.0.s8 %v10264
        %v10266 = vlaneseq
        %v10267 = vshrl.u32 %v10266, 7
        %v10268 = vsub.s32 %v10265, %v10267
        %v10269 = vrot.slane %v9862, %v10268
        %v10271 = vunpack.c.l.s4 1966171168
        %v10272 = vunpack.c.0.s8 %v10271
        %v10273 = vlaneseq
        %v10274 = vshrl.u32 %v10273, 7
        %v10275 = vsub.s32 %v10272, %v10274
        %v10276 = vrot.slane %v10262, %v10275
        %v10277 = vcombine.high %v10269, %v10269
        %v10278 = vcombine.high %v10276, %v10276
        %v10280 = vunpack.c.l.s4 1966171168
        %v10281 = vunpack.c.0.s8 %v10280
        %v10282 = vlaneseq
        %v10283 = vshrl.u32 %v10282, 7
        %v10284 = vsub.s32 %v10281, %v10283
        %v10285 = vrot.slane %v10269, %v10284
        %v10287 = vunpack.c.l.s4 1966171168
        %v10288 = vunpack.c.0.s8 %v10287
        %v10289 = vlaneseq
        %v10290 = vshrl.u32 %v10289, 7
        %v10291 = vsub.s32 %v10288, %v10290
        %v10292 = vrot.slane %v10276, %v10291
        %v10294 = vunpack.c.l.s4 1966171168
        %v10295 = vunpack.c.0.s8 %v10294
        %v10296 = vlaneseq
        %v10297 = vshrl.u32 %v10296, 7
        %v10298 = vsub.s32 %v10295, %v10297
        %v10299 = vrot.slane %v10277, %v10298
        %v10301 = vunpack.c.l.s4 1966171168
        %v10302 = vunpack.c.0.s8 %v10301
        %v10303 = vlaneseq
        %v10304 = vshrl.u32 %v10303, 7
        %v10305 = vsub.s32 %v10302, %v10304
        %v10306 = vrot.slane %v10278, %v10305
        %v10307 = vcombine.high %v10285, %v10285
        %v10308 = vcombine.high %v10292, %v10292
        %v10309 = vcombine.high %v10299, %v10299
        %v10310 = vcombine.high %v10306, %v10306
        %10319 = vst.msk [vmem:[%s163 + $0x6] sm:$0x1] %vm9922, %v10285
        %10320 = vst.msk [vmem:[%s163 + $0xe] sm:$0x1] %vm9922, %v10299
        %10321 = vst.msk [vmem:[%s163 + $0x16] sm:$0x1] %vm9922, %v10307
        %10322 = vst.msk [vmem:[%s163 + $0x1e] sm:$0x1] %vm9922, %v10309
        %10323 = vst.msk [vmem:[%s163 + $0x26] sm:$0x1] %vm9922, %v10292
        %10324 = vst.msk [vmem:[%s163 + $0x2e] sm:$0x1] %vm9922, %v10306
        %10325 = vst.msk [vmem:[%s163 + $0x36] sm:$0x1] %vm9922, %v10308
        %10326 = vst.msk [vmem:[%s163 + $0x3e] sm:$0x1] %vm9922, %v10310
        %v10328 = vcombine.high %v9863, %v9863
        %v10330 = vunpack.c.l.s4 1966171168
        %v10331 = vunpack.c.0.s8 %v10330
        %v10332 = vlaneseq
        %v10333 = vshrl.u32 %v10332, 7
        %v10334 = vsub.s32 %v10331, %v10333
        %v10335 = vrot.slane %v9863, %v10334
        %v10337 = vunpack.c.l.s4 1966171168
        %v10338 = vunpack.c.0.s8 %v10337
        %v10339 = vlaneseq
        %v10340 = vshrl.u32 %v10339, 7
        %v10341 = vsub.s32 %v10338, %v10340
        %v10342 = vrot.slane %v10328, %v10341
        %v10343 = vcombine.high %v10335, %v10335
        %v10344 = vcombine.high %v10342, %v10342
        %v10346 = vunpack.c.l.s4 1966171168
        %v10347 = vunpack.c.0.s8 %v10346
        %v10348 = vlaneseq
        %v10349 = vshrl.u32 %v10348, 7
        %v10350 = vsub.s32 %v10347, %v10349
        %v10351 = vrot.slane %v10335, %v10350
        %v10353 = vunpack.c.l.s4 1966171168
        %v10354 = vunpack.c.0.s8 %v10353
        %v10355 = vlaneseq
        %v10356 = vshrl.u32 %v10355, 7
        %v10357 = vsub.s32 %v10354, %v10356
        %v10358 = vrot.slane %v10342, %v10357
        %v10360 = vunpack.c.l.s4 1966171168
        %v10361 = vunpack.c.0.s8 %v10360
        %v10362 = vlaneseq
        %v10363 = vshrl.u32 %v10362, 7
        %v10364 = vsub.s32 %v10361, %v10363
        %v10365 = vrot.slane %v10343, %v10364
        %v10367 = vunpack.c.l.s4 1966171168
        %v10368 = vunpack.c.0.s8 %v10367
        %v10369 = vlaneseq
        %v10370 = vshrl.u32 %v10369, 7
        %v10371 = vsub.s32 %v10368, %v10370
        %v10372 = vrot.slane %v10344, %v10371
        %v10373 = vcombine.high %v10351, %v10351
        %v10374 = vcombine.high %v10358, %v10358
        %v10375 = vcombine.high %v10365, %v10365
        %v10376 = vcombine.high %v10372, %v10372
        %10385 = vst.msk [vmem:[%s163 + $0x7] sm:$0x1] %vm9922, %v10351
        %10386 = vst.msk [vmem:[%s163 + $0xf] sm:$0x1] %vm9922, %v10365
        %10387 = vst.msk [vmem:[%s163 + $0x17] sm:$0x1] %vm9922, %v10373
        %10388 = vst.msk [vmem:[%s163 + $0x1f] sm:$0x1] %vm9922, %v10375
        %10389 = vst.msk [vmem:[%s163 + $0x27] sm:$0x1] %vm9922, %v10358
        %10390 = vst.msk [vmem:[%s163 + $0x2f] sm:$0x1] %vm9922, %v10372
        %10391 = vst.msk [vmem:[%s163 + $0x37] sm:$0x1] %vm9922, %v10374
        %10392 = vst.msk [vmem:[%s163 + $0x3f] sm:$0x1] %vm9922, %v10376
        %s10393 = sand.u32 %s93, 1
        %s10394 = scalar_lea.sflag [#allocation3], %s10393
        %s10395 = sand.u32 %s93, 1
        %s10396 = smul.addr %s10395, 64
        %s10397 = scalar_lea.vmem [#allocation2], %s10396
        // Predicated region
        $region33: #{_forward.1} parent=31 // pred_check
          %p10398 = pneg %p103
        $region34: #{_forward.1} parent=31 // pred_check_branch
          %10400 = sbr.rel (%p10398) target = $region36
        $region35: #{_forward.1} parent=31 // pred_region
          %s10402 = ssub.s32 1024, 1024
          %10403 = vsyncadd %s10394, %s10402
          %s10404 = smul.addr %s17, 8
          %s10405 = smul.addr %s10404, 128
          %s10406 = scalar_lea.hbm %s3, %s10405
          %s10407 = sshll.u32 %s10397, 4
          %s10408 = int_to_ptr.vmem [resolvable:$true] %s10407
          %10413 = dma.vmem_to_hbm [thread:$0]  %s10408, 1024, %s10406, %s10394, 128, 128, 8
        $region36: #{_forward.1} parent=31 // pred_fallthru
          _
      $region32: #{_forward.1} parent=5 // pred_fallthru
        _
      %p10414 = scmp.le.s32.totalorder 2, %s12
      // Predicated region
      $region37: #{_forward.1} parent=5 // pred_check
        %p10415 = pneg %p10414
      $region38: #{_forward.1} parent=5 // pred_check_branch
        %10417 = sbr.rel (%p10415) target = $region40
      $region39: #{_forward.1} parent=5 // pred_region
        %s10418 = ssub.s32 %s12, 2
        // Predicated region
        $region41: #{_forward.1} parent=39 // pred_check
          %p10419 = pneg %p109
        $region42: #{_forward.1} parent=39 // pred_check_branch
          %10421 = sbr.rel (%p10419) target = $region44
        $region43: #{_forward.1} parent=39 // pred_region
          %s10422 = sand.u32 %s94, 1
          %s10423 = scalar_lea.sflag [#allocation3], %s10422
          %s10424 = sand.u32 %s94, 1
          %s10425 = smul.addr %s10424, 64
          %s10426 = scalar_lea.vmem [#allocation2], %s10425
          %10427 = dma.done %s10423, 1024
        $region44: #{_forward.1} parent=39 // pred_fallthru
          _
      $region40: #{_forward.1} parent=5 // pred_fallthru
        _
    $region6: #{_forward.1} parent=1 // loop_footer
      %s16 = sadd.s32 1, %s12
    $region7: #{_forward.1} parent=1 // loop_footer_branch
      %11 = sbr.rel target = $region3
    $region8: #{_forward.1} parent=1 // loop_exit
      _
    %10428 = vsyncpa [#allocation3], 1
    %s10429 = scalar_lea.sflag [#allocation3], 1
    %10430 = vsyncpa %s10429, 1

</llo_original>
